<compile_context>
chip_gen: v7x
topology: tpu7x:2x2x1
jax: 0.10.0
libtpu: 0.0.40
codegen_flags: <defaults>
</compile_context>

<pallas_src>
import jax
import jax.numpy as jnp
from jax.experimental import pallas as pl
from jax.experimental.pallas import tpu as pltpu

BN_EPS = 1e-5    # nn.BatchNorm1d default eps
L2_EPS = 1e-12   # F.normalize default eps


def _head_kernel(feat_ref, w1t_ref, gamma_ref, beta_ref, mean_ref, var_ref,
                 w2t_ref, b2_ref, out_ref):
    # Linear(encoder_dim -> n_hidden, bias=False)            (MXU)
    h = jnp.dot(feat_ref[...], w1t_ref[...],
                preferred_element_type=jnp.float32,
                precision=jax.lax.Precision.HIGHEST)

    # Unsqueeze + BatchNorm1d + Flatten == per-feature affine BN with running stats
    # (eval mode). Dropout layers are identity at inference.
    inv_std = jax.lax.rsqrt(var_ref[...] + BN_EPS)            # (1, n_hidden), EUP
    h = (h - mean_ref[...]) * (inv_std * gamma_ref[...]) + beta_ref[...]

    # ReLU                                                    (VPU)
    h = jnp.maximum(h, 0.0)

    # Linear(n_hidden -> proj_dim, bias=True)                 (MXU)
    z = jnp.dot(h, w2t_ref[...],
                preferred_element_type=jnp.float32,
                precision=jax.lax.Precision.HIGHEST) + b2_ref[...]

    # F.normalize(z, dim=-1): z / max(||z||_2, eps)
    norm = jnp.sqrt(jnp.sum(z * z, axis=-1, keepdims=True))   # XLU reduce
    out_ref[...] = (z / jnp.maximum(norm, L2_EPS)).astype(out_ref.dtype)


def _pick_batch_tile(batch: int) -> int:
    """Batch tile: multiple of 8 sublanes when possible, else full batch
    (block == full dim also satisfies the (8,128) rule)."""
    if batch >= 256 and batch % 256 == 0:
        return 256
    if batch >= 8 and batch % 8 == 0:
        tb = min(batch, 128)
        while batch % tb != 0:
            tb //= 2
        return tb
    return batch


def supcon_forward(feat, w1, bn_gamma, bn_beta, bn_mean, bn_var, w2, b2):
    """Fused SupConResNet head + L2 normalization.

    feat: (B, encoder_dim) encoder features.
    w1:   (n_hidden, encoder_dim)  -- PyTorch Linear layout, no bias.
    w2:   (proj_dim, n_hidden), b2: (proj_dim,).
    BN params / running stats: (n_hidden,) each.
    """
    batch, d_enc = feat.shape
    n_hidden = w1.shape[0]
    proj_dim = w2.shape[0]

    # One-time layout plumbing in the wrapper (transposed weights -> plain (M,K)x(K,N) MXU
    # matmuls; BN/bias vectors as lane-dense (1, N) rows for in-kernel broadcast).
    feat = feat.astype(jnp.float32)
    w1t = jnp.asarray(w1, jnp.float32).T                       # (d_enc, n_hidden)
    w2t = jnp.asarray(w2, jnp.float32).T                       # (n_hidden, proj_dim)
    gamma = jnp.asarray(bn_gamma, jnp.float32).reshape(1, n_hidden)
    beta = jnp.asarray(bn_beta, jnp.float32).reshape(1, n_hidden)
    mean = jnp.asarray(bn_mean, jnp.float32).reshape(1, n_hidden)
    var = jnp.asarray(bn_var, jnp.float32).reshape(1, n_hidden)
    b2r = jnp.asarray(b2, jnp.float32).reshape(1, proj_dim)

    tb = _pick_batch_tile(batch)
    grid = (batch // tb,)

    return pl.pallas_call(
        _head_kernel,
        out_shape=jax.ShapeDtypeStruct((batch, proj_dim), jnp.float32),
        grid_spec=pltpu.PrefetchScalarGridSpec(
            num_scalar_prefetch=0,
            grid=grid,
            in_specs=[
                pl.BlockSpec((tb, d_enc), lambda i: (i, 0)),           # feature tile
                pl.BlockSpec((d_enc, n_hidden), lambda i: (0, 0)),     # W1^T (VMEM-resident)
                pl.BlockSpec((1, n_hidden), lambda i: (0, 0)),         # BN gamma
                pl.BlockSpec((1, n_hidden), lambda i: (0, 0)),         # BN beta
                pl.BlockSpec((1, n_hidden), lambda i: (0, 0)),         # BN running mean
                pl.BlockSpec((1, n_hidden), lambda i: (0, 0)),         # BN running var
                pl.BlockSpec((n_hidden, proj_dim), lambda i: (0, 0)),  # W2^T (VMEM-resident)
                pl.BlockSpec((1, proj_dim), lambda i: (0, 0)),         # b2
            ],
            out_specs=pl.BlockSpec((tb, proj_dim), lambda i: (i, 0)),
        ),
        compiler_params=pltpu.CompilerParams(
            dimension_semantics=("parallel",),   # batch tiles are independent (megacore-shardable)
        ),
    )(feat, w1t, gamma, beta, mean, var, w2t, b2r)


if __name__ == "__main__":
    key = jax.random.PRNGKey(0)
    B, encoder_dim, n_hidden, proj_dim = 2, 512, 512, 256
    ks = jax.random.split(key, 8)

    # Encoder output features (the r2plus1d_18 backbone itself is not translated).
    feat = jax.random.normal(ks[0], (B, encoder_dim), jnp.float32)
    # Head parameters (PyTorch layouts).
    w1 = jax.random.normal(ks[1], (n_hidden, encoder_dim), jnp.float32) / jnp.sqrt(encoder_dim)
    bn_gamma = 1.0 + 0.1 * jax.random.normal(ks[2], (n_hidden,), jnp.float32)
    bn_beta = 0.1 * jax.random.normal(ks[3], (n_hidden,), jnp.float32)
    bn_mean = 0.1 * jax.random.normal(ks[4], (n_hidden,), jnp.float32)
    bn_var = jnp.abs(1.0 + 0.1 * jax.random.normal(ks[5], (n_hidden,), jnp.float32))
    w2 = jax.random.normal(ks[6], (proj_dim, n_hidden), jnp.float32) / jnp.sqrt(n_hidden)
    b2 = 0.1 * jax.random.normal(ks[7], (proj_dim,), jnp.float32)

    out = supcon_forward(feat, w1, bn_gamma, bn_beta, bn_mean, bn_var, w2, b2)
    jax.block_until_ready(out)

    # Pure-JAX reference (eval-mode PyTorch semantics).
    h = jnp.dot(feat, w1.T, precision=jax.lax.Precision.HIGHEST)
    h = (h - bn_mean) / jnp.sqrt(bn_var + BN_EPS) * bn_gamma + bn_beta
    h = jnp.maximum(h, 0.0)
    z = jnp.dot(h, w2.T, precision=jax.lax.Precision.HIGHEST) + b2
    ref = z / jnp.maximum(jnp.sqrt(jnp.sum(z * z, axis=-1, keepdims=True)), L2_EPS)

    assert out.shape == (B, proj_dim), out.shape
    assert out.dtype == jnp.float32
    max_err = float(jnp.max(jnp.abs(out - ref)))
    assert jnp.allclose(out, ref, rtol=1e-3, atol=1e-3), max_err

    print("KERNEL_OK")
</pallas_src>

<mosaic_0001>
module attributes {stable_mosaic.version = 11 : i64} {
  func.func @_head_kernel(%arg0: i32, %arg1: memref<2x512xf32, #tpu.memory_space<vmem>>, %arg2: memref<512x512xf32, #tpu.memory_space<vmem>>, %arg3: memref<1x512xf32, #tpu.memory_space<vmem>>, %arg4: memref<1x512xf32, #tpu.memory_space<vmem>>, %arg5: memref<1x512xf32, #tpu.memory_space<vmem>>, %arg6: memref<1x512xf32, #tpu.memory_space<vmem>>, %arg7: memref<512x256xf32, #tpu.memory_space<vmem>>, %arg8: memref<1x256xf32, #tpu.memory_space<vmem>>, %arg9: memref<2x256xf32, #tpu.memory_space<vmem>>) attributes {dimension_semantics = [#tpu.dimension_semantics<parallel>], iteration_bounds = array<i64: 1>, scalar_prefetch = 0 : i64, scratch_operands = 0 : i64, tpu.core_type = #tpu.core_type<tc>, window_params = [{transform_indices = @transform_0, window_bounds = array<i64: 2, 512>}, {pipeline_mode = #tpu.pipeline_mode<synchronous>, transform_indices = @transform_1, window_bounds = array<i64: 512, 512>}, {pipeline_mode = #tpu.pipeline_mode<synchronous>, transform_indices = @transform_2, window_bounds = array<i64: 1, 512>}, {pipeline_mode = #tpu.pipeline_mode<synchronous>, transform_indices = @transform_3, window_bounds = array<i64: 1, 512>}, {pipeline_mode = #tpu.pipeline_mode<synchronous>, transform_indices = @transform_4, window_bounds = array<i64: 1, 512>}, {pipeline_mode = #tpu.pipeline_mode<synchronous>, transform_indices = @transform_5, window_bounds = array<i64: 1, 512>}, {pipeline_mode = #tpu.pipeline_mode<synchronous>, transform_indices = @transform_6, window_bounds = array<i64: 512, 256>}, {pipeline_mode = #tpu.pipeline_mode<synchronous>, transform_indices = @transform_7, window_bounds = array<i64: 1, 256>}, {transform_indices = @transform_8, window_bounds = array<i64: 2, 256>}]} {
    %c0 = arith.constant 0 : index
    %c0_0 = arith.constant 0 : index
    %0 = vector.load %arg1[%c0, %c0_0] : memref<2x512xf32, #tpu.memory_space<vmem>>, vector<2x512xf32>
    %c0_1 = arith.constant 0 : index
    %c0_2 = arith.constant 0 : index
    %1 = vector.load %arg2[%c0_1, %c0_2] : memref<512x512xf32, #tpu.memory_space<vmem>>, vector<512x512xf32>
    %cst = arith.constant dense<0.000000e+00> : vector<2x512xf32>
    %2 = tpu.matmul %0, %1, %cst {dimension_numbers = #tpu.dot_dimension_numbers<[1], [0], [0], [1], [0, 0, 1, 1], [], []>, precision = #tpu.contract_precision<fp32>} : vector<2x512xf32>, vector<512x512xf32>, vector<2x512xf32> -> vector<2x512xf32>
    %c0_3 = arith.constant 0 : index
    %c0_4 = arith.constant 0 : index
    %3 = vector.load %arg6[%c0_3, %c0_4] : memref<1x512xf32, #tpu.memory_space<vmem>>, vector<1x512xf32>
    %cst_5 = arith.constant 9.99999974E-6 : f32
    %4 = vector.broadcast %cst_5 : f32 to vector<1x512xf32>
    %5 = arith.addf %3, %4 : vector<1x512xf32>
    %6 = math.rsqrt %5 : vector<1x512xf32>
    %c0_6 = arith.constant 0 : index
    %c0_7 = arith.constant 0 : index
    %7 = vector.load %arg5[%c0_6, %c0_7] : memref<1x512xf32, #tpu.memory_space<vmem>>, vector<1x512xf32>
    %8 = vector.broadcast %7 : vector<1x512xf32> to vector<2x512xf32>
    %9 = arith.subf %2, %8 : vector<2x512xf32>
    %c0_8 = arith.constant 0 : index
    %c0_9 = arith.constant 0 : index
    %10 = vector.load %arg3[%c0_8, %c0_9] : memref<1x512xf32, #tpu.memory_space<vmem>>, vector<1x512xf32>
    %11 = arith.mulf %6, %10 : vector<1x512xf32>
    %12 = vector.broadcast %11 : vector<1x512xf32> to vector<2x512xf32>
    %13 = arith.mulf %9, %12 : vector<2x512xf32>
    %c0_10 = arith.constant 0 : index
    %c0_11 = arith.constant 0 : index
    %14 = vector.load %arg4[%c0_10, %c0_11] : memref<1x512xf32, #tpu.memory_space<vmem>>, vector<1x512xf32>
    %15 = vector.broadcast %14 : vector<1x512xf32> to vector<2x512xf32>
    %16 = arith.addf %13, %15 : vector<2x512xf32>
    %cst_12 = arith.constant 0.000000e+00 : f32
    %17 = vector.broadcast %cst_12 : f32 to vector<2x512xf32>
    %18 = arith.maximumf %16, %17 : vector<2x512xf32>
    %c0_13 = arith.constant 0 : index
    %c0_14 = arith.constant 0 : index
    %19 = vector.load %arg7[%c0_13, %c0_14] : memref<512x256xf32, #tpu.memory_space<vmem>>, vector<512x256xf32>
    %cst_15 = arith.constant dense<0.000000e+00> : vector<2x256xf32>
    %20 = tpu.matmul %18, %19, %cst_15 {dimension_numbers = #tpu.dot_dimension_numbers<[1], [0], [0], [1], [0, 0, 1, 1], [], []>, precision = #tpu.contract_precision<fp32>} : vector<2x512xf32>, vector<512x256xf32>, vector<2x256xf32> -> vector<2x256xf32>
    %c0_16 = arith.constant 0 : index
    %c0_17 = arith.constant 0 : index
    %21 = vector.load %arg8[%c0_16, %c0_17] : memref<1x256xf32, #tpu.memory_space<vmem>>, vector<1x256xf32>
    %22 = vector.broadcast %21 : vector<1x256xf32> to vector<2x256xf32>
    %23 = arith.addf %20, %22 : vector<2x256xf32>
    %24 = arith.mulf %23, %23 : vector<2x256xf32>
    %cst_18 = arith.constant dense<0.000000e+00> : vector<2xf32>
    %25 = vector.multi_reduction <add>, %24, %cst_18 [1] : vector<2x256xf32> to vector<2xf32>
    %26 = vector.shape_cast %25 : vector<2xf32> to vector<2x1xf32>
    %27 = math.sqrt %26 : vector<2x1xf32>
    %cst_19 = arith.constant 9.99999996E-13 : f32
    %28 = vector.broadcast %cst_19 : f32 to vector<2x1xf32>
    %29 = arith.maximumf %27, %28 : vector<2x1xf32>
    %30 = vector.broadcast %29 : vector<2x1xf32> to vector<2x256xf32>
    %31 = arith.divf %23, %30 : vector<2x256xf32>
    %c0_20 = arith.constant 0 : index
    %c0_21 = arith.constant 0 : index
    %32 = vector.load %arg9[%c0_20, %c0_21] : memref<2x256xf32, #tpu.memory_space<vmem>>, vector<2x256xf32>
    tpu.vector_store %arg9[%c0_20, %c0_21], %31 {strides = array<i32>} : memref<2x256xf32, #tpu.memory_space<vmem>>, vector<2x256xf32>,
    return
  }
  func.func @transform_0(%arg0: i32) -> (i32, i32) {
    %c0_i32 = arith.constant 0 : i32
    %c0_i32_0 = arith.constant 0 : i32
    return %arg0, %c0_i32 : i32, i32
  }
  func.func @transform_1(%arg0: i32) -> (i32, i32) {
    %c0_i32 = arith.constant 0 : i32
    %c0_i32_0 = arith.constant 0 : i32
    %c0_i32_1 = arith.constant 0 : i32
    return %c0_i32, %c0_i32_0 : i32, i32
  }
  func.func @transform_2(%arg0: i32) -> (i32, i32) {
    %c0_i32 = arith.constant 0 : i32
    %c0_i32_0 = arith.constant 0 : i32
    %c0_i32_1 = arith.constant 0 : i32
    return %c0_i32, %c0_i32_0 : i32, i32
  }
  func.func @transform_3(%arg0: i32) -> (i32, i32) {
    %c0_i32 = arith.constant 0 : i32
    %c0_i32_0 = arith.constant 0 : i32
    %c0_i32_1 = arith.constant 0 : i32
    return %c0_i32, %c0_i32_0 : i32, i32
  }
  func.func @transform_4(%arg0: i32) -> (i32, i32) {
    %c0_i32 = arith.constant 0 : i32
    %c0_i32_0 = arith.constant 0 : i32
    %c0_i32_1 = arith.constant 0 : i32
    return %c0_i32, %c0_i32_0 : i32, i32
  }
  func.func @transform_5(%arg0: i32) -> (i32, i32) {
    %c0_i32 = arith.constant 0 : i32
    %c0_i32_0 = arith.constant 0 : i32
    %c0_i32_1 = arith.constant 0 : i32
    return %c0_i32, %c0_i32_0 : i32, i32
  }
  func.func @transform_6(%arg0: i32) -> (i32, i32) {
    %c0_i32 = arith.constant 0 : i32
    %c0_i32_0 = arith.constant 0 : i32
    %c0_i32_1 = arith.constant 0 : i32
    return %c0_i32, %c0_i32_0 : i32, i32
  }
  func.func @transform_7(%arg0: i32) -> (i32, i32) {
    %c0_i32 = arith.constant 0 : i32
    %c0_i32_0 = arith.constant 0 : i32
    %c0_i32_1 = arith.constant 0 : i32
    return %c0_i32, %c0_i32_0 : i32, i32
  }
  func.func @transform_8(%arg0: i32) -> (i32, i32) {
    %c0_i32 = arith.constant 0 : i32
    %c0_i32_0 = arith.constant 0 : i32
    return %arg0, %c0_i32 : i32, i32
  }
}

</mosaic_0001>

<llo_original>
// kernel: tpu_custom_call.1
$region0: #{tpu_custom_call.1}
  #allocation0 [shape = 'u32[]', space=smem, size = 0x4, offset = 0x4, fixed_abs, tag = 'smem constant byte address 0x4 - core index']
  #allocation1 [shape = 'u32[144,128]{1,0:T(1,128)}', space=vmem, size = 0x12000, scoped, tag = 'internal scratch']
  %s0 = inlined_call_operand.hbm [shape: f32[2,512], index: 0, kind: input, shape index: {}]
  %s1 = inlined_call_operand.hbm [shape: f32[512,512], index: 1, kind: input, shape index: {}]
  %s2 = inlined_call_operand.vmem [shape: f32[1,512], index: 2, kind: input, shape index: {}]
  %s3 = inlined_call_operand.vmem [shape: f32[1,512], index: 3, kind: input, shape index: {}]
  %s4 = inlined_call_operand.vmem [shape: f32[1,512], index: 4, kind: input, shape index: {}]
  %s5 = inlined_call_operand.vmem [shape: f32[1,512], index: 5, kind: input, shape index: {}]
  %s6 = inlined_call_operand.hbm [shape: f32[512,256], index: 6, kind: input, shape index: {}]
  %s7 = inlined_call_operand.vmem [shape: f32[1,256], index: 7, kind: input, shape index: {}]
  %s8 = inlined_call_operand.hbm [shape: f32[2,256], index: 8, kind: output, shape index: {}]
  %s9 = sld [smem:[#allocation0]]
  $region54: #{tpu_custom_call.1} parent=0
    _
  %s11 = ssub.s32 1, %s9
  %s12 = scalar_select 0, %s11, %s9
  $region1: #{tpu_custom_call.1} parent=0
    #allocation2 [shape = 'u8[4096]{0}', space=vmem, size = 0x1000, scoped, tag = 'input window, operand 0, single buffered']
    #allocation3 [shape = 's32[1]{0}', space=sflag, size = 0x4, scoped, tag = 'scoped memory for tpu_custom_call.1']
    #allocation4 [shape = 's32[1]{0}', space=sflag, size = 0x4, scoped, tag = 'scoped memory for tpu_custom_call.1']
    #allocation5 [shape = 'u8[1048576]{0}', space=vmem, size = 0x100000, scoped, tag = 'input window, operand 1, single buffered']
    #allocation6 [shape = 's32[1]{0}', space=sflag, size = 0x4, scoped, tag = 'scoped memory for tpu_custom_call.1']
    #allocation7 [shape = 'u8[524288]{0}', space=vmem, size = 0x80000, scoped, tag = 'input window, operand 6, single buffered']
    #allocation8 [shape = 'u8[2048]{0}', space=vmem, size = 0x800, scoped, tag = 'output window, operand 0, single buffered']
    %13 = vsyncpa [#allocation3], 0
    %14 = vsyncpa [#allocation6], 0
    %15 = vsyncpa [#allocation4], 0
    // Predicated region
    $region2: #{tpu_custom_call.1} parent=1 // pred_check
      _
    $region3: #{tpu_custom_call.1} parent=1 // pred_check_branch
      %17 = sbr.rel (0) target = $region5
    $region4: #{tpu_custom_call.1} parent=1 // pred_region
      %s19 = ssub.s32 128, 128
      %20 = vsyncadd [#allocation3], %s19
      %s22 = sshll.u32 [#allocation2], 4
      %s23 = int_to_ptr.vmem [resolvable:$true] %s22
      %25 = dma.hbm_to_vmem [thread:$0]  %s0, 128, %s23, [#allocation3]
    $region5: #{tpu_custom_call.1} parent=1 // pred_fallthru
      _
    // Predicated region
    $region6: #{tpu_custom_call.1} parent=1 // pred_check
      _
    $region7: #{tpu_custom_call.1} parent=1 // pred_check_branch
      %27 = sbr.rel (0) target = $region9
    $region8: #{tpu_custom_call.1} parent=1 // pred_region
      %s29 = ssub.s32 32768, 32768
      %30 = vsyncadd [#allocation6], %s29
      %s31 = sshll.u32 [#allocation5], 4
      %s32 = int_to_ptr.vmem [resolvable:$true] %s31
      %37 = dma.hbm_to_vmem [thread:$0]  %s1, 32768, %s32, [#allocation6], 512, 512, 32
    $region9: #{tpu_custom_call.1} parent=1 // pred_fallthru
      _
    // Predicated region
    $region10: #{tpu_custom_call.1} parent=1 // pred_check
      _
    $region11: #{tpu_custom_call.1} parent=1 // pred_check_branch
      %39 = sbr.rel (0) target = $region13
    $region12: #{tpu_custom_call.1} parent=1 // pred_region
      _
    $region13: #{tpu_custom_call.1} parent=1 // pred_fallthru
      _
    // Predicated region
    $region14: #{tpu_custom_call.1} parent=1 // pred_check
      _
    $region15: #{tpu_custom_call.1} parent=1 // pred_check_branch
      %41 = sbr.rel (0) target = $region17
    $region16: #{tpu_custom_call.1} parent=1 // pred_region
      _
    $region17: #{tpu_custom_call.1} parent=1 // pred_fallthru
      _
    // Predicated region
    $region18: #{tpu_custom_call.1} parent=1 // pred_check
      _
    $region19: #{tpu_custom_call.1} parent=1 // pred_check_branch
      %43 = sbr.rel (0) target = $region21
    $region20: #{tpu_custom_call.1} parent=1 // pred_region
      _
    $region21: #{tpu_custom_call.1} parent=1 // pred_fallthru
      _
    // Predicated region
    $region22: #{tpu_custom_call.1} parent=1 // pred_check
      _
    $region23: #{tpu_custom_call.1} parent=1 // pred_check_branch
      %45 = sbr.rel (0) target = $region25
    $region24: #{tpu_custom_call.1} parent=1 // pred_region
      _
    $region25: #{tpu_custom_call.1} parent=1 // pred_fallthru
      _
    // Predicated region
    $region26: #{tpu_custom_call.1} parent=1 // pred_check
      _
    $region27: #{tpu_custom_call.1} parent=1 // pred_check_branch
      %47 = sbr.rel (0) target = $region29
    $region28: #{tpu_custom_call.1} parent=1 // pred_region
      %s49 = ssub.s32 16384, 16384
      %50 = vsyncadd [#allocation6], %s49
      %s51 = sshll.u32 [#allocation7], 4
      %s52 = int_to_ptr.vmem [resolvable:$true] %s51
      %57 = dma.hbm_to_vmem [thread:$0]  %s6, 16384, %s52, [#allocation6], 256, 256, 16
    $region29: #{tpu_custom_call.1} parent=1 // pred_fallthru
      _
    // Predicated region
    $region30: #{tpu_custom_call.1} parent=1 // pred_check
      _
    $region31: #{tpu_custom_call.1} parent=1 // pred_check_branch
      %59 = sbr.rel (0) target = $region33
    $region32: #{tpu_custom_call.1} parent=1 // pred_region
      _
    $region33: #{tpu_custom_call.1} parent=1 // pred_fallthru
      _
    // Predicated region
    $region34: #{tpu_custom_call.1} parent=1 // pred_check
      _
    $region35: #{tpu_custom_call.1} parent=1 // pred_check_branch
      %61 = sbr.rel (0) target = $region37
    $region36: #{tpu_custom_call.1} parent=1 // pred_region
      %62 = dma.done [#allocation3], 128
    $region37: #{tpu_custom_call.1} parent=1 // pred_fallthru
      _
    // Predicated region
    $region38: #{tpu_custom_call.1} parent=1 // pred_check
      _
    $region39: #{tpu_custom_call.1} parent=1 // pred_check_branch
      %64 = sbr.rel (0) target = $region41
    $region40: #{tpu_custom_call.1} parent=1 // pred_region
      %65 = dma.done [#allocation6], 32768
    $region41: #{tpu_custom_call.1} parent=1 // pred_fallthru
      _
    // Predicated region
    $region42: #{tpu_custom_call.1} parent=1 // pred_check
      _
    $region43: #{tpu_custom_call.1} parent=1 // pred_check_branch
      %67 = sbr.rel (0) target = $region45
    $region44: #{tpu_custom_call.1} parent=1 // pred_region
      %68 = dma.done [#allocation6], 16384
    $region45: #{tpu_custom_call.1} parent=1 // pred_fallthru
      _
    %v69 = vld [vmem:[#allocation2] sm:$0xff]
    %v70 = vld [vmem:[#allocation5] sm:$0xff]
    %v71 = vld [vmem:[#allocation5 + $0x8] sm:$0xff]
    %v72 = vld [vmem:[#allocation5 + $0x10] sm:$0xff]
    %v73 = vld [vmem:[#allocation5 + $0x18] sm:$0xff]
    %v74 = vld [vmem:[#allocation5 + $0x20] sm:$0xff]
    %v75 = vld [vmem:[#allocation5 + $0x28] sm:$0xff]
    %v76 = vld [vmem:[#allocation5 + $0x30] sm:$0xff]
    %v77 = vld [vmem:[#allocation5 + $0x38] sm:$0xff]
    %v78 = vld [vmem:[#allocation5 + $0x40] sm:$0xff]
    %v79 = vld [vmem:[#allocation5 + $0x48] sm:$0xff]
    %v80 = vld [vmem:[#allocation5 + $0x50] sm:$0xff]
    %v81 = vld [vmem:[#allocation5 + $0x58] sm:$0xff]
    %v82 = vld [vmem:[#allocation5 + $0x60] sm:$0xff]
    %v83 = vld [vmem:[#allocation5 + $0x68] sm:$0xff]
    %v84 = vld [vmem:[#allocation5 + $0x70] sm:$0xff]
    %v85 = vld [vmem:[#allocation5 + $0x78] sm:$0xff]
    %v86 = vld [vmem:[#allocation5 + $0x80] sm:$0xff]
    %v87 = vld [vmem:[#allocation5 + $0x88] sm:$0xff]
    %v88 = vld [vmem:[#allocation5 + $0x90] sm:$0xff]
    %v89 = vld [vmem:[#allocation5 + $0x98] sm:$0xff]
    %v90 = vld [vmem:[#allocation5 + $0xa0] sm:$0xff]
    %v91 = vld [vmem:[#allocation5 + $0xa8] sm:$0xff]
    %v92 = vld [vmem:[#allocation5 + $0xb0] sm:$0xff]
    %v93 = vld [vmem:[#allocation5 + $0xb8] sm:$0xff]
    %v94 = vld [vmem:[#allocation5 + $0xc0] sm:$0xff]
    %v95 = vld [vmem:[#allocation5 + $0xc8] sm:$0xff]
    %v96 = vld [vmem:[#allocation5 + $0xd0] sm:$0xff]
    %v97 = vld [vmem:[#allocation5 + $0xd8] sm:$0xff]
    %v98 = vld [vmem:[#allocation5 + $0xe0] sm:$0xff]
    %v99 = vld [vmem:[#allocation5 + $0xe8] sm:$0xff]
    %v100 = vld [vmem:[#allocation5 + $0xf0] sm:$0xff]
    %v101 = vld [vmem:[#allocation5 + $0xf8] sm:$0xff]
    %v102 = vld [vmem:[#allocation5 + $0x100] sm:$0xff]
    %v103 = vld [vmem:[#allocation5 + $0x108] sm:$0xff]
    %v104 = vld [vmem:[#allocation5 + $0x110] sm:$0xff]
    %v105 = vld [vmem:[#allocation5 + $0x118] sm:$0xff]
    %v106 = vld [vmem:[#allocation5 + $0x120] sm:$0xff]
    %v107 = vld [vmem:[#allocation5 + $0x128] sm:$0xff]
    %v108 = vld [vmem:[#allocation5 + $0x130] sm:$0xff]
    %v109 = vld [vmem:[#allocation5 + $0x138] sm:$0xff]
    %v110 = vld [vmem:[#allocation5 + $0x140] sm:$0xff]
    %v111 = vld [vmem:[#allocation5 + $0x148] sm:$0xff]
    %v112 = vld [vmem:[#allocation5 + $0x150] sm:$0xff]
    %v113 = vld [vmem:[#allocation5 + $0x158] sm:$0xff]
    %v114 = vld [vmem:[#allocation5 + $0x160] sm:$0xff]
    %v115 = vld [vmem:[#allocation5 + $0x168] sm:$0xff]
    %v116 = vld [vmem:[#allocation5 + $0x170] sm:$0xff]
    %v117 = vld [vmem:[#allocation5 + $0x178] sm:$0xff]
    %v118 = vld [vmem:[#allocation5 + $0x180] sm:$0xff]
    %v119 = vld [vmem:[#allocation5 + $0x188] sm:$0xff]
    %v120 = vld [vmem:[#allocation5 + $0x190] sm:$0xff]
    %v121 = vld [vmem:[#allocation5 + $0x198] sm:$0xff]
    %v122 = vld [vmem:[#allocation5 + $0x1a0] sm:$0xff]
    %v123 = vld [vmem:[#allocation5 + $0x1a8] sm:$0xff]
    %v124 = vld [vmem:[#allocation5 + $0x1b0] sm:$0xff]
    %v125 = vld [vmem:[#allocation5 + $0x1b8] sm:$0xff]
    %v126 = vld [vmem:[#allocation5 + $0x1c0] sm:$0xff]
    %v127 = vld [vmem:[#allocation5 + $0x1c8] sm:$0xff]
    %v128 = vld [vmem:[#allocation5 + $0x1d0] sm:$0xff]
    %v129 = vld [vmem:[#allocation5 + $0x1d8] sm:$0xff]
    %v130 = vld [vmem:[#allocation5 + $0x1e0] sm:$0xff]
    %v131 = vld [vmem:[#allocation5 + $0x1e8] sm:$0xff]
    %v132 = vld [vmem:[#allocation5 + $0x1f0] sm:$0xff]
    %v133 = vld [vmem:[#allocation5 + $0x1f8] sm:$0xff]
    %v134 = vld [vmem:[#allocation5 + $0x200] sm:$0xff]
    %v135 = vld [vmem:[#allocation5 + $0x208] sm:$0xff]
    %v136 = vld [vmem:[#allocation5 + $0x210] sm:$0xff]
    %v137 = vld [vmem:[#allocation5 + $0x218] sm:$0xff]
    %v138 = vld [vmem:[#allocation5 + $0x220] sm:$0xff]
    %v139 = vld [vmem:[#allocation5 + $0x228] sm:$0xff]
    %v140 = vld [vmem:[#allocation5 + $0x230] sm:$0xff]
    %v141 = vld [vmem:[#allocation5 + $0x238] sm:$0xff]
    %v142 = vld [vmem:[#allocation5 + $0x240] sm:$0xff]
    %v143 = vld [vmem:[#allocation5 + $0x248] sm:$0xff]
    %v144 = vld [vmem:[#allocation5 + $0x250] sm:$0xff]
    %v145 = vld [vmem:[#allocation5 + $0x258] sm:$0xff]
    %v146 = vld [vmem:[#allocation5 + $0x260] sm:$0xff]
    %v147 = vld [vmem:[#allocation5 + $0x268] sm:$0xff]
    %v148 = vld [vmem:[#allocation5 + $0x270] sm:$0xff]
    %v149 = vld [vmem:[#allocation5 + $0x278] sm:$0xff]
    %v150 = vld [vmem:[#allocation5 + $0x280] sm:$0xff]
    %v151 = vld [vmem:[#allocation5 + $0x288] sm:$0xff]
    %v152 = vld [vmem:[#allocation5 + $0x290] sm:$0xff]
    %v153 = vld [vmem:[#allocation5 + $0x298] sm:$0xff]
    %v154 = vld [vmem:[#allocation5 + $0x2a0] sm:$0xff]
    %v155 = vld [vmem:[#allocation5 + $0x2a8] sm:$0xff]
    %v156 = vld [vmem:[#allocation5 + $0x2b0] sm:$0xff]
    %v157 = vld [vmem:[#allocation5 + $0x2b8] sm:$0xff]
    %v158 = vld [vmem:[#allocation5 + $0x2c0] sm:$0xff]
    %v159 = vld [vmem:[#allocation5 + $0x2c8] sm:$0xff]
    %v160 = vld [vmem:[#allocation5 + $0x2d0] sm:$0xff]
    %v161 = vld [vmem:[#allocation5 + $0x2d8] sm:$0xff]
    %v162 = vld [vmem:[#allocation5 + $0x2e0] sm:$0xff]
    %v163 = vld [vmem:[#allocation5 + $0x2e8] sm:$0xff]
    %v164 = vld [vmem:[#allocation5 + $0x2f0] sm:$0xff]
    %v165 = vld [vmem:[#allocation5 + $0x2f8] sm:$0xff]
    %v166 = vld [vmem:[#allocation5 + $0x300] sm:$0xff]
    %v167 = vld [vmem:[#allocation5 + $0x308] sm:$0xff]
    %v168 = vld [vmem:[#allocation5 + $0x310] sm:$0xff]
    %v169 = vld [vmem:[#allocation5 + $0x318] sm:$0xff]
    %v170 = vld [vmem:[#allocation5 + $0x320] sm:$0xff]
    %v171 = vld [vmem:[#allocation5 + $0x328] sm:$0xff]
    %v172 = vld [vmem:[#allocation5 + $0x330] sm:$0xff]
    %v173 = vld [vmem:[#allocation5 + $0x338] sm:$0xff]
    %v174 = vld [vmem:[#allocation5 + $0x340] sm:$0xff]
    %v175 = vld [vmem:[#allocation5 + $0x348] sm:$0xff]
    %v176 = vld [vmem:[#allocation5 + $0x350] sm:$0xff]
    %v177 = vld [vmem:[#allocation5 + $0x358] sm:$0xff]
    %v178 = vld [vmem:[#allocation5 + $0x360] sm:$0xff]
    %v179 = vld [vmem:[#allocation5 + $0x368] sm:$0xff]
    %v180 = vld [vmem:[#allocation5 + $0x370] sm:$0xff]
    %v181 = vld [vmem:[#allocation5 + $0x378] sm:$0xff]
    %v182 = vld [vmem:[#allocation5 + $0x380] sm:$0xff]
    %v183 = vld [vmem:[#allocation5 + $0x388] sm:$0xff]
    %v184 = vld [vmem:[#allocation5 + $0x390] sm:$0xff]
    %v185 = vld [vmem:[#allocation5 + $0x398] sm:$0xff]
    %v186 = vld [vmem:[#allocation5 + $0x3a0] sm:$0xff]
    %v187 = vld [vmem:[#allocation5 + $0x3a8] sm:$0xff]
    %v188 = vld [vmem:[#allocation5 + $0x3b0] sm:$0xff]
    %v189 = vld [vmem:[#allocation5 + $0x3b8] sm:$0xff]
    %v190 = vld [vmem:[#allocation5 + $0x3c0] sm:$0xff]
    %v191 = vld [vmem:[#allocation5 + $0x3c8] sm:$0xff]
    %v192 = vld [vmem:[#allocation5 + $0x3d0] sm:$0xff]
    %v193 = vld [vmem:[#allocation5 + $0x3d8] sm:$0xff]
    %v194 = vld [vmem:[#allocation5 + $0x3e0] sm:$0xff]
    %v195 = vld [vmem:[#allocation5 + $0x3e8] sm:$0xff]
    %v196 = vld [vmem:[#allocation5 + $0x3f0] sm:$0xff]
    %v197 = vld [vmem:[#allocation5 + $0x3f8] sm:$0xff]
    %v198 = vld [vmem:[#allocation5 + $0x400] sm:$0xff]
    %v199 = vld [vmem:[#allocation5 + $0x408] sm:$0xff]
    %v200 = vld [vmem:[#allocation5 + $0x410] sm:$0xff]
    %v201 = vld [vmem:[#allocation5 + $0x418] sm:$0xff]
    %v202 = vld [vmem:[#allocation5 + $0x420] sm:$0xff]
    %v203 = vld [vmem:[#allocation5 + $0x428] sm:$0xff]
    %v204 = vld [vmem:[#allocation5 + $0x430] sm:$0xff]
    %v205 = vld [vmem:[#allocation5 + $0x438] sm:$0xff]
    %v206 = vld [vmem:[#allocation5 + $0x440] sm:$0xff]
    %v207 = vld [vmem:[#allocation5 + $0x448] sm:$0xff]
    %v208 = vld [vmem:[#allocation5 + $0x450] sm:$0xff]
    %v209 = vld [vmem:[#allocation5 + $0x458] sm:$0xff]
    %v210 = vld [vmem:[#allocation5 + $0x460] sm:$0xff]
    %v211 = vld [vmem:[#allocation5 + $0x468] sm:$0xff]
    %v212 = vld [vmem:[#allocation5 + $0x470] sm:$0xff]
    %v213 = vld [vmem:[#allocation5 + $0x478] sm:$0xff]
    %v214 = vld [vmem:[#allocation5 + $0x480] sm:$0xff]
    %v215 = vld [vmem:[#allocation5 + $0x488] sm:$0xff]
    %v216 = vld [vmem:[#allocation5 + $0x490] sm:$0xff]
    %v217 = vld [vmem:[#allocation5 + $0x498] sm:$0xff]
    %v218 = vld [vmem:[#allocation5 + $0x4a0] sm:$0xff]
    %v219 = vld [vmem:[#allocation5 + $0x4a8] sm:$0xff]
    %v220 = vld [vmem:[#allocation5 + $0x4b0] sm:$0xff]
    %v221 = vld [vmem:[#allocation5 + $0x4b8] sm:$0xff]
    %v222 = vld [vmem:[#allocation5 + $0x4c0] sm:$0xff]
    %v223 = vld [vmem:[#allocation5 + $0x4c8] sm:$0xff]
    %v224 = vld [vmem:[#allocation5 + $0x4d0] sm:$0xff]
    %v225 = vld [vmem:[#allocation5 + $0x4d8] sm:$0xff]
    %v226 = vld [vmem:[#allocation5 + $0x4e0] sm:$0xff]
    %v227 = vld [vmem:[#allocation5 + $0x4e8] sm:$0xff]
    %v228 = vld [vmem:[#allocation5 + $0x4f0] sm:$0xff]
    %v229 = vld [vmem:[#allocation5 + $0x4f8] sm:$0xff]
    %v230 = vld [vmem:[#allocation5 + $0x500] sm:$0xff]
    %v231 = vld [vmem:[#allocation5 + $0x508] sm:$0xff]
    %v232 = vld [vmem:[#allocation5 + $0x510] sm:$0xff]
    %v233 = vld [vmem:[#allocation5 + $0x518] sm:$0xff]
    %v234 = vld [vmem:[#allocation5 + $0x520] sm:$0xff]
    %v235 = vld [vmem:[#allocation5 + $0x528] sm:$0xff]
    %v236 = vld [vmem:[#allocation5 + $0x530] sm:$0xff]
    %v237 = vld [vmem:[#allocation5 + $0x538] sm:$0xff]
    %v238 = vld [vmem:[#allocation5 + $0x540] sm:$0xff]
    %v239 = vld [vmem:[#allocation5 + $0x548] sm:$0xff]
    %v240 = vld [vmem:[#allocation5 + $0x550] sm:$0xff]
    %v241 = vld [vmem:[#allocation5 + $0x558] sm:$0xff]
    %v242 = vld [vmem:[#allocation5 + $0x560] sm:$0xff]
    %v243 = vld [vmem:[#allocation5 + $0x568] sm:$0xff]
    %v244 = vld [vmem:[#allocation5 + $0x570] sm:$0xff]
    %v245 = vld [vmem:[#allocation5 + $0x578] sm:$0xff]
    %v246 = vld [vmem:[#allocation5 + $0x580] sm:$0xff]
    %v247 = vld [vmem:[#allocation5 + $0x588] sm:$0xff]
    %v248 = vld [vmem:[#allocation5 + $0x590] sm:$0xff]
    %v249 = vld [vmem:[#allocation5 + $0x598] sm:$0xff]
    %v250 = vld [vmem:[#allocation5 + $0x5a0] sm:$0xff]
    %v251 = vld [vmem:[#allocation5 + $0x5a8] sm:$0xff]
    %v252 = vld [vmem:[#allocation5 + $0x5b0] sm:$0xff]
    %v253 = vld [vmem:[#allocation5 + $0x5b8] sm:$0xff]
    %v254 = vld [vmem:[#allocation5 + $0x5c0] sm:$0xff]
    %v255 = vld [vmem:[#allocation5 + $0x5c8] sm:$0xff]
    %v256 = vld [vmem:[#allocation5 + $0x5d0] sm:$0xff]
    %v257 = vld [vmem:[#allocation5 + $0x5d8] sm:$0xff]
    %v258 = vld [vmem:[#allocation5 + $0x5e0] sm:$0xff]
    %v259 = vld [vmem:[#allocation5 + $0x5e8] sm:$0xff]
    %v260 = vld [vmem:[#allocation5 + $0x5f0] sm:$0xff]
    %v261 = vld [vmem:[#allocation5 + $0x5f8] sm:$0xff]
    %v262 = vld [vmem:[#allocation5 + $0x600] sm:$0xff]
    %v263 = vld [vmem:[#allocation5 + $0x608] sm:$0xff]
    %v264 = vld [vmem:[#allocation5 + $0x610] sm:$0xff]
    %v265 = vld [vmem:[#allocation5 + $0x618] sm:$0xff]
    %v266 = vld [vmem:[#allocation5 + $0x620] sm:$0xff]
    %v267 = vld [vmem:[#allocation5 + $0x628] sm:$0xff]
    %v268 = vld [vmem:[#allocation5 + $0x630] sm:$0xff]
    %v269 = vld [vmem:[#allocation5 + $0x638] sm:$0xff]
    %v270 = vld [vmem:[#allocation5 + $0x640] sm:$0xff]
    %v271 = vld [vmem:[#allocation5 + $0x648] sm:$0xff]
    %v272 = vld [vmem:[#allocation5 + $0x650] sm:$0xff]
    %v273 = vld [vmem:[#allocation5 + $0x658] sm:$0xff]
    %v274 = vld [vmem:[#allocation5 + $0x660] sm:$0xff]
    %v275 = vld [vmem:[#allocation5 + $0x668] sm:$0xff]
    %v276 = vld [vmem:[#allocation5 + $0x670] sm:$0xff]
    %v277 = vld [vmem:[#allocation5 + $0x678] sm:$0xff]
    %v278 = vld [vmem:[#allocation5 + $0x680] sm:$0xff]
    %v279 = vld [vmem:[#allocation5 + $0x688] sm:$0xff]
    %v280 = vld [vmem:[#allocation5 + $0x690] sm:$0xff]
    %v281 = vld [vmem:[#allocation5 + $0x698] sm:$0xff]
    %v282 = vld [vmem:[#allocation5 + $0x6a0] sm:$0xff]
    %v283 = vld [vmem:[#allocation5 + $0x6a8] sm:$0xff]
    %v284 = vld [vmem:[#allocation5 + $0x6b0] sm:$0xff]
    %v285 = vld [vmem:[#allocation5 + $0x6b8] sm:$0xff]
    %v286 = vld [vmem:[#allocation5 + $0x6c0] sm:$0xff]
    %v287 = vld [vmem:[#allocation5 + $0x6c8] sm:$0xff]
    %v288 = vld [vmem:[#allocation5 + $0x6d0] sm:$0xff]
    %v289 = vld [vmem:[#allocation5 + $0x6d8] sm:$0xff]
    %v290 = vld [vmem:[#allocation5 + $0x6e0] sm:$0xff]
    %v291 = vld [vmem:[#allocation5 + $0x6e8] sm:$0xff]
    %v292 = vld [vmem:[#allocation5 + $0x6f0] sm:$0xff]
    %v293 = vld [vmem:[#allocation5 + $0x6f8] sm:$0xff]
    %v294 = vld [vmem:[#allocation5 + $0x700] sm:$0xff]
    %v295 = vld [vmem:[#allocation5 + $0x708] sm:$0xff]
    %v296 = vld [vmem:[#allocation5 + $0x710] sm:$0xff]
    %v297 = vld [vmem:[#allocation5 + $0x718] sm:$0xff]
    %v298 = vld [vmem:[#allocation5 + $0x720] sm:$0xff]
    %v299 = vld [vmem:[#allocation5 + $0x728] sm:$0xff]
    %v300 = vld [vmem:[#allocation5 + $0x730] sm:$0xff]
    %v301 = vld [vmem:[#allocation5 + $0x738] sm:$0xff]
    %v302 = vld [vmem:[#allocation5 + $0x740] sm:$0xff]
    %v303 = vld [vmem:[#allocation5 + $0x748] sm:$0xff]
    %v304 = vld [vmem:[#allocation5 + $0x750] sm:$0xff]
    %v305 = vld [vmem:[#allocation5 + $0x758] sm:$0xff]
    %v306 = vld [vmem:[#allocation5 + $0x760] sm:$0xff]
    %v307 = vld [vmem:[#allocation5 + $0x768] sm:$0xff]
    %v308 = vld [vmem:[#allocation5 + $0x770] sm:$0xff]
    %v309 = vld [vmem:[#allocation5 + $0x778] sm:$0xff]
    %v310 = vld [vmem:[#allocation5 + $0x780] sm:$0xff]
    %v311 = vld [vmem:[#allocation5 + $0x788] sm:$0xff]
    %v312 = vld [vmem:[#allocation5 + $0x790] sm:$0xff]
    %v313 = vld [vmem:[#allocation5 + $0x798] sm:$0xff]
    %v314 = vld [vmem:[#allocation5 + $0x7a0] sm:$0xff]
    %v315 = vld [vmem:[#allocation5 + $0x7a8] sm:$0xff]
    %v316 = vld [vmem:[#allocation5 + $0x7b0] sm:$0xff]
    %v317 = vld [vmem:[#allocation5 + $0x7b8] sm:$0xff]
    %v318 = vld [vmem:[#allocation5 + $0x7c0] sm:$0xff]
    %v319 = vld [vmem:[#allocation5 + $0x7c8] sm:$0xff]
    %v320 = vld [vmem:[#allocation5 + $0x7d0] sm:$0xff]
    %v321 = vld [vmem:[#allocation5 + $0x7d8] sm:$0xff]
    %v322 = vld [vmem:[#allocation5 + $0x7e0] sm:$0xff]
    %v323 = vld [vmem:[#allocation5 + $0x7e8] sm:$0xff]
    %v324 = vld [vmem:[#allocation5 + $0x7f0] sm:$0xff]
    %v325 = vld [vmem:[#allocation5 + $0x7f8] sm:$0xff]
    %v327 = vcombine.high %v69, %v69
    %v329 = vunpack.c.l.s4 1983009808
    %v330 = vunpack.c.0.s8 %v329
    %v331 = vlaneseq
    %v332 = vshrl.u32 %v331, 7
    %v333 = vsub.s32 %v330, %v332
    %v334 = vrot.slane %v69, %v333
    %v336 = vunpack.c.l.s4 1983009808
    %v337 = vunpack.c.0.s8 %v336
    %v338 = vlaneseq
    %v339 = vshrl.u32 %v338, 7
    %v340 = vsub.s32 %v337, %v339
    %v341 = vrot.slane %v327, %v340
    %v342 = vcombine.high %v334, %v334
    %v343 = vcombine.high %v341, %v341
    %v348 = vand.u32 %v71, 4294901760
    %349 = vmatprep.subr.mxu0 %v348
    %v350 = vand.u32 %v70, 4294901760
    %351 = vmatpush1.msra.mxu0 %v350
    %v352 = vand.u32 %v75, 4294901760
    %353 = vmatprep.subr.mxu0 %v352
    %v354 = vand.u32 %v74, 4294901760
    %355 = vmatpush1.msra.mxu0 %v354
    %v356 = vand.u32 %v79, 4294901760
    %357 = vmatprep.subr.mxu0 %v356
    %v358 = vand.u32 %v78, 4294901760
    %359 = vmatpush1.msra.mxu0 %v358
    %v360 = vand.u32 %v83, 4294901760
    %361 = vmatprep.subr.mxu0 %v360
    %v362 = vand.u32 %v82, 4294901760
    %363 = vmatpush1.msra.mxu0 %v362
    %v364 = vand.u32 %v87, 4294901760
    %365 = vmatprep.subr.mxu0 %v364
    %v366 = vand.u32 %v86, 4294901760
    %367 = vmatpush1.msra.mxu0 %v366
    %v368 = vand.u32 %v91, 4294901760
    %369 = vmatprep.subr.mxu0 %v368
    %v370 = vand.u32 %v90, 4294901760
    %371 = vmatpush1.msra.mxu0 %v370
    %v372 = vand.u32 %v95, 4294901760
    %373 = vmatprep.subr.mxu0 %v372
    %v374 = vand.u32 %v94, 4294901760
    %375 = vmatpush1.msra.mxu0 %v374
    %v376 = vand.u32 %v99, 4294901760
    %377 = vmatprep.subr.mxu0 %v376
    %v378 = vand.u32 %v98, 4294901760
    %379 = vmatpush1.msra.mxu0 %v378
    %v380 = vand.u32 %v103, 4294901760
    %381 = vmatprep.subr.mxu0 %v380
    %v382 = vand.u32 %v102, 4294901760
    %383 = vmatpush1.msra.mxu0 %v382
    %v384 = vand.u32 %v107, 4294901760
    %385 = vmatprep.subr.mxu0 %v384
    %v386 = vand.u32 %v106, 4294901760
    %387 = vmatpush1.msra.mxu0 %v386
    %v388 = vand.u32 %v111, 4294901760
    %389 = vmatprep.subr.mxu0 %v388
    %v390 = vand.u32 %v110, 4294901760
    %391 = vmatpush1.msra.mxu0 %v390
    %v392 = vand.u32 %v115, 4294901760
    %393 = vmatprep.subr.mxu0 %v392
    %v394 = vand.u32 %v114, 4294901760
    %395 = vmatpush1.msra.mxu0 %v394
    %v396 = vand.u32 %v119, 4294901760
    %397 = vmatprep.subr.mxu0 %v396
    %v398 = vand.u32 %v118, 4294901760
    %399 = vmatpush1.msra.mxu0 %v398
    %v400 = vand.u32 %v123, 4294901760
    %401 = vmatprep.subr.mxu0 %v400
    %v402 = vand.u32 %v122, 4294901760
    %403 = vmatpush1.msra.mxu0 %v402
    %v404 = vand.u32 %v127, 4294901760
    %405 = vmatprep.subr.mxu0 %v404
    %v406 = vand.u32 %v126, 4294901760
    %407 = vmatpush1.msra.mxu0 %v406
    %v408 = vand.u32 %v131, 4294901760
    %409 = vmatprep.subr.mxu0 %v408
    %v410 = vand.u32 %v130, 4294901760
    %411 = vmatpush1.msra.mxu0 %v410
    %v412 = vand.u32 %v135, 4294901760
    %413 = vmatprep.subr.mxu0 %v412
    %v414 = vand.u32 %v134, 4294901760
    %415 = vmatpush1.msra.mxu0 %v414
    %v416 = vand.u32 %v139, 4294901760
    %417 = vmatprep.subr.mxu0 %v416
    %v418 = vand.u32 %v138, 4294901760
    %419 = vmatpush1.msra.mxu0 %v418
    %v420 = vand.u32 %v143, 4294901760
    %421 = vmatprep.subr.mxu0 %v420
    %v422 = vand.u32 %v142, 4294901760
    %423 = vmatpush1.msra.mxu0 %v422
    %v424 = vand.u32 %v147, 4294901760
    %425 = vmatprep.subr.mxu0 %v424
    %v426 = vand.u32 %v146, 4294901760
    %427 = vmatpush1.msra.mxu0 %v426
    %v428 = vand.u32 %v151, 4294901760
    %429 = vmatprep.subr.mxu0 %v428
    %v430 = vand.u32 %v150, 4294901760
    %431 = vmatpush1.msra.mxu0 %v430
    %v432 = vand.u32 %v155, 4294901760
    %433 = vmatprep.subr.mxu0 %v432
    %v434 = vand.u32 %v154, 4294901760
    %435 = vmatpush1.msra.mxu0 %v434
    %v436 = vand.u32 %v159, 4294901760
    %437 = vmatprep.subr.mxu0 %v436
    %v438 = vand.u32 %v158, 4294901760
    %439 = vmatpush1.msra.mxu0 %v438
    %v440 = vand.u32 %v163, 4294901760
    %441 = vmatprep.subr.mxu0 %v440
    %v442 = vand.u32 %v162, 4294901760
    %443 = vmatpush1.msra.mxu0 %v442
    %v444 = vand.u32 %v167, 4294901760
    %445 = vmatprep.subr.mxu0 %v444
    %v446 = vand.u32 %v166, 4294901760
    %447 = vmatpush1.msra.mxu0 %v446
    %v448 = vand.u32 %v171, 4294901760
    %449 = vmatprep.subr.mxu0 %v448
    %v450 = vand.u32 %v170, 4294901760
    %451 = vmatpush1.msra.mxu0 %v450
    %v452 = vand.u32 %v175, 4294901760
    %453 = vmatprep.subr.mxu0 %v452
    %v454 = vand.u32 %v174, 4294901760
    %455 = vmatpush1.msra.mxu0 %v454
    %v456 = vand.u32 %v179, 4294901760
    %457 = vmatprep.subr.mxu0 %v456
    %v458 = vand.u32 %v178, 4294901760
    %459 = vmatpush1.msra.mxu0 %v458
    %v460 = vand.u32 %v183, 4294901760
    %461 = vmatprep.subr.mxu0 %v460
    %v462 = vand.u32 %v182, 4294901760
    %463 = vmatpush1.msra.mxu0 %v462
    %v464 = vand.u32 %v187, 4294901760
    %465 = vmatprep.subr.mxu0 %v464
    %v466 = vand.u32 %v186, 4294901760
    %467 = vmatpush1.msra.mxu0 %v466
    %v468 = vand.u32 %v191, 4294901760
    %469 = vmatprep.subr.mxu0 %v468
    %v470 = vand.u32 %v190, 4294901760
    %471 = vmatpush1.msra.mxu0 %v470
    %v472 = vand.u32 %v195, 4294901760
    %473 = vmatprep.subr.mxu0 %v472
    %v474 = vand.u32 %v194, 4294901760
    %475 = vmatpush1.msra.mxu0 %v474
    %v476 = vand.u32 %v342, 4294901760
    %v477 = vsub.f32 %v342, %v476
    %v478 = vand.u32 %v477, 4294901760
    %v479 = vsub.f32 %v477, %v478
    %v480 = vand.u32 %v479, 4294901760
    %481 = vmatprep.mubr.f32.mxu0 %v480
    %v482 = vand.u32 %v334, 4294901760
    %v483 = vsub.f32 %v334, %v482
    %v484 = vand.u32 %v483, 4294901760
    %v485 = vsub.f32 %v483, %v484
    %v486 = vand.u32 %v485, 4294901760
    %487 = vmatmul.mubr.f32.gmra.mrb[0].mxu0 %v486
    %v488 = vpop.f32.mrb[0].mxu0
    %v489 = vadd.f32 0.0, %v488
    %v490 = vpop.f32.mrb[0].mxu0
    %v491 = vadd.f32 0.0, %v490
    %492 = vdwg.mxu0
    %v493 = vand.u32 %v71, 4294901760
    %v494 = vsub.f32 %v71, %v493
    %v495 = vand.u32 %v494, 4294901760
    %v496 = vsub.f32 %v494, %v495
    %v497 = vand.u32 %v496, 4294901760
    %498 = vmatprep.subr.mxu0 %v497
    %v499 = vand.u32 %v70, 4294901760
    %v500 = vsub.f32 %v70, %v499
    %v501 = vand.u32 %v500, 4294901760
    %v502 = vsub.f32 %v500, %v501
    %v503 = vand.u32 %v502, 4294901760
    %504 = vmatpush1.msra.mxu0 %v503
    %v505 = vand.u32 %v75, 4294901760
    %v506 = vsub.f32 %v75, %v505
    %v507 = vand.u32 %v506, 4294901760
    %v508 = vsub.f32 %v506, %v507
    %v509 = vand.u32 %v508, 4294901760
    %510 = vmatprep.subr.mxu0 %v509
    %v511 = vand.u32 %v74, 4294901760
    %v512 = vsub.f32 %v74, %v511
    %v513 = vand.u32 %v512, 4294901760
    %v514 = vsub.f32 %v512, %v513
    %v515 = vand.u32 %v514, 4294901760
    %516 = vmatpush1.msra.mxu0 %v515
    %v517 = vand.u32 %v79, 4294901760
    %v518 = vsub.f32 %v79, %v517
    %v519 = vand.u32 %v518, 4294901760
    %v520 = vsub.f32 %v518, %v519
    %v521 = vand.u32 %v520, 4294901760
    %522 = vmatprep.subr.mxu0 %v521
    %v523 = vand.u32 %v78, 4294901760
    %v524 = vsub.f32 %v78, %v523
    %v525 = vand.u32 %v524, 4294901760
    %v526 = vsub.f32 %v524, %v525
    %v527 = vand.u32 %v526, 4294901760
    %528 = vmatpush1.msra.mxu0 %v527
    %v529 = vand.u32 %v83, 4294901760
    %v530 = vsub.f32 %v83, %v529
    %v531 = vand.u32 %v530, 4294901760
    %v532 = vsub.f32 %v530, %v531
    %v533 = vand.u32 %v532, 4294901760
    %534 = vmatprep.subr.mxu0 %v533
    %v535 = vand.u32 %v82, 4294901760
    %v536 = vsub.f32 %v82, %v535
    %v537 = vand.u32 %v536, 4294901760
    %v538 = vsub.f32 %v536, %v537
    %v539 = vand.u32 %v538, 4294901760
    %540 = vmatpush1.msra.mxu0 %v539
    %v541 = vand.u32 %v87, 4294901760
    %v542 = vsub.f32 %v87, %v541
    %v543 = vand.u32 %v542, 4294901760
    %v544 = vsub.f32 %v542, %v543
    %v545 = vand.u32 %v544, 4294901760
    %546 = vmatprep.subr.mxu0 %v545
    %v547 = vand.u32 %v86, 4294901760
    %v548 = vsub.f32 %v86, %v547
    %v549 = vand.u32 %v548, 4294901760
    %v550 = vsub.f32 %v548, %v549
    %v551 = vand.u32 %v550, 4294901760
    %552 = vmatpush1.msra.mxu0 %v551
    %v553 = vand.u32 %v91, 4294901760
    %v554 = vsub.f32 %v91, %v553
    %v555 = vand.u32 %v554, 4294901760
    %v556 = vsub.f32 %v554, %v555
    %v557 = vand.u32 %v556, 4294901760
    %558 = vmatprep.subr.mxu0 %v557
    %v559 = vand.u32 %v90, 4294901760
    %v560 = vsub.f32 %v90, %v559
    %v561 = vand.u32 %v560, 4294901760
    %v562 = vsub.f32 %v560, %v561
    %v563 = vand.u32 %v562, 4294901760
    %564 = vmatpush1.msra.mxu0 %v563
    %v565 = vand.u32 %v95, 4294901760
    %v566 = vsub.f32 %v95, %v565
    %v567 = vand.u32 %v566, 4294901760
    %v568 = vsub.f32 %v566, %v567
    %v569 = vand.u32 %v568, 4294901760
    %570 = vmatprep.subr.mxu0 %v569
    %v571 = vand.u32 %v94, 4294901760
    %v572 = vsub.f32 %v94, %v571
    %v573 = vand.u32 %v572, 4294901760
    %v574 = vsub.f32 %v572, %v573
    %v575 = vand.u32 %v574, 4294901760
    %576 = vmatpush1.msra.mxu0 %v575
    %v577 = vand.u32 %v99, 4294901760
    %v578 = vsub.f32 %v99, %v577
    %v579 = vand.u32 %v578, 4294901760
    %v580 = vsub.f32 %v578, %v579
    %v581 = vand.u32 %v580, 4294901760
    %582 = vmatprep.subr.mxu0 %v581
    %v583 = vand.u32 %v98, 4294901760
    %v584 = vsub.f32 %v98, %v583
    %v585 = vand.u32 %v584, 4294901760
    %v586 = vsub.f32 %v584, %v585
    %v587 = vand.u32 %v586, 4294901760
    %588 = vmatpush1.msra.mxu0 %v587
    %v589 = vand.u32 %v103, 4294901760
    %v590 = vsub.f32 %v103, %v589
    %v591 = vand.u32 %v590, 4294901760
    %v592 = vsub.f32 %v590, %v591
    %v593 = vand.u32 %v592, 4294901760
    %594 = vmatprep.subr.mxu0 %v593
    %v595 = vand.u32 %v102, 4294901760
    %v596 = vsub.f32 %v102, %v595
    %v597 = vand.u32 %v596, 4294901760
    %v598 = vsub.f32 %v596, %v597
    %v599 = vand.u32 %v598, 4294901760
    %600 = vmatpush1.msra.mxu0 %v599
    %v601 = vand.u32 %v107, 4294901760
    %v602 = vsub.f32 %v107, %v601
    %v603 = vand.u32 %v602, 4294901760
    %v604 = vsub.f32 %v602, %v603
    %v605 = vand.u32 %v604, 4294901760
    %606 = vmatprep.subr.mxu0 %v605
    %v607 = vand.u32 %v106, 4294901760
    %v608 = vsub.f32 %v106, %v607
    %v609 = vand.u32 %v608, 4294901760
    %v610 = vsub.f32 %v608, %v609
    %v611 = vand.u32 %v610, 4294901760
    %612 = vmatpush1.msra.mxu0 %v611
    %v613 = vand.u32 %v111, 4294901760
    %v614 = vsub.f32 %v111, %v613
    %v615 = vand.u32 %v614, 4294901760
    %v616 = vsub.f32 %v614, %v615
    %v617 = vand.u32 %v616, 4294901760
    %618 = vmatprep.subr.mxu0 %v617
    %v619 = vand.u32 %v110, 4294901760
    %v620 = vsub.f32 %v110, %v619
    %v621 = vand.u32 %v620, 4294901760
    %v622 = vsub.f32 %v620, %v621
    %v623 = vand.u32 %v622, 4294901760
    %624 = vmatpush1.msra.mxu0 %v623
    %v625 = vand.u32 %v115, 4294901760
    %v626 = vsub.f32 %v115, %v625
    %v627 = vand.u32 %v626, 4294901760
    %v628 = vsub.f32 %v626, %v627
    %v629 = vand.u32 %v628, 4294901760
    %630 = vmatprep.subr.mxu0 %v629
    %v631 = vand.u32 %v114, 4294901760
    %v632 = vsub.f32 %v114, %v631
    %v633 = vand.u32 %v632, 4294901760
    %v634 = vsub.f32 %v632, %v633
    %v635 = vand.u32 %v634, 4294901760
    %636 = vmatpush1.msra.mxu0 %v635
    %v637 = vand.u32 %v119, 4294901760
    %v638 = vsub.f32 %v119, %v637
    %v639 = vand.u32 %v638, 4294901760
    %v640 = vsub.f32 %v638, %v639
    %v641 = vand.u32 %v640, 4294901760
    %642 = vmatprep.subr.mxu0 %v641
    %v643 = vand.u32 %v118, 4294901760
    %v644 = vsub.f32 %v118, %v643
    %v645 = vand.u32 %v644, 4294901760
    %v646 = vsub.f32 %v644, %v645
    %v647 = vand.u32 %v646, 4294901760
    %648 = vmatpush1.msra.mxu0 %v647
    %v649 = vand.u32 %v123, 4294901760
    %v650 = vsub.f32 %v123, %v649
    %v651 = vand.u32 %v650, 4294901760
    %v652 = vsub.f32 %v650, %v651
    %v653 = vand.u32 %v652, 4294901760
    %654 = vmatprep.subr.mxu0 %v653
    %v655 = vand.u32 %v122, 4294901760
    %v656 = vsub.f32 %v122, %v655
    %v657 = vand.u32 %v656, 4294901760
    %v658 = vsub.f32 %v656, %v657
    %v659 = vand.u32 %v658, 4294901760
    %660 = vmatpush1.msra.mxu0 %v659
    %v661 = vand.u32 %v127, 4294901760
    %v662 = vsub.f32 %v127, %v661
    %v663 = vand.u32 %v662, 4294901760
    %v664 = vsub.f32 %v662, %v663
    %v665 = vand.u32 %v664, 4294901760
    %666 = vmatprep.subr.mxu0 %v665
    %v667 = vand.u32 %v126, 4294901760
    %v668 = vsub.f32 %v126, %v667
    %v669 = vand.u32 %v668, 4294901760
    %v670 = vsub.f32 %v668, %v669
    %v671 = vand.u32 %v670, 4294901760
    %672 = vmatpush1.msra.mxu0 %v671
    %v673 = vand.u32 %v131, 4294901760
    %v674 = vsub.f32 %v131, %v673
    %v675 = vand.u32 %v674, 4294901760
    %v676 = vsub.f32 %v674, %v675
    %v677 = vand.u32 %v676, 4294901760
    %678 = vmatprep.subr.mxu0 %v677
    %v679 = vand.u32 %v130, 4294901760
    %v680 = vsub.f32 %v130, %v679
    %v681 = vand.u32 %v680, 4294901760
    %v682 = vsub.f32 %v680, %v681
    %v683 = vand.u32 %v682, 4294901760
    %684 = vmatpush1.msra.mxu0 %v683
    %v685 = vand.u32 %v135, 4294901760
    %v686 = vsub.f32 %v135, %v685
    %v687 = vand.u32 %v686, 4294901760
    %v688 = vsub.f32 %v686, %v687
    %v689 = vand.u32 %v688, 4294901760
    %690 = vmatprep.subr.mxu0 %v689
    %v691 = vand.u32 %v134, 4294901760
    %v692 = vsub.f32 %v134, %v691
    %v693 = vand.u32 %v692, 4294901760
    %v694 = vsub.f32 %v692, %v693
    %v695 = vand.u32 %v694, 4294901760
    %696 = vmatpush1.msra.mxu0 %v695
    %v697 = vand.u32 %v139, 4294901760
    %v698 = vsub.f32 %v139, %v697
    %v699 = vand.u32 %v698, 4294901760
    %v700 = vsub.f32 %v698, %v699
    %v701 = vand.u32 %v700, 4294901760
    %702 = vmatprep.subr.mxu0 %v701
    %v703 = vand.u32 %v138, 4294901760
    %v704 = vsub.f32 %v138, %v703
    %v705 = vand.u32 %v704, 4294901760
    %v706 = vsub.f32 %v704, %v705
    %v707 = vand.u32 %v706, 4294901760
    %708 = vmatpush1.msra.mxu0 %v707
    %v709 = vand.u32 %v143, 4294901760
    %v710 = vsub.f32 %v143, %v709
    %v711 = vand.u32 %v710, 4294901760
    %v712 = vsub.f32 %v710, %v711
    %v713 = vand.u32 %v712, 4294901760
    %714 = vmatprep.subr.mxu0 %v713
    %v715 = vand.u32 %v142, 4294901760
    %v716 = vsub.f32 %v142, %v715
    %v717 = vand.u32 %v716, 4294901760
    %v718 = vsub.f32 %v716, %v717
    %v719 = vand.u32 %v718, 4294901760
    %720 = vmatpush1.msra.mxu0 %v719
    %v721 = vand.u32 %v147, 4294901760
    %v722 = vsub.f32 %v147, %v721
    %v723 = vand.u32 %v722, 4294901760
    %v724 = vsub.f32 %v722, %v723
    %v725 = vand.u32 %v724, 4294901760
    %726 = vmatprep.subr.mxu0 %v725
    %v727 = vand.u32 %v146, 4294901760
    %v728 = vsub.f32 %v146, %v727
    %v729 = vand.u32 %v728, 4294901760
    %v730 = vsub.f32 %v728, %v729
    %v731 = vand.u32 %v730, 4294901760
    %732 = vmatpush1.msra.mxu0 %v731
    %v733 = vand.u32 %v151, 4294901760
    %v734 = vsub.f32 %v151, %v733
    %v735 = vand.u32 %v734, 4294901760
    %v736 = vsub.f32 %v734, %v735
    %v737 = vand.u32 %v736, 4294901760
    %738 = vmatprep.subr.mxu0 %v737
    %v739 = vand.u32 %v150, 4294901760
    %v740 = vsub.f32 %v150, %v739
    %v741 = vand.u32 %v740, 4294901760
    %v742 = vsub.f32 %v740, %v741
    %v743 = vand.u32 %v742, 4294901760
    %744 = vmatpush1.msra.mxu0 %v743
    %v745 = vand.u32 %v155, 4294901760
    %v746 = vsub.f32 %v155, %v745
    %v747 = vand.u32 %v746, 4294901760
    %v748 = vsub.f32 %v746, %v747
    %v749 = vand.u32 %v748, 4294901760
    %750 = vmatprep.subr.mxu0 %v749
    %v751 = vand.u32 %v154, 4294901760
    %v752 = vsub.f32 %v154, %v751
    %v753 = vand.u32 %v752, 4294901760
    %v754 = vsub.f32 %v752, %v753
    %v755 = vand.u32 %v754, 4294901760
    %756 = vmatpush1.msra.mxu0 %v755
    %v757 = vand.u32 %v159, 4294901760
    %v758 = vsub.f32 %v159, %v757
    %v759 = vand.u32 %v758, 4294901760
    %v760 = vsub.f32 %v758, %v759
    %v761 = vand.u32 %v760, 4294901760
    %762 = vmatprep.subr.mxu0 %v761
    %v763 = vand.u32 %v158, 4294901760
    %v764 = vsub.f32 %v158, %v763
    %v765 = vand.u32 %v764, 4294901760
    %v766 = vsub.f32 %v764, %v765
    %v767 = vand.u32 %v766, 4294901760
    %768 = vmatpush1.msra.mxu0 %v767
    %v769 = vand.u32 %v163, 4294901760
    %v770 = vsub.f32 %v163, %v769
    %v771 = vand.u32 %v770, 4294901760
    %v772 = vsub.f32 %v770, %v771
    %v773 = vand.u32 %v772, 4294901760
    %774 = vmatprep.subr.mxu0 %v773
    %v775 = vand.u32 %v162, 4294901760
    %v776 = vsub.f32 %v162, %v775
    %v777 = vand.u32 %v776, 4294901760
    %v778 = vsub.f32 %v776, %v777
    %v779 = vand.u32 %v778, 4294901760
    %780 = vmatpush1.msra.mxu0 %v779
    %v781 = vand.u32 %v167, 4294901760
    %v782 = vsub.f32 %v167, %v781
    %v783 = vand.u32 %v782, 4294901760
    %v784 = vsub.f32 %v782, %v783
    %v785 = vand.u32 %v784, 4294901760
    %786 = vmatprep.subr.mxu0 %v785
    %v787 = vand.u32 %v166, 4294901760
    %v788 = vsub.f32 %v166, %v787
    %v789 = vand.u32 %v788, 4294901760
    %v790 = vsub.f32 %v788, %v789
    %v791 = vand.u32 %v790, 4294901760
    %792 = vmatpush1.msra.mxu0 %v791
    %v793 = vand.u32 %v171, 4294901760
    %v794 = vsub.f32 %v171, %v793
    %v795 = vand.u32 %v794, 4294901760
    %v796 = vsub.f32 %v794, %v795
    %v797 = vand.u32 %v796, 4294901760
    %798 = vmatprep.subr.mxu0 %v797
    %v799 = vand.u32 %v170, 4294901760
    %v800 = vsub.f32 %v170, %v799
    %v801 = vand.u32 %v800, 4294901760
    %v802 = vsub.f32 %v800, %v801
    %v803 = vand.u32 %v802, 4294901760
    %804 = vmatpush1.msra.mxu0 %v803
    %v805 = vand.u32 %v175, 4294901760
    %v806 = vsub.f32 %v175, %v805
    %v807 = vand.u32 %v806, 4294901760
    %v808 = vsub.f32 %v806, %v807
    %v809 = vand.u32 %v808, 4294901760
    %810 = vmatprep.subr.mxu0 %v809
    %v811 = vand.u32 %v174, 4294901760
    %v812 = vsub.f32 %v174, %v811
    %v813 = vand.u32 %v812, 4294901760
    %v814 = vsub.f32 %v812, %v813
    %v815 = vand.u32 %v814, 4294901760
    %816 = vmatpush1.msra.mxu0 %v815
    %v817 = vand.u32 %v179, 4294901760
    %v818 = vsub.f32 %v179, %v817
    %v819 = vand.u32 %v818, 4294901760
    %v820 = vsub.f32 %v818, %v819
    %v821 = vand.u32 %v820, 4294901760
    %822 = vmatprep.subr.mxu0 %v821
    %v823 = vand.u32 %v178, 4294901760
    %v824 = vsub.f32 %v178, %v823
    %v825 = vand.u32 %v824, 4294901760
    %v826 = vsub.f32 %v824, %v825
    %v827 = vand.u32 %v826, 4294901760
    %828 = vmatpush1.msra.mxu0 %v827
    %v829 = vand.u32 %v183, 4294901760
    %v830 = vsub.f32 %v183, %v829
    %v831 = vand.u32 %v830, 4294901760
    %v832 = vsub.f32 %v830, %v831
    %v833 = vand.u32 %v832, 4294901760
    %834 = vmatprep.subr.mxu0 %v833
    %v835 = vand.u32 %v182, 4294901760
    %v836 = vsub.f32 %v182, %v835
    %v837 = vand.u32 %v836, 4294901760
    %v838 = vsub.f32 %v836, %v837
    %v839 = vand.u32 %v838, 4294901760
    %840 = vmatpush1.msra.mxu0 %v839
    %v841 = vand.u32 %v187, 4294901760
    %v842 = vsub.f32 %v187, %v841
    %v843 = vand.u32 %v842, 4294901760
    %v844 = vsub.f32 %v842, %v843
    %v845 = vand.u32 %v844, 4294901760
    %846 = vmatprep.subr.mxu0 %v845
    %v847 = vand.u32 %v186, 4294901760
    %v848 = vsub.f32 %v186, %v847
    %v849 = vand.u32 %v848, 4294901760
    %v850 = vsub.f32 %v848, %v849
    %v851 = vand.u32 %v850, 4294901760
    %852 = vmatpush1.msra.mxu0 %v851
    %v853 = vand.u32 %v191, 4294901760
    %v854 = vsub.f32 %v191, %v853
    %v855 = vand.u32 %v854, 4294901760
    %v856 = vsub.f32 %v854, %v855
    %v857 = vand.u32 %v856, 4294901760
    %858 = vmatprep.subr.mxu0 %v857
    %v859 = vand.u32 %v190, 4294901760
    %v860 = vsub.f32 %v190, %v859
    %v861 = vand.u32 %v860, 4294901760
    %v862 = vsub.f32 %v860, %v861
    %v863 = vand.u32 %v862, 4294901760
    %864 = vmatpush1.msra.mxu0 %v863
    %v865 = vand.u32 %v195, 4294901760
    %v866 = vsub.f32 %v195, %v865
    %v867 = vand.u32 %v866, 4294901760
    %v868 = vsub.f32 %v866, %v867
    %v869 = vand.u32 %v868, 4294901760
    %870 = vmatprep.subr.mxu0 %v869
    %v871 = vand.u32 %v194, 4294901760
    %v872 = vsub.f32 %v194, %v871
    %v873 = vand.u32 %v872, 4294901760
    %v874 = vsub.f32 %v872, %v873
    %v875 = vand.u32 %v874, 4294901760
    %876 = vmatpush1.msra.mxu0 %v875
    %v877 = vand.u32 %v342, 4294901760
    %878 = vmatprep.mubr.f32.mxu0 %v877
    %v879 = vand.u32 %v334, 4294901760
    %880 = vmatmul.mubr.f32.gmra.mrb[0].mxu0 %v879
    %v881 = vpop.f32.mrb[0].mxu0
    %v882 = vadd.f32 %v489, %v881
    %v883 = vpop.f32.mrb[0].mxu0
    %v884 = vadd.f32 %v491, %v883
    %885 = vdwg.mxu0
    %v886 = vand.u32 %v71, 4294901760
    %v887 = vsub.f32 %v71, %v886
    %888 = vmatprep.subr.mxu0 %v887
    %v889 = vand.u32 %v70, 4294901760
    %v890 = vsub.f32 %v70, %v889
    %891 = vmatpush1.msra.mxu0 %v890
    %v892 = vand.u32 %v75, 4294901760
    %v893 = vsub.f32 %v75, %v892
    %894 = vmatprep.subr.mxu0 %v893
    %v895 = vand.u32 %v74, 4294901760
    %v896 = vsub.f32 %v74, %v895
    %897 = vmatpush1.msra.mxu0 %v896
    %v898 = vand.u32 %v79, 4294901760
    %v899 = vsub.f32 %v79, %v898
    %900 = vmatprep.subr.mxu0 %v899
    %v901 = vand.u32 %v78, 4294901760
    %v902 = vsub.f32 %v78, %v901
    %903 = vmatpush1.msra.mxu0 %v902
    %v904 = vand.u32 %v83, 4294901760
    %v905 = vsub.f32 %v83, %v904
    %906 = vmatprep.subr.mxu0 %v905
    %v907 = vand.u32 %v82, 4294901760
    %v908 = vsub.f32 %v82, %v907
    %909 = vmatpush1.msra.mxu0 %v908
    %v910 = vand.u32 %v87, 4294901760
    %v911 = vsub.f32 %v87, %v910
    %912 = vmatprep.subr.mxu0 %v911
    %v913 = vand.u32 %v86, 4294901760
    %v914 = vsub.f32 %v86, %v913
    %915 = vmatpush1.msra.mxu0 %v914
    %v916 = vand.u32 %v91, 4294901760
    %v917 = vsub.f32 %v91, %v916
    %918 = vmatprep.subr.mxu0 %v917
    %v919 = vand.u32 %v90, 4294901760
    %v920 = vsub.f32 %v90, %v919
    %921 = vmatpush1.msra.mxu0 %v920
    %v922 = vand.u32 %v95, 4294901760
    %v923 = vsub.f32 %v95, %v922
    %924 = vmatprep.subr.mxu0 %v923
    %v925 = vand.u32 %v94, 4294901760
    %v926 = vsub.f32 %v94, %v925
    %927 = vmatpush1.msra.mxu0 %v926
    %v928 = vand.u32 %v99, 4294901760
    %v929 = vsub.f32 %v99, %v928
    %930 = vmatprep.subr.mxu0 %v929
    %v931 = vand.u32 %v98, 4294901760
    %v932 = vsub.f32 %v98, %v931
    %933 = vmatpush1.msra.mxu0 %v932
    %v934 = vand.u32 %v103, 4294901760
    %v935 = vsub.f32 %v103, %v934
    %936 = vmatprep.subr.mxu0 %v935
    %v937 = vand.u32 %v102, 4294901760
    %v938 = vsub.f32 %v102, %v937
    %939 = vmatpush1.msra.mxu0 %v938
    %v940 = vand.u32 %v107, 4294901760
    %v941 = vsub.f32 %v107, %v940
    %942 = vmatprep.subr.mxu0 %v941
    %v943 = vand.u32 %v106, 4294901760
    %v944 = vsub.f32 %v106, %v943
    %945 = vmatpush1.msra.mxu0 %v944
    %v946 = vand.u32 %v111, 4294901760
    %v947 = vsub.f32 %v111, %v946
    %948 = vmatprep.subr.mxu0 %v947
    %v949 = vand.u32 %v110, 4294901760
    %v950 = vsub.f32 %v110, %v949
    %951 = vmatpush1.msra.mxu0 %v950
    %v952 = vand.u32 %v115, 4294901760
    %v953 = vsub.f32 %v115, %v952
    %954 = vmatprep.subr.mxu0 %v953
    %v955 = vand.u32 %v114, 4294901760
    %v956 = vsub.f32 %v114, %v955
    %957 = vmatpush1.msra.mxu0 %v956
    %v958 = vand.u32 %v119, 4294901760
    %v959 = vsub.f32 %v119, %v958
    %960 = vmatprep.subr.mxu0 %v959
    %v961 = vand.u32 %v118, 4294901760
    %v962 = vsub.f32 %v118, %v961
    %963 = vmatpush1.msra.mxu0 %v962
    %v964 = vand.u32 %v123, 4294901760
    %v965 = vsub.f32 %v123, %v964
    %966 = vmatprep.subr.mxu0 %v965
    %v967 = vand.u32 %v122, 4294901760
    %v968 = vsub.f32 %v122, %v967
    %969 = vmatpush1.msra.mxu0 %v968
    %v970 = vand.u32 %v127, 4294901760
    %v971 = vsub.f32 %v127, %v970
    %972 = vmatprep.subr.mxu0 %v971
    %v973 = vand.u32 %v126, 4294901760
    %v974 = vsub.f32 %v126, %v973
    %975 = vmatpush1.msra.mxu0 %v974
    %v976 = vand.u32 %v131, 4294901760
    %v977 = vsub.f32 %v131, %v976
    %978 = vmatprep.subr.mxu0 %v977
    %v979 = vand.u32 %v130, 4294901760
    %v980 = vsub.f32 %v130, %v979
    %981 = vmatpush1.msra.mxu0 %v980
    %v982 = vand.u32 %v135, 4294901760
    %v983 = vsub.f32 %v135, %v982
    %984 = vmatprep.subr.mxu0 %v983
    %v985 = vand.u32 %v134, 4294901760
    %v986 = vsub.f32 %v134, %v985
    %987 = vmatpush1.msra.mxu0 %v986
    %v988 = vand.u32 %v139, 4294901760
    %v989 = vsub.f32 %v139, %v988
    %990 = vmatprep.subr.mxu0 %v989
    %v991 = vand.u32 %v138, 4294901760
    %v992 = vsub.f32 %v138, %v991
    %993 = vmatpush1.msra.mxu0 %v992
    %v994 = vand.u32 %v143, 4294901760
    %v995 = vsub.f32 %v143, %v994
    %996 = vmatprep.subr.mxu0 %v995
    %v997 = vand.u32 %v142, 4294901760
    %v998 = vsub.f32 %v142, %v997
    %999 = vmatpush1.msra.mxu0 %v998
    %v1000 = vand.u32 %v147, 4294901760
    %v1001 = vsub.f32 %v147, %v1000
    %1002 = vmatprep.subr.mxu0 %v1001
    %v1003 = vand.u32 %v146, 4294901760
    %v1004 = vsub.f32 %v146, %v1003
    %1005 = vmatpush1.msra.mxu0 %v1004
    %v1006 = vand.u32 %v151, 4294901760
    %v1007 = vsub.f32 %v151, %v1006
    %1008 = vmatprep.subr.mxu0 %v1007
    %v1009 = vand.u32 %v150, 4294901760
    %v1010 = vsub.f32 %v150, %v1009
    %1011 = vmatpush1.msra.mxu0 %v1010
    %v1012 = vand.u32 %v155, 4294901760
    %v1013 = vsub.f32 %v155, %v1012
    %1014 = vmatprep.subr.mxu0 %v1013
    %v1015 = vand.u32 %v154, 4294901760
    %v1016 = vsub.f32 %v154, %v1015
    %1017 = vmatpush1.msra.mxu0 %v1016
    %v1018 = vand.u32 %v159, 4294901760
    %v1019 = vsub.f32 %v159, %v1018
    %1020 = vmatprep.subr.mxu0 %v1019
    %v1021 = vand.u32 %v158, 4294901760
    %v1022 = vsub.f32 %v158, %v1021
    %1023 = vmatpush1.msra.mxu0 %v1022
    %v1024 = vand.u32 %v163, 4294901760
    %v1025 = vsub.f32 %v163, %v1024
    %1026 = vmatprep.subr.mxu0 %v1025
    %v1027 = vand.u32 %v162, 4294901760
    %v1028 = vsub.f32 %v162, %v1027
    %1029 = vmatpush1.msra.mxu0 %v1028
    %v1030 = vand.u32 %v167, 4294901760
    %v1031 = vsub.f32 %v167, %v1030
    %1032 = vmatprep.subr.mxu0 %v1031
    %v1033 = vand.u32 %v166, 4294901760
    %v1034 = vsub.f32 %v166, %v1033
    %1035 = vmatpush1.msra.mxu0 %v1034
    %v1036 = vand.u32 %v171, 4294901760
    %v1037 = vsub.f32 %v171, %v1036
    %1038 = vmatprep.subr.mxu0 %v1037
    %v1039 = vand.u32 %v170, 4294901760
    %v1040 = vsub.f32 %v170, %v1039
    %1041 = vmatpush1.msra.mxu0 %v1040
    %v1042 = vand.u32 %v175, 4294901760
    %v1043 = vsub.f32 %v175, %v1042
    %1044 = vmatprep.subr.mxu0 %v1043
    %v1045 = vand.u32 %v174, 4294901760
    %v1046 = vsub.f32 %v174, %v1045
    %1047 = vmatpush1.msra.mxu0 %v1046
    %v1048 = vand.u32 %v179, 4294901760
    %v1049 = vsub.f32 %v179, %v1048
    %1050 = vmatprep.subr.mxu0 %v1049
    %v1051 = vand.u32 %v178, 4294901760
    %v1052 = vsub.f32 %v178, %v1051
    %1053 = vmatpush1.msra.mxu0 %v1052
    %v1054 = vand.u32 %v183, 4294901760
    %v1055 = vsub.f32 %v183, %v1054
    %1056 = vmatprep.subr.mxu0 %v1055
    %v1057 = vand.u32 %v182, 4294901760
    %v1058 = vsub.f32 %v182, %v1057
    %1059 = vmatpush1.msra.mxu0 %v1058
    %v1060 = vand.u32 %v187, 4294901760
    %v1061 = vsub.f32 %v187, %v1060
    %1062 = vmatprep.subr.mxu0 %v1061
    %v1063 = vand.u32 %v186, 4294901760
    %v1064 = vsub.f32 %v186, %v1063
    %1065 = vmatpush1.msra.mxu0 %v1064
    %v1066 = vand.u32 %v191, 4294901760
    %v1067 = vsub.f32 %v191, %v1066
    %1068 = vmatprep.subr.mxu0 %v1067
    %v1069 = vand.u32 %v190, 4294901760
    %v1070 = vsub.f32 %v190, %v1069
    %1071 = vmatpush1.msra.mxu0 %v1070
    %v1072 = vand.u32 %v195, 4294901760
    %v1073 = vsub.f32 %v195, %v1072
    %1074 = vmatprep.subr.mxu0 %v1073
    %v1075 = vand.u32 %v194, 4294901760
    %v1076 = vsub.f32 %v194, %v1075
    %1077 = vmatpush1.msra.mxu0 %v1076
    %v1078 = vand.u32 %v342, 4294901760
    %v1079 = vsub.f32 %v342, %v1078
    %1080 = vmatprep.mubr.f32.mxu0 %v1079
    %v1081 = vand.u32 %v334, 4294901760
    %v1082 = vsub.f32 %v334, %v1081
    %1083 = vmatmul.mubr.f32.gmra.mrb[0].mxu0 %v1082
    %v1084 = vpop.f32.mrb[0].mxu0
    %v1085 = vadd.f32 %v882, %v1084
    %v1086 = vpop.f32.mrb[0].mxu0
    %v1087 = vadd.f32 %v884, %v1086
    %1088 = vdwg.mxu0
    %v1089 = vand.u32 %v71, 4294901760
    %1090 = vmatprep.subr.mxu0 %v1089
    %v1091 = vand.u32 %v70, 4294901760
    %1092 = vmatpush1.msra.mxu0 %v1091
    %v1093 = vand.u32 %v75, 4294901760
    %1094 = vmatprep.subr.mxu0 %v1093
    %v1095 = vand.u32 %v74, 4294901760
    %1096 = vmatpush1.msra.mxu0 %v1095
    %v1097 = vand.u32 %v79, 4294901760
    %1098 = vmatprep.subr.mxu0 %v1097
    %v1099 = vand.u32 %v78, 4294901760
    %1100 = vmatpush1.msra.mxu0 %v1099
    %v1101 = vand.u32 %v83, 4294901760
    %1102 = vmatprep.subr.mxu0 %v1101
    %v1103 = vand.u32 %v82, 4294901760
    %1104 = vmatpush1.msra.mxu0 %v1103
    %v1105 = vand.u32 %v87, 4294901760
    %1106 = vmatprep.subr.mxu0 %v1105
    %v1107 = vand.u32 %v86, 4294901760
    %1108 = vmatpush1.msra.mxu0 %v1107
    %v1109 = vand.u32 %v91, 4294901760
    %1110 = vmatprep.subr.mxu0 %v1109
    %v1111 = vand.u32 %v90, 4294901760
    %1112 = vmatpush1.msra.mxu0 %v1111
    %v1113 = vand.u32 %v95, 4294901760
    %1114 = vmatprep.subr.mxu0 %v1113
    %v1115 = vand.u32 %v94, 4294901760
    %1116 = vmatpush1.msra.mxu0 %v1115
    %v1117 = vand.u32 %v99, 4294901760
    %1118 = vmatprep.subr.mxu0 %v1117
    %v1119 = vand.u32 %v98, 4294901760
    %1120 = vmatpush1.msra.mxu0 %v1119
    %v1121 = vand.u32 %v103, 4294901760
    %1122 = vmatprep.subr.mxu0 %v1121
    %v1123 = vand.u32 %v102, 4294901760
    %1124 = vmatpush1.msra.mxu0 %v1123
    %v1125 = vand.u32 %v107, 4294901760
    %1126 = vmatprep.subr.mxu0 %v1125
    %v1127 = vand.u32 %v106, 4294901760
    %1128 = vmatpush1.msra.mxu0 %v1127
    %v1129 = vand.u32 %v111, 4294901760
    %1130 = vmatprep.subr.mxu0 %v1129
    %v1131 = vand.u32 %v110, 4294901760
    %1132 = vmatpush1.msra.mxu0 %v1131
    %v1133 = vand.u32 %v115, 4294901760
    %1134 = vmatprep.subr.mxu0 %v1133
    %v1135 = vand.u32 %v114, 4294901760
    %1136 = vmatpush1.msra.mxu0 %v1135
    %v1137 = vand.u32 %v119, 4294901760
    %1138 = vmatprep.subr.mxu0 %v1137
    %v1139 = vand.u32 %v118, 4294901760
    %1140 = vmatpush1.msra.mxu0 %v1139
    %v1141 = vand.u32 %v123, 4294901760
    %1142 = vmatprep.subr.mxu0 %v1141
    %v1143 = vand.u32 %v122, 4294901760
    %1144 = vmatpush1.msra.mxu0 %v1143
    %v1145 = vand.u32 %v127, 4294901760
    %1146 = vmatprep.subr.mxu0 %v1145
    %v1147 = vand.u32 %v126, 4294901760
    %1148 = vmatpush1.msra.mxu0 %v1147
    %v1149 = vand.u32 %v131, 4294901760
    %1150 = vmatprep.subr.mxu0 %v1149
    %v1151 = vand.u32 %v130, 4294901760
    %1152 = vmatpush1.msra.mxu0 %v1151
    %v1153 = vand.u32 %v135, 4294901760
    %1154 = vmatprep.subr.mxu0 %v1153
    %v1155 = vand.u32 %v134, 4294901760
    %1156 = vmatpush1.msra.mxu0 %v1155
    %v1157 = vand.u32 %v139, 4294901760
    %1158 = vmatprep.subr.mxu0 %v1157
    %v1159 = vand.u32 %v138, 4294901760
    %1160 = vmatpush1.msra.mxu0 %v1159
    %v1161 = vand.u32 %v143, 4294901760
    %1162 = vmatprep.subr.mxu0 %v1161
    %v1163 = vand.u32 %v142, 4294901760
    %1164 = vmatpush1.msra.mxu0 %v1163
    %v1165 = vand.u32 %v147, 4294901760
    %1166 = vmatprep.subr.mxu0 %v1165
    %v1167 = vand.u32 %v146, 4294901760
    %1168 = vmatpush1.msra.mxu0 %v1167
    %v1169 = vand.u32 %v151, 4294901760
    %1170 = vmatprep.subr.mxu0 %v1169
    %v1171 = vand.u32 %v150, 4294901760
    %1172 = vmatpush1.msra.mxu0 %v1171
    %v1173 = vand.u32 %v155, 4294901760
    %1174 = vmatprep.subr.mxu0 %v1173
    %v1175 = vand.u32 %v154, 4294901760
    %1176 = vmatpush1.msra.mxu0 %v1175
    %v1177 = vand.u32 %v159, 4294901760
    %1178 = vmatprep.subr.mxu0 %v1177
    %v1179 = vand.u32 %v158, 4294901760
    %1180 = vmatpush1.msra.mxu0 %v1179
    %v1181 = vand.u32 %v163, 4294901760
    %1182 = vmatprep.subr.mxu0 %v1181
    %v1183 = vand.u32 %v162, 4294901760
    %1184 = vmatpush1.msra.mxu0 %v1183
    %v1185 = vand.u32 %v167, 4294901760
    %1186 = vmatprep.subr.mxu0 %v1185
    %v1187 = vand.u32 %v166, 4294901760
    %1188 = vmatpush1.msra.mxu0 %v1187
    %v1189 = vand.u32 %v171, 4294901760
    %1190 = vmatprep.subr.mxu0 %v1189
    %v1191 = vand.u32 %v170, 4294901760
    %1192 = vmatpush1.msra.mxu0 %v1191
    %v1193 = vand.u32 %v175, 4294901760
    %1194 = vmatprep.subr.mxu0 %v1193
    %v1195 = vand.u32 %v174, 4294901760
    %1196 = vmatpush1.msra.mxu0 %v1195
    %v1197 = vand.u32 %v179, 4294901760
    %1198 = vmatprep.subr.mxu0 %v1197
    %v1199 = vand.u32 %v178, 4294901760
    %1200 = vmatpush1.msra.mxu0 %v1199
    %v1201 = vand.u32 %v183, 4294901760
    %1202 = vmatprep.subr.mxu0 %v1201
    %v1203 = vand.u32 %v182, 4294901760
    %1204 = vmatpush1.msra.mxu0 %v1203
    %v1205 = vand.u32 %v187, 4294901760
    %1206 = vmatprep.subr.mxu0 %v1205
    %v1207 = vand.u32 %v186, 4294901760
    %1208 = vmatpush1.msra.mxu0 %v1207
    %v1209 = vand.u32 %v191, 4294901760
    %1210 = vmatprep.subr.mxu0 %v1209
    %v1211 = vand.u32 %v190, 4294901760
    %1212 = vmatpush1.msra.mxu0 %v1211
    %v1213 = vand.u32 %v195, 4294901760
    %1214 = vmatprep.subr.mxu0 %v1213
    %v1215 = vand.u32 %v194, 4294901760
    %1216 = vmatpush1.msra.mxu0 %v1215
    %v1217 = vand.u32 %v342, 4294901760
    %v1218 = vsub.f32 %v342, %v1217
    %v1219 = vand.u32 %v1218, 4294901760
    %1220 = vmatprep.mubr.f32.mxu0 %v1219
    %v1221 = vand.u32 %v334, 4294901760
    %v1222 = vsub.f32 %v334, %v1221
    %v1223 = vand.u32 %v1222, 4294901760
    %1224 = vmatmul.mubr.f32.gmra.mrb[0].mxu0 %v1223
    %v1225 = vpop.f32.mrb[0].mxu0
    %v1226 = vadd.f32 %v1085, %v1225
    %v1227 = vpop.f32.mrb[0].mxu0
    %v1228 = vadd.f32 %v1087, %v1227
    %1229 = vdwg.mxu0
    %v1230 = vand.u32 %v71, 4294901760
    %v1231 = vsub.f32 %v71, %v1230
    %v1232 = vand.u32 %v1231, 4294901760
    %1233 = vmatprep.subr.mxu0 %v1232
    %v1234 = vand.u32 %v70, 4294901760
    %v1235 = vsub.f32 %v70, %v1234
    %v1236 = vand.u32 %v1235, 4294901760
    %1237 = vmatpush1.msra.mxu0 %v1236
    %v1238 = vand.u32 %v75, 4294901760
    %v1239 = vsub.f32 %v75, %v1238
    %v1240 = vand.u32 %v1239, 4294901760
    %1241 = vmatprep.subr.mxu0 %v1240
    %v1242 = vand.u32 %v74, 4294901760
    %v1243 = vsub.f32 %v74, %v1242
    %v1244 = vand.u32 %v1243, 4294901760
    %1245 = vmatpush1.msra.mxu0 %v1244
    %v1246 = vand.u32 %v79, 4294901760
    %v1247 = vsub.f32 %v79, %v1246
    %v1248 = vand.u32 %v1247, 4294901760
    %1249 = vmatprep.subr.mxu0 %v1248
    %v1250 = vand.u32 %v78, 4294901760
    %v1251 = vsub.f32 %v78, %v1250
    %v1252 = vand.u32 %v1251, 4294901760
    %1253 = vmatpush1.msra.mxu0 %v1252
    %v1254 = vand.u32 %v83, 4294901760
    %v1255 = vsub.f32 %v83, %v1254
    %v1256 = vand.u32 %v1255, 4294901760
    %1257 = vmatprep.subr.mxu0 %v1256
    %v1258 = vand.u32 %v82, 4294901760
    %v1259 = vsub.f32 %v82, %v1258
    %v1260 = vand.u32 %v1259, 4294901760
    %1261 = vmatpush1.msra.mxu0 %v1260
    %v1262 = vand.u32 %v87, 4294901760
    %v1263 = vsub.f32 %v87, %v1262
    %v1264 = vand.u32 %v1263, 4294901760
    %1265 = vmatprep.subr.mxu0 %v1264
    %v1266 = vand.u32 %v86, 4294901760
    %v1267 = vsub.f32 %v86, %v1266
    %v1268 = vand.u32 %v1267, 4294901760
    %1269 = vmatpush1.msra.mxu0 %v1268
    %v1270 = vand.u32 %v91, 4294901760
    %v1271 = vsub.f32 %v91, %v1270
    %v1272 = vand.u32 %v1271, 4294901760
    %1273 = vmatprep.subr.mxu0 %v1272
    %v1274 = vand.u32 %v90, 4294901760
    %v1275 = vsub.f32 %v90, %v1274
    %v1276 = vand.u32 %v1275, 4294901760
    %1277 = vmatpush1.msra.mxu0 %v1276
    %v1278 = vand.u32 %v95, 4294901760
    %v1279 = vsub.f32 %v95, %v1278
    %v1280 = vand.u32 %v1279, 4294901760
    %1281 = vmatprep.subr.mxu0 %v1280
    %v1282 = vand.u32 %v94, 4294901760
    %v1283 = vsub.f32 %v94, %v1282
    %v1284 = vand.u32 %v1283, 4294901760
    %1285 = vmatpush1.msra.mxu0 %v1284
    %v1286 = vand.u32 %v99, 4294901760
    %v1287 = vsub.f32 %v99, %v1286
    %v1288 = vand.u32 %v1287, 4294901760
    %1289 = vmatprep.subr.mxu0 %v1288
    %v1290 = vand.u32 %v98, 4294901760
    %v1291 = vsub.f32 %v98, %v1290
    %v1292 = vand.u32 %v1291, 4294901760
    %1293 = vmatpush1.msra.mxu0 %v1292
    %v1294 = vand.u32 %v103, 4294901760
    %v1295 = vsub.f32 %v103, %v1294
    %v1296 = vand.u32 %v1295, 4294901760
    %1297 = vmatprep.subr.mxu0 %v1296
    %v1298 = vand.u32 %v102, 4294901760
    %v1299 = vsub.f32 %v102, %v1298
    %v1300 = vand.u32 %v1299, 4294901760
    %1301 = vmatpush1.msra.mxu0 %v1300
    %v1302 = vand.u32 %v107, 4294901760
    %v1303 = vsub.f32 %v107, %v1302
    %v1304 = vand.u32 %v1303, 4294901760
    %1305 = vmatprep.subr.mxu0 %v1304
    %v1306 = vand.u32 %v106, 4294901760
    %v1307 = vsub.f32 %v106, %v1306
    %v1308 = vand.u32 %v1307, 4294901760
    %1309 = vmatpush1.msra.mxu0 %v1308
    %v1310 = vand.u32 %v111, 4294901760
    %v1311 = vsub.f32 %v111, %v1310
    %v1312 = vand.u32 %v1311, 4294901760
    %1313 = vmatprep.subr.mxu0 %v1312
    %v1314 = vand.u32 %v110, 4294901760
    %v1315 = vsub.f32 %v110, %v1314
    %v1316 = vand.u32 %v1315, 4294901760
    %1317 = vmatpush1.msra.mxu0 %v1316
    %v1318 = vand.u32 %v115, 4294901760
    %v1319 = vsub.f32 %v115, %v1318
    %v1320 = vand.u32 %v1319, 4294901760
    %1321 = vmatprep.subr.mxu0 %v1320
    %v1322 = vand.u32 %v114, 4294901760
    %v1323 = vsub.f32 %v114, %v1322
    %v1324 = vand.u32 %v1323, 4294901760
    %1325 = vmatpush1.msra.mxu0 %v1324
    %v1326 = vand.u32 %v119, 4294901760
    %v1327 = vsub.f32 %v119, %v1326
    %v1328 = vand.u32 %v1327, 4294901760
    %1329 = vmatprep.subr.mxu0 %v1328
    %v1330 = vand.u32 %v118, 4294901760
    %v1331 = vsub.f32 %v118, %v1330
    %v1332 = vand.u32 %v1331, 4294901760
    %1333 = vmatpush1.msra.mxu0 %v1332
    %v1334 = vand.u32 %v123, 4294901760
    %v1335 = vsub.f32 %v123, %v1334
    %v1336 = vand.u32 %v1335, 4294901760
    %1337 = vmatprep.subr.mxu0 %v1336
    %v1338 = vand.u32 %v122, 4294901760
    %v1339 = vsub.f32 %v122, %v1338
    %v1340 = vand.u32 %v1339, 4294901760
    %1341 = vmatpush1.msra.mxu0 %v1340
    %v1342 = vand.u32 %v127, 4294901760
    %v1343 = vsub.f32 %v127, %v1342
    %v1344 = vand.u32 %v1343, 4294901760
    %1345 = vmatprep.subr.mxu0 %v1344
    %v1346 = vand.u32 %v126, 4294901760
    %v1347 = vsub.f32 %v126, %v1346
    %v1348 = vand.u32 %v1347, 4294901760
    %1349 = vmatpush1.msra.mxu0 %v1348
    %v1350 = vand.u32 %v131, 4294901760
    %v1351 = vsub.f32 %v131, %v1350
    %v1352 = vand.u32 %v1351, 4294901760
    %1353 = vmatprep.subr.mxu0 %v1352
    %v1354 = vand.u32 %v130, 4294901760
    %v1355 = vsub.f32 %v130, %v1354
    %v1356 = vand.u32 %v1355, 4294901760
    %1357 = vmatpush1.msra.mxu0 %v1356
    %v1358 = vand.u32 %v135, 4294901760
    %v1359 = vsub.f32 %v135, %v1358
    %v1360 = vand.u32 %v1359, 4294901760
    %1361 = vmatprep.subr.mxu0 %v1360
    %v1362 = vand.u32 %v134, 4294901760
    %v1363 = vsub.f32 %v134, %v1362
    %v1364 = vand.u32 %v1363, 4294901760
    %1365 = vmatpush1.msra.mxu0 %v1364
    %v1366 = vand.u32 %v139, 4294901760
    %v1367 = vsub.f32 %v139, %v1366
    %v1368 = vand.u32 %v1367, 4294901760
    %1369 = vmatprep.subr.mxu0 %v1368
    %v1370 = vand.u32 %v138, 4294901760
    %v1371 = vsub.f32 %v138, %v1370
    %v1372 = vand.u32 %v1371, 4294901760
    %1373 = vmatpush1.msra.mxu0 %v1372
    %v1374 = vand.u32 %v143, 4294901760
    %v1375 = vsub.f32 %v143, %v1374
    %v1376 = vand.u32 %v1375, 4294901760
    %1377 = vmatprep.subr.mxu0 %v1376
    %v1378 = vand.u32 %v142, 4294901760
    %v1379 = vsub.f32 %v142, %v1378
    %v1380 = vand.u32 %v1379, 4294901760
    %1381 = vmatpush1.msra.mxu0 %v1380
    %v1382 = vand.u32 %v147, 4294901760
    %v1383 = vsub.f32 %v147, %v1382
    %v1384 = vand.u32 %v1383, 4294901760
    %1385 = vmatprep.subr.mxu0 %v1384
    %v1386 = vand.u32 %v146, 4294901760
    %v1387 = vsub.f32 %v146, %v1386
    %v1388 = vand.u32 %v1387, 4294901760
    %1389 = vmatpush1.msra.mxu0 %v1388
    %v1390 = vand.u32 %v151, 4294901760
    %v1391 = vsub.f32 %v151, %v1390
    %v1392 = vand.u32 %v1391, 4294901760
    %1393 = vmatprep.subr.mxu0 %v1392
    %v1394 = vand.u32 %v150, 4294901760
    %v1395 = vsub.f32 %v150, %v1394
    %v1396 = vand.u32 %v1395, 4294901760
    %1397 = vmatpush1.msra.mxu0 %v1396
    %v1398 = vand.u32 %v155, 4294901760
    %v1399 = vsub.f32 %v155, %v1398
    %v1400 = vand.u32 %v1399, 4294901760
    %1401 = vmatprep.subr.mxu0 %v1400
    %v1402 = vand.u32 %v154, 4294901760
    %v1403 = vsub.f32 %v154, %v1402
    %v1404 = vand.u32 %v1403, 4294901760
    %1405 = vmatpush1.msra.mxu0 %v1404
    %v1406 = vand.u32 %v159, 4294901760
    %v1407 = vsub.f32 %v159, %v1406
    %v1408 = vand.u32 %v1407, 4294901760
    %1409 = vmatprep.subr.mxu0 %v1408
    %v1410 = vand.u32 %v158, 4294901760
    %v1411 = vsub.f32 %v158, %v1410
    %v1412 = vand.u32 %v1411, 4294901760
    %1413 = vmatpush1.msra.mxu0 %v1412
    %v1414 = vand.u32 %v163, 4294901760
    %v1415 = vsub.f32 %v163, %v1414
    %v1416 = vand.u32 %v1415, 4294901760
    %1417 = vmatprep.subr.mxu0 %v1416
    %v1418 = vand.u32 %v162, 4294901760
    %v1419 = vsub.f32 %v162, %v1418
    %v1420 = vand.u32 %v1419, 4294901760
    %1421 = vmatpush1.msra.mxu0 %v1420
    %v1422 = vand.u32 %v167, 4294901760
    %v1423 = vsub.f32 %v167, %v1422
    %v1424 = vand.u32 %v1423, 4294901760
    %1425 = vmatprep.subr.mxu0 %v1424
    %v1426 = vand.u32 %v166, 4294901760
    %v1427 = vsub.f32 %v166, %v1426
    %v1428 = vand.u32 %v1427, 4294901760
    %1429 = vmatpush1.msra.mxu0 %v1428
    %v1430 = vand.u32 %v171, 4294901760
    %v1431 = vsub.f32 %v171, %v1430
    %v1432 = vand.u32 %v1431, 4294901760
    %1433 = vmatprep.subr.mxu0 %v1432
    %v1434 = vand.u32 %v170, 4294901760
    %v1435 = vsub.f32 %v170, %v1434
    %v1436 = vand.u32 %v1435, 4294901760
    %1437 = vmatpush1.msra.mxu0 %v1436
    %v1438 = vand.u32 %v175, 4294901760
    %v1439 = vsub.f32 %v175, %v1438
    %v1440 = vand.u32 %v1439, 4294901760
    %1441 = vmatprep.subr.mxu0 %v1440
    %v1442 = vand.u32 %v174, 4294901760
    %v1443 = vsub.f32 %v174, %v1442
    %v1444 = vand.u32 %v1443, 4294901760
    %1445 = vmatpush1.msra.mxu0 %v1444
    %v1446 = vand.u32 %v179, 4294901760
    %v1447 = vsub.f32 %v179, %v1446
    %v1448 = vand.u32 %v1447, 4294901760
    %1449 = vmatprep.subr.mxu0 %v1448
    %v1450 = vand.u32 %v178, 4294901760
    %v1451 = vsub.f32 %v178, %v1450
    %v1452 = vand.u32 %v1451, 4294901760
    %1453 = vmatpush1.msra.mxu0 %v1452
    %v1454 = vand.u32 %v183, 4294901760
    %v1455 = vsub.f32 %v183, %v1454
    %v1456 = vand.u32 %v1455, 4294901760
    %1457 = vmatprep.subr.mxu0 %v1456
    %v1458 = vand.u32 %v182, 4294901760
    %v1459 = vsub.f32 %v182, %v1458
    %v1460 = vand.u32 %v1459, 4294901760
    %1461 = vmatpush1.msra.mxu0 %v1460
    %v1462 = vand.u32 %v187, 4294901760
    %v1463 = vsub.f32 %v187, %v1462
    %v1464 = vand.u32 %v1463, 4294901760
    %1465 = vmatprep.subr.mxu0 %v1464
    %v1466 = vand.u32 %v186, 4294901760
    %v1467 = vsub.f32 %v186, %v1466
    %v1468 = vand.u32 %v1467, 4294901760
    %1469 = vmatpush1.msra.mxu0 %v1468
    %v1470 = vand.u32 %v191, 4294901760
    %v1471 = vsub.f32 %v191, %v1470
    %v1472 = vand.u32 %v1471, 4294901760
    %1473 = vmatprep.subr.mxu0 %v1472
    %v1474 = vand.u32 %v190, 4294901760
    %v1475 = vsub.f32 %v190, %v1474
    %v1476 = vand.u32 %v1475, 4294901760
    %1477 = vmatpush1.msra.mxu0 %v1476
    %v1478 = vand.u32 %v195, 4294901760
    %v1479 = vsub.f32 %v195, %v1478
    %v1480 = vand.u32 %v1479, 4294901760
    %1481 = vmatprep.subr.mxu0 %v1480
    %v1482 = vand.u32 %v194, 4294901760
    %v1483 = vsub.f32 %v194, %v1482
    %v1484 = vand.u32 %v1483, 4294901760
    %1485 = vmatpush1.msra.mxu0 %v1484
    %v1486 = vand.u32 %v342, 4294901760
    %1487 = vmatprep.mubr.f32.mxu0 %v1486
    %v1488 = vand.u32 %v334, 4294901760
    %1489 = vmatmul.mubr.f32.gmra.mrb[0].mxu0 %v1488
    %v1490 = vpop.f32.mrb[0].mxu0
    %v1491 = vadd.f32 %v1226, %v1490
    %v1492 = vpop.f32.mrb[0].mxu0
    %v1493 = vadd.f32 %v1228, %v1492
    %1494 = vdwg.mxu0
    %v1495 = vand.u32 %v71, 4294901760
    %1496 = vmatprep.subr.mxu0 %v1495
    %v1497 = vand.u32 %v70, 4294901760
    %1498 = vmatpush1.msra.mxu0 %v1497
    %v1499 = vand.u32 %v75, 4294901760
    %1500 = vmatprep.subr.mxu0 %v1499
    %v1501 = vand.u32 %v74, 4294901760
    %1502 = vmatpush1.msra.mxu0 %v1501
    %v1503 = vand.u32 %v79, 4294901760
    %1504 = vmatprep.subr.mxu0 %v1503
    %v1505 = vand.u32 %v78, 4294901760
    %1506 = vmatpush1.msra.mxu0 %v1505
    %v1507 = vand.u32 %v83, 4294901760
    %1508 = vmatprep.subr.mxu0 %v1507
    %v1509 = vand.u32 %v82, 4294901760
    %1510 = vmatpush1.msra.mxu0 %v1509
    %v1511 = vand.u32 %v87, 4294901760
    %1512 = vmatprep.subr.mxu0 %v1511
    %v1513 = vand.u32 %v86, 4294901760
    %1514 = vmatpush1.msra.mxu0 %v1513
    %v1515 = vand.u32 %v91, 4294901760
    %1516 = vmatprep.subr.mxu0 %v1515
    %v1517 = vand.u32 %v90, 4294901760
    %1518 = vmatpush1.msra.mxu0 %v1517
    %v1519 = vand.u32 %v95, 4294901760
    %1520 = vmatprep.subr.mxu0 %v1519
    %v1521 = vand.u32 %v94, 4294901760
    %1522 = vmatpush1.msra.mxu0 %v1521
    %v1523 = vand.u32 %v99, 4294901760
    %1524 = vmatprep.subr.mxu0 %v1523
    %v1525 = vand.u32 %v98, 4294901760
    %1526 = vmatpush1.msra.mxu0 %v1525
    %v1527 = vand.u32 %v103, 4294901760
    %1528 = vmatprep.subr.mxu0 %v1527
    %v1529 = vand.u32 %v102, 4294901760
    %1530 = vmatpush1.msra.mxu0 %v1529
    %v1531 = vand.u32 %v107, 4294901760
    %1532 = vmatprep.subr.mxu0 %v1531
    %v1533 = vand.u32 %v106, 4294901760
    %1534 = vmatpush1.msra.mxu0 %v1533
    %v1535 = vand.u32 %v111, 4294901760
    %1536 = vmatprep.subr.mxu0 %v1535
    %v1537 = vand.u32 %v110, 4294901760
    %1538 = vmatpush1.msra.mxu0 %v1537
    %v1539 = vand.u32 %v115, 4294901760
    %1540 = vmatprep.subr.mxu0 %v1539
    %v1541 = vand.u32 %v114, 4294901760
    %1542 = vmatpush1.msra.mxu0 %v1541
    %v1543 = vand.u32 %v119, 4294901760
    %1544 = vmatprep.subr.mxu0 %v1543
    %v1545 = vand.u32 %v118, 4294901760
    %1546 = vmatpush1.msra.mxu0 %v1545
    %v1547 = vand.u32 %v123, 4294901760
    %1548 = vmatprep.subr.mxu0 %v1547
    %v1549 = vand.u32 %v122, 4294901760
    %1550 = vmatpush1.msra.mxu0 %v1549
    %v1551 = vand.u32 %v127, 4294901760
    %1552 = vmatprep.subr.mxu0 %v1551
    %v1553 = vand.u32 %v126, 4294901760
    %1554 = vmatpush1.msra.mxu0 %v1553
    %v1555 = vand.u32 %v131, 4294901760
    %1556 = vmatprep.subr.mxu0 %v1555
    %v1557 = vand.u32 %v130, 4294901760
    %1558 = vmatpush1.msra.mxu0 %v1557
    %v1559 = vand.u32 %v135, 4294901760
    %1560 = vmatprep.subr.mxu0 %v1559
    %v1561 = vand.u32 %v134, 4294901760
    %1562 = vmatpush1.msra.mxu0 %v1561
    %v1563 = vand.u32 %v139, 4294901760
    %1564 = vmatprep.subr.mxu0 %v1563
    %v1565 = vand.u32 %v138, 4294901760
    %1566 = vmatpush1.msra.mxu0 %v1565
    %v1567 = vand.u32 %v143, 4294901760
    %1568 = vmatprep.subr.mxu0 %v1567
    %v1569 = vand.u32 %v142, 4294901760
    %1570 = vmatpush1.msra.mxu0 %v1569
    %v1571 = vand.u32 %v147, 4294901760
    %1572 = vmatprep.subr.mxu0 %v1571
    %v1573 = vand.u32 %v146, 4294901760
    %1574 = vmatpush1.msra.mxu0 %v1573
    %v1575 = vand.u32 %v151, 4294901760
    %1576 = vmatprep.subr.mxu0 %v1575
    %v1577 = vand.u32 %v150, 4294901760
    %1578 = vmatpush1.msra.mxu0 %v1577
    %v1579 = vand.u32 %v155, 4294901760
    %1580 = vmatprep.subr.mxu0 %v1579
    %v1581 = vand.u32 %v154, 4294901760
    %1582 = vmatpush1.msra.mxu0 %v1581
    %v1583 = vand.u32 %v159, 4294901760
    %1584 = vmatprep.subr.mxu0 %v1583
    %v1585 = vand.u32 %v158, 4294901760
    %1586 = vmatpush1.msra.mxu0 %v1585
    %v1587 = vand.u32 %v163, 4294901760
    %1588 = vmatprep.subr.mxu0 %v1587
    %v1589 = vand.u32 %v162, 4294901760
    %1590 = vmatpush1.msra.mxu0 %v1589
    %v1591 = vand.u32 %v167, 4294901760
    %1592 = vmatprep.subr.mxu0 %v1591
    %v1593 = vand.u32 %v166, 4294901760
    %1594 = vmatpush1.msra.mxu0 %v1593
    %v1595 = vand.u32 %v171, 4294901760
    %1596 = vmatprep.subr.mxu0 %v1595
    %v1597 = vand.u32 %v170, 4294901760
    %1598 = vmatpush1.msra.mxu0 %v1597
    %v1599 = vand.u32 %v175, 4294901760
    %1600 = vmatprep.subr.mxu0 %v1599
    %v1601 = vand.u32 %v174, 4294901760
    %1602 = vmatpush1.msra.mxu0 %v1601
    %v1603 = vand.u32 %v179, 4294901760
    %1604 = vmatprep.subr.mxu0 %v1603
    %v1605 = vand.u32 %v178, 4294901760
    %1606 = vmatpush1.msra.mxu0 %v1605
    %v1607 = vand.u32 %v183, 4294901760
    %1608 = vmatprep.subr.mxu0 %v1607
    %v1609 = vand.u32 %v182, 4294901760
    %1610 = vmatpush1.msra.mxu0 %v1609
    %v1611 = vand.u32 %v187, 4294901760
    %1612 = vmatprep.subr.mxu0 %v1611
    %v1613 = vand.u32 %v186, 4294901760
    %1614 = vmatpush1.msra.mxu0 %v1613
    %v1615 = vand.u32 %v191, 4294901760
    %1616 = vmatprep.subr.mxu0 %v1615
    %v1617 = vand.u32 %v190, 4294901760
    %1618 = vmatpush1.msra.mxu0 %v1617
    %v1619 = vand.u32 %v195, 4294901760
    %1620 = vmatprep.subr.mxu0 %v1619
    %v1621 = vand.u32 %v194, 4294901760
    %1622 = vmatpush1.msra.mxu0 %v1621
    %v1623 = vand.u32 %v342, 4294901760
    %1624 = vmatprep.mubr.f32.mxu0 %v1623
    %v1625 = vand.u32 %v334, 4294901760
    %1626 = vmatmul.mubr.f32.gmra.mrb[0].mxu0 %v1625
    %v1627 = vpop.f32.mrb[0].mxu0
    %v1628 = vadd.f32 %v1491, %v1627
    %v1629 = vpop.f32.mrb[0].mxu0
    %v1630 = vadd.f32 %v1493, %v1629
    %1631 = vdwg.mxu0
    %v1632 = vand.u32 %v199, 4294901760
    %1633 = vmatprep.subr.mxu0 %v1632
    %v1634 = vand.u32 %v198, 4294901760
    %1635 = vmatpush1.msra.mxu0 %v1634
    %v1636 = vand.u32 %v203, 4294901760
    %1637 = vmatprep.subr.mxu0 %v1636
    %v1638 = vand.u32 %v202, 4294901760
    %1639 = vmatpush1.msra.mxu0 %v1638
    %v1640 = vand.u32 %v207, 4294901760
    %1641 = vmatprep.subr.mxu0 %v1640
    %v1642 = vand.u32 %v206, 4294901760
    %1643 = vmatpush1.msra.mxu0 %v1642
    %v1644 = vand.u32 %v211, 4294901760
    %1645 = vmatprep.subr.mxu0 %v1644
    %v1646 = vand.u32 %v210, 4294901760
    %1647 = vmatpush1.msra.mxu0 %v1646
    %v1648 = vand.u32 %v215, 4294901760
    %1649 = vmatprep.subr.mxu0 %v1648
    %v1650 = vand.u32 %v214, 4294901760
    %1651 = vmatpush1.msra.mxu0 %v1650
    %v1652 = vand.u32 %v219, 4294901760
    %1653 = vmatprep.subr.mxu0 %v1652
    %v1654 = vand.u32 %v218, 4294901760
    %1655 = vmatpush1.msra.mxu0 %v1654
    %v1656 = vand.u32 %v223, 4294901760
    %1657 = vmatprep.subr.mxu0 %v1656
    %v1658 = vand.u32 %v222, 4294901760
    %1659 = vmatpush1.msra.mxu0 %v1658
    %v1660 = vand.u32 %v227, 4294901760
    %1661 = vmatprep.subr.mxu0 %v1660
    %v1662 = vand.u32 %v226, 4294901760
    %1663 = vmatpush1.msra.mxu0 %v1662
    %v1664 = vand.u32 %v231, 4294901760
    %1665 = vmatprep.subr.mxu0 %v1664
    %v1666 = vand.u32 %v230, 4294901760
    %1667 = vmatpush1.msra.mxu0 %v1666
    %v1668 = vand.u32 %v235, 4294901760
    %1669 = vmatprep.subr.mxu0 %v1668
    %v1670 = vand.u32 %v234, 4294901760
    %1671 = vmatpush1.msra.mxu0 %v1670
    %v1672 = vand.u32 %v239, 4294901760
    %1673 = vmatprep.subr.mxu0 %v1672
    %v1674 = vand.u32 %v238, 4294901760
    %1675 = vmatpush1.msra.mxu0 %v1674
    %v1676 = vand.u32 %v243, 4294901760
    %1677 = vmatprep.subr.mxu0 %v1676
    %v1678 = vand.u32 %v242, 4294901760
    %1679 = vmatpush1.msra.mxu0 %v1678
    %v1680 = vand.u32 %v247, 4294901760
    %1681 = vmatprep.subr.mxu0 %v1680
    %v1682 = vand.u32 %v246, 4294901760
    %1683 = vmatpush1.msra.mxu0 %v1682
    %v1684 = vand.u32 %v251, 4294901760
    %1685 = vmatprep.subr.mxu0 %v1684
    %v1686 = vand.u32 %v250, 4294901760
    %1687 = vmatpush1.msra.mxu0 %v1686
    %v1688 = vand.u32 %v255, 4294901760
    %1689 = vmatprep.subr.mxu0 %v1688
    %v1690 = vand.u32 %v254, 4294901760
    %1691 = vmatpush1.msra.mxu0 %v1690
    %v1692 = vand.u32 %v259, 4294901760
    %1693 = vmatprep.subr.mxu0 %v1692
    %v1694 = vand.u32 %v258, 4294901760
    %1695 = vmatpush1.msra.mxu0 %v1694
    %v1696 = vand.u32 %v263, 4294901760
    %1697 = vmatprep.subr.mxu0 %v1696
    %v1698 = vand.u32 %v262, 4294901760
    %1699 = vmatpush1.msra.mxu0 %v1698
    %v1700 = vand.u32 %v267, 4294901760
    %1701 = vmatprep.subr.mxu0 %v1700
    %v1702 = vand.u32 %v266, 4294901760
    %1703 = vmatpush1.msra.mxu0 %v1702
    %v1704 = vand.u32 %v271, 4294901760
    %1705 = vmatprep.subr.mxu0 %v1704
    %v1706 = vand.u32 %v270, 4294901760
    %1707 = vmatpush1.msra.mxu0 %v1706
    %v1708 = vand.u32 %v275, 4294901760
    %1709 = vmatprep.subr.mxu0 %v1708
    %v1710 = vand.u32 %v274, 4294901760
    %1711 = vmatpush1.msra.mxu0 %v1710
    %v1712 = vand.u32 %v279, 4294901760
    %1713 = vmatprep.subr.mxu0 %v1712
    %v1714 = vand.u32 %v278, 4294901760
    %1715 = vmatpush1.msra.mxu0 %v1714
    %v1716 = vand.u32 %v283, 4294901760
    %1717 = vmatprep.subr.mxu0 %v1716
    %v1718 = vand.u32 %v282, 4294901760
    %1719 = vmatpush1.msra.mxu0 %v1718
    %v1720 = vand.u32 %v287, 4294901760
    %1721 = vmatprep.subr.mxu0 %v1720
    %v1722 = vand.u32 %v286, 4294901760
    %1723 = vmatpush1.msra.mxu0 %v1722
    %v1724 = vand.u32 %v291, 4294901760
    %1725 = vmatprep.subr.mxu0 %v1724
    %v1726 = vand.u32 %v290, 4294901760
    %1727 = vmatpush1.msra.mxu0 %v1726
    %v1728 = vand.u32 %v295, 4294901760
    %1729 = vmatprep.subr.mxu0 %v1728
    %v1730 = vand.u32 %v294, 4294901760
    %1731 = vmatpush1.msra.mxu0 %v1730
    %v1732 = vand.u32 %v299, 4294901760
    %1733 = vmatprep.subr.mxu0 %v1732
    %v1734 = vand.u32 %v298, 4294901760
    %1735 = vmatpush1.msra.mxu0 %v1734
    %v1736 = vand.u32 %v303, 4294901760
    %1737 = vmatprep.subr.mxu0 %v1736
    %v1738 = vand.u32 %v302, 4294901760
    %1739 = vmatpush1.msra.mxu0 %v1738
    %v1740 = vand.u32 %v307, 4294901760
    %1741 = vmatprep.subr.mxu0 %v1740
    %v1742 = vand.u32 %v306, 4294901760
    %1743 = vmatpush1.msra.mxu0 %v1742
    %v1744 = vand.u32 %v311, 4294901760
    %1745 = vmatprep.subr.mxu0 %v1744
    %v1746 = vand.u32 %v310, 4294901760
    %1747 = vmatpush1.msra.mxu0 %v1746
    %v1748 = vand.u32 %v315, 4294901760
    %1749 = vmatprep.subr.mxu0 %v1748
    %v1750 = vand.u32 %v314, 4294901760
    %1751 = vmatpush1.msra.mxu0 %v1750
    %v1752 = vand.u32 %v319, 4294901760
    %1753 = vmatprep.subr.mxu0 %v1752
    %v1754 = vand.u32 %v318, 4294901760
    %1755 = vmatpush1.msra.mxu0 %v1754
    %v1756 = vand.u32 %v323, 4294901760
    %1757 = vmatprep.subr.mxu0 %v1756
    %v1758 = vand.u32 %v322, 4294901760
    %1759 = vmatpush1.msra.mxu0 %v1758
    %v1760 = vand.u32 %v343, 4294901760
    %v1761 = vsub.f32 %v343, %v1760
    %v1762 = vand.u32 %v1761, 4294901760
    %v1763 = vsub.f32 %v1761, %v1762
    %v1764 = vand.u32 %v1763, 4294901760
    %1765 = vmatprep.mubr.f32.mxu0 %v1764
    %v1766 = vand.u32 %v341, 4294901760
    %v1767 = vsub.f32 %v341, %v1766
    %v1768 = vand.u32 %v1767, 4294901760
    %v1769 = vsub.f32 %v1767, %v1768
    %v1770 = vand.u32 %v1769, 4294901760
    %1771 = vmatmul.mubr.f32.gmra.mrb[0].mxu0 %v1770
    %v1772 = vpop.f32.mrb[0].mxu0
    %v1773 = vadd.f32 %v1628, %v1772
    %v1774 = vpop.f32.mrb[0].mxu0
    %v1775 = vadd.f32 %v1630, %v1774
    %1776 = vdwg.mxu0
    %v1777 = vand.u32 %v199, 4294901760
    %v1778 = vsub.f32 %v199, %v1777
    %v1779 = vand.u32 %v1778, 4294901760
    %v1780 = vsub.f32 %v1778, %v1779
    %v1781 = vand.u32 %v1780, 4294901760
    %1782 = vmatprep.subr.mxu0 %v1781
    %v1783 = vand.u32 %v198, 4294901760
    %v1784 = vsub.f32 %v198, %v1783
    %v1785 = vand.u32 %v1784, 4294901760
    %v1786 = vsub.f32 %v1784, %v1785
    %v1787 = vand.u32 %v1786, 4294901760
    %1788 = vmatpush1.msra.mxu0 %v1787
    %v1789 = vand.u32 %v203, 4294901760
    %v1790 = vsub.f32 %v203, %v1789
    %v1791 = vand.u32 %v1790, 4294901760
    %v1792 = vsub.f32 %v1790, %v1791
    %v1793 = vand.u32 %v1792, 4294901760
    %1794 = vmatprep.subr.mxu0 %v1793
    %v1795 = vand.u32 %v202, 4294901760
    %v1796 = vsub.f32 %v202, %v1795
    %v1797 = vand.u32 %v1796, 4294901760
    %v1798 = vsub.f32 %v1796, %v1797
    %v1799 = vand.u32 %v1798, 4294901760
    %1800 = vmatpush1.msra.mxu0 %v1799
    %v1801 = vand.u32 %v207, 4294901760
    %v1802 = vsub.f32 %v207, %v1801
    %v1803 = vand.u32 %v1802, 4294901760
    %v1804 = vsub.f32 %v1802, %v1803
    %v1805 = vand.u32 %v1804, 4294901760
    %1806 = vmatprep.subr.mxu0 %v1805
    %v1807 = vand.u32 %v206, 4294901760
    %v1808 = vsub.f32 %v206, %v1807
    %v1809 = vand.u32 %v1808, 4294901760
    %v1810 = vsub.f32 %v1808, %v1809
    %v1811 = vand.u32 %v1810, 4294901760
    %1812 = vmatpush1.msra.mxu0 %v1811
    %v1813 = vand.u32 %v211, 4294901760
    %v1814 = vsub.f32 %v211, %v1813
    %v1815 = vand.u32 %v1814, 4294901760
    %v1816 = vsub.f32 %v1814, %v1815
    %v1817 = vand.u32 %v1816, 4294901760
    %1818 = vmatprep.subr.mxu0 %v1817
    %v1819 = vand.u32 %v210, 4294901760
    %v1820 = vsub.f32 %v210, %v1819
    %v1821 = vand.u32 %v1820, 4294901760
    %v1822 = vsub.f32 %v1820, %v1821
    %v1823 = vand.u32 %v1822, 4294901760
    %1824 = vmatpush1.msra.mxu0 %v1823
    %v1825 = vand.u32 %v215, 4294901760
    %v1826 = vsub.f32 %v215, %v1825
    %v1827 = vand.u32 %v1826, 4294901760
    %v1828 = vsub.f32 %v1826, %v1827
    %v1829 = vand.u32 %v1828, 4294901760
    %1830 = vmatprep.subr.mxu0 %v1829
    %v1831 = vand.u32 %v214, 4294901760
    %v1832 = vsub.f32 %v214, %v1831
    %v1833 = vand.u32 %v1832, 4294901760
    %v1834 = vsub.f32 %v1832, %v1833
    %v1835 = vand.u32 %v1834, 4294901760
    %1836 = vmatpush1.msra.mxu0 %v1835
    %v1837 = vand.u32 %v219, 4294901760
    %v1838 = vsub.f32 %v219, %v1837
    %v1839 = vand.u32 %v1838, 4294901760
    %v1840 = vsub.f32 %v1838, %v1839
    %v1841 = vand.u32 %v1840, 4294901760
    %1842 = vmatprep.subr.mxu0 %v1841
    %v1843 = vand.u32 %v218, 4294901760
    %v1844 = vsub.f32 %v218, %v1843
    %v1845 = vand.u32 %v1844, 4294901760
    %v1846 = vsub.f32 %v1844, %v1845
    %v1847 = vand.u32 %v1846, 4294901760
    %1848 = vmatpush1.msra.mxu0 %v1847
    %v1849 = vand.u32 %v223, 4294901760
    %v1850 = vsub.f32 %v223, %v1849
    %v1851 = vand.u32 %v1850, 4294901760
    %v1852 = vsub.f32 %v1850, %v1851
    %v1853 = vand.u32 %v1852, 4294901760
    %1854 = vmatprep.subr.mxu0 %v1853
    %v1855 = vand.u32 %v222, 4294901760
    %v1856 = vsub.f32 %v222, %v1855
    %v1857 = vand.u32 %v1856, 4294901760
    %v1858 = vsub.f32 %v1856, %v1857
    %v1859 = vand.u32 %v1858, 4294901760
    %1860 = vmatpush1.msra.mxu0 %v1859
    %v1861 = vand.u32 %v227, 4294901760
    %v1862 = vsub.f32 %v227, %v1861
    %v1863 = vand.u32 %v1862, 4294901760
    %v1864 = vsub.f32 %v1862, %v1863
    %v1865 = vand.u32 %v1864, 4294901760
    %1866 = vmatprep.subr.mxu0 %v1865
    %v1867 = vand.u32 %v226, 4294901760
    %v1868 = vsub.f32 %v226, %v1867
    %v1869 = vand.u32 %v1868, 4294901760
    %v1870 = vsub.f32 %v1868, %v1869
    %v1871 = vand.u32 %v1870, 4294901760
    %1872 = vmatpush1.msra.mxu0 %v1871
    %v1873 = vand.u32 %v231, 4294901760
    %v1874 = vsub.f32 %v231, %v1873
    %v1875 = vand.u32 %v1874, 4294901760
    %v1876 = vsub.f32 %v1874, %v1875
    %v1877 = vand.u32 %v1876, 4294901760
    %1878 = vmatprep.subr.mxu0 %v1877
    %v1879 = vand.u32 %v230, 4294901760
    %v1880 = vsub.f32 %v230, %v1879
    %v1881 = vand.u32 %v1880, 4294901760
    %v1882 = vsub.f32 %v1880, %v1881
    %v1883 = vand.u32 %v1882, 4294901760
    %1884 = vmatpush1.msra.mxu0 %v1883
    %v1885 = vand.u32 %v235, 4294901760
    %v1886 = vsub.f32 %v235, %v1885
    %v1887 = vand.u32 %v1886, 4294901760
    %v1888 = vsub.f32 %v1886, %v1887
    %v1889 = vand.u32 %v1888, 4294901760
    %1890 = vmatprep.subr.mxu0 %v1889
    %v1891 = vand.u32 %v234, 4294901760
    %v1892 = vsub.f32 %v234, %v1891
    %v1893 = vand.u32 %v1892, 4294901760
    %v1894 = vsub.f32 %v1892, %v1893
    %v1895 = vand.u32 %v1894, 4294901760
    %1896 = vmatpush1.msra.mxu0 %v1895
    %v1897 = vand.u32 %v239, 4294901760
    %v1898 = vsub.f32 %v239, %v1897
    %v1899 = vand.u32 %v1898, 4294901760
    %v1900 = vsub.f32 %v1898, %v1899
    %v1901 = vand.u32 %v1900, 4294901760
    %1902 = vmatprep.subr.mxu0 %v1901
    %v1903 = vand.u32 %v238, 4294901760
    %v1904 = vsub.f32 %v238, %v1903
    %v1905 = vand.u32 %v1904, 4294901760
    %v1906 = vsub.f32 %v1904, %v1905
    %v1907 = vand.u32 %v1906, 4294901760
    %1908 = vmatpush1.msra.mxu0 %v1907
    %v1909 = vand.u32 %v243, 4294901760
    %v1910 = vsub.f32 %v243, %v1909
    %v1911 = vand.u32 %v1910, 4294901760
    %v1912 = vsub.f32 %v1910, %v1911
    %v1913 = vand.u32 %v1912, 4294901760
    %1914 = vmatprep.subr.mxu0 %v1913
    %v1915 = vand.u32 %v242, 4294901760
    %v1916 = vsub.f32 %v242, %v1915
    %v1917 = vand.u32 %v1916, 4294901760
    %v1918 = vsub.f32 %v1916, %v1917
    %v1919 = vand.u32 %v1918, 4294901760
    %1920 = vmatpush1.msra.mxu0 %v1919
    %v1921 = vand.u32 %v247, 4294901760
    %v1922 = vsub.f32 %v247, %v1921
    %v1923 = vand.u32 %v1922, 4294901760
    %v1924 = vsub.f32 %v1922, %v1923
    %v1925 = vand.u32 %v1924, 4294901760
    %1926 = vmatprep.subr.mxu0 %v1925
    %v1927 = vand.u32 %v246, 4294901760
    %v1928 = vsub.f32 %v246, %v1927
    %v1929 = vand.u32 %v1928, 4294901760
    %v1930 = vsub.f32 %v1928, %v1929
    %v1931 = vand.u32 %v1930, 4294901760
    %1932 = vmatpush1.msra.mxu0 %v1931
    %v1933 = vand.u32 %v251, 4294901760
    %v1934 = vsub.f32 %v251, %v1933
    %v1935 = vand.u32 %v1934, 4294901760
    %v1936 = vsub.f32 %v1934, %v1935
    %v1937 = vand.u32 %v1936, 4294901760
    %1938 = vmatprep.subr.mxu0 %v1937
    %v1939 = vand.u32 %v250, 4294901760
    %v1940 = vsub.f32 %v250, %v1939
    %v1941 = vand.u32 %v1940, 4294901760
    %v1942 = vsub.f32 %v1940, %v1941
    %v1943 = vand.u32 %v1942, 4294901760
    %1944 = vmatpush1.msra.mxu0 %v1943
    %v1945 = vand.u32 %v255, 4294901760
    %v1946 = vsub.f32 %v255, %v1945
    %v1947 = vand.u32 %v1946, 4294901760
    %v1948 = vsub.f32 %v1946, %v1947
    %v1949 = vand.u32 %v1948, 4294901760
    %1950 = vmatprep.subr.mxu0 %v1949
    %v1951 = vand.u32 %v254, 4294901760
    %v1952 = vsub.f32 %v254, %v1951
    %v1953 = vand.u32 %v1952, 4294901760
    %v1954 = vsub.f32 %v1952, %v1953
    %v1955 = vand.u32 %v1954, 4294901760
    %1956 = vmatpush1.msra.mxu0 %v1955
    %v1957 = vand.u32 %v259, 4294901760
    %v1958 = vsub.f32 %v259, %v1957
    %v1959 = vand.u32 %v1958, 4294901760
    %v1960 = vsub.f32 %v1958, %v1959
    %v1961 = vand.u32 %v1960, 4294901760
    %1962 = vmatprep.subr.mxu0 %v1961
    %v1963 = vand.u32 %v258, 4294901760
    %v1964 = vsub.f32 %v258, %v1963
    %v1965 = vand.u32 %v1964, 4294901760
    %v1966 = vsub.f32 %v1964, %v1965
    %v1967 = vand.u32 %v1966, 4294901760
    %1968 = vmatpush1.msra.mxu0 %v1967
    %v1969 = vand.u32 %v263, 4294901760
    %v1970 = vsub.f32 %v263, %v1969
    %v1971 = vand.u32 %v1970, 4294901760
    %v1972 = vsub.f32 %v1970, %v1971
    %v1973 = vand.u32 %v1972, 4294901760
    %1974 = vmatprep.subr.mxu0 %v1973
    %v1975 = vand.u32 %v262, 4294901760
    %v1976 = vsub.f32 %v262, %v1975
    %v1977 = vand.u32 %v1976, 4294901760
    %v1978 = vsub.f32 %v1976, %v1977
    %v1979 = vand.u32 %v1978, 4294901760
    %1980 = vmatpush1.msra.mxu0 %v1979
    %v1981 = vand.u32 %v267, 4294901760
    %v1982 = vsub.f32 %v267, %v1981
    %v1983 = vand.u32 %v1982, 4294901760
    %v1984 = vsub.f32 %v1982, %v1983
    %v1985 = vand.u32 %v1984, 4294901760
    %1986 = vmatprep.subr.mxu0 %v1985
    %v1987 = vand.u32 %v266, 4294901760
    %v1988 = vsub.f32 %v266, %v1987
    %v1989 = vand.u32 %v1988, 4294901760
    %v1990 = vsub.f32 %v1988, %v1989
    %v1991 = vand.u32 %v1990, 4294901760
    %1992 = vmatpush1.msra.mxu0 %v1991
    %v1993 = vand.u32 %v271, 4294901760
    %v1994 = vsub.f32 %v271, %v1993
    %v1995 = vand.u32 %v1994, 4294901760
    %v1996 = vsub.f32 %v1994, %v1995
    %v1997 = vand.u32 %v1996, 4294901760
    %1998 = vmatprep.subr.mxu0 %v1997
    %v1999 = vand.u32 %v270, 4294901760
    %v2000 = vsub.f32 %v270, %v1999
    %v2001 = vand.u32 %v2000, 4294901760
    %v2002 = vsub.f32 %v2000, %v2001
    %v2003 = vand.u32 %v2002, 4294901760
    %2004 = vmatpush1.msra.mxu0 %v2003
    %v2005 = vand.u32 %v275, 4294901760
    %v2006 = vsub.f32 %v275, %v2005
    %v2007 = vand.u32 %v2006, 4294901760
    %v2008 = vsub.f32 %v2006, %v2007
    %v2009 = vand.u32 %v2008, 4294901760
    %2010 = vmatprep.subr.mxu0 %v2009
    %v2011 = vand.u32 %v274, 4294901760
    %v2012 = vsub.f32 %v274, %v2011
    %v2013 = vand.u32 %v2012, 4294901760
    %v2014 = vsub.f32 %v2012, %v2013
    %v2015 = vand.u32 %v2014, 4294901760
    %2016 = vmatpush1.msra.mxu0 %v2015
    %v2017 = vand.u32 %v279, 4294901760
    %v2018 = vsub.f32 %v279, %v2017
    %v2019 = vand.u32 %v2018, 4294901760
    %v2020 = vsub.f32 %v2018, %v2019
    %v2021 = vand.u32 %v2020, 4294901760
    %2022 = vmatprep.subr.mxu0 %v2021
    %v2023 = vand.u32 %v278, 4294901760
    %v2024 = vsub.f32 %v278, %v2023
    %v2025 = vand.u32 %v2024, 4294901760
    %v2026 = vsub.f32 %v2024, %v2025
    %v2027 = vand.u32 %v2026, 4294901760
    %2028 = vmatpush1.msra.mxu0 %v2027
    %v2029 = vand.u32 %v283, 4294901760
    %v2030 = vsub.f32 %v283, %v2029
    %v2031 = vand.u32 %v2030, 4294901760
    %v2032 = vsub.f32 %v2030, %v2031
    %v2033 = vand.u32 %v2032, 4294901760
    %2034 = vmatprep.subr.mxu0 %v2033
    %v2035 = vand.u32 %v282, 4294901760
    %v2036 = vsub.f32 %v282, %v2035
    %v2037 = vand.u32 %v2036, 4294901760
    %v2038 = vsub.f32 %v2036, %v2037
    %v2039 = vand.u32 %v2038, 4294901760
    %2040 = vmatpush1.msra.mxu0 %v2039
    %v2041 = vand.u32 %v287, 4294901760
    %v2042 = vsub.f32 %v287, %v2041
    %v2043 = vand.u32 %v2042, 4294901760
    %v2044 = vsub.f32 %v2042, %v2043
    %v2045 = vand.u32 %v2044, 4294901760
    %2046 = vmatprep.subr.mxu0 %v2045
    %v2047 = vand.u32 %v286, 4294901760
    %v2048 = vsub.f32 %v286, %v2047
    %v2049 = vand.u32 %v2048, 4294901760
    %v2050 = vsub.f32 %v2048, %v2049
    %v2051 = vand.u32 %v2050, 4294901760
    %2052 = vmatpush1.msra.mxu0 %v2051
    %v2053 = vand.u32 %v291, 4294901760
    %v2054 = vsub.f32 %v291, %v2053
    %v2055 = vand.u32 %v2054, 4294901760
    %v2056 = vsub.f32 %v2054, %v2055
    %v2057 = vand.u32 %v2056, 4294901760
    %2058 = vmatprep.subr.mxu0 %v2057
    %v2059 = vand.u32 %v290, 4294901760
    %v2060 = vsub.f32 %v290, %v2059
    %v2061 = vand.u32 %v2060, 4294901760
    %v2062 = vsub.f32 %v2060, %v2061
    %v2063 = vand.u32 %v2062, 4294901760
    %2064 = vmatpush1.msra.mxu0 %v2063
    %v2065 = vand.u32 %v295, 4294901760
    %v2066 = vsub.f32 %v295, %v2065
    %v2067 = vand.u32 %v2066, 4294901760
    %v2068 = vsub.f32 %v2066, %v2067
    %v2069 = vand.u32 %v2068, 4294901760
    %2070 = vmatprep.subr.mxu0 %v2069
    %v2071 = vand.u32 %v294, 4294901760
    %v2072 = vsub.f32 %v294, %v2071
    %v2073 = vand.u32 %v2072, 4294901760
    %v2074 = vsub.f32 %v2072, %v2073
    %v2075 = vand.u32 %v2074, 4294901760
    %2076 = vmatpush1.msra.mxu0 %v2075
    %v2077 = vand.u32 %v299, 4294901760
    %v2078 = vsub.f32 %v299, %v2077
    %v2079 = vand.u32 %v2078, 4294901760
    %v2080 = vsub.f32 %v2078, %v2079
    %v2081 = vand.u32 %v2080, 4294901760
    %2082 = vmatprep.subr.mxu0 %v2081
    %v2083 = vand.u32 %v298, 4294901760
    %v2084 = vsub.f32 %v298, %v2083
    %v2085 = vand.u32 %v2084, 4294901760
    %v2086 = vsub.f32 %v2084, %v2085
    %v2087 = vand.u32 %v2086, 4294901760
    %2088 = vmatpush1.msra.mxu0 %v2087
    %v2089 = vand.u32 %v303, 4294901760
    %v2090 = vsub.f32 %v303, %v2089
    %v2091 = vand.u32 %v2090, 4294901760
    %v2092 = vsub.f32 %v2090, %v2091
    %v2093 = vand.u32 %v2092, 4294901760
    %2094 = vmatprep.subr.mxu0 %v2093
    %v2095 = vand.u32 %v302, 4294901760
    %v2096 = vsub.f32 %v302, %v2095
    %v2097 = vand.u32 %v2096, 4294901760
    %v2098 = vsub.f32 %v2096, %v2097
    %v2099 = vand.u32 %v2098, 4294901760
    %2100 = vmatpush1.msra.mxu0 %v2099
    %v2101 = vand.u32 %v307, 4294901760
    %v2102 = vsub.f32 %v307, %v2101
    %v2103 = vand.u32 %v2102, 4294901760
    %v2104 = vsub.f32 %v2102, %v2103
    %v2105 = vand.u32 %v2104, 4294901760
    %2106 = vmatprep.subr.mxu0 %v2105
    %v2107 = vand.u32 %v306, 4294901760
    %v2108 = vsub.f32 %v306, %v2107
    %v2109 = vand.u32 %v2108, 4294901760
    %v2110 = vsub.f32 %v2108, %v2109
    %v2111 = vand.u32 %v2110, 4294901760
    %2112 = vmatpush1.msra.mxu0 %v2111
    %v2113 = vand.u32 %v311, 4294901760
    %v2114 = vsub.f32 %v311, %v2113
    %v2115 = vand.u32 %v2114, 4294901760
    %v2116 = vsub.f32 %v2114, %v2115
    %v2117 = vand.u32 %v2116, 4294901760
    %2118 = vmatprep.subr.mxu0 %v2117
    %v2119 = vand.u32 %v310, 4294901760
    %v2120 = vsub.f32 %v310, %v2119
    %v2121 = vand.u32 %v2120, 4294901760
    %v2122 = vsub.f32 %v2120, %v2121
    %v2123 = vand.u32 %v2122, 4294901760
    %2124 = vmatpush1.msra.mxu0 %v2123
    %v2125 = vand.u32 %v315, 4294901760
    %v2126 = vsub.f32 %v315, %v2125
    %v2127 = vand.u32 %v2126, 4294901760
    %v2128 = vsub.f32 %v2126, %v2127
    %v2129 = vand.u32 %v2128, 4294901760
    %2130 = vmatprep.subr.mxu0 %v2129
    %v2131 = vand.u32 %v314, 4294901760
    %v2132 = vsub.f32 %v314, %v2131
    %v2133 = vand.u32 %v2132, 4294901760
    %v2134 = vsub.f32 %v2132, %v2133
    %v2135 = vand.u32 %v2134, 4294901760
    %2136 = vmatpush1.msra.mxu0 %v2135
    %v2137 = vand.u32 %v319, 4294901760
    %v2138 = vsub.f32 %v319, %v2137
    %v2139 = vand.u32 %v2138, 4294901760
    %v2140 = vsub.f32 %v2138, %v2139
    %v2141 = vand.u32 %v2140, 4294901760
    %2142 = vmatprep.subr.mxu0 %v2141
    %v2143 = vand.u32 %v318, 4294901760
    %v2144 = vsub.f32 %v318, %v2143
    %v2145 = vand.u32 %v2144, 4294901760
    %v2146 = vsub.f32 %v2144, %v2145
    %v2147 = vand.u32 %v2146, 4294901760
    %2148 = vmatpush1.msra.mxu0 %v2147
    %v2149 = vand.u32 %v323, 4294901760
    %v2150 = vsub.f32 %v323, %v2149
    %v2151 = vand.u32 %v2150, 4294901760
    %v2152 = vsub.f32 %v2150, %v2151
    %v2153 = vand.u32 %v2152, 4294901760
    %2154 = vmatprep.subr.mxu0 %v2153
    %v2155 = vand.u32 %v322, 4294901760
    %v2156 = vsub.f32 %v322, %v2155
    %v2157 = vand.u32 %v2156, 4294901760
    %v2158 = vsub.f32 %v2156, %v2157
    %v2159 = vand.u32 %v2158, 4294901760
    %2160 = vmatpush1.msra.mxu0 %v2159
    %v2161 = vand.u32 %v343, 4294901760
    %2162 = vmatprep.mubr.f32.mxu0 %v2161
    %v2163 = vand.u32 %v341, 4294901760
    %2164 = vmatmul.mubr.f32.gmra.mrb[0].mxu0 %v2163
    %v2165 = vpop.f32.mrb[0].mxu0
    %v2166 = vadd.f32 %v1773, %v2165
    %v2167 = vpop.f32.mrb[0].mxu0
    %v2168 = vadd.f32 %v1775, %v2167
    %2169 = vdwg.mxu0
    %v2170 = vand.u32 %v199, 4294901760
    %v2171 = vsub.f32 %v199, %v2170
    %2172 = vmatprep.subr.mxu0 %v2171
    %v2173 = vand.u32 %v198, 4294901760
    %v2174 = vsub.f32 %v198, %v2173
    %2175 = vmatpush1.msra.mxu0 %v2174
    %v2176 = vand.u32 %v203, 4294901760
    %v2177 = vsub.f32 %v203, %v2176
    %2178 = vmatprep.subr.mxu0 %v2177
    %v2179 = vand.u32 %v202, 4294901760
    %v2180 = vsub.f32 %v202, %v2179
    %2181 = vmatpush1.msra.mxu0 %v2180
    %v2182 = vand.u32 %v207, 4294901760
    %v2183 = vsub.f32 %v207, %v2182
    %2184 = vmatprep.subr.mxu0 %v2183
    %v2185 = vand.u32 %v206, 4294901760
    %v2186 = vsub.f32 %v206, %v2185
    %2187 = vmatpush1.msra.mxu0 %v2186
    %v2188 = vand.u32 %v211, 4294901760
    %v2189 = vsub.f32 %v211, %v2188
    %2190 = vmatprep.subr.mxu0 %v2189
    %v2191 = vand.u32 %v210, 4294901760
    %v2192 = vsub.f32 %v210, %v2191
    %2193 = vmatpush1.msra.mxu0 %v2192
    %v2194 = vand.u32 %v215, 4294901760
    %v2195 = vsub.f32 %v215, %v2194
    %2196 = vmatprep.subr.mxu0 %v2195
    %v2197 = vand.u32 %v214, 4294901760
    %v2198 = vsub.f32 %v214, %v2197
    %2199 = vmatpush1.msra.mxu0 %v2198
    %v2200 = vand.u32 %v219, 4294901760
    %v2201 = vsub.f32 %v219, %v2200
    %2202 = vmatprep.subr.mxu0 %v2201
    %v2203 = vand.u32 %v218, 4294901760
    %v2204 = vsub.f32 %v218, %v2203
    %2205 = vmatpush1.msra.mxu0 %v2204
    %v2206 = vand.u32 %v223, 4294901760
    %v2207 = vsub.f32 %v223, %v2206
    %2208 = vmatprep.subr.mxu0 %v2207
    %v2209 = vand.u32 %v222, 4294901760
    %v2210 = vsub.f32 %v222, %v2209
    %2211 = vmatpush1.msra.mxu0 %v2210
    %v2212 = vand.u32 %v227, 4294901760
    %v2213 = vsub.f32 %v227, %v2212
    %2214 = vmatprep.subr.mxu0 %v2213
    %v2215 = vand.u32 %v226, 4294901760
    %v2216 = vsub.f32 %v226, %v2215
    %2217 = vmatpush1.msra.mxu0 %v2216
    %v2218 = vand.u32 %v231, 4294901760
    %v2219 = vsub.f32 %v231, %v2218
    %2220 = vmatprep.subr.mxu0 %v2219
    %v2221 = vand.u32 %v230, 4294901760
    %v2222 = vsub.f32 %v230, %v2221
    %2223 = vmatpush1.msra.mxu0 %v2222
    %v2224 = vand.u32 %v235, 4294901760
    %v2225 = vsub.f32 %v235, %v2224
    %2226 = vmatprep.subr.mxu0 %v2225
    %v2227 = vand.u32 %v234, 4294901760
    %v2228 = vsub.f32 %v234, %v2227
    %2229 = vmatpush1.msra.mxu0 %v2228
    %v2230 = vand.u32 %v239, 4294901760
    %v2231 = vsub.f32 %v239, %v2230
    %2232 = vmatprep.subr.mxu0 %v2231
    %v2233 = vand.u32 %v238, 4294901760
    %v2234 = vsub.f32 %v238, %v2233
    %2235 = vmatpush1.msra.mxu0 %v2234
    %v2236 = vand.u32 %v243, 4294901760
    %v2237 = vsub.f32 %v243, %v2236
    %2238 = vmatprep.subr.mxu0 %v2237
    %v2239 = vand.u32 %v242, 4294901760
    %v2240 = vsub.f32 %v242, %v2239
    %2241 = vmatpush1.msra.mxu0 %v2240
    %v2242 = vand.u32 %v247, 4294901760
    %v2243 = vsub.f32 %v247, %v2242
    %2244 = vmatprep.subr.mxu0 %v2243
    %v2245 = vand.u32 %v246, 4294901760
    %v2246 = vsub.f32 %v246, %v2245
    %2247 = vmatpush1.msra.mxu0 %v2246
    %v2248 = vand.u32 %v251, 4294901760
    %v2249 = vsub.f32 %v251, %v2248
    %2250 = vmatprep.subr.mxu0 %v2249
    %v2251 = vand.u32 %v250, 4294901760
    %v2252 = vsub.f32 %v250, %v2251
    %2253 = vmatpush1.msra.mxu0 %v2252
    %v2254 = vand.u32 %v255, 4294901760
    %v2255 = vsub.f32 %v255, %v2254
    %2256 = vmatprep.subr.mxu0 %v2255
    %v2257 = vand.u32 %v254, 4294901760
    %v2258 = vsub.f32 %v254, %v2257
    %2259 = vmatpush1.msra.mxu0 %v2258
    %v2260 = vand.u32 %v259, 4294901760
    %v2261 = vsub.f32 %v259, %v2260
    %2262 = vmatprep.subr.mxu0 %v2261
    %v2263 = vand.u32 %v258, 4294901760
    %v2264 = vsub.f32 %v258, %v2263
    %2265 = vmatpush1.msra.mxu0 %v2264
    %v2266 = vand.u32 %v263, 4294901760
    %v2267 = vsub.f32 %v263, %v2266
    %2268 = vmatprep.subr.mxu0 %v2267
    %v2269 = vand.u32 %v262, 4294901760
    %v2270 = vsub.f32 %v262, %v2269
    %2271 = vmatpush1.msra.mxu0 %v2270
    %v2272 = vand.u32 %v267, 4294901760
    %v2273 = vsub.f32 %v267, %v2272
    %2274 = vmatprep.subr.mxu0 %v2273
    %v2275 = vand.u32 %v266, 4294901760
    %v2276 = vsub.f32 %v266, %v2275
    %2277 = vmatpush1.msra.mxu0 %v2276
    %v2278 = vand.u32 %v271, 4294901760
    %v2279 = vsub.f32 %v271, %v2278
    %2280 = vmatprep.subr.mxu0 %v2279
    %v2281 = vand.u32 %v270, 4294901760
    %v2282 = vsub.f32 %v270, %v2281
    %2283 = vmatpush1.msra.mxu0 %v2282
    %v2284 = vand.u32 %v275, 4294901760
    %v2285 = vsub.f32 %v275, %v2284
    %2286 = vmatprep.subr.mxu0 %v2285
    %v2287 = vand.u32 %v274, 4294901760
    %v2288 = vsub.f32 %v274, %v2287
    %2289 = vmatpush1.msra.mxu0 %v2288
    %v2290 = vand.u32 %v279, 4294901760
    %v2291 = vsub.f32 %v279, %v2290
    %2292 = vmatprep.subr.mxu0 %v2291
    %v2293 = vand.u32 %v278, 4294901760
    %v2294 = vsub.f32 %v278, %v2293
    %2295 = vmatpush1.msra.mxu0 %v2294
    %v2296 = vand.u32 %v283, 4294901760
    %v2297 = vsub.f32 %v283, %v2296
    %2298 = vmatprep.subr.mxu0 %v2297
    %v2299 = vand.u32 %v282, 4294901760
    %v2300 = vsub.f32 %v282, %v2299
    %2301 = vmatpush1.msra.mxu0 %v2300
    %v2302 = vand.u32 %v287, 4294901760
    %v2303 = vsub.f32 %v287, %v2302
    %2304 = vmatprep.subr.mxu0 %v2303
    %v2305 = vand.u32 %v286, 4294901760
    %v2306 = vsub.f32 %v286, %v2305
    %2307 = vmatpush1.msra.mxu0 %v2306
    %v2308 = vand.u32 %v291, 4294901760
    %v2309 = vsub.f32 %v291, %v2308
    %2310 = vmatprep.subr.mxu0 %v2309
    %v2311 = vand.u32 %v290, 4294901760
    %v2312 = vsub.f32 %v290, %v2311
    %2313 = vmatpush1.msra.mxu0 %v2312
    %v2314 = vand.u32 %v295, 4294901760
    %v2315 = vsub.f32 %v295, %v2314
    %2316 = vmatprep.subr.mxu0 %v2315
    %v2317 = vand.u32 %v294, 4294901760
    %v2318 = vsub.f32 %v294, %v2317
    %2319 = vmatpush1.msra.mxu0 %v2318
    %v2320 = vand.u32 %v299, 4294901760
    %v2321 = vsub.f32 %v299, %v2320
    %2322 = vmatprep.subr.mxu0 %v2321
    %v2323 = vand.u32 %v298, 4294901760
    %v2324 = vsub.f32 %v298, %v2323
    %2325 = vmatpush1.msra.mxu0 %v2324
    %v2326 = vand.u32 %v303, 4294901760
    %v2327 = vsub.f32 %v303, %v2326
    %2328 = vmatprep.subr.mxu0 %v2327
    %v2329 = vand.u32 %v302, 4294901760
    %v2330 = vsub.f32 %v302, %v2329
    %2331 = vmatpush1.msra.mxu0 %v2330
    %v2332 = vand.u32 %v307, 4294901760
    %v2333 = vsub.f32 %v307, %v2332
    %2334 = vmatprep.subr.mxu0 %v2333
    %v2335 = vand.u32 %v306, 4294901760
    %v2336 = vsub.f32 %v306, %v2335
    %2337 = vmatpush1.msra.mxu0 %v2336
    %v2338 = vand.u32 %v311, 4294901760
    %v2339 = vsub.f32 %v311, %v2338
    %2340 = vmatprep.subr.mxu0 %v2339
    %v2341 = vand.u32 %v310, 4294901760
    %v2342 = vsub.f32 %v310, %v2341
    %2343 = vmatpush1.msra.mxu0 %v2342
    %v2344 = vand.u32 %v315, 4294901760
    %v2345 = vsub.f32 %v315, %v2344
    %2346 = vmatprep.subr.mxu0 %v2345
    %v2347 = vand.u32 %v314, 4294901760
    %v2348 = vsub.f32 %v314, %v2347
    %2349 = vmatpush1.msra.mxu0 %v2348
    %v2350 = vand.u32 %v319, 4294901760
    %v2351 = vsub.f32 %v319, %v2350
    %2352 = vmatprep.subr.mxu0 %v2351
    %v2353 = vand.u32 %v318, 4294901760
    %v2354 = vsub.f32 %v318, %v2353
    %2355 = vmatpush1.msra.mxu0 %v2354
    %v2356 = vand.u32 %v323, 4294901760
    %v2357 = vsub.f32 %v323, %v2356
    %2358 = vmatprep.subr.mxu0 %v2357
    %v2359 = vand.u32 %v322, 4294901760
    %v2360 = vsub.f32 %v322, %v2359
    %2361 = vmatpush1.msra.mxu0 %v2360
    %v2362 = vand.u32 %v343, 4294901760
    %v2363 = vsub.f32 %v343, %v2362
    %2364 = vmatprep.mubr.f32.mxu0 %v2363
    %v2365 = vand.u32 %v341, 4294901760
    %v2366 = vsub.f32 %v341, %v2365
    %2367 = vmatmul.mubr.f32.gmra.mrb[0].mxu0 %v2366
    %v2368 = vpop.f32.mrb[0].mxu0
    %v2369 = vadd.f32 %v2166, %v2368
    %v2370 = vpop.f32.mrb[0].mxu0
    %v2371 = vadd.f32 %v2168, %v2370
    %2372 = vdwg.mxu0
    %v2373 = vand.u32 %v199, 4294901760
    %2374 = vmatprep.subr.mxu0 %v2373
    %v2375 = vand.u32 %v198, 4294901760
    %2376 = vmatpush1.msra.mxu0 %v2375
    %v2377 = vand.u32 %v203, 4294901760
    %2378 = vmatprep.subr.mxu0 %v2377
    %v2379 = vand.u32 %v202, 4294901760
    %2380 = vmatpush1.msra.mxu0 %v2379
    %v2381 = vand.u32 %v207, 4294901760
    %2382 = vmatprep.subr.mxu0 %v2381
    %v2383 = vand.u32 %v206, 4294901760
    %2384 = vmatpush1.msra.mxu0 %v2383
    %v2385 = vand.u32 %v211, 4294901760
    %2386 = vmatprep.subr.mxu0 %v2385
    %v2387 = vand.u32 %v210, 4294901760
    %2388 = vmatpush1.msra.mxu0 %v2387
    %v2389 = vand.u32 %v215, 4294901760
    %2390 = vmatprep.subr.mxu0 %v2389
    %v2391 = vand.u32 %v214, 4294901760
    %2392 = vmatpush1.msra.mxu0 %v2391
    %v2393 = vand.u32 %v219, 4294901760
    %2394 = vmatprep.subr.mxu0 %v2393
    %v2395 = vand.u32 %v218, 4294901760
    %2396 = vmatpush1.msra.mxu0 %v2395
    %v2397 = vand.u32 %v223, 4294901760
    %2398 = vmatprep.subr.mxu0 %v2397
    %v2399 = vand.u32 %v222, 4294901760
    %2400 = vmatpush1.msra.mxu0 %v2399
    %v2401 = vand.u32 %v227, 4294901760
    %2402 = vmatprep.subr.mxu0 %v2401
    %v2403 = vand.u32 %v226, 4294901760
    %2404 = vmatpush1.msra.mxu0 %v2403
    %v2405 = vand.u32 %v231, 4294901760
    %2406 = vmatprep.subr.mxu0 %v2405
    %v2407 = vand.u32 %v230, 4294901760
    %2408 = vmatpush1.msra.mxu0 %v2407
    %v2409 = vand.u32 %v235, 4294901760
    %2410 = vmatprep.subr.mxu0 %v2409
    %v2411 = vand.u32 %v234, 4294901760
    %2412 = vmatpush1.msra.mxu0 %v2411
    %v2413 = vand.u32 %v239, 4294901760
    %2414 = vmatprep.subr.mxu0 %v2413
    %v2415 = vand.u32 %v238, 4294901760
    %2416 = vmatpush1.msra.mxu0 %v2415
    %v2417 = vand.u32 %v243, 4294901760
    %2418 = vmatprep.subr.mxu0 %v2417
    %v2419 = vand.u32 %v242, 4294901760
    %2420 = vmatpush1.msra.mxu0 %v2419
    %v2421 = vand.u32 %v247, 4294901760
    %2422 = vmatprep.subr.mxu0 %v2421
    %v2423 = vand.u32 %v246, 4294901760
    %2424 = vmatpush1.msra.mxu0 %v2423
    %v2425 = vand.u32 %v251, 4294901760
    %2426 = vmatprep.subr.mxu0 %v2425
    %v2427 = vand.u32 %v250, 4294901760
    %2428 = vmatpush1.msra.mxu0 %v2427
    %v2429 = vand.u32 %v255, 4294901760
    %2430 = vmatprep.subr.mxu0 %v2429
    %v2431 = vand.u32 %v254, 4294901760
    %2432 = vmatpush1.msra.mxu0 %v2431
    %v2433 = vand.u32 %v259, 4294901760
    %2434 = vmatprep.subr.mxu0 %v2433
    %v2435 = vand.u32 %v258, 4294901760
    %2436 = vmatpush1.msra.mxu0 %v2435
    %v2437 = vand.u32 %v263, 4294901760
    %2438 = vmatprep.subr.mxu0 %v2437
    %v2439 = vand.u32 %v262, 4294901760
    %2440 = vmatpush1.msra.mxu0 %v2439
    %v2441 = vand.u32 %v267, 4294901760
    %2442 = vmatprep.subr.mxu0 %v2441
    %v2443 = vand.u32 %v266, 4294901760
    %2444 = vmatpush1.msra.mxu0 %v2443
    %v2445 = vand.u32 %v271, 4294901760
    %2446 = vmatprep.subr.mxu0 %v2445
    %v2447 = vand.u32 %v270, 4294901760
    %2448 = vmatpush1.msra.mxu0 %v2447
    %v2449 = vand.u32 %v275, 4294901760
    %2450 = vmatprep.subr.mxu0 %v2449
    %v2451 = vand.u32 %v274, 4294901760
    %2452 = vmatpush1.msra.mxu0 %v2451
    %v2453 = vand.u32 %v279, 4294901760
    %2454 = vmatprep.subr.mxu0 %v2453
    %v2455 = vand.u32 %v278, 4294901760
    %2456 = vmatpush1.msra.mxu0 %v2455
    %v2457 = vand.u32 %v283, 4294901760
    %2458 = vmatprep.subr.mxu0 %v2457
    %v2459 = vand.u32 %v282, 4294901760
    %2460 = vmatpush1.msra.mxu0 %v2459
    %v2461 = vand.u32 %v287, 4294901760
    %2462 = vmatprep.subr.mxu0 %v2461
    %v2463 = vand.u32 %v286, 4294901760
    %2464 = vmatpush1.msra.mxu0 %v2463
    %v2465 = vand.u32 %v291, 4294901760
    %2466 = vmatprep.subr.mxu0 %v2465
    %v2467 = vand.u32 %v290, 4294901760
    %2468 = vmatpush1.msra.mxu0 %v2467
    %v2469 = vand.u32 %v295, 4294901760
    %2470 = vmatprep.subr.mxu0 %v2469
    %v2471 = vand.u32 %v294, 4294901760
    %2472 = vmatpush1.msra.mxu0 %v2471
    %v2473 = vand.u32 %v299, 4294901760
    %2474 = vmatprep.subr.mxu0 %v2473
    %v2475 = vand.u32 %v298, 4294901760
    %2476 = vmatpush1.msra.mxu0 %v2475
    %v2477 = vand.u32 %v303, 4294901760
    %2478 = vmatprep.subr.mxu0 %v2477
    %v2479 = vand.u32 %v302, 4294901760
    %2480 = vmatpush1.msra.mxu0 %v2479
    %v2481 = vand.u32 %v307, 4294901760
    %2482 = vmatprep.subr.mxu0 %v2481
    %v2483 = vand.u32 %v306, 4294901760
    %2484 = vmatpush1.msra.mxu0 %v2483
    %v2485 = vand.u32 %v311, 4294901760
    %2486 = vmatprep.subr.mxu0 %v2485
    %v2487 = vand.u32 %v310, 4294901760
    %2488 = vmatpush1.msra.mxu0 %v2487
    %v2489 = vand.u32 %v315, 4294901760
    %2490 = vmatprep.subr.mxu0 %v2489
    %v2491 = vand.u32 %v314, 4294901760
    %2492 = vmatpush1.msra.mxu0 %v2491
    %v2493 = vand.u32 %v319, 4294901760
    %2494 = vmatprep.subr.mxu0 %v2493
    %v2495 = vand.u32 %v318, 4294901760
    %2496 = vmatpush1.msra.mxu0 %v2495
    %v2497 = vand.u32 %v323, 4294901760
    %2498 = vmatprep.subr.mxu0 %v2497
    %v2499 = vand.u32 %v322, 4294901760
    %2500 = vmatpush1.msra.mxu0 %v2499
    %v2501 = vand.u32 %v343, 4294901760
    %v2502 = vsub.f32 %v343, %v2501
    %v2503 = vand.u32 %v2502, 4294901760
    %2504 = vmatprep.mubr.f32.mxu0 %v2503
    %v2505 = vand.u32 %v341, 4294901760
    %v2506 = vsub.f32 %v341, %v2505
    %v2507 = vand.u32 %v2506, 4294901760
    %2508 = vmatmul.mubr.f32.gmra.mrb[0].mxu0 %v2507
    %v2509 = vpop.f32.mrb[0].mxu0
    %v2510 = vadd.f32 %v2369, %v2509
    %v2511 = vpop.f32.mrb[0].mxu0
    %v2512 = vadd.f32 %v2371, %v2511
    %2513 = vdwg.mxu0
    %v2514 = vand.u32 %v199, 4294901760
    %v2515 = vsub.f32 %v199, %v2514
    %v2516 = vand.u32 %v2515, 4294901760
    %2517 = vmatprep.subr.mxu0 %v2516
    %v2518 = vand.u32 %v198, 4294901760
    %v2519 = vsub.f32 %v198, %v2518
    %v2520 = vand.u32 %v2519, 4294901760
    %2521 = vmatpush1.msra.mxu0 %v2520
    %v2522 = vand.u32 %v203, 4294901760
    %v2523 = vsub.f32 %v203, %v2522
    %v2524 = vand.u32 %v2523, 4294901760
    %2525 = vmatprep.subr.mxu0 %v2524
    %v2526 = vand.u32 %v202, 4294901760
    %v2527 = vsub.f32 %v202, %v2526
    %v2528 = vand.u32 %v2527, 4294901760
    %2529 = vmatpush1.msra.mxu0 %v2528
    %v2530 = vand.u32 %v207, 4294901760
    %v2531 = vsub.f32 %v207, %v2530
    %v2532 = vand.u32 %v2531, 4294901760
    %2533 = vmatprep.subr.mxu0 %v2532
    %v2534 = vand.u32 %v206, 4294901760
    %v2535 = vsub.f32 %v206, %v2534
    %v2536 = vand.u32 %v2535, 4294901760
    %2537 = vmatpush1.msra.mxu0 %v2536
    %v2538 = vand.u32 %v211, 4294901760
    %v2539 = vsub.f32 %v211, %v2538
    %v2540 = vand.u32 %v2539, 4294901760
    %2541 = vmatprep.subr.mxu0 %v2540
    %v2542 = vand.u32 %v210, 4294901760
    %v2543 = vsub.f32 %v210, %v2542
    %v2544 = vand.u32 %v2543, 4294901760
    %2545 = vmatpush1.msra.mxu0 %v2544
    %v2546 = vand.u32 %v215, 4294901760
    %v2547 = vsub.f32 %v215, %v2546
    %v2548 = vand.u32 %v2547, 4294901760
    %2549 = vmatprep.subr.mxu0 %v2548
    %v2550 = vand.u32 %v214, 4294901760
    %v2551 = vsub.f32 %v214, %v2550
    %v2552 = vand.u32 %v2551, 4294901760
    %2553 = vmatpush1.msra.mxu0 %v2552
    %v2554 = vand.u32 %v219, 4294901760
    %v2555 = vsub.f32 %v219, %v2554
    %v2556 = vand.u32 %v2555, 4294901760
    %2557 = vmatprep.subr.mxu0 %v2556
    %v2558 = vand.u32 %v218, 4294901760
    %v2559 = vsub.f32 %v218, %v2558
    %v2560 = vand.u32 %v2559, 4294901760
    %2561 = vmatpush1.msra.mxu0 %v2560
    %v2562 = vand.u32 %v223, 4294901760
    %v2563 = vsub.f32 %v223, %v2562
    %v2564 = vand.u32 %v2563, 4294901760
    %2565 = vmatprep.subr.mxu0 %v2564
    %v2566 = vand.u32 %v222, 4294901760
    %v2567 = vsub.f32 %v222, %v2566
    %v2568 = vand.u32 %v2567, 4294901760
    %2569 = vmatpush1.msra.mxu0 %v2568
    %v2570 = vand.u32 %v227, 4294901760
    %v2571 = vsub.f32 %v227, %v2570
    %v2572 = vand.u32 %v2571, 4294901760
    %2573 = vmatprep.subr.mxu0 %v2572
    %v2574 = vand.u32 %v226, 4294901760
    %v2575 = vsub.f32 %v226, %v2574
    %v2576 = vand.u32 %v2575, 4294901760
    %2577 = vmatpush1.msra.mxu0 %v2576
    %v2578 = vand.u32 %v231, 4294901760
    %v2579 = vsub.f32 %v231, %v2578
    %v2580 = vand.u32 %v2579, 4294901760
    %2581 = vmatprep.subr.mxu0 %v2580
    %v2582 = vand.u32 %v230, 4294901760
    %v2583 = vsub.f32 %v230, %v2582
    %v2584 = vand.u32 %v2583, 4294901760
    %2585 = vmatpush1.msra.mxu0 %v2584
    %v2586 = vand.u32 %v235, 4294901760
    %v2587 = vsub.f32 %v235, %v2586
    %v2588 = vand.u32 %v2587, 4294901760
    %2589 = vmatprep.subr.mxu0 %v2588
    %v2590 = vand.u32 %v234, 4294901760
    %v2591 = vsub.f32 %v234, %v2590
    %v2592 = vand.u32 %v2591, 4294901760
    %2593 = vmatpush1.msra.mxu0 %v2592
    %v2594 = vand.u32 %v239, 4294901760
    %v2595 = vsub.f32 %v239, %v2594
    %v2596 = vand.u32 %v2595, 4294901760
    %2597 = vmatprep.subr.mxu0 %v2596
    %v2598 = vand.u32 %v238, 4294901760
    %v2599 = vsub.f32 %v238, %v2598
    %v2600 = vand.u32 %v2599, 4294901760
    %2601 = vmatpush1.msra.mxu0 %v2600
    %v2602 = vand.u32 %v243, 4294901760
    %v2603 = vsub.f32 %v243, %v2602
    %v2604 = vand.u32 %v2603, 4294901760
    %2605 = vmatprep.subr.mxu0 %v2604
    %v2606 = vand.u32 %v242, 4294901760
    %v2607 = vsub.f32 %v242, %v2606
    %v2608 = vand.u32 %v2607, 4294901760
    %2609 = vmatpush1.msra.mxu0 %v2608
    %v2610 = vand.u32 %v247, 4294901760
    %v2611 = vsub.f32 %v247, %v2610
    %v2612 = vand.u32 %v2611, 4294901760
    %2613 = vmatprep.subr.mxu0 %v2612
    %v2614 = vand.u32 %v246, 4294901760
    %v2615 = vsub.f32 %v246, %v2614
    %v2616 = vand.u32 %v2615, 4294901760
    %2617 = vmatpush1.msra.mxu0 %v2616
    %v2618 = vand.u32 %v251, 4294901760
    %v2619 = vsub.f32 %v251, %v2618
    %v2620 = vand.u32 %v2619, 4294901760
    %2621 = vmatprep.subr.mxu0 %v2620
    %v2622 = vand.u32 %v250, 4294901760
    %v2623 = vsub.f32 %v250, %v2622
    %v2624 = vand.u32 %v2623, 4294901760
    %2625 = vmatpush1.msra.mxu0 %v2624
    %v2626 = vand.u32 %v255, 4294901760
    %v2627 = vsub.f32 %v255, %v2626
    %v2628 = vand.u32 %v2627, 4294901760
    %2629 = vmatprep.subr.mxu0 %v2628
    %v2630 = vand.u32 %v254, 4294901760
    %v2631 = vsub.f32 %v254, %v2630
    %v2632 = vand.u32 %v2631, 4294901760
    %2633 = vmatpush1.msra.mxu0 %v2632
    %v2634 = vand.u32 %v259, 4294901760
    %v2635 = vsub.f32 %v259, %v2634
    %v2636 = vand.u32 %v2635, 4294901760
    %2637 = vmatprep.subr.mxu0 %v2636
    %v2638 = vand.u32 %v258, 4294901760
    %v2639 = vsub.f32 %v258, %v2638
    %v2640 = vand.u32 %v2639, 4294901760
    %2641 = vmatpush1.msra.mxu0 %v2640
    %v2642 = vand.u32 %v263, 4294901760
    %v2643 = vsub.f32 %v263, %v2642
    %v2644 = vand.u32 %v2643, 4294901760
    %2645 = vmatprep.subr.mxu0 %v2644
    %v2646 = vand.u32 %v262, 4294901760
    %v2647 = vsub.f32 %v262, %v2646
    %v2648 = vand.u32 %v2647, 4294901760
    %2649 = vmatpush1.msra.mxu0 %v2648
    %v2650 = vand.u32 %v267, 4294901760
    %v2651 = vsub.f32 %v267, %v2650
    %v2652 = vand.u32 %v2651, 4294901760
    %2653 = vmatprep.subr.mxu0 %v2652
    %v2654 = vand.u32 %v266, 4294901760
    %v2655 = vsub.f32 %v266, %v2654
    %v2656 = vand.u32 %v2655, 4294901760
    %2657 = vmatpush1.msra.mxu0 %v2656
    %v2658 = vand.u32 %v271, 4294901760
    %v2659 = vsub.f32 %v271, %v2658
    %v2660 = vand.u32 %v2659, 4294901760
    %2661 = vmatprep.subr.mxu0 %v2660
    %v2662 = vand.u32 %v270, 4294901760
    %v2663 = vsub.f32 %v270, %v2662
    %v2664 = vand.u32 %v2663, 4294901760
    %2665 = vmatpush1.msra.mxu0 %v2664
    %v2666 = vand.u32 %v275, 4294901760
    %v2667 = vsub.f32 %v275, %v2666
    %v2668 = vand.u32 %v2667, 4294901760
    %2669 = vmatprep.subr.mxu0 %v2668
    %v2670 = vand.u32 %v274, 4294901760
    %v2671 = vsub.f32 %v274, %v2670
    %v2672 = vand.u32 %v2671, 4294901760
    %2673 = vmatpush1.msra.mxu0 %v2672
    %v2674 = vand.u32 %v279, 4294901760
    %v2675 = vsub.f32 %v279, %v2674
    %v2676 = vand.u32 %v2675, 4294901760
    %2677 = vmatprep.subr.mxu0 %v2676
    %v2678 = vand.u32 %v278, 4294901760
    %v2679 = vsub.f32 %v278, %v2678
    %v2680 = vand.u32 %v2679, 4294901760
    %2681 = vmatpush1.msra.mxu0 %v2680
    %v2682 = vand.u32 %v283, 4294901760
    %v2683 = vsub.f32 %v283, %v2682
    %v2684 = vand.u32 %v2683, 4294901760
    %2685 = vmatprep.subr.mxu0 %v2684
    %v2686 = vand.u32 %v282, 4294901760
    %v2687 = vsub.f32 %v282, %v2686
    %v2688 = vand.u32 %v2687, 4294901760
    %2689 = vmatpush1.msra.mxu0 %v2688
    %v2690 = vand.u32 %v287, 4294901760
    %v2691 = vsub.f32 %v287, %v2690
    %v2692 = vand.u32 %v2691, 4294901760
    %2693 = vmatprep.subr.mxu0 %v2692
    %v2694 = vand.u32 %v286, 4294901760
    %v2695 = vsub.f32 %v286, %v2694
    %v2696 = vand.u32 %v2695, 4294901760
    %2697 = vmatpush1.msra.mxu0 %v2696
    %v2698 = vand.u32 %v291, 4294901760
    %v2699 = vsub.f32 %v291, %v2698
    %v2700 = vand.u32 %v2699, 4294901760
    %2701 = vmatprep.subr.mxu0 %v2700
    %v2702 = vand.u32 %v290, 4294901760
    %v2703 = vsub.f32 %v290, %v2702
    %v2704 = vand.u32 %v2703, 4294901760
    %2705 = vmatpush1.msra.mxu0 %v2704
    %v2706 = vand.u32 %v295, 4294901760
    %v2707 = vsub.f32 %v295, %v2706
    %v2708 = vand.u32 %v2707, 4294901760
    %2709 = vmatprep.subr.mxu0 %v2708
    %v2710 = vand.u32 %v294, 4294901760
    %v2711 = vsub.f32 %v294, %v2710
    %v2712 = vand.u32 %v2711, 4294901760
    %2713 = vmatpush1.msra.mxu0 %v2712
    %v2714 = vand.u32 %v299, 4294901760
    %v2715 = vsub.f32 %v299, %v2714
    %v2716 = vand.u32 %v2715, 4294901760
    %2717 = vmatprep.subr.mxu0 %v2716
    %v2718 = vand.u32 %v298, 4294901760
    %v2719 = vsub.f32 %v298, %v2718
    %v2720 = vand.u32 %v2719, 4294901760
    %2721 = vmatpush1.msra.mxu0 %v2720
    %v2722 = vand.u32 %v303, 4294901760
    %v2723 = vsub.f32 %v303, %v2722
    %v2724 = vand.u32 %v2723, 4294901760
    %2725 = vmatprep.subr.mxu0 %v2724
    %v2726 = vand.u32 %v302, 4294901760
    %v2727 = vsub.f32 %v302, %v2726
    %v2728 = vand.u32 %v2727, 4294901760
    %2729 = vmatpush1.msra.mxu0 %v2728
    %v2730 = vand.u32 %v307, 4294901760
    %v2731 = vsub.f32 %v307, %v2730
    %v2732 = vand.u32 %v2731, 4294901760
    %2733 = vmatprep.subr.mxu0 %v2732
    %v2734 = vand.u32 %v306, 4294901760
    %v2735 = vsub.f32 %v306, %v2734
    %v2736 = vand.u32 %v2735, 4294901760
    %2737 = vmatpush1.msra.mxu0 %v2736
    %v2738 = vand.u32 %v311, 4294901760
    %v2739 = vsub.f32 %v311, %v2738
    %v2740 = vand.u32 %v2739, 4294901760
    %2741 = vmatprep.subr.mxu0 %v2740
    %v2742 = vand.u32 %v310, 4294901760
    %v2743 = vsub.f32 %v310, %v2742
    %v2744 = vand.u32 %v2743, 4294901760
    %2745 = vmatpush1.msra.mxu0 %v2744
    %v2746 = vand.u32 %v315, 4294901760
    %v2747 = vsub.f32 %v315, %v2746
    %v2748 = vand.u32 %v2747, 4294901760
    %2749 = vmatprep.subr.mxu0 %v2748
    %v2750 = vand.u32 %v314, 4294901760
    %v2751 = vsub.f32 %v314, %v2750
    %v2752 = vand.u32 %v2751, 4294901760
    %2753 = vmatpush1.msra.mxu0 %v2752
    %v2754 = vand.u32 %v319, 4294901760
    %v2755 = vsub.f32 %v319, %v2754
    %v2756 = vand.u32 %v2755, 4294901760
    %2757 = vmatprep.subr.mxu0 %v2756
    %v2758 = vand.u32 %v318, 4294901760
    %v2759 = vsub.f32 %v318, %v2758
    %v2760 = vand.u32 %v2759, 4294901760
    %2761 = vmatpush1.msra.mxu0 %v2760
    %v2762 = vand.u32 %v323, 4294901760
    %v2763 = vsub.f32 %v323, %v2762
    %v2764 = vand.u32 %v2763, 4294901760
    %2765 = vmatprep.subr.mxu0 %v2764
    %v2766 = vand.u32 %v322, 4294901760
    %v2767 = vsub.f32 %v322, %v2766
    %v2768 = vand.u32 %v2767, 4294901760
    %2769 = vmatpush1.msra.mxu0 %v2768
    %v2770 = vand.u32 %v343, 4294901760
    %2771 = vmatprep.mubr.f32.mxu0 %v2770
    %v2772 = vand.u32 %v341, 4294901760
    %2773 = vmatmul.mubr.f32.gmra.mrb[0].mxu0 %v2772
    %v2774 = vpop.f32.mrb[0].mxu0
    %v2775 = vadd.f32 %v2510, %v2774
    %v2776 = vpop.f32.mrb[0].mxu0
    %v2777 = vadd.f32 %v2512, %v2776
    %2778 = vdwg.mxu0
    %v2779 = vand.u32 %v199, 4294901760
    %2780 = vmatprep.subr.mxu0 %v2779
    %v2781 = vand.u32 %v198, 4294901760
    %2782 = vmatpush1.msra.mxu0 %v2781
    %v2783 = vand.u32 %v203, 4294901760
    %2784 = vmatprep.subr.mxu0 %v2783
    %v2785 = vand.u32 %v202, 4294901760
    %2786 = vmatpush1.msra.mxu0 %v2785
    %v2787 = vand.u32 %v207, 4294901760
    %2788 = vmatprep.subr.mxu0 %v2787
    %v2789 = vand.u32 %v206, 4294901760
    %2790 = vmatpush1.msra.mxu0 %v2789
    %v2791 = vand.u32 %v211, 4294901760
    %2792 = vmatprep.subr.mxu0 %v2791
    %v2793 = vand.u32 %v210, 4294901760
    %2794 = vmatpush1.msra.mxu0 %v2793
    %v2795 = vand.u32 %v215, 4294901760
    %2796 = vmatprep.subr.mxu0 %v2795
    %v2797 = vand.u32 %v214, 4294901760
    %2798 = vmatpush1.msra.mxu0 %v2797
    %v2799 = vand.u32 %v219, 4294901760
    %2800 = vmatprep.subr.mxu0 %v2799
    %v2801 = vand.u32 %v218, 4294901760
    %2802 = vmatpush1.msra.mxu0 %v2801
    %v2803 = vand.u32 %v223, 4294901760
    %2804 = vmatprep.subr.mxu0 %v2803
    %v2805 = vand.u32 %v222, 4294901760
    %2806 = vmatpush1.msra.mxu0 %v2805
    %v2807 = vand.u32 %v227, 4294901760
    %2808 = vmatprep.subr.mxu0 %v2807
    %v2809 = vand.u32 %v226, 4294901760
    %2810 = vmatpush1.msra.mxu0 %v2809
    %v2811 = vand.u32 %v231, 4294901760
    %2812 = vmatprep.subr.mxu0 %v2811
    %v2813 = vand.u32 %v230, 4294901760
    %2814 = vmatpush1.msra.mxu0 %v2813
    %v2815 = vand.u32 %v235, 4294901760
    %2816 = vmatprep.subr.mxu0 %v2815
    %v2817 = vand.u32 %v234, 4294901760
    %2818 = vmatpush1.msra.mxu0 %v2817
    %v2819 = vand.u32 %v239, 4294901760
    %2820 = vmatprep.subr.mxu0 %v2819
    %v2821 = vand.u32 %v238, 4294901760
    %2822 = vmatpush1.msra.mxu0 %v2821
    %v2823 = vand.u32 %v243, 4294901760
    %2824 = vmatprep.subr.mxu0 %v2823
    %v2825 = vand.u32 %v242, 4294901760
    %2826 = vmatpush1.msra.mxu0 %v2825
    %v2827 = vand.u32 %v247, 4294901760
    %2828 = vmatprep.subr.mxu0 %v2827
    %v2829 = vand.u32 %v246, 4294901760
    %2830 = vmatpush1.msra.mxu0 %v2829
    %v2831 = vand.u32 %v251, 4294901760
    %2832 = vmatprep.subr.mxu0 %v2831
    %v2833 = vand.u32 %v250, 4294901760
    %2834 = vmatpush1.msra.mxu0 %v2833
    %v2835 = vand.u32 %v255, 4294901760
    %2836 = vmatprep.subr.mxu0 %v2835
    %v2837 = vand.u32 %v254, 4294901760
    %2838 = vmatpush1.msra.mxu0 %v2837
    %v2839 = vand.u32 %v259, 4294901760
    %2840 = vmatprep.subr.mxu0 %v2839
    %v2841 = vand.u32 %v258, 4294901760
    %2842 = vmatpush1.msra.mxu0 %v2841
    %v2843 = vand.u32 %v263, 4294901760
    %2844 = vmatprep.subr.mxu0 %v2843
    %v2845 = vand.u32 %v262, 4294901760
    %2846 = vmatpush1.msra.mxu0 %v2845
    %v2847 = vand.u32 %v267, 4294901760
    %2848 = vmatprep.subr.mxu0 %v2847
    %v2849 = vand.u32 %v266, 4294901760
    %2850 = vmatpush1.msra.mxu0 %v2849
    %v2851 = vand.u32 %v271, 4294901760
    %2852 = vmatprep.subr.mxu0 %v2851
    %v2853 = vand.u32 %v270, 4294901760
    %2854 = vmatpush1.msra.mxu0 %v2853
    %v2855 = vand.u32 %v275, 4294901760
    %2856 = vmatprep.subr.mxu0 %v2855
    %v2857 = vand.u32 %v274, 4294901760
    %2858 = vmatpush1.msra.mxu0 %v2857
    %v2859 = vand.u32 %v279, 4294901760
    %2860 = vmatprep.subr.mxu0 %v2859
    %v2861 = vand.u32 %v278, 4294901760
    %2862 = vmatpush1.msra.mxu0 %v2861
    %v2863 = vand.u32 %v283, 4294901760
    %2864 = vmatprep.subr.mxu0 %v2863
    %v2865 = vand.u32 %v282, 4294901760
    %2866 = vmatpush1.msra.mxu0 %v2865
    %v2867 = vand.u32 %v287, 4294901760
    %2868 = vmatprep.subr.mxu0 %v2867
    %v2869 = vand.u32 %v286, 4294901760
    %2870 = vmatpush1.msra.mxu0 %v2869
    %v2871 = vand.u32 %v291, 4294901760
    %2872 = vmatprep.subr.mxu0 %v2871
    %v2873 = vand.u32 %v290, 4294901760
    %2874 = vmatpush1.msra.mxu0 %v2873
    %v2875 = vand.u32 %v295, 4294901760
    %2876 = vmatprep.subr.mxu0 %v2875
    %v2877 = vand.u32 %v294, 4294901760
    %2878 = vmatpush1.msra.mxu0 %v2877
    %v2879 = vand.u32 %v299, 4294901760
    %2880 = vmatprep.subr.mxu0 %v2879
    %v2881 = vand.u32 %v298, 4294901760
    %2882 = vmatpush1.msra.mxu0 %v2881
    %v2883 = vand.u32 %v303, 4294901760
    %2884 = vmatprep.subr.mxu0 %v2883
    %v2885 = vand.u32 %v302, 4294901760
    %2886 = vmatpush1.msra.mxu0 %v2885
    %v2887 = vand.u32 %v307, 4294901760
    %2888 = vmatprep.subr.mxu0 %v2887
    %v2889 = vand.u32 %v306, 4294901760
    %2890 = vmatpush1.msra.mxu0 %v2889
    %v2891 = vand.u32 %v311, 4294901760
    %2892 = vmatprep.subr.mxu0 %v2891
    %v2893 = vand.u32 %v310, 4294901760
    %2894 = vmatpush1.msra.mxu0 %v2893
    %v2895 = vand.u32 %v315, 4294901760
    %2896 = vmatprep.subr.mxu0 %v2895
    %v2897 = vand.u32 %v314, 4294901760
    %2898 = vmatpush1.msra.mxu0 %v2897
    %v2899 = vand.u32 %v319, 4294901760
    %2900 = vmatprep.subr.mxu0 %v2899
    %v2901 = vand.u32 %v318, 4294901760
    %2902 = vmatpush1.msra.mxu0 %v2901
    %v2903 = vand.u32 %v323, 4294901760
    %2904 = vmatprep.subr.mxu0 %v2903
    %v2905 = vand.u32 %v322, 4294901760
    %2906 = vmatpush1.msra.mxu0 %v2905
    %v2907 = vand.u32 %v343, 4294901760
    %2908 = vmatprep.mubr.f32.mxu0 %v2907
    %v2909 = vand.u32 %v341, 4294901760
    %2910 = vmatmul.mubr.f32.gmra.mrb[0].mxu0 %v2909
    %v2911 = vpop.f32.mrb[0].mxu0
    %v2912 = vadd.f32 %v2775, %v2911
    %v2913 = vpop.f32.mrb[0].mxu0
    %v2914 = vadd.f32 %v2777, %v2913
    %2915 = vdwg.mxu0
    %v2916 = vand.u32 %v73, 4294901760
    %2917 = vmatprep.subr.mxu0 %v2916
    %v2918 = vand.u32 %v72, 4294901760
    %2919 = vmatpush1.msra.mxu0 %v2918
    %v2920 = vand.u32 %v77, 4294901760
    %2921 = vmatprep.subr.mxu0 %v2920
    %v2922 = vand.u32 %v76, 4294901760
    %2923 = vmatpush1.msra.mxu0 %v2922
    %v2924 = vand.u32 %v81, 4294901760
    %2925 = vmatprep.subr.mxu0 %v2924
    %v2926 = vand.u32 %v80, 4294901760
    %2927 = vmatpush1.msra.mxu0 %v2926
    %v2928 = vand.u32 %v85, 4294901760
    %2929 = vmatprep.subr.mxu0 %v2928
    %v2930 = vand.u32 %v84, 4294901760
    %2931 = vmatpush1.msra.mxu0 %v2930
    %v2932 = vand.u32 %v89, 4294901760
    %2933 = vmatprep.subr.mxu0 %v2932
    %v2934 = vand.u32 %v88, 4294901760
    %2935 = vmatpush1.msra.mxu0 %v2934
    %v2936 = vand.u32 %v93, 4294901760
    %2937 = vmatprep.subr.mxu0 %v2936
    %v2938 = vand.u32 %v92, 4294901760
    %2939 = vmatpush1.msra.mxu0 %v2938
    %v2940 = vand.u32 %v97, 4294901760
    %2941 = vmatprep.subr.mxu0 %v2940
    %v2942 = vand.u32 %v96, 4294901760
    %2943 = vmatpush1.msra.mxu0 %v2942
    %v2944 = vand.u32 %v101, 4294901760
    %2945 = vmatprep.subr.mxu0 %v2944
    %v2946 = vand.u32 %v100, 4294901760
    %2947 = vmatpush1.msra.mxu0 %v2946
    %v2948 = vand.u32 %v105, 4294901760
    %2949 = vmatprep.subr.mxu0 %v2948
    %v2950 = vand.u32 %v104, 4294901760
    %2951 = vmatpush1.msra.mxu0 %v2950
    %v2952 = vand.u32 %v109, 4294901760
    %2953 = vmatprep.subr.mxu0 %v2952
    %v2954 = vand.u32 %v108, 4294901760
    %2955 = vmatpush1.msra.mxu0 %v2954
    %v2956 = vand.u32 %v113, 4294901760
    %2957 = vmatprep.subr.mxu0 %v2956
    %v2958 = vand.u32 %v112, 4294901760
    %2959 = vmatpush1.msra.mxu0 %v2958
    %v2960 = vand.u32 %v117, 4294901760
    %2961 = vmatprep.subr.mxu0 %v2960
    %v2962 = vand.u32 %v116, 4294901760
    %2963 = vmatpush1.msra.mxu0 %v2962
    %v2964 = vand.u32 %v121, 4294901760
    %2965 = vmatprep.subr.mxu0 %v2964
    %v2966 = vand.u32 %v120, 4294901760
    %2967 = vmatpush1.msra.mxu0 %v2966
    %v2968 = vand.u32 %v125, 4294901760
    %2969 = vmatprep.subr.mxu0 %v2968
    %v2970 = vand.u32 %v124, 4294901760
    %2971 = vmatpush1.msra.mxu0 %v2970
    %v2972 = vand.u32 %v129, 4294901760
    %2973 = vmatprep.subr.mxu0 %v2972
    %v2974 = vand.u32 %v128, 4294901760
    %2975 = vmatpush1.msra.mxu0 %v2974
    %v2976 = vand.u32 %v133, 4294901760
    %2977 = vmatprep.subr.mxu0 %v2976
    %v2978 = vand.u32 %v132, 4294901760
    %2979 = vmatpush1.msra.mxu0 %v2978
    %v2980 = vand.u32 %v137, 4294901760
    %2981 = vmatprep.subr.mxu0 %v2980
    %v2982 = vand.u32 %v136, 4294901760
    %2983 = vmatpush1.msra.mxu0 %v2982
    %v2984 = vand.u32 %v141, 4294901760
    %2985 = vmatprep.subr.mxu0 %v2984
    %v2986 = vand.u32 %v140, 4294901760
    %2987 = vmatpush1.msra.mxu0 %v2986
    %v2988 = vand.u32 %v145, 4294901760
    %2989 = vmatprep.subr.mxu0 %v2988
    %v2990 = vand.u32 %v144, 4294901760
    %2991 = vmatpush1.msra.mxu0 %v2990
    %v2992 = vand.u32 %v149, 4294901760
    %2993 = vmatprep.subr.mxu0 %v2992
    %v2994 = vand.u32 %v148, 4294901760
    %2995 = vmatpush1.msra.mxu0 %v2994
    %v2996 = vand.u32 %v153, 4294901760
    %2997 = vmatprep.subr.mxu0 %v2996
    %v2998 = vand.u32 %v152, 4294901760
    %2999 = vmatpush1.msra.mxu0 %v2998
    %v3000 = vand.u32 %v157, 4294901760
    %3001 = vmatprep.subr.mxu0 %v3000
    %v3002 = vand.u32 %v156, 4294901760
    %3003 = vmatpush1.msra.mxu0 %v3002
    %v3004 = vand.u32 %v161, 4294901760
    %3005 = vmatprep.subr.mxu0 %v3004
    %v3006 = vand.u32 %v160, 4294901760
    %3007 = vmatpush1.msra.mxu0 %v3006
    %v3008 = vand.u32 %v165, 4294901760
    %3009 = vmatprep.subr.mxu0 %v3008
    %v3010 = vand.u32 %v164, 4294901760
    %3011 = vmatpush1.msra.mxu0 %v3010
    %v3012 = vand.u32 %v169, 4294901760
    %3013 = vmatprep.subr.mxu0 %v3012
    %v3014 = vand.u32 %v168, 4294901760
    %3015 = vmatpush1.msra.mxu0 %v3014
    %v3016 = vand.u32 %v173, 4294901760
    %3017 = vmatprep.subr.mxu0 %v3016
    %v3018 = vand.u32 %v172, 4294901760
    %3019 = vmatpush1.msra.mxu0 %v3018
    %v3020 = vand.u32 %v177, 4294901760
    %3021 = vmatprep.subr.mxu0 %v3020
    %v3022 = vand.u32 %v176, 4294901760
    %3023 = vmatpush1.msra.mxu0 %v3022
    %v3024 = vand.u32 %v181, 4294901760
    %3025 = vmatprep.subr.mxu0 %v3024
    %v3026 = vand.u32 %v180, 4294901760
    %3027 = vmatpush1.msra.mxu0 %v3026
    %v3028 = vand.u32 %v185, 4294901760
    %3029 = vmatprep.subr.mxu0 %v3028
    %v3030 = vand.u32 %v184, 4294901760
    %3031 = vmatpush1.msra.mxu0 %v3030
    %v3032 = vand.u32 %v189, 4294901760
    %3033 = vmatprep.subr.mxu0 %v3032
    %v3034 = vand.u32 %v188, 4294901760
    %3035 = vmatpush1.msra.mxu0 %v3034
    %v3036 = vand.u32 %v193, 4294901760
    %3037 = vmatprep.subr.mxu0 %v3036
    %v3038 = vand.u32 %v192, 4294901760
    %3039 = vmatpush1.msra.mxu0 %v3038
    %v3040 = vand.u32 %v197, 4294901760
    %3041 = vmatprep.subr.mxu0 %v3040
    %v3042 = vand.u32 %v196, 4294901760
    %3043 = vmatpush1.msra.mxu0 %v3042
    %v3044 = vand.u32 %v342, 4294901760
    %v3045 = vsub.f32 %v342, %v3044
    %v3046 = vand.u32 %v3045, 4294901760
    %v3047 = vsub.f32 %v3045, %v3046
    %v3048 = vand.u32 %v3047, 4294901760
    %3049 = vmatprep.mubr.f32.mxu0 %v3048
    %v3050 = vand.u32 %v334, 4294901760
    %v3051 = vsub.f32 %v334, %v3050
    %v3052 = vand.u32 %v3051, 4294901760
    %v3053 = vsub.f32 %v3051, %v3052
    %v3054 = vand.u32 %v3053, 4294901760
    %3055 = vmatmul.mubr.f32.gmra.mrb[0].mxu0 %v3054
    %v3056 = vpop.f32.mrb[0].mxu0
    %v3057 = vadd.f32 0.0, %v3056
    %v3058 = vpop.f32.mrb[0].mxu0
    %v3059 = vadd.f32 0.0, %v3058
    %3060 = vdwg.mxu0
    %v3061 = vand.u32 %v73, 4294901760
    %v3062 = vsub.f32 %v73, %v3061
    %v3063 = vand.u32 %v3062, 4294901760
    %v3064 = vsub.f32 %v3062, %v3063
    %v3065 = vand.u32 %v3064, 4294901760
    %3066 = vmatprep.subr.mxu0 %v3065
    %v3067 = vand.u32 %v72, 4294901760
    %v3068 = vsub.f32 %v72, %v3067
    %v3069 = vand.u32 %v3068, 4294901760
    %v3070 = vsub.f32 %v3068, %v3069
    %v3071 = vand.u32 %v3070, 4294901760
    %3072 = vmatpush1.msra.mxu0 %v3071
    %v3073 = vand.u32 %v77, 4294901760
    %v3074 = vsub.f32 %v77, %v3073
    %v3075 = vand.u32 %v3074, 4294901760
    %v3076 = vsub.f32 %v3074, %v3075
    %v3077 = vand.u32 %v3076, 4294901760
    %3078 = vmatprep.subr.mxu0 %v3077
    %v3079 = vand.u32 %v76, 4294901760
    %v3080 = vsub.f32 %v76, %v3079
    %v3081 = vand.u32 %v3080, 4294901760
    %v3082 = vsub.f32 %v3080, %v3081
    %v3083 = vand.u32 %v3082, 4294901760
    %3084 = vmatpush1.msra.mxu0 %v3083
    %v3085 = vand.u32 %v81, 4294901760
    %v3086 = vsub.f32 %v81, %v3085
    %v3087 = vand.u32 %v3086, 4294901760
    %v3088 = vsub.f32 %v3086, %v3087
    %v3089 = vand.u32 %v3088, 4294901760
    %3090 = vmatprep.subr.mxu0 %v3089
    %v3091 = vand.u32 %v80, 4294901760
    %v3092 = vsub.f32 %v80, %v3091
    %v3093 = vand.u32 %v3092, 4294901760
    %v3094 = vsub.f32 %v3092, %v3093
    %v3095 = vand.u32 %v3094, 4294901760
    %3096 = vmatpush1.msra.mxu0 %v3095
    %v3097 = vand.u32 %v85, 4294901760
    %v3098 = vsub.f32 %v85, %v3097
    %v3099 = vand.u32 %v3098, 4294901760
    %v3100 = vsub.f32 %v3098, %v3099
    %v3101 = vand.u32 %v3100, 4294901760
    %3102 = vmatprep.subr.mxu0 %v3101
    %v3103 = vand.u32 %v84, 4294901760
    %v3104 = vsub.f32 %v84, %v3103
    %v3105 = vand.u32 %v3104, 4294901760
    %v3106 = vsub.f32 %v3104, %v3105
    %v3107 = vand.u32 %v3106, 4294901760
    %3108 = vmatpush1.msra.mxu0 %v3107
    %v3109 = vand.u32 %v89, 4294901760
    %v3110 = vsub.f32 %v89, %v3109
    %v3111 = vand.u32 %v3110, 4294901760
    %v3112 = vsub.f32 %v3110, %v3111
    %v3113 = vand.u32 %v3112, 4294901760
    %3114 = vmatprep.subr.mxu0 %v3113
    %v3115 = vand.u32 %v88, 4294901760
    %v3116 = vsub.f32 %v88, %v3115
    %v3117 = vand.u32 %v3116, 4294901760
    %v3118 = vsub.f32 %v3116, %v3117
    %v3119 = vand.u32 %v3118, 4294901760
    %3120 = vmatpush1.msra.mxu0 %v3119
    %v3121 = vand.u32 %v93, 4294901760
    %v3122 = vsub.f32 %v93, %v3121
    %v3123 = vand.u32 %v3122, 4294901760
    %v3124 = vsub.f32 %v3122, %v3123
    %v3125 = vand.u32 %v3124, 4294901760
    %3126 = vmatprep.subr.mxu0 %v3125
    %v3127 = vand.u32 %v92, 4294901760
    %v3128 = vsub.f32 %v92, %v3127
    %v3129 = vand.u32 %v3128, 4294901760
    %v3130 = vsub.f32 %v3128, %v3129
    %v3131 = vand.u32 %v3130, 4294901760
    %3132 = vmatpush1.msra.mxu0 %v3131
    %v3133 = vand.u32 %v97, 4294901760
    %v3134 = vsub.f32 %v97, %v3133
    %v3135 = vand.u32 %v3134, 4294901760
    %v3136 = vsub.f32 %v3134, %v3135
    %v3137 = vand.u32 %v3136, 4294901760
    %3138 = vmatprep.subr.mxu0 %v3137
    %v3139 = vand.u32 %v96, 4294901760
    %v3140 = vsub.f32 %v96, %v3139
    %v3141 = vand.u32 %v3140, 4294901760
    %v3142 = vsub.f32 %v3140, %v3141
    %v3143 = vand.u32 %v3142, 4294901760
    %3144 = vmatpush1.msra.mxu0 %v3143
    %v3145 = vand.u32 %v101, 4294901760
    %v3146 = vsub.f32 %v101, %v3145
    %v3147 = vand.u32 %v3146, 4294901760
    %v3148 = vsub.f32 %v3146, %v3147
    %v3149 = vand.u32 %v3148, 4294901760
    %3150 = vmatprep.subr.mxu0 %v3149
    %v3151 = vand.u32 %v100, 4294901760
    %v3152 = vsub.f32 %v100, %v3151
    %v3153 = vand.u32 %v3152, 4294901760
    %v3154 = vsub.f32 %v3152, %v3153
    %v3155 = vand.u32 %v3154, 4294901760
    %3156 = vmatpush1.msra.mxu0 %v3155
    %v3157 = vand.u32 %v105, 4294901760
    %v3158 = vsub.f32 %v105, %v3157
    %v3159 = vand.u32 %v3158, 4294901760
    %v3160 = vsub.f32 %v3158, %v3159
    %v3161 = vand.u32 %v3160, 4294901760
    %3162 = vmatprep.subr.mxu0 %v3161
    %v3163 = vand.u32 %v104, 4294901760
    %v3164 = vsub.f32 %v104, %v3163
    %v3165 = vand.u32 %v3164, 4294901760
    %v3166 = vsub.f32 %v3164, %v3165
    %v3167 = vand.u32 %v3166, 4294901760
    %3168 = vmatpush1.msra.mxu0 %v3167
    %v3169 = vand.u32 %v109, 4294901760
    %v3170 = vsub.f32 %v109, %v3169
    %v3171 = vand.u32 %v3170, 4294901760
    %v3172 = vsub.f32 %v3170, %v3171
    %v3173 = vand.u32 %v3172, 4294901760
    %3174 = vmatprep.subr.mxu0 %v3173
    %v3175 = vand.u32 %v108, 4294901760
    %v3176 = vsub.f32 %v108, %v3175
    %v3177 = vand.u32 %v3176, 4294901760
    %v3178 = vsub.f32 %v3176, %v3177
    %v3179 = vand.u32 %v3178, 4294901760
    %3180 = vmatpush1.msra.mxu0 %v3179
    %v3181 = vand.u32 %v113, 4294901760
    %v3182 = vsub.f32 %v113, %v3181
    %v3183 = vand.u32 %v3182, 4294901760
    %v3184 = vsub.f32 %v3182, %v3183
    %v3185 = vand.u32 %v3184, 4294901760
    %3186 = vmatprep.subr.mxu0 %v3185
    %v3187 = vand.u32 %v112, 4294901760
    %v3188 = vsub.f32 %v112, %v3187
    %v3189 = vand.u32 %v3188, 4294901760
    %v3190 = vsub.f32 %v3188, %v3189
    %v3191 = vand.u32 %v3190, 4294901760
    %3192 = vmatpush1.msra.mxu0 %v3191
    %v3193 = vand.u32 %v117, 4294901760
    %v3194 = vsub.f32 %v117, %v3193
    %v3195 = vand.u32 %v3194, 4294901760
    %v3196 = vsub.f32 %v3194, %v3195
    %v3197 = vand.u32 %v3196, 4294901760
    %3198 = vmatprep.subr.mxu0 %v3197
    %v3199 = vand.u32 %v116, 4294901760
    %v3200 = vsub.f32 %v116, %v3199
    %v3201 = vand.u32 %v3200, 4294901760
    %v3202 = vsub.f32 %v3200, %v3201
    %v3203 = vand.u32 %v3202, 4294901760
    %3204 = vmatpush1.msra.mxu0 %v3203
    %v3205 = vand.u32 %v121, 4294901760
    %v3206 = vsub.f32 %v121, %v3205
    %v3207 = vand.u32 %v3206, 4294901760
    %v3208 = vsub.f32 %v3206, %v3207
    %v3209 = vand.u32 %v3208, 4294901760
    %3210 = vmatprep.subr.mxu0 %v3209
    %v3211 = vand.u32 %v120, 4294901760
    %v3212 = vsub.f32 %v120, %v3211
    %v3213 = vand.u32 %v3212, 4294901760
    %v3214 = vsub.f32 %v3212, %v3213
    %v3215 = vand.u32 %v3214, 4294901760
    %3216 = vmatpush1.msra.mxu0 %v3215
    %v3217 = vand.u32 %v125, 4294901760
    %v3218 = vsub.f32 %v125, %v3217
    %v3219 = vand.u32 %v3218, 4294901760
    %v3220 = vsub.f32 %v3218, %v3219
    %v3221 = vand.u32 %v3220, 4294901760
    %3222 = vmatprep.subr.mxu0 %v3221
    %v3223 = vand.u32 %v124, 4294901760
    %v3224 = vsub.f32 %v124, %v3223
    %v3225 = vand.u32 %v3224, 4294901760
    %v3226 = vsub.f32 %v3224, %v3225
    %v3227 = vand.u32 %v3226, 4294901760
    %3228 = vmatpush1.msra.mxu0 %v3227
    %v3229 = vand.u32 %v129, 4294901760
    %v3230 = vsub.f32 %v129, %v3229
    %v3231 = vand.u32 %v3230, 4294901760
    %v3232 = vsub.f32 %v3230, %v3231
    %v3233 = vand.u32 %v3232, 4294901760
    %3234 = vmatprep.subr.mxu0 %v3233
    %v3235 = vand.u32 %v128, 4294901760
    %v3236 = vsub.f32 %v128, %v3235
    %v3237 = vand.u32 %v3236, 4294901760
    %v3238 = vsub.f32 %v3236, %v3237
    %v3239 = vand.u32 %v3238, 4294901760
    %3240 = vmatpush1.msra.mxu0 %v3239
    %v3241 = vand.u32 %v133, 4294901760
    %v3242 = vsub.f32 %v133, %v3241
    %v3243 = vand.u32 %v3242, 4294901760
    %v3244 = vsub.f32 %v3242, %v3243
    %v3245 = vand.u32 %v3244, 4294901760
    %3246 = vmatprep.subr.mxu0 %v3245
    %v3247 = vand.u32 %v132, 4294901760
    %v3248 = vsub.f32 %v132, %v3247
    %v3249 = vand.u32 %v3248, 4294901760
    %v3250 = vsub.f32 %v3248, %v3249
    %v3251 = vand.u32 %v3250, 4294901760
    %3252 = vmatpush1.msra.mxu0 %v3251
    %v3253 = vand.u32 %v137, 4294901760
    %v3254 = vsub.f32 %v137, %v3253
    %v3255 = vand.u32 %v3254, 4294901760
    %v3256 = vsub.f32 %v3254, %v3255
    %v3257 = vand.u32 %v3256, 4294901760
    %3258 = vmatprep.subr.mxu0 %v3257
    %v3259 = vand.u32 %v136, 4294901760
    %v3260 = vsub.f32 %v136, %v3259
    %v3261 = vand.u32 %v3260, 4294901760
    %v3262 = vsub.f32 %v3260, %v3261
    %v3263 = vand.u32 %v3262, 4294901760
    %3264 = vmatpush1.msra.mxu0 %v3263
    %v3265 = vand.u32 %v141, 4294901760
    %v3266 = vsub.f32 %v141, %v3265
    %v3267 = vand.u32 %v3266, 4294901760
    %v3268 = vsub.f32 %v3266, %v3267
    %v3269 = vand.u32 %v3268, 4294901760
    %3270 = vmatprep.subr.mxu0 %v3269
    %v3271 = vand.u32 %v140, 4294901760
    %v3272 = vsub.f32 %v140, %v3271
    %v3273 = vand.u32 %v3272, 4294901760
    %v3274 = vsub.f32 %v3272, %v3273
    %v3275 = vand.u32 %v3274, 4294901760
    %3276 = vmatpush1.msra.mxu0 %v3275
    %v3277 = vand.u32 %v145, 4294901760
    %v3278 = vsub.f32 %v145, %v3277
    %v3279 = vand.u32 %v3278, 4294901760
    %v3280 = vsub.f32 %v3278, %v3279
    %v3281 = vand.u32 %v3280, 4294901760
    %3282 = vmatprep.subr.mxu0 %v3281
    %v3283 = vand.u32 %v144, 4294901760
    %v3284 = vsub.f32 %v144, %v3283
    %v3285 = vand.u32 %v3284, 4294901760
    %v3286 = vsub.f32 %v3284, %v3285
    %v3287 = vand.u32 %v3286, 4294901760
    %3288 = vmatpush1.msra.mxu0 %v3287
    %v3289 = vand.u32 %v149, 4294901760
    %v3290 = vsub.f32 %v149, %v3289
    %v3291 = vand.u32 %v3290, 4294901760
    %v3292 = vsub.f32 %v3290, %v3291
    %v3293 = vand.u32 %v3292, 4294901760
    %3294 = vmatprep.subr.mxu0 %v3293
    %v3295 = vand.u32 %v148, 4294901760
    %v3296 = vsub.f32 %v148, %v3295
    %v3297 = vand.u32 %v3296, 4294901760
    %v3298 = vsub.f32 %v3296, %v3297
    %v3299 = vand.u32 %v3298, 4294901760
    %3300 = vmatpush1.msra.mxu0 %v3299
    %v3301 = vand.u32 %v153, 4294901760
    %v3302 = vsub.f32 %v153, %v3301
    %v3303 = vand.u32 %v3302, 4294901760
    %v3304 = vsub.f32 %v3302, %v3303
    %v3305 = vand.u32 %v3304, 4294901760
    %3306 = vmatprep.subr.mxu0 %v3305
    %v3307 = vand.u32 %v152, 4294901760
    %v3308 = vsub.f32 %v152, %v3307
    %v3309 = vand.u32 %v3308, 4294901760
    %v3310 = vsub.f32 %v3308, %v3309
    %v3311 = vand.u32 %v3310, 4294901760
    %3312 = vmatpush1.msra.mxu0 %v3311
    %v3313 = vand.u32 %v157, 4294901760
    %v3314 = vsub.f32 %v157, %v3313
    %v3315 = vand.u32 %v3314, 4294901760
    %v3316 = vsub.f32 %v3314, %v3315
    %v3317 = vand.u32 %v3316, 4294901760
    %3318 = vmatprep.subr.mxu0 %v3317
    %v3319 = vand.u32 %v156, 4294901760
    %v3320 = vsub.f32 %v156, %v3319
    %v3321 = vand.u32 %v3320, 4294901760
    %v3322 = vsub.f32 %v3320, %v3321
    %v3323 = vand.u32 %v3322, 4294901760
    %3324 = vmatpush1.msra.mxu0 %v3323
    %v3325 = vand.u32 %v161, 4294901760
    %v3326 = vsub.f32 %v161, %v3325
    %v3327 = vand.u32 %v3326, 4294901760
    %v3328 = vsub.f32 %v3326, %v3327
    %v3329 = vand.u32 %v3328, 4294901760
    %3330 = vmatprep.subr.mxu0 %v3329
    %v3331 = vand.u32 %v160, 4294901760
    %v3332 = vsub.f32 %v160, %v3331
    %v3333 = vand.u32 %v3332, 4294901760
    %v3334 = vsub.f32 %v3332, %v3333
    %v3335 = vand.u32 %v3334, 4294901760
    %3336 = vmatpush1.msra.mxu0 %v3335
    %v3337 = vand.u32 %v165, 4294901760
    %v3338 = vsub.f32 %v165, %v3337
    %v3339 = vand.u32 %v3338, 4294901760
    %v3340 = vsub.f32 %v3338, %v3339
    %v3341 = vand.u32 %v3340, 4294901760
    %3342 = vmatprep.subr.mxu0 %v3341
    %v3343 = vand.u32 %v164, 4294901760
    %v3344 = vsub.f32 %v164, %v3343
    %v3345 = vand.u32 %v3344, 4294901760
    %v3346 = vsub.f32 %v3344, %v3345
    %v3347 = vand.u32 %v3346, 4294901760
    %3348 = vmatpush1.msra.mxu0 %v3347
    %v3349 = vand.u32 %v169, 4294901760
    %v3350 = vsub.f32 %v169, %v3349
    %v3351 = vand.u32 %v3350, 4294901760
    %v3352 = vsub.f32 %v3350, %v3351
    %v3353 = vand.u32 %v3352, 4294901760
    %3354 = vmatprep.subr.mxu0 %v3353
    %v3355 = vand.u32 %v168, 4294901760
    %v3356 = vsub.f32 %v168, %v3355
    %v3357 = vand.u32 %v3356, 4294901760
    %v3358 = vsub.f32 %v3356, %v3357
    %v3359 = vand.u32 %v3358, 4294901760
    %3360 = vmatpush1.msra.mxu0 %v3359
    %v3361 = vand.u32 %v173, 4294901760
    %v3362 = vsub.f32 %v173, %v3361
    %v3363 = vand.u32 %v3362, 4294901760
    %v3364 = vsub.f32 %v3362, %v3363
    %v3365 = vand.u32 %v3364, 4294901760
    %3366 = vmatprep.subr.mxu0 %v3365
    %v3367 = vand.u32 %v172, 4294901760
    %v3368 = vsub.f32 %v172, %v3367
    %v3369 = vand.u32 %v3368, 4294901760
    %v3370 = vsub.f32 %v3368, %v3369
    %v3371 = vand.u32 %v3370, 4294901760
    %3372 = vmatpush1.msra.mxu0 %v3371
    %v3373 = vand.u32 %v177, 4294901760
    %v3374 = vsub.f32 %v177, %v3373
    %v3375 = vand.u32 %v3374, 4294901760
    %v3376 = vsub.f32 %v3374, %v3375
    %v3377 = vand.u32 %v3376, 4294901760
    %3378 = vmatprep.subr.mxu0 %v3377
    %v3379 = vand.u32 %v176, 4294901760
    %v3380 = vsub.f32 %v176, %v3379
    %v3381 = vand.u32 %v3380, 4294901760
    %v3382 = vsub.f32 %v3380, %v3381
    %v3383 = vand.u32 %v3382, 4294901760
    %3384 = vmatpush1.msra.mxu0 %v3383
    %v3385 = vand.u32 %v181, 4294901760
    %v3386 = vsub.f32 %v181, %v3385
    %v3387 = vand.u32 %v3386, 4294901760
    %v3388 = vsub.f32 %v3386, %v3387
    %v3389 = vand.u32 %v3388, 4294901760
    %3390 = vmatprep.subr.mxu0 %v3389
    %v3391 = vand.u32 %v180, 4294901760
    %v3392 = vsub.f32 %v180, %v3391
    %v3393 = vand.u32 %v3392, 4294901760
    %v3394 = vsub.f32 %v3392, %v3393
    %v3395 = vand.u32 %v3394, 4294901760
    %3396 = vmatpush1.msra.mxu0 %v3395
    %v3397 = vand.u32 %v185, 4294901760
    %v3398 = vsub.f32 %v185, %v3397
    %v3399 = vand.u32 %v3398, 4294901760
    %v3400 = vsub.f32 %v3398, %v3399
    %v3401 = vand.u32 %v3400, 4294901760
    %3402 = vmatprep.subr.mxu0 %v3401
    %v3403 = vand.u32 %v184, 4294901760
    %v3404 = vsub.f32 %v184, %v3403
    %v3405 = vand.u32 %v3404, 4294901760
    %v3406 = vsub.f32 %v3404, %v3405
    %v3407 = vand.u32 %v3406, 4294901760
    %3408 = vmatpush1.msra.mxu0 %v3407
    %v3409 = vand.u32 %v189, 4294901760
    %v3410 = vsub.f32 %v189, %v3409
    %v3411 = vand.u32 %v3410, 4294901760
    %v3412 = vsub.f32 %v3410, %v3411
    %v3413 = vand.u32 %v3412, 4294901760
    %3414 = vmatprep.subr.mxu0 %v3413
    %v3415 = vand.u32 %v188, 4294901760
    %v3416 = vsub.f32 %v188, %v3415
    %v3417 = vand.u32 %v3416, 4294901760
    %v3418 = vsub.f32 %v3416, %v3417
    %v3419 = vand.u32 %v3418, 4294901760
    %3420 = vmatpush1.msra.mxu0 %v3419
    %v3421 = vand.u32 %v193, 4294901760
    %v3422 = vsub.f32 %v193, %v3421
    %v3423 = vand.u32 %v3422, 4294901760
    %v3424 = vsub.f32 %v3422, %v3423
    %v3425 = vand.u32 %v3424, 4294901760
    %3426 = vmatprep.subr.mxu0 %v3425
    %v3427 = vand.u32 %v192, 4294901760
    %v3428 = vsub.f32 %v192, %v3427
    %v3429 = vand.u32 %v3428, 4294901760
    %v3430 = vsub.f32 %v3428, %v3429
    %v3431 = vand.u32 %v3430, 4294901760
    %3432 = vmatpush1.msra.mxu0 %v3431
    %v3433 = vand.u32 %v197, 4294901760
    %v3434 = vsub.f32 %v197, %v3433
    %v3435 = vand.u32 %v3434, 4294901760
    %v3436 = vsub.f32 %v3434, %v3435
    %v3437 = vand.u32 %v3436, 4294901760
    %3438 = vmatprep.subr.mxu0 %v3437
    %v3439 = vand.u32 %v196, 4294901760
    %v3440 = vsub.f32 %v196, %v3439
    %v3441 = vand.u32 %v3440, 4294901760
    %v3442 = vsub.f32 %v3440, %v3441
    %v3443 = vand.u32 %v3442, 4294901760
    %3444 = vmatpush1.msra.mxu0 %v3443
    %v3445 = vand.u32 %v342, 4294901760
    %3446 = vmatprep.mubr.f32.mxu0 %v3445
    %v3447 = vand.u32 %v334, 4294901760
    %3448 = vmatmul.mubr.f32.gmra.mrb[0].mxu0 %v3447
    %v3449 = vpop.f32.mrb[0].mxu0
    %v3450 = vadd.f32 %v3057, %v3449
    %v3451 = vpop.f32.mrb[0].mxu0
    %v3452 = vadd.f32 %v3059, %v3451
    %3453 = vdwg.mxu0
    %v3454 = vand.u32 %v73, 4294901760
    %v3455 = vsub.f32 %v73, %v3454
    %3456 = vmatprep.subr.mxu0 %v3455
    %v3457 = vand.u32 %v72, 4294901760
    %v3458 = vsub.f32 %v72, %v3457
    %3459 = vmatpush1.msra.mxu0 %v3458
    %v3460 = vand.u32 %v77, 4294901760
    %v3461 = vsub.f32 %v77, %v3460
    %3462 = vmatprep.subr.mxu0 %v3461
    %v3463 = vand.u32 %v76, 4294901760
    %v3464 = vsub.f32 %v76, %v3463
    %3465 = vmatpush1.msra.mxu0 %v3464
    %v3466 = vand.u32 %v81, 4294901760
    %v3467 = vsub.f32 %v81, %v3466
    %3468 = vmatprep.subr.mxu0 %v3467
    %v3469 = vand.u32 %v80, 4294901760
    %v3470 = vsub.f32 %v80, %v3469
    %3471 = vmatpush1.msra.mxu0 %v3470
    %v3472 = vand.u32 %v85, 4294901760
    %v3473 = vsub.f32 %v85, %v3472
    %3474 = vmatprep.subr.mxu0 %v3473
    %v3475 = vand.u32 %v84, 4294901760
    %v3476 = vsub.f32 %v84, %v3475
    %3477 = vmatpush1.msra.mxu0 %v3476
    %v3478 = vand.u32 %v89, 4294901760
    %v3479 = vsub.f32 %v89, %v3478
    %3480 = vmatprep.subr.mxu0 %v3479
    %v3481 = vand.u32 %v88, 4294901760
    %v3482 = vsub.f32 %v88, %v3481
    %3483 = vmatpush1.msra.mxu0 %v3482
    %v3484 = vand.u32 %v93, 4294901760
    %v3485 = vsub.f32 %v93, %v3484
    %3486 = vmatprep.subr.mxu0 %v3485
    %v3487 = vand.u32 %v92, 4294901760
    %v3488 = vsub.f32 %v92, %v3487
    %3489 = vmatpush1.msra.mxu0 %v3488
    %v3490 = vand.u32 %v97, 4294901760
    %v3491 = vsub.f32 %v97, %v3490
    %3492 = vmatprep.subr.mxu0 %v3491
    %v3493 = vand.u32 %v96, 4294901760
    %v3494 = vsub.f32 %v96, %v3493
    %3495 = vmatpush1.msra.mxu0 %v3494
    %v3496 = vand.u32 %v101, 4294901760
    %v3497 = vsub.f32 %v101, %v3496
    %3498 = vmatprep.subr.mxu0 %v3497
    %v3499 = vand.u32 %v100, 4294901760
    %v3500 = vsub.f32 %v100, %v3499
    %3501 = vmatpush1.msra.mxu0 %v3500
    %v3502 = vand.u32 %v105, 4294901760
    %v3503 = vsub.f32 %v105, %v3502
    %3504 = vmatprep.subr.mxu0 %v3503
    %v3505 = vand.u32 %v104, 4294901760
    %v3506 = vsub.f32 %v104, %v3505
    %3507 = vmatpush1.msra.mxu0 %v3506
    %v3508 = vand.u32 %v109, 4294901760
    %v3509 = vsub.f32 %v109, %v3508
    %3510 = vmatprep.subr.mxu0 %v3509
    %v3511 = vand.u32 %v108, 4294901760
    %v3512 = vsub.f32 %v108, %v3511
    %3513 = vmatpush1.msra.mxu0 %v3512
    %v3514 = vand.u32 %v113, 4294901760
    %v3515 = vsub.f32 %v113, %v3514
    %3516 = vmatprep.subr.mxu0 %v3515
    %v3517 = vand.u32 %v112, 4294901760
    %v3518 = vsub.f32 %v112, %v3517
    %3519 = vmatpush1.msra.mxu0 %v3518
    %v3520 = vand.u32 %v117, 4294901760
    %v3521 = vsub.f32 %v117, %v3520
    %3522 = vmatprep.subr.mxu0 %v3521
    %v3523 = vand.u32 %v116, 4294901760
    %v3524 = vsub.f32 %v116, %v3523
    %3525 = vmatpush1.msra.mxu0 %v3524
    %v3526 = vand.u32 %v121, 4294901760
    %v3527 = vsub.f32 %v121, %v3526
    %3528 = vmatprep.subr.mxu0 %v3527
    %v3529 = vand.u32 %v120, 4294901760
    %v3530 = vsub.f32 %v120, %v3529
    %3531 = vmatpush1.msra.mxu0 %v3530
    %v3532 = vand.u32 %v125, 4294901760
    %v3533 = vsub.f32 %v125, %v3532
    %3534 = vmatprep.subr.mxu0 %v3533
    %v3535 = vand.u32 %v124, 4294901760
    %v3536 = vsub.f32 %v124, %v3535
    %3537 = vmatpush1.msra.mxu0 %v3536
    %v3538 = vand.u32 %v129, 4294901760
    %v3539 = vsub.f32 %v129, %v3538
    %3540 = vmatprep.subr.mxu0 %v3539
    %v3541 = vand.u32 %v128, 4294901760
    %v3542 = vsub.f32 %v128, %v3541
    %3543 = vmatpush1.msra.mxu0 %v3542
    %v3544 = vand.u32 %v133, 4294901760
    %v3545 = vsub.f32 %v133, %v3544
    %3546 = vmatprep.subr.mxu0 %v3545
    %v3547 = vand.u32 %v132, 4294901760
    %v3548 = vsub.f32 %v132, %v3547
    %3549 = vmatpush1.msra.mxu0 %v3548
    %v3550 = vand.u32 %v137, 4294901760
    %v3551 = vsub.f32 %v137, %v3550
    %3552 = vmatprep.subr.mxu0 %v3551
    %v3553 = vand.u32 %v136, 4294901760
    %v3554 = vsub.f32 %v136, %v3553
    %3555 = vmatpush1.msra.mxu0 %v3554
    %v3556 = vand.u32 %v141, 4294901760
    %v3557 = vsub.f32 %v141, %v3556
    %3558 = vmatprep.subr.mxu0 %v3557
    %v3559 = vand.u32 %v140, 4294901760
    %v3560 = vsub.f32 %v140, %v3559
    %3561 = vmatpush1.msra.mxu0 %v3560
    %v3562 = vand.u32 %v145, 4294901760
    %v3563 = vsub.f32 %v145, %v3562
    %3564 = vmatprep.subr.mxu0 %v3563
    %v3565 = vand.u32 %v144, 4294901760
    %v3566 = vsub.f32 %v144, %v3565
    %3567 = vmatpush1.msra.mxu0 %v3566
    %v3568 = vand.u32 %v149, 4294901760
    %v3569 = vsub.f32 %v149, %v3568
    %3570 = vmatprep.subr.mxu0 %v3569
    %v3571 = vand.u32 %v148, 4294901760
    %v3572 = vsub.f32 %v148, %v3571
    %3573 = vmatpush1.msra.mxu0 %v3572
    %v3574 = vand.u32 %v153, 4294901760
    %v3575 = vsub.f32 %v153, %v3574
    %3576 = vmatprep.subr.mxu0 %v3575
    %v3577 = vand.u32 %v152, 4294901760
    %v3578 = vsub.f32 %v152, %v3577
    %3579 = vmatpush1.msra.mxu0 %v3578
    %v3580 = vand.u32 %v157, 4294901760
    %v3581 = vsub.f32 %v157, %v3580
    %3582 = vmatprep.subr.mxu0 %v3581
    %v3583 = vand.u32 %v156, 4294901760
    %v3584 = vsub.f32 %v156, %v3583
    %3585 = vmatpush1.msra.mxu0 %v3584
    %v3586 = vand.u32 %v161, 4294901760
    %v3587 = vsub.f32 %v161, %v3586
    %3588 = vmatprep.subr.mxu0 %v3587
    %v3589 = vand.u32 %v160, 4294901760
    %v3590 = vsub.f32 %v160, %v3589
    %3591 = vmatpush1.msra.mxu0 %v3590
    %v3592 = vand.u32 %v165, 4294901760
    %v3593 = vsub.f32 %v165, %v3592
    %3594 = vmatprep.subr.mxu0 %v3593
    %v3595 = vand.u32 %v164, 4294901760
    %v3596 = vsub.f32 %v164, %v3595
    %3597 = vmatpush1.msra.mxu0 %v3596
    %v3598 = vand.u32 %v169, 4294901760
    %v3599 = vsub.f32 %v169, %v3598
    %3600 = vmatprep.subr.mxu0 %v3599
    %v3601 = vand.u32 %v168, 4294901760
    %v3602 = vsub.f32 %v168, %v3601
    %3603 = vmatpush1.msra.mxu0 %v3602
    %v3604 = vand.u32 %v173, 4294901760
    %v3605 = vsub.f32 %v173, %v3604
    %3606 = vmatprep.subr.mxu0 %v3605
    %v3607 = vand.u32 %v172, 4294901760
    %v3608 = vsub.f32 %v172, %v3607
    %3609 = vmatpush1.msra.mxu0 %v3608
    %v3610 = vand.u32 %v177, 4294901760
    %v3611 = vsub.f32 %v177, %v3610
    %3612 = vmatprep.subr.mxu0 %v3611
    %v3613 = vand.u32 %v176, 4294901760
    %v3614 = vsub.f32 %v176, %v3613
    %3615 = vmatpush1.msra.mxu0 %v3614
    %v3616 = vand.u32 %v181, 4294901760
    %v3617 = vsub.f32 %v181, %v3616
    %3618 = vmatprep.subr.mxu0 %v3617
    %v3619 = vand.u32 %v180, 4294901760
    %v3620 = vsub.f32 %v180, %v3619
    %3621 = vmatpush1.msra.mxu0 %v3620
    %v3622 = vand.u32 %v185, 4294901760
    %v3623 = vsub.f32 %v185, %v3622
    %3624 = vmatprep.subr.mxu0 %v3623
    %v3625 = vand.u32 %v184, 4294901760
    %v3626 = vsub.f32 %v184, %v3625
    %3627 = vmatpush1.msra.mxu0 %v3626
    %v3628 = vand.u32 %v189, 4294901760
    %v3629 = vsub.f32 %v189, %v3628
    %3630 = vmatprep.subr.mxu0 %v3629
    %v3631 = vand.u32 %v188, 4294901760
    %v3632 = vsub.f32 %v188, %v3631
    %3633 = vmatpush1.msra.mxu0 %v3632
    %v3634 = vand.u32 %v193, 4294901760
    %v3635 = vsub.f32 %v193, %v3634
    %3636 = vmatprep.subr.mxu0 %v3635
    %v3637 = vand.u32 %v192, 4294901760
    %v3638 = vsub.f32 %v192, %v3637
    %3639 = vmatpush1.msra.mxu0 %v3638
    %v3640 = vand.u32 %v197, 4294901760
    %v3641 = vsub.f32 %v197, %v3640
    %3642 = vmatprep.subr.mxu0 %v3641
    %v3643 = vand.u32 %v196, 4294901760
    %v3644 = vsub.f32 %v196, %v3643
    %3645 = vmatpush1.msra.mxu0 %v3644
    %v3646 = vand.u32 %v342, 4294901760
    %v3647 = vsub.f32 %v342, %v3646
    %3648 = vmatprep.mubr.f32.mxu0 %v3647
    %v3649 = vand.u32 %v334, 4294901760
    %v3650 = vsub.f32 %v334, %v3649
    %3651 = vmatmul.mubr.f32.gmra.mrb[0].mxu0 %v3650
    %v3652 = vpop.f32.mrb[0].mxu0
    %v3653 = vadd.f32 %v3450, %v3652
    %v3654 = vpop.f32.mrb[0].mxu0
    %v3655 = vadd.f32 %v3452, %v3654
    %3656 = vdwg.mxu0
    %v3657 = vand.u32 %v73, 4294901760
    %3658 = vmatprep.subr.mxu0 %v3657
    %v3659 = vand.u32 %v72, 4294901760
    %3660 = vmatpush1.msra.mxu0 %v3659
    %v3661 = vand.u32 %v77, 4294901760
    %3662 = vmatprep.subr.mxu0 %v3661
    %v3663 = vand.u32 %v76, 4294901760
    %3664 = vmatpush1.msra.mxu0 %v3663
    %v3665 = vand.u32 %v81, 4294901760
    %3666 = vmatprep.subr.mxu0 %v3665
    %v3667 = vand.u32 %v80, 4294901760
    %3668 = vmatpush1.msra.mxu0 %v3667
    %v3669 = vand.u32 %v85, 4294901760
    %3670 = vmatprep.subr.mxu0 %v3669
    %v3671 = vand.u32 %v84, 4294901760
    %3672 = vmatpush1.msra.mxu0 %v3671
    %v3673 = vand.u32 %v89, 4294901760
    %3674 = vmatprep.subr.mxu0 %v3673
    %v3675 = vand.u32 %v88, 4294901760
    %3676 = vmatpush1.msra.mxu0 %v3675
    %v3677 = vand.u32 %v93, 4294901760
    %3678 = vmatprep.subr.mxu0 %v3677
    %v3679 = vand.u32 %v92, 4294901760
    %3680 = vmatpush1.msra.mxu0 %v3679
    %v3681 = vand.u32 %v97, 4294901760
    %3682 = vmatprep.subr.mxu0 %v3681
    %v3683 = vand.u32 %v96, 4294901760
    %3684 = vmatpush1.msra.mxu0 %v3683
    %v3685 = vand.u32 %v101, 4294901760
    %3686 = vmatprep.subr.mxu0 %v3685
    %v3687 = vand.u32 %v100, 4294901760
    %3688 = vmatpush1.msra.mxu0 %v3687
    %v3689 = vand.u32 %v105, 4294901760
    %3690 = vmatprep.subr.mxu0 %v3689
    %v3691 = vand.u32 %v104, 4294901760
    %3692 = vmatpush1.msra.mxu0 %v3691
    %v3693 = vand.u32 %v109, 4294901760
    %3694 = vmatprep.subr.mxu0 %v3693
    %v3695 = vand.u32 %v108, 4294901760
    %3696 = vmatpush1.msra.mxu0 %v3695
    %v3697 = vand.u32 %v113, 4294901760
    %3698 = vmatprep.subr.mxu0 %v3697
    %v3699 = vand.u32 %v112, 4294901760
    %3700 = vmatpush1.msra.mxu0 %v3699
    %v3701 = vand.u32 %v117, 4294901760
    %3702 = vmatprep.subr.mxu0 %v3701
    %v3703 = vand.u32 %v116, 4294901760
    %3704 = vmatpush1.msra.mxu0 %v3703
    %v3705 = vand.u32 %v121, 4294901760
    %3706 = vmatprep.subr.mxu0 %v3705
    %v3707 = vand.u32 %v120, 4294901760
    %3708 = vmatpush1.msra.mxu0 %v3707
    %v3709 = vand.u32 %v125, 4294901760
    %3710 = vmatprep.subr.mxu0 %v3709
    %v3711 = vand.u32 %v124, 4294901760
    %3712 = vmatpush1.msra.mxu0 %v3711
    %v3713 = vand.u32 %v129, 4294901760
    %3714 = vmatprep.subr.mxu0 %v3713
    %v3715 = vand.u32 %v128, 4294901760
    %3716 = vmatpush1.msra.mxu0 %v3715
    %v3717 = vand.u32 %v133, 4294901760
    %3718 = vmatprep.subr.mxu0 %v3717
    %v3719 = vand.u32 %v132, 4294901760
    %3720 = vmatpush1.msra.mxu0 %v3719
    %v3721 = vand.u32 %v137, 4294901760
    %3722 = vmatprep.subr.mxu0 %v3721
    %v3723 = vand.u32 %v136, 4294901760
    %3724 = vmatpush1.msra.mxu0 %v3723
    %v3725 = vand.u32 %v141, 4294901760
    %3726 = vmatprep.subr.mxu0 %v3725
    %v3727 = vand.u32 %v140, 4294901760
    %3728 = vmatpush1.msra.mxu0 %v3727
    %v3729 = vand.u32 %v145, 4294901760
    %3730 = vmatprep.subr.mxu0 %v3729
    %v3731 = vand.u32 %v144, 4294901760
    %3732 = vmatpush1.msra.mxu0 %v3731
    %v3733 = vand.u32 %v149, 4294901760
    %3734 = vmatprep.subr.mxu0 %v3733
    %v3735 = vand.u32 %v148, 4294901760
    %3736 = vmatpush1.msra.mxu0 %v3735
    %v3737 = vand.u32 %v153, 4294901760
    %3738 = vmatprep.subr.mxu0 %v3737
    %v3739 = vand.u32 %v152, 4294901760
    %3740 = vmatpush1.msra.mxu0 %v3739
    %v3741 = vand.u32 %v157, 4294901760
    %3742 = vmatprep.subr.mxu0 %v3741
    %v3743 = vand.u32 %v156, 4294901760
    %3744 = vmatpush1.msra.mxu0 %v3743
    %v3745 = vand.u32 %v161, 4294901760
    %3746 = vmatprep.subr.mxu0 %v3745
    %v3747 = vand.u32 %v160, 4294901760
    %3748 = vmatpush1.msra.mxu0 %v3747
    %v3749 = vand.u32 %v165, 4294901760
    %3750 = vmatprep.subr.mxu0 %v3749
    %v3751 = vand.u32 %v164, 4294901760
    %3752 = vmatpush1.msra.mxu0 %v3751
    %v3753 = vand.u32 %v169, 4294901760
    %3754 = vmatprep.subr.mxu0 %v3753
    %v3755 = vand.u32 %v168, 4294901760
    %3756 = vmatpush1.msra.mxu0 %v3755
    %v3757 = vand.u32 %v173, 4294901760
    %3758 = vmatprep.subr.mxu0 %v3757
    %v3759 = vand.u32 %v172, 4294901760
    %3760 = vmatpush1.msra.mxu0 %v3759
    %v3761 = vand.u32 %v177, 4294901760
    %3762 = vmatprep.subr.mxu0 %v3761
    %v3763 = vand.u32 %v176, 4294901760
    %3764 = vmatpush1.msra.mxu0 %v3763
    %v3765 = vand.u32 %v181, 4294901760
    %3766 = vmatprep.subr.mxu0 %v3765
    %v3767 = vand.u32 %v180, 4294901760
    %3768 = vmatpush1.msra.mxu0 %v3767
    %v3769 = vand.u32 %v185, 4294901760
    %3770 = vmatprep.subr.mxu0 %v3769
    %v3771 = vand.u32 %v184, 4294901760
    %3772 = vmatpush1.msra.mxu0 %v3771
    %v3773 = vand.u32 %v189, 4294901760
    %3774 = vmatprep.subr.mxu0 %v3773
    %v3775 = vand.u32 %v188, 4294901760
    %3776 = vmatpush1.msra.mxu0 %v3775
    %v3777 = vand.u32 %v193, 4294901760
    %3778 = vmatprep.subr.mxu0 %v3777
    %v3779 = vand.u32 %v192, 4294901760
    %3780 = vmatpush1.msra.mxu0 %v3779
    %v3781 = vand.u32 %v197, 4294901760
    %3782 = vmatprep.subr.mxu0 %v3781
    %v3783 = vand.u32 %v196, 4294901760
    %3784 = vmatpush1.msra.mxu0 %v3783
    %v3785 = vand.u32 %v342, 4294901760
    %v3786 = vsub.f32 %v342, %v3785
    %v3787 = vand.u32 %v3786, 4294901760
    %3788 = vmatprep.mubr.f32.mxu0 %v3787
    %v3789 = vand.u32 %v334, 4294901760
    %v3790 = vsub.f32 %v334, %v3789
    %v3791 = vand.u32 %v3790, 4294901760
    %3792 = vmatmul.mubr.f32.gmra.mrb[0].mxu0 %v3791
    %v3793 = vpop.f32.mrb[0].mxu0
    %v3794 = vadd.f32 %v3653, %v3793
    %v3795 = vpop.f32.mrb[0].mxu0
    %v3796 = vadd.f32 %v3655, %v3795
    %3797 = vdwg.mxu0
    %v3798 = vand.u32 %v73, 4294901760
    %v3799 = vsub.f32 %v73, %v3798
    %v3800 = vand.u32 %v3799, 4294901760
    %3801 = vmatprep.subr.mxu0 %v3800
    %v3802 = vand.u32 %v72, 4294901760
    %v3803 = vsub.f32 %v72, %v3802
    %v3804 = vand.u32 %v3803, 4294901760
    %3805 = vmatpush1.msra.mxu0 %v3804
    %v3806 = vand.u32 %v77, 4294901760
    %v3807 = vsub.f32 %v77, %v3806
    %v3808 = vand.u32 %v3807, 4294901760
    %3809 = vmatprep.subr.mxu0 %v3808
    %v3810 = vand.u32 %v76, 4294901760
    %v3811 = vsub.f32 %v76, %v3810
    %v3812 = vand.u32 %v3811, 4294901760
    %3813 = vmatpush1.msra.mxu0 %v3812
    %v3814 = vand.u32 %v81, 4294901760
    %v3815 = vsub.f32 %v81, %v3814
    %v3816 = vand.u32 %v3815, 4294901760
    %3817 = vmatprep.subr.mxu0 %v3816
    %v3818 = vand.u32 %v80, 4294901760
    %v3819 = vsub.f32 %v80, %v3818
    %v3820 = vand.u32 %v3819, 4294901760
    %3821 = vmatpush1.msra.mxu0 %v3820
    %v3822 = vand.u32 %v85, 4294901760
    %v3823 = vsub.f32 %v85, %v3822
    %v3824 = vand.u32 %v3823, 4294901760
    %3825 = vmatprep.subr.mxu0 %v3824
    %v3826 = vand.u32 %v84, 4294901760
    %v3827 = vsub.f32 %v84, %v3826
    %v3828 = vand.u32 %v3827, 4294901760
    %3829 = vmatpush1.msra.mxu0 %v3828
    %v3830 = vand.u32 %v89, 4294901760
    %v3831 = vsub.f32 %v89, %v3830
    %v3832 = vand.u32 %v3831, 4294901760
    %3833 = vmatprep.subr.mxu0 %v3832
    %v3834 = vand.u32 %v88, 4294901760
    %v3835 = vsub.f32 %v88, %v3834
    %v3836 = vand.u32 %v3835, 4294901760
    %3837 = vmatpush1.msra.mxu0 %v3836
    %v3838 = vand.u32 %v93, 4294901760
    %v3839 = vsub.f32 %v93, %v3838
    %v3840 = vand.u32 %v3839, 4294901760
    %3841 = vmatprep.subr.mxu0 %v3840
    %v3842 = vand.u32 %v92, 4294901760
    %v3843 = vsub.f32 %v92, %v3842
    %v3844 = vand.u32 %v3843, 4294901760
    %3845 = vmatpush1.msra.mxu0 %v3844
    %v3846 = vand.u32 %v97, 4294901760
    %v3847 = vsub.f32 %v97, %v3846
    %v3848 = vand.u32 %v3847, 4294901760
    %3849 = vmatprep.subr.mxu0 %v3848
    %v3850 = vand.u32 %v96, 4294901760
    %v3851 = vsub.f32 %v96, %v3850
    %v3852 = vand.u32 %v3851, 4294901760
    %3853 = vmatpush1.msra.mxu0 %v3852
    %v3854 = vand.u32 %v101, 4294901760
    %v3855 = vsub.f32 %v101, %v3854
    %v3856 = vand.u32 %v3855, 4294901760
    %3857 = vmatprep.subr.mxu0 %v3856
    %v3858 = vand.u32 %v100, 4294901760
    %v3859 = vsub.f32 %v100, %v3858
    %v3860 = vand.u32 %v3859, 4294901760
    %3861 = vmatpush1.msra.mxu0 %v3860
    %v3862 = vand.u32 %v105, 4294901760
    %v3863 = vsub.f32 %v105, %v3862
    %v3864 = vand.u32 %v3863, 4294901760
    %3865 = vmatprep.subr.mxu0 %v3864
    %v3866 = vand.u32 %v104, 4294901760
    %v3867 = vsub.f32 %v104, %v3866
    %v3868 = vand.u32 %v3867, 4294901760
    %3869 = vmatpush1.msra.mxu0 %v3868
    %v3870 = vand.u32 %v109, 4294901760
    %v3871 = vsub.f32 %v109, %v3870
    %v3872 = vand.u32 %v3871, 4294901760
    %3873 = vmatprep.subr.mxu0 %v3872
    %v3874 = vand.u32 %v108, 4294901760
    %v3875 = vsub.f32 %v108, %v3874
    %v3876 = vand.u32 %v3875, 4294901760
    %3877 = vmatpush1.msra.mxu0 %v3876
    %v3878 = vand.u32 %v113, 4294901760
    %v3879 = vsub.f32 %v113, %v3878
    %v3880 = vand.u32 %v3879, 4294901760
    %3881 = vmatprep.subr.mxu0 %v3880
    %v3882 = vand.u32 %v112, 4294901760
    %v3883 = vsub.f32 %v112, %v3882
    %v3884 = vand.u32 %v3883, 4294901760
    %3885 = vmatpush1.msra.mxu0 %v3884
    %v3886 = vand.u32 %v117, 4294901760
    %v3887 = vsub.f32 %v117, %v3886
    %v3888 = vand.u32 %v3887, 4294901760
    %3889 = vmatprep.subr.mxu0 %v3888
    %v3890 = vand.u32 %v116, 4294901760
    %v3891 = vsub.f32 %v116, %v3890
    %v3892 = vand.u32 %v3891, 4294901760
    %3893 = vmatpush1.msra.mxu0 %v3892
    %v3894 = vand.u32 %v121, 4294901760
    %v3895 = vsub.f32 %v121, %v3894
    %v3896 = vand.u32 %v3895, 4294901760
    %3897 = vmatprep.subr.mxu0 %v3896
    %v3898 = vand.u32 %v120, 4294901760
    %v3899 = vsub.f32 %v120, %v3898
    %v3900 = vand.u32 %v3899, 4294901760
    %3901 = vmatpush1.msra.mxu0 %v3900
    %v3902 = vand.u32 %v125, 4294901760
    %v3903 = vsub.f32 %v125, %v3902
    %v3904 = vand.u32 %v3903, 4294901760
    %3905 = vmatprep.subr.mxu0 %v3904
    %v3906 = vand.u32 %v124, 4294901760
    %v3907 = vsub.f32 %v124, %v3906
    %v3908 = vand.u32 %v3907, 4294901760
    %3909 = vmatpush1.msra.mxu0 %v3908
    %v3910 = vand.u32 %v129, 4294901760
    %v3911 = vsub.f32 %v129, %v3910
    %v3912 = vand.u32 %v3911, 4294901760
    %3913 = vmatprep.subr.mxu0 %v3912
    %v3914 = vand.u32 %v128, 4294901760
    %v3915 = vsub.f32 %v128, %v3914
    %v3916 = vand.u32 %v3915, 4294901760
    %3917 = vmatpush1.msra.mxu0 %v3916
    %v3918 = vand.u32 %v133, 4294901760
    %v3919 = vsub.f32 %v133, %v3918
    %v3920 = vand.u32 %v3919, 4294901760
    %3921 = vmatprep.subr.mxu0 %v3920
    %v3922 = vand.u32 %v132, 4294901760
    %v3923 = vsub.f32 %v132, %v3922
    %v3924 = vand.u32 %v3923, 4294901760
    %3925 = vmatpush1.msra.mxu0 %v3924
    %v3926 = vand.u32 %v137, 4294901760
    %v3927 = vsub.f32 %v137, %v3926
    %v3928 = vand.u32 %v3927, 4294901760
    %3929 = vmatprep.subr.mxu0 %v3928
    %v3930 = vand.u32 %v136, 4294901760
    %v3931 = vsub.f32 %v136, %v3930
    %v3932 = vand.u32 %v3931, 4294901760
    %3933 = vmatpush1.msra.mxu0 %v3932
    %v3934 = vand.u32 %v141, 4294901760
    %v3935 = vsub.f32 %v141, %v3934
    %v3936 = vand.u32 %v3935, 4294901760
    %3937 = vmatprep.subr.mxu0 %v3936
    %v3938 = vand.u32 %v140, 4294901760
    %v3939 = vsub.f32 %v140, %v3938
    %v3940 = vand.u32 %v3939, 4294901760
    %3941 = vmatpush1.msra.mxu0 %v3940
    %v3942 = vand.u32 %v145, 4294901760
    %v3943 = vsub.f32 %v145, %v3942
    %v3944 = vand.u32 %v3943, 4294901760
    %3945 = vmatprep.subr.mxu0 %v3944
    %v3946 = vand.u32 %v144, 4294901760
    %v3947 = vsub.f32 %v144, %v3946
    %v3948 = vand.u32 %v3947, 4294901760
    %3949 = vmatpush1.msra.mxu0 %v3948
    %v3950 = vand.u32 %v149, 4294901760
    %v3951 = vsub.f32 %v149, %v3950
    %v3952 = vand.u32 %v3951, 4294901760
    %3953 = vmatprep.subr.mxu0 %v3952
    %v3954 = vand.u32 %v148, 4294901760
    %v3955 = vsub.f32 %v148, %v3954
    %v3956 = vand.u32 %v3955, 4294901760
    %3957 = vmatpush1.msra.mxu0 %v3956
    %v3958 = vand.u32 %v153, 4294901760
    %v3959 = vsub.f32 %v153, %v3958
    %v3960 = vand.u32 %v3959, 4294901760
    %3961 = vmatprep.subr.mxu0 %v3960
    %v3962 = vand.u32 %v152, 4294901760
    %v3963 = vsub.f32 %v152, %v3962
    %v3964 = vand.u32 %v3963, 4294901760
    %3965 = vmatpush1.msra.mxu0 %v3964
    %v3966 = vand.u32 %v157, 4294901760
    %v3967 = vsub.f32 %v157, %v3966
    %v3968 = vand.u32 %v3967, 4294901760
    %3969 = vmatprep.subr.mxu0 %v3968
    %v3970 = vand.u32 %v156, 4294901760
    %v3971 = vsub.f32 %v156, %v3970
    %v3972 = vand.u32 %v3971, 4294901760
    %3973 = vmatpush1.msra.mxu0 %v3972
    %v3974 = vand.u32 %v161, 4294901760
    %v3975 = vsub.f32 %v161, %v3974
    %v3976 = vand.u32 %v3975, 4294901760
    %3977 = vmatprep.subr.mxu0 %v3976
    %v3978 = vand.u32 %v160, 4294901760
    %v3979 = vsub.f32 %v160, %v3978
    %v3980 = vand.u32 %v3979, 4294901760
    %3981 = vmatpush1.msra.mxu0 %v3980
    %v3982 = vand.u32 %v165, 4294901760
    %v3983 = vsub.f32 %v165, %v3982
    %v3984 = vand.u32 %v3983, 4294901760
    %3985 = vmatprep.subr.mxu0 %v3984
    %v3986 = vand.u32 %v164, 4294901760
    %v3987 = vsub.f32 %v164, %v3986
    %v3988 = vand.u32 %v3987, 4294901760
    %3989 = vmatpush1.msra.mxu0 %v3988
    %v3990 = vand.u32 %v169, 4294901760
    %v3991 = vsub.f32 %v169, %v3990
    %v3992 = vand.u32 %v3991, 4294901760
    %3993 = vmatprep.subr.mxu0 %v3992
    %v3994 = vand.u32 %v168, 4294901760
    %v3995 = vsub.f32 %v168, %v3994
    %v3996 = vand.u32 %v3995, 4294901760
    %3997 = vmatpush1.msra.mxu0 %v3996
    %v3998 = vand.u32 %v173, 4294901760
    %v3999 = vsub.f32 %v173, %v3998
    %v4000 = vand.u32 %v3999, 4294901760
    %4001 = vmatprep.subr.mxu0 %v4000
    %v4002 = vand.u32 %v172, 4294901760
    %v4003 = vsub.f32 %v172, %v4002
    %v4004 = vand.u32 %v4003, 4294901760
    %4005 = vmatpush1.msra.mxu0 %v4004
    %v4006 = vand.u32 %v177, 4294901760
    %v4007 = vsub.f32 %v177, %v4006
    %v4008 = vand.u32 %v4007, 4294901760
    %4009 = vmatprep.subr.mxu0 %v4008
    %v4010 = vand.u32 %v176, 4294901760
    %v4011 = vsub.f32 %v176, %v4010
    %v4012 = vand.u32 %v4011, 4294901760
    %4013 = vmatpush1.msra.mxu0 %v4012
    %v4014 = vand.u32 %v181, 4294901760
    %v4015 = vsub.f32 %v181, %v4014
    %v4016 = vand.u32 %v4015, 4294901760
    %4017 = vmatprep.subr.mxu0 %v4016
    %v4018 = vand.u32 %v180, 4294901760
    %v4019 = vsub.f32 %v180, %v4018
    %v4020 = vand.u32 %v4019, 4294901760
    %4021 = vmatpush1.msra.mxu0 %v4020
    %v4022 = vand.u32 %v185, 4294901760
    %v4023 = vsub.f32 %v185, %v4022
    %v4024 = vand.u32 %v4023, 4294901760
    %4025 = vmatprep.subr.mxu0 %v4024
    %v4026 = vand.u32 %v184, 4294901760
    %v4027 = vsub.f32 %v184, %v4026
    %v4028 = vand.u32 %v4027, 4294901760
    %4029 = vmatpush1.msra.mxu0 %v4028
    %v4030 = vand.u32 %v189, 4294901760
    %v4031 = vsub.f32 %v189, %v4030
    %v4032 = vand.u32 %v4031, 4294901760
    %4033 = vmatprep.subr.mxu0 %v4032
    %v4034 = vand.u32 %v188, 4294901760
    %v4035 = vsub.f32 %v188, %v4034
    %v4036 = vand.u32 %v4035, 4294901760
    %4037 = vmatpush1.msra.mxu0 %v4036
    %v4038 = vand.u32 %v193, 4294901760
    %v4039 = vsub.f32 %v193, %v4038
    %v4040 = vand.u32 %v4039, 4294901760
    %4041 = vmatprep.subr.mxu0 %v4040
    %v4042 = vand.u32 %v192, 4294901760
    %v4043 = vsub.f32 %v192, %v4042
    %v4044 = vand.u32 %v4043, 4294901760
    %4045 = vmatpush1.msra.mxu0 %v4044
    %v4046 = vand.u32 %v197, 4294901760
    %v4047 = vsub.f32 %v197, %v4046
    %v4048 = vand.u32 %v4047, 4294901760
    %4049 = vmatprep.subr.mxu0 %v4048
    %v4050 = vand.u32 %v196, 4294901760
    %v4051 = vsub.f32 %v196, %v4050
    %v4052 = vand.u32 %v4051, 4294901760
    %4053 = vmatpush1.msra.mxu0 %v4052
    %v4054 = vand.u32 %v342, 4294901760
    %4055 = vmatprep.mubr.f32.mxu0 %v4054
    %v4056 = vand.u32 %v334, 4294901760
    %4057 = vmatmul.mubr.f32.gmra.mrb[0].mxu0 %v4056
    %v4058 = vpop.f32.mrb[0].mxu0
    %v4059 = vadd.f32 %v3794, %v4058
    %v4060 = vpop.f32.mrb[0].mxu0
    %v4061 = vadd.f32 %v3796, %v4060
    %4062 = vdwg.mxu0
    %v4063 = vand.u32 %v73, 4294901760
    %4064 = vmatprep.subr.mxu0 %v4063
    %v4065 = vand.u32 %v72, 4294901760
    %4066 = vmatpush1.msra.mxu0 %v4065
    %v4067 = vand.u32 %v77, 4294901760
    %4068 = vmatprep.subr.mxu0 %v4067
    %v4069 = vand.u32 %v76, 4294901760
    %4070 = vmatpush1.msra.mxu0 %v4069
    %v4071 = vand.u32 %v81, 4294901760
    %4072 = vmatprep.subr.mxu0 %v4071
    %v4073 = vand.u32 %v80, 4294901760
    %4074 = vmatpush1.msra.mxu0 %v4073
    %v4075 = vand.u32 %v85, 4294901760
    %4076 = vmatprep.subr.mxu0 %v4075
    %v4077 = vand.u32 %v84, 4294901760
    %4078 = vmatpush1.msra.mxu0 %v4077
    %v4079 = vand.u32 %v89, 4294901760
    %4080 = vmatprep.subr.mxu0 %v4079
    %v4081 = vand.u32 %v88, 4294901760
    %4082 = vmatpush1.msra.mxu0 %v4081
    %v4083 = vand.u32 %v93, 4294901760
    %4084 = vmatprep.subr.mxu0 %v4083
    %v4085 = vand.u32 %v92, 4294901760
    %4086 = vmatpush1.msra.mxu0 %v4085
    %v4087 = vand.u32 %v97, 4294901760
    %4088 = vmatprep.subr.mxu0 %v4087
    %v4089 = vand.u32 %v96, 4294901760
    %4090 = vmatpush1.msra.mxu0 %v4089
    %v4091 = vand.u32 %v101, 4294901760
    %4092 = vmatprep.subr.mxu0 %v4091
    %v4093 = vand.u32 %v100, 4294901760
    %4094 = vmatpush1.msra.mxu0 %v4093
    %v4095 = vand.u32 %v105, 4294901760
    %4096 = vmatprep.subr.mxu0 %v4095
    %v4097 = vand.u32 %v104, 4294901760
    %4098 = vmatpush1.msra.mxu0 %v4097
    %v4099 = vand.u32 %v109, 4294901760
    %4100 = vmatprep.subr.mxu0 %v4099
    %v4101 = vand.u32 %v108, 4294901760
    %4102 = vmatpush1.msra.mxu0 %v4101
    %v4103 = vand.u32 %v113, 4294901760
    %4104 = vmatprep.subr.mxu0 %v4103
    %v4105 = vand.u32 %v112, 4294901760
    %4106 = vmatpush1.msra.mxu0 %v4105
    %v4107 = vand.u32 %v117, 4294901760
    %4108 = vmatprep.subr.mxu0 %v4107
    %v4109 = vand.u32 %v116, 4294901760
    %4110 = vmatpush1.msra.mxu0 %v4109
    %v4111 = vand.u32 %v121, 4294901760
    %4112 = vmatprep.subr.mxu0 %v4111
    %v4113 = vand.u32 %v120, 4294901760
    %4114 = vmatpush1.msra.mxu0 %v4113
    %v4115 = vand.u32 %v125, 4294901760
    %4116 = vmatprep.subr.mxu0 %v4115
    %v4117 = vand.u32 %v124, 4294901760
    %4118 = vmatpush1.msra.mxu0 %v4117
    %v4119 = vand.u32 %v129, 4294901760
    %4120 = vmatprep.subr.mxu0 %v4119
    %v4121 = vand.u32 %v128, 4294901760
    %4122 = vmatpush1.msra.mxu0 %v4121
    %v4123 = vand.u32 %v133, 4294901760
    %4124 = vmatprep.subr.mxu0 %v4123
    %v4125 = vand.u32 %v132, 4294901760
    %4126 = vmatpush1.msra.mxu0 %v4125
    %v4127 = vand.u32 %v137, 4294901760
    %4128 = vmatprep.subr.mxu0 %v4127
    %v4129 = vand.u32 %v136, 4294901760
    %4130 = vmatpush1.msra.mxu0 %v4129
    %v4131 = vand.u32 %v141, 4294901760
    %4132 = vmatprep.subr.mxu0 %v4131
    %v4133 = vand.u32 %v140, 4294901760
    %4134 = vmatpush1.msra.mxu0 %v4133
    %v4135 = vand.u32 %v145, 4294901760
    %4136 = vmatprep.subr.mxu0 %v4135
    %v4137 = vand.u32 %v144, 4294901760
    %4138 = vmatpush1.msra.mxu0 %v4137
    %v4139 = vand.u32 %v149, 4294901760
    %4140 = vmatprep.subr.mxu0 %v4139
    %v4141 = vand.u32 %v148, 4294901760
    %4142 = vmatpush1.msra.mxu0 %v4141
    %v4143 = vand.u32 %v153, 4294901760
    %4144 = vmatprep.subr.mxu0 %v4143
    %v4145 = vand.u32 %v152, 4294901760
    %4146 = vmatpush1.msra.mxu0 %v4145
    %v4147 = vand.u32 %v157, 4294901760
    %4148 = vmatprep.subr.mxu0 %v4147
    %v4149 = vand.u32 %v156, 4294901760
    %4150 = vmatpush1.msra.mxu0 %v4149
    %v4151 = vand.u32 %v161, 4294901760
    %4152 = vmatprep.subr.mxu0 %v4151
    %v4153 = vand.u32 %v160, 4294901760
    %4154 = vmatpush1.msra.mxu0 %v4153
    %v4155 = vand.u32 %v165, 4294901760
    %4156 = vmatprep.subr.mxu0 %v4155
    %v4157 = vand.u32 %v164, 4294901760
    %4158 = vmatpush1.msra.mxu0 %v4157
    %v4159 = vand.u32 %v169, 4294901760
    %4160 = vmatprep.subr.mxu0 %v4159
    %v4161 = vand.u32 %v168, 4294901760
    %4162 = vmatpush1.msra.mxu0 %v4161
    %v4163 = vand.u32 %v173, 4294901760
    %4164 = vmatprep.subr.mxu0 %v4163
    %v4165 = vand.u32 %v172, 4294901760
    %4166 = vmatpush1.msra.mxu0 %v4165
    %v4167 = vand.u32 %v177, 4294901760
    %4168 = vmatprep.subr.mxu0 %v4167
    %v4169 = vand.u32 %v176, 4294901760
    %4170 = vmatpush1.msra.mxu0 %v4169
    %v4171 = vand.u32 %v181, 4294901760
    %4172 = vmatprep.subr.mxu0 %v4171
    %v4173 = vand.u32 %v180, 4294901760
    %4174 = vmatpush1.msra.mxu0 %v4173
    %v4175 = vand.u32 %v185, 4294901760
    %4176 = vmatprep.subr.mxu0 %v4175
    %v4177 = vand.u32 %v184, 4294901760
    %4178 = vmatpush1.msra.mxu0 %v4177
    %v4179 = vand.u32 %v189, 4294901760
    %4180 = vmatprep.subr.mxu0 %v4179
    %v4181 = vand.u32 %v188, 4294901760
    %4182 = vmatpush1.msra.mxu0 %v4181
    %v4183 = vand.u32 %v193, 4294901760
    %4184 = vmatprep.subr.mxu0 %v4183
    %v4185 = vand.u32 %v192, 4294901760
    %4186 = vmatpush1.msra.mxu0 %v4185
    %v4187 = vand.u32 %v197, 4294901760
    %4188 = vmatprep.subr.mxu0 %v4187
    %v4189 = vand.u32 %v196, 4294901760
    %4190 = vmatpush1.msra.mxu0 %v4189
    %v4191 = vand.u32 %v342, 4294901760
    %4192 = vmatprep.mubr.f32.mxu0 %v4191
    %v4193 = vand.u32 %v334, 4294901760
    %4194 = vmatmul.mubr.f32.gmra.mrb[0].mxu0 %v4193
    %v4195 = vpop.f32.mrb[0].mxu0
    %v4196 = vadd.f32 %v4059, %v4195
    %v4197 = vpop.f32.mrb[0].mxu0
    %v4198 = vadd.f32 %v4061, %v4197
    %4199 = vdwg.mxu0
    %v4200 = vand.u32 %v201, 4294901760
    %4201 = vmatprep.subr.mxu0 %v4200
    %v4202 = vand.u32 %v200, 4294901760
    %4203 = vmatpush1.msra.mxu0 %v4202
    %v4204 = vand.u32 %v205, 4294901760
    %4205 = vmatprep.subr.mxu0 %v4204
    %v4206 = vand.u32 %v204, 4294901760
    %4207 = vmatpush1.msra.mxu0 %v4206
    %v4208 = vand.u32 %v209, 4294901760
    %4209 = vmatprep.subr.mxu0 %v4208
    %v4210 = vand.u32 %v208, 4294901760
    %4211 = vmatpush1.msra.mxu0 %v4210
    %v4212 = vand.u32 %v213, 4294901760
    %4213 = vmatprep.subr.mxu0 %v4212
    %v4214 = vand.u32 %v212, 4294901760
    %4215 = vmatpush1.msra.mxu0 %v4214
    %v4216 = vand.u32 %v217, 4294901760
    %4217 = vmatprep.subr.mxu0 %v4216
    %v4218 = vand.u32 %v216, 4294901760
    %4219 = vmatpush1.msra.mxu0 %v4218
    %v4220 = vand.u32 %v221, 4294901760
    %4221 = vmatprep.subr.mxu0 %v4220
    %v4222 = vand.u32 %v220, 4294901760
    %4223 = vmatpush1.msra.mxu0 %v4222
    %v4224 = vand.u32 %v225, 4294901760
    %4225 = vmatprep.subr.mxu0 %v4224
    %v4226 = vand.u32 %v224, 4294901760
    %4227 = vmatpush1.msra.mxu0 %v4226
    %v4228 = vand.u32 %v229, 4294901760
    %4229 = vmatprep.subr.mxu0 %v4228
    %v4230 = vand.u32 %v228, 4294901760
    %4231 = vmatpush1.msra.mxu0 %v4230
    %v4232 = vand.u32 %v233, 4294901760
    %4233 = vmatprep.subr.mxu0 %v4232
    %v4234 = vand.u32 %v232, 4294901760
    %4235 = vmatpush1.msra.mxu0 %v4234
    %v4236 = vand.u32 %v237, 4294901760
    %4237 = vmatprep.subr.mxu0 %v4236
    %v4238 = vand.u32 %v236, 4294901760
    %4239 = vmatpush1.msra.mxu0 %v4238
    %v4240 = vand.u32 %v241, 4294901760
    %4241 = vmatprep.subr.mxu0 %v4240
    %v4242 = vand.u32 %v240, 4294901760
    %4243 = vmatpush1.msra.mxu0 %v4242
    %v4244 = vand.u32 %v245, 4294901760
    %4245 = vmatprep.subr.mxu0 %v4244
    %v4246 = vand.u32 %v244, 4294901760
    %4247 = vmatpush1.msra.mxu0 %v4246
    %v4248 = vand.u32 %v249, 4294901760
    %4249 = vmatprep.subr.mxu0 %v4248
    %v4250 = vand.u32 %v248, 4294901760
    %4251 = vmatpush1.msra.mxu0 %v4250
    %v4252 = vand.u32 %v253, 4294901760
    %4253 = vmatprep.subr.mxu0 %v4252
    %v4254 = vand.u32 %v252, 4294901760
    %4255 = vmatpush1.msra.mxu0 %v4254
    %v4256 = vand.u32 %v257, 4294901760
    %4257 = vmatprep.subr.mxu0 %v4256
    %v4258 = vand.u32 %v256, 4294901760
    %4259 = vmatpush1.msra.mxu0 %v4258
    %v4260 = vand.u32 %v261, 4294901760
    %4261 = vmatprep.subr.mxu0 %v4260
    %v4262 = vand.u32 %v260, 4294901760
    %4263 = vmatpush1.msra.mxu0 %v4262
    %v4264 = vand.u32 %v265, 4294901760
    %4265 = vmatprep.subr.mxu0 %v4264
    %v4266 = vand.u32 %v264, 4294901760
    %4267 = vmatpush1.msra.mxu0 %v4266
    %v4268 = vand.u32 %v269, 4294901760
    %4269 = vmatprep.subr.mxu0 %v4268
    %v4270 = vand.u32 %v268, 4294901760
    %4271 = vmatpush1.msra.mxu0 %v4270
    %v4272 = vand.u32 %v273, 4294901760
    %4273 = vmatprep.subr.mxu0 %v4272
    %v4274 = vand.u32 %v272, 4294901760
    %4275 = vmatpush1.msra.mxu0 %v4274
    %v4276 = vand.u32 %v277, 4294901760
    %4277 = vmatprep.subr.mxu0 %v4276
    %v4278 = vand.u32 %v276, 4294901760
    %4279 = vmatpush1.msra.mxu0 %v4278
    %v4280 = vand.u32 %v281, 4294901760
    %4281 = vmatprep.subr.mxu0 %v4280
    %v4282 = vand.u32 %v280, 4294901760
    %4283 = vmatpush1.msra.mxu0 %v4282
    %v4284 = vand.u32 %v285, 4294901760
    %4285 = vmatprep.subr.mxu0 %v4284
    %v4286 = vand.u32 %v284, 4294901760
    %4287 = vmatpush1.msra.mxu0 %v4286
    %v4288 = vand.u32 %v289, 4294901760
    %4289 = vmatprep.subr.mxu0 %v4288
    %v4290 = vand.u32 %v288, 4294901760
    %4291 = vmatpush1.msra.mxu0 %v4290
    %v4292 = vand.u32 %v293, 4294901760
    %4293 = vmatprep.subr.mxu0 %v4292
    %v4294 = vand.u32 %v292, 4294901760
    %4295 = vmatpush1.msra.mxu0 %v4294
    %v4296 = vand.u32 %v297, 4294901760
    %4297 = vmatprep.subr.mxu0 %v4296
    %v4298 = vand.u32 %v296, 4294901760
    %4299 = vmatpush1.msra.mxu0 %v4298
    %v4300 = vand.u32 %v301, 4294901760
    %4301 = vmatprep.subr.mxu0 %v4300
    %v4302 = vand.u32 %v300, 4294901760
    %4303 = vmatpush1.msra.mxu0 %v4302
    %v4304 = vand.u32 %v305, 4294901760
    %4305 = vmatprep.subr.mxu0 %v4304
    %v4306 = vand.u32 %v304, 4294901760
    %4307 = vmatpush1.msra.mxu0 %v4306
    %v4308 = vand.u32 %v309, 4294901760
    %4309 = vmatprep.subr.mxu0 %v4308
    %v4310 = vand.u32 %v308, 4294901760
    %4311 = vmatpush1.msra.mxu0 %v4310
    %v4312 = vand.u32 %v313, 4294901760
    %4313 = vmatprep.subr.mxu0 %v4312
    %v4314 = vand.u32 %v312, 4294901760
    %4315 = vmatpush1.msra.mxu0 %v4314
    %v4316 = vand.u32 %v317, 4294901760
    %4317 = vmatprep.subr.mxu0 %v4316
    %v4318 = vand.u32 %v316, 4294901760
    %4319 = vmatpush1.msra.mxu0 %v4318
    %v4320 = vand.u32 %v321, 4294901760
    %4321 = vmatprep.subr.mxu0 %v4320
    %v4322 = vand.u32 %v320, 4294901760
    %4323 = vmatpush1.msra.mxu0 %v4322
    %v4324 = vand.u32 %v325, 4294901760
    %4325 = vmatprep.subr.mxu0 %v4324
    %v4326 = vand.u32 %v324, 4294901760
    %4327 = vmatpush1.msra.mxu0 %v4326
    %v4328 = vand.u32 %v343, 4294901760
    %v4329 = vsub.f32 %v343, %v4328
    %v4330 = vand.u32 %v4329, 4294901760
    %v4331 = vsub.f32 %v4329, %v4330
    %v4332 = vand.u32 %v4331, 4294901760
    %4333 = vmatprep.mubr.f32.mxu0 %v4332
    %v4334 = vand.u32 %v341, 4294901760
    %v4335 = vsub.f32 %v341, %v4334
    %v4336 = vand.u32 %v4335, 4294901760
    %v4337 = vsub.f32 %v4335, %v4336
    %v4338 = vand.u32 %v4337, 4294901760
    %4339 = vmatmul.mubr.f32.gmra.mrb[0].mxu0 %v4338
    %v4340 = vpop.f32.mrb[0].mxu0
    %v4341 = vadd.f32 %v4196, %v4340
    %v4342 = vpop.f32.mrb[0].mxu0
    %v4343 = vadd.f32 %v4198, %v4342
    %4344 = vdwg.mxu0
    %v4345 = vand.u32 %v201, 4294901760
    %v4346 = vsub.f32 %v201, %v4345
    %v4347 = vand.u32 %v4346, 4294901760
    %v4348 = vsub.f32 %v4346, %v4347
    %v4349 = vand.u32 %v4348, 4294901760
    %4350 = vmatprep.subr.mxu0 %v4349
    %v4351 = vand.u32 %v200, 4294901760
    %v4352 = vsub.f32 %v200, %v4351
    %v4353 = vand.u32 %v4352, 4294901760
    %v4354 = vsub.f32 %v4352, %v4353
    %v4355 = vand.u32 %v4354, 4294901760
    %4356 = vmatpush1.msra.mxu0 %v4355
    %v4357 = vand.u32 %v205, 4294901760
    %v4358 = vsub.f32 %v205, %v4357
    %v4359 = vand.u32 %v4358, 4294901760
    %v4360 = vsub.f32 %v4358, %v4359
    %v4361 = vand.u32 %v4360, 4294901760
    %4362 = vmatprep.subr.mxu0 %v4361
    %v4363 = vand.u32 %v204, 4294901760
    %v4364 = vsub.f32 %v204, %v4363
    %v4365 = vand.u32 %v4364, 4294901760
    %v4366 = vsub.f32 %v4364, %v4365
    %v4367 = vand.u32 %v4366, 4294901760
    %4368 = vmatpush1.msra.mxu0 %v4367
    %v4369 = vand.u32 %v209, 4294901760
    %v4370 = vsub.f32 %v209, %v4369
    %v4371 = vand.u32 %v4370, 4294901760
    %v4372 = vsub.f32 %v4370, %v4371
    %v4373 = vand.u32 %v4372, 4294901760
    %4374 = vmatprep.subr.mxu0 %v4373
    %v4375 = vand.u32 %v208, 4294901760
    %v4376 = vsub.f32 %v208, %v4375
    %v4377 = vand.u32 %v4376, 4294901760
    %v4378 = vsub.f32 %v4376, %v4377
    %v4379 = vand.u32 %v4378, 4294901760
    %4380 = vmatpush1.msra.mxu0 %v4379
    %v4381 = vand.u32 %v213, 4294901760
    %v4382 = vsub.f32 %v213, %v4381
    %v4383 = vand.u32 %v4382, 4294901760
    %v4384 = vsub.f32 %v4382, %v4383
    %v4385 = vand.u32 %v4384, 4294901760
    %4386 = vmatprep.subr.mxu0 %v4385
    %v4387 = vand.u32 %v212, 4294901760
    %v4388 = vsub.f32 %v212, %v4387
    %v4389 = vand.u32 %v4388, 4294901760
    %v4390 = vsub.f32 %v4388, %v4389
    %v4391 = vand.u32 %v4390, 4294901760
    %4392 = vmatpush1.msra.mxu0 %v4391
    %v4393 = vand.u32 %v217, 4294901760
    %v4394 = vsub.f32 %v217, %v4393
    %v4395 = vand.u32 %v4394, 4294901760
    %v4396 = vsub.f32 %v4394, %v4395
    %v4397 = vand.u32 %v4396, 4294901760
    %4398 = vmatprep.subr.mxu0 %v4397
    %v4399 = vand.u32 %v216, 4294901760
    %v4400 = vsub.f32 %v216, %v4399
    %v4401 = vand.u32 %v4400, 4294901760
    %v4402 = vsub.f32 %v4400, %v4401
    %v4403 = vand.u32 %v4402, 4294901760
    %4404 = vmatpush1.msra.mxu0 %v4403
    %v4405 = vand.u32 %v221, 4294901760
    %v4406 = vsub.f32 %v221, %v4405
    %v4407 = vand.u32 %v4406, 4294901760
    %v4408 = vsub.f32 %v4406, %v4407
    %v4409 = vand.u32 %v4408, 4294901760
    %4410 = vmatprep.subr.mxu0 %v4409
    %v4411 = vand.u32 %v220, 4294901760
    %v4412 = vsub.f32 %v220, %v4411
    %v4413 = vand.u32 %v4412, 4294901760
    %v4414 = vsub.f32 %v4412, %v4413
    %v4415 = vand.u32 %v4414, 4294901760
    %4416 = vmatpush1.msra.mxu0 %v4415
    %v4417 = vand.u32 %v225, 4294901760
    %v4418 = vsub.f32 %v225, %v4417
    %v4419 = vand.u32 %v4418, 4294901760
    %v4420 = vsub.f32 %v4418, %v4419
    %v4421 = vand.u32 %v4420, 4294901760
    %4422 = vmatprep.subr.mxu0 %v4421
    %v4423 = vand.u32 %v224, 4294901760
    %v4424 = vsub.f32 %v224, %v4423
    %v4425 = vand.u32 %v4424, 4294901760
    %v4426 = vsub.f32 %v4424, %v4425
    %v4427 = vand.u32 %v4426, 4294901760
    %4428 = vmatpush1.msra.mxu0 %v4427
    %v4429 = vand.u32 %v229, 4294901760
    %v4430 = vsub.f32 %v229, %v4429
    %v4431 = vand.u32 %v4430, 4294901760
    %v4432 = vsub.f32 %v4430, %v4431
    %v4433 = vand.u32 %v4432, 4294901760
    %4434 = vmatprep.subr.mxu0 %v4433
    %v4435 = vand.u32 %v228, 4294901760
    %v4436 = vsub.f32 %v228, %v4435
    %v4437 = vand.u32 %v4436, 4294901760
    %v4438 = vsub.f32 %v4436, %v4437
    %v4439 = vand.u32 %v4438, 4294901760
    %4440 = vmatpush1.msra.mxu0 %v4439
    %v4441 = vand.u32 %v233, 4294901760
    %v4442 = vsub.f32 %v233, %v4441
    %v4443 = vand.u32 %v4442, 4294901760
    %v4444 = vsub.f32 %v4442, %v4443
    %v4445 = vand.u32 %v4444, 4294901760
    %4446 = vmatprep.subr.mxu0 %v4445
    %v4447 = vand.u32 %v232, 4294901760
    %v4448 = vsub.f32 %v232, %v4447
    %v4449 = vand.u32 %v4448, 4294901760
    %v4450 = vsub.f32 %v4448, %v4449
    %v4451 = vand.u32 %v4450, 4294901760
    %4452 = vmatpush1.msra.mxu0 %v4451
    %v4453 = vand.u32 %v237, 4294901760
    %v4454 = vsub.f32 %v237, %v4453
    %v4455 = vand.u32 %v4454, 4294901760
    %v4456 = vsub.f32 %v4454, %v4455
    %v4457 = vand.u32 %v4456, 4294901760
    %4458 = vmatprep.subr.mxu0 %v4457
    %v4459 = vand.u32 %v236, 4294901760
    %v4460 = vsub.f32 %v236, %v4459
    %v4461 = vand.u32 %v4460, 4294901760
    %v4462 = vsub.f32 %v4460, %v4461
    %v4463 = vand.u32 %v4462, 4294901760
    %4464 = vmatpush1.msra.mxu0 %v4463
    %v4465 = vand.u32 %v241, 4294901760
    %v4466 = vsub.f32 %v241, %v4465
    %v4467 = vand.u32 %v4466, 4294901760
    %v4468 = vsub.f32 %v4466, %v4467
    %v4469 = vand.u32 %v4468, 4294901760
    %4470 = vmatprep.subr.mxu0 %v4469
    %v4471 = vand.u32 %v240, 4294901760
    %v4472 = vsub.f32 %v240, %v4471
    %v4473 = vand.u32 %v4472, 4294901760
    %v4474 = vsub.f32 %v4472, %v4473
    %v4475 = vand.u32 %v4474, 4294901760
    %4476 = vmatpush1.msra.mxu0 %v4475
    %v4477 = vand.u32 %v245, 4294901760
    %v4478 = vsub.f32 %v245, %v4477
    %v4479 = vand.u32 %v4478, 4294901760
    %v4480 = vsub.f32 %v4478, %v4479
    %v4481 = vand.u32 %v4480, 4294901760
    %4482 = vmatprep.subr.mxu0 %v4481
    %v4483 = vand.u32 %v244, 4294901760
    %v4484 = vsub.f32 %v244, %v4483
    %v4485 = vand.u32 %v4484, 4294901760
    %v4486 = vsub.f32 %v4484, %v4485
    %v4487 = vand.u32 %v4486, 4294901760
    %4488 = vmatpush1.msra.mxu0 %v4487
    %v4489 = vand.u32 %v249, 4294901760
    %v4490 = vsub.f32 %v249, %v4489
    %v4491 = vand.u32 %v4490, 4294901760
    %v4492 = vsub.f32 %v4490, %v4491
    %v4493 = vand.u32 %v4492, 4294901760
    %4494 = vmatprep.subr.mxu0 %v4493
    %v4495 = vand.u32 %v248, 4294901760
    %v4496 = vsub.f32 %v248, %v4495
    %v4497 = vand.u32 %v4496, 4294901760
    %v4498 = vsub.f32 %v4496, %v4497
    %v4499 = vand.u32 %v4498, 4294901760
    %4500 = vmatpush1.msra.mxu0 %v4499
    %v4501 = vand.u32 %v253, 4294901760
    %v4502 = vsub.f32 %v253, %v4501
    %v4503 = vand.u32 %v4502, 4294901760
    %v4504 = vsub.f32 %v4502, %v4503
    %v4505 = vand.u32 %v4504, 4294901760
    %4506 = vmatprep.subr.mxu0 %v4505
    %v4507 = vand.u32 %v252, 4294901760
    %v4508 = vsub.f32 %v252, %v4507
    %v4509 = vand.u32 %v4508, 4294901760
    %v4510 = vsub.f32 %v4508, %v4509
    %v4511 = vand.u32 %v4510, 4294901760
    %4512 = vmatpush1.msra.mxu0 %v4511
    %v4513 = vand.u32 %v257, 4294901760
    %v4514 = vsub.f32 %v257, %v4513
    %v4515 = vand.u32 %v4514, 4294901760
    %v4516 = vsub.f32 %v4514, %v4515
    %v4517 = vand.u32 %v4516, 4294901760
    %4518 = vmatprep.subr.mxu0 %v4517
    %v4519 = vand.u32 %v256, 4294901760
    %v4520 = vsub.f32 %v256, %v4519
    %v4521 = vand.u32 %v4520, 4294901760
    %v4522 = vsub.f32 %v4520, %v4521
    %v4523 = vand.u32 %v4522, 4294901760
    %4524 = vmatpush1.msra.mxu0 %v4523
    %v4525 = vand.u32 %v261, 4294901760
    %v4526 = vsub.f32 %v261, %v4525
    %v4527 = vand.u32 %v4526, 4294901760
    %v4528 = vsub.f32 %v4526, %v4527
    %v4529 = vand.u32 %v4528, 4294901760
    %4530 = vmatprep.subr.mxu0 %v4529
    %v4531 = vand.u32 %v260, 4294901760
    %v4532 = vsub.f32 %v260, %v4531
    %v4533 = vand.u32 %v4532, 4294901760
    %v4534 = vsub.f32 %v4532, %v4533
    %v4535 = vand.u32 %v4534, 4294901760
    %4536 = vmatpush1.msra.mxu0 %v4535
    %v4537 = vand.u32 %v265, 4294901760
    %v4538 = vsub.f32 %v265, %v4537
    %v4539 = vand.u32 %v4538, 4294901760
    %v4540 = vsub.f32 %v4538, %v4539
    %v4541 = vand.u32 %v4540, 4294901760
    %4542 = vmatprep.subr.mxu0 %v4541
    %v4543 = vand.u32 %v264, 4294901760
    %v4544 = vsub.f32 %v264, %v4543
    %v4545 = vand.u32 %v4544, 4294901760
    %v4546 = vsub.f32 %v4544, %v4545
    %v4547 = vand.u32 %v4546, 4294901760
    %4548 = vmatpush1.msra.mxu0 %v4547
    %v4549 = vand.u32 %v269, 4294901760
    %v4550 = vsub.f32 %v269, %v4549
    %v4551 = vand.u32 %v4550, 4294901760
    %v4552 = vsub.f32 %v4550, %v4551
    %v4553 = vand.u32 %v4552, 4294901760
    %4554 = vmatprep.subr.mxu0 %v4553
    %v4555 = vand.u32 %v268, 4294901760
    %v4556 = vsub.f32 %v268, %v4555
    %v4557 = vand.u32 %v4556, 4294901760
    %v4558 = vsub.f32 %v4556, %v4557
    %v4559 = vand.u32 %v4558, 4294901760
    %4560 = vmatpush1.msra.mxu0 %v4559
    %v4561 = vand.u32 %v273, 4294901760
    %v4562 = vsub.f32 %v273, %v4561
    %v4563 = vand.u32 %v4562, 4294901760
    %v4564 = vsub.f32 %v4562, %v4563
    %v4565 = vand.u32 %v4564, 4294901760
    %4566 = vmatprep.subr.mxu0 %v4565
    %v4567 = vand.u32 %v272, 4294901760
    %v4568 = vsub.f32 %v272, %v4567
    %v4569 = vand.u32 %v4568, 4294901760
    %v4570 = vsub.f32 %v4568, %v4569
    %v4571 = vand.u32 %v4570, 4294901760
    %4572 = vmatpush1.msra.mxu0 %v4571
    %v4573 = vand.u32 %v277, 4294901760
    %v4574 = vsub.f32 %v277, %v4573
    %v4575 = vand.u32 %v4574, 4294901760
    %v4576 = vsub.f32 %v4574, %v4575
    %v4577 = vand.u32 %v4576, 4294901760
    %4578 = vmatprep.subr.mxu0 %v4577
    %v4579 = vand.u32 %v276, 4294901760
    %v4580 = vsub.f32 %v276, %v4579
    %v4581 = vand.u32 %v4580, 4294901760
    %v4582 = vsub.f32 %v4580, %v4581
    %v4583 = vand.u32 %v4582, 4294901760
    %4584 = vmatpush1.msra.mxu0 %v4583
    %v4585 = vand.u32 %v281, 4294901760
    %v4586 = vsub.f32 %v281, %v4585
    %v4587 = vand.u32 %v4586, 4294901760
    %v4588 = vsub.f32 %v4586, %v4587
    %v4589 = vand.u32 %v4588, 4294901760
    %4590 = vmatprep.subr.mxu0 %v4589
    %v4591 = vand.u32 %v280, 4294901760
    %v4592 = vsub.f32 %v280, %v4591
    %v4593 = vand.u32 %v4592, 4294901760
    %v4594 = vsub.f32 %v4592, %v4593
    %v4595 = vand.u32 %v4594, 4294901760
    %4596 = vmatpush1.msra.mxu0 %v4595
    %v4597 = vand.u32 %v285, 4294901760
    %v4598 = vsub.f32 %v285, %v4597
    %v4599 = vand.u32 %v4598, 4294901760
    %v4600 = vsub.f32 %v4598, %v4599
    %v4601 = vand.u32 %v4600, 4294901760
    %4602 = vmatprep.subr.mxu0 %v4601
    %v4603 = vand.u32 %v284, 4294901760
    %v4604 = vsub.f32 %v284, %v4603
    %v4605 = vand.u32 %v4604, 4294901760
    %v4606 = vsub.f32 %v4604, %v4605
    %v4607 = vand.u32 %v4606, 4294901760
    %4608 = vmatpush1.msra.mxu0 %v4607
    %v4609 = vand.u32 %v289, 4294901760
    %v4610 = vsub.f32 %v289, %v4609
    %v4611 = vand.u32 %v4610, 4294901760
    %v4612 = vsub.f32 %v4610, %v4611
    %v4613 = vand.u32 %v4612, 4294901760
    %4614 = vmatprep.subr.mxu0 %v4613
    %v4615 = vand.u32 %v288, 4294901760
    %v4616 = vsub.f32 %v288, %v4615
    %v4617 = vand.u32 %v4616, 4294901760
    %v4618 = vsub.f32 %v4616, %v4617
    %v4619 = vand.u32 %v4618, 4294901760
    %4620 = vmatpush1.msra.mxu0 %v4619
    %v4621 = vand.u32 %v293, 4294901760
    %v4622 = vsub.f32 %v293, %v4621
    %v4623 = vand.u32 %v4622, 4294901760
    %v4624 = vsub.f32 %v4622, %v4623
    %v4625 = vand.u32 %v4624, 4294901760
    %4626 = vmatprep.subr.mxu0 %v4625
    %v4627 = vand.u32 %v292, 4294901760
    %v4628 = vsub.f32 %v292, %v4627
    %v4629 = vand.u32 %v4628, 4294901760
    %v4630 = vsub.f32 %v4628, %v4629
    %v4631 = vand.u32 %v4630, 4294901760
    %4632 = vmatpush1.msra.mxu0 %v4631
    %v4633 = vand.u32 %v297, 4294901760
    %v4634 = vsub.f32 %v297, %v4633
    %v4635 = vand.u32 %v4634, 4294901760
    %v4636 = vsub.f32 %v4634, %v4635
    %v4637 = vand.u32 %v4636, 4294901760
    %4638 = vmatprep.subr.mxu0 %v4637
    %v4639 = vand.u32 %v296, 4294901760
    %v4640 = vsub.f32 %v296, %v4639
    %v4641 = vand.u32 %v4640, 4294901760
    %v4642 = vsub.f32 %v4640, %v4641
    %v4643 = vand.u32 %v4642, 4294901760
    %4644 = vmatpush1.msra.mxu0 %v4643
    %v4645 = vand.u32 %v301, 4294901760
    %v4646 = vsub.f32 %v301, %v4645
    %v4647 = vand.u32 %v4646, 4294901760
    %v4648 = vsub.f32 %v4646, %v4647
    %v4649 = vand.u32 %v4648, 4294901760
    %4650 = vmatprep.subr.mxu0 %v4649
    %v4651 = vand.u32 %v300, 4294901760
    %v4652 = vsub.f32 %v300, %v4651
    %v4653 = vand.u32 %v4652, 4294901760
    %v4654 = vsub.f32 %v4652, %v4653
    %v4655 = vand.u32 %v4654, 4294901760
    %4656 = vmatpush1.msra.mxu0 %v4655
    %v4657 = vand.u32 %v305, 4294901760
    %v4658 = vsub.f32 %v305, %v4657
    %v4659 = vand.u32 %v4658, 4294901760
    %v4660 = vsub.f32 %v4658, %v4659
    %v4661 = vand.u32 %v4660, 4294901760
    %4662 = vmatprep.subr.mxu0 %v4661
    %v4663 = vand.u32 %v304, 4294901760
    %v4664 = vsub.f32 %v304, %v4663
    %v4665 = vand.u32 %v4664, 4294901760
    %v4666 = vsub.f32 %v4664, %v4665
    %v4667 = vand.u32 %v4666, 4294901760
    %4668 = vmatpush1.msra.mxu0 %v4667
    %v4669 = vand.u32 %v309, 4294901760
    %v4670 = vsub.f32 %v309, %v4669
    %v4671 = vand.u32 %v4670, 4294901760
    %v4672 = vsub.f32 %v4670, %v4671
    %v4673 = vand.u32 %v4672, 4294901760
    %4674 = vmatprep.subr.mxu0 %v4673
    %v4675 = vand.u32 %v308, 4294901760
    %v4676 = vsub.f32 %v308, %v4675
    %v4677 = vand.u32 %v4676, 4294901760
    %v4678 = vsub.f32 %v4676, %v4677
    %v4679 = vand.u32 %v4678, 4294901760
    %4680 = vmatpush1.msra.mxu0 %v4679
    %v4681 = vand.u32 %v313, 4294901760
    %v4682 = vsub.f32 %v313, %v4681
    %v4683 = vand.u32 %v4682, 4294901760
    %v4684 = vsub.f32 %v4682, %v4683
    %v4685 = vand.u32 %v4684, 4294901760
    %4686 = vmatprep.subr.mxu0 %v4685
    %v4687 = vand.u32 %v312, 4294901760
    %v4688 = vsub.f32 %v312, %v4687
    %v4689 = vand.u32 %v4688, 4294901760
    %v4690 = vsub.f32 %v4688, %v4689
    %v4691 = vand.u32 %v4690, 4294901760
    %4692 = vmatpush1.msra.mxu0 %v4691
    %v4693 = vand.u32 %v317, 4294901760
    %v4694 = vsub.f32 %v317, %v4693
    %v4695 = vand.u32 %v4694, 4294901760
    %v4696 = vsub.f32 %v4694, %v4695
    %v4697 = vand.u32 %v4696, 4294901760
    %4698 = vmatprep.subr.mxu0 %v4697
    %v4699 = vand.u32 %v316, 4294901760
    %v4700 = vsub.f32 %v316, %v4699
    %v4701 = vand.u32 %v4700, 4294901760
    %v4702 = vsub.f32 %v4700, %v4701
    %v4703 = vand.u32 %v4702, 4294901760
    %4704 = vmatpush1.msra.mxu0 %v4703
    %v4705 = vand.u32 %v321, 4294901760
    %v4706 = vsub.f32 %v321, %v4705
    %v4707 = vand.u32 %v4706, 4294901760
    %v4708 = vsub.f32 %v4706, %v4707
    %v4709 = vand.u32 %v4708, 4294901760
    %4710 = vmatprep.subr.mxu0 %v4709
    %v4711 = vand.u32 %v320, 4294901760
    %v4712 = vsub.f32 %v320, %v4711
    %v4713 = vand.u32 %v4712, 4294901760
    %v4714 = vsub.f32 %v4712, %v4713
    %v4715 = vand.u32 %v4714, 4294901760
    %4716 = vmatpush1.msra.mxu0 %v4715
    %v4717 = vand.u32 %v325, 4294901760
    %v4718 = vsub.f32 %v325, %v4717
    %v4719 = vand.u32 %v4718, 4294901760
    %v4720 = vsub.f32 %v4718, %v4719
    %v4721 = vand.u32 %v4720, 4294901760
    %4722 = vmatprep.subr.mxu0 %v4721
    %v4723 = vand.u32 %v324, 4294901760
    %v4724 = vsub.f32 %v324, %v4723
    %v4725 = vand.u32 %v4724, 4294901760
    %v4726 = vsub.f32 %v4724, %v4725
    %v4727 = vand.u32 %v4726, 4294901760
    %4728 = vmatpush1.msra.mxu0 %v4727
    %v4729 = vand.u32 %v343, 4294901760
    %4730 = vmatprep.mubr.f32.mxu0 %v4729
    %v4731 = vand.u32 %v341, 4294901760
    %4732 = vmatmul.mubr.f32.gmra.mrb[0].mxu0 %v4731
    %v4733 = vpop.f32.mrb[0].mxu0
    %v4734 = vadd.f32 %v4341, %v4733
    %v4735 = vpop.f32.mrb[0].mxu0
    %v4736 = vadd.f32 %v4343, %v4735
    %4737 = vdwg.mxu0
    %v4738 = vand.u32 %v201, 4294901760
    %v4739 = vsub.f32 %v201, %v4738
    %4740 = vmatprep.subr.mxu0 %v4739
    %v4741 = vand.u32 %v200, 4294901760
    %v4742 = vsub.f32 %v200, %v4741
    %4743 = vmatpush1.msra.mxu0 %v4742
    %v4744 = vand.u32 %v205, 4294901760
    %v4745 = vsub.f32 %v205, %v4744
    %4746 = vmatprep.subr.mxu0 %v4745
    %v4747 = vand.u32 %v204, 4294901760
    %v4748 = vsub.f32 %v204, %v4747
    %4749 = vmatpush1.msra.mxu0 %v4748
    %v4750 = vand.u32 %v209, 4294901760
    %v4751 = vsub.f32 %v209, %v4750
    %4752 = vmatprep.subr.mxu0 %v4751
    %v4753 = vand.u32 %v208, 4294901760
    %v4754 = vsub.f32 %v208, %v4753
    %4755 = vmatpush1.msra.mxu0 %v4754
    %v4756 = vand.u32 %v213, 4294901760
    %v4757 = vsub.f32 %v213, %v4756
    %4758 = vmatprep.subr.mxu0 %v4757
    %v4759 = vand.u32 %v212, 4294901760
    %v4760 = vsub.f32 %v212, %v4759
    %4761 = vmatpush1.msra.mxu0 %v4760
    %v4762 = vand.u32 %v217, 4294901760
    %v4763 = vsub.f32 %v217, %v4762
    %4764 = vmatprep.subr.mxu0 %v4763
    %v4765 = vand.u32 %v216, 4294901760
    %v4766 = vsub.f32 %v216, %v4765
    %4767 = vmatpush1.msra.mxu0 %v4766
    %v4768 = vand.u32 %v221, 4294901760
    %v4769 = vsub.f32 %v221, %v4768
    %4770 = vmatprep.subr.mxu0 %v4769
    %v4771 = vand.u32 %v220, 4294901760
    %v4772 = vsub.f32 %v220, %v4771
    %4773 = vmatpush1.msra.mxu0 %v4772
    %v4774 = vand.u32 %v225, 4294901760
    %v4775 = vsub.f32 %v225, %v4774
    %4776 = vmatprep.subr.mxu0 %v4775
    %v4777 = vand.u32 %v224, 4294901760
    %v4778 = vsub.f32 %v224, %v4777
    %4779 = vmatpush1.msra.mxu0 %v4778
    %v4780 = vand.u32 %v229, 4294901760
    %v4781 = vsub.f32 %v229, %v4780
    %4782 = vmatprep.subr.mxu0 %v4781
    %v4783 = vand.u32 %v228, 4294901760
    %v4784 = vsub.f32 %v228, %v4783
    %4785 = vmatpush1.msra.mxu0 %v4784
    %v4786 = vand.u32 %v233, 4294901760
    %v4787 = vsub.f32 %v233, %v4786
    %4788 = vmatprep.subr.mxu0 %v4787
    %v4789 = vand.u32 %v232, 4294901760
    %v4790 = vsub.f32 %v232, %v4789
    %4791 = vmatpush1.msra.mxu0 %v4790
    %v4792 = vand.u32 %v237, 4294901760
    %v4793 = vsub.f32 %v237, %v4792
    %4794 = vmatprep.subr.mxu0 %v4793
    %v4795 = vand.u32 %v236, 4294901760
    %v4796 = vsub.f32 %v236, %v4795
    %4797 = vmatpush1.msra.mxu0 %v4796
    %v4798 = vand.u32 %v241, 4294901760
    %v4799 = vsub.f32 %v241, %v4798
    %4800 = vmatprep.subr.mxu0 %v4799
    %v4801 = vand.u32 %v240, 4294901760
    %v4802 = vsub.f32 %v240, %v4801
    %4803 = vmatpush1.msra.mxu0 %v4802
    %v4804 = vand.u32 %v245, 4294901760
    %v4805 = vsub.f32 %v245, %v4804
    %4806 = vmatprep.subr.mxu0 %v4805
    %v4807 = vand.u32 %v244, 4294901760
    %v4808 = vsub.f32 %v244, %v4807
    %4809 = vmatpush1.msra.mxu0 %v4808
    %v4810 = vand.u32 %v249, 4294901760
    %v4811 = vsub.f32 %v249, %v4810
    %4812 = vmatprep.subr.mxu0 %v4811
    %v4813 = vand.u32 %v248, 4294901760
    %v4814 = vsub.f32 %v248, %v4813
    %4815 = vmatpush1.msra.mxu0 %v4814
    %v4816 = vand.u32 %v253, 4294901760
    %v4817 = vsub.f32 %v253, %v4816
    %4818 = vmatprep.subr.mxu0 %v4817
    %v4819 = vand.u32 %v252, 4294901760
    %v4820 = vsub.f32 %v252, %v4819
    %4821 = vmatpush1.msra.mxu0 %v4820
    %v4822 = vand.u32 %v257, 4294901760
    %v4823 = vsub.f32 %v257, %v4822
    %4824 = vmatprep.subr.mxu0 %v4823
    %v4825 = vand.u32 %v256, 4294901760
    %v4826 = vsub.f32 %v256, %v4825
    %4827 = vmatpush1.msra.mxu0 %v4826
    %v4828 = vand.u32 %v261, 4294901760
    %v4829 = vsub.f32 %v261, %v4828
    %4830 = vmatprep.subr.mxu0 %v4829
    %v4831 = vand.u32 %v260, 4294901760
    %v4832 = vsub.f32 %v260, %v4831
    %4833 = vmatpush1.msra.mxu0 %v4832
    %v4834 = vand.u32 %v265, 4294901760
    %v4835 = vsub.f32 %v265, %v4834
    %4836 = vmatprep.subr.mxu0 %v4835
    %v4837 = vand.u32 %v264, 4294901760
    %v4838 = vsub.f32 %v264, %v4837
    %4839 = vmatpush1.msra.mxu0 %v4838
    %v4840 = vand.u32 %v269, 4294901760
    %v4841 = vsub.f32 %v269, %v4840
    %4842 = vmatprep.subr.mxu0 %v4841
    %v4843 = vand.u32 %v268, 4294901760
    %v4844 = vsub.f32 %v268, %v4843
    %4845 = vmatpush1.msra.mxu0 %v4844
    %v4846 = vand.u32 %v273, 4294901760
    %v4847 = vsub.f32 %v273, %v4846
    %4848 = vmatprep.subr.mxu0 %v4847
    %v4849 = vand.u32 %v272, 4294901760
    %v4850 = vsub.f32 %v272, %v4849
    %4851 = vmatpush1.msra.mxu0 %v4850
    %v4852 = vand.u32 %v277, 4294901760
    %v4853 = vsub.f32 %v277, %v4852
    %4854 = vmatprep.subr.mxu0 %v4853
    %v4855 = vand.u32 %v276, 4294901760
    %v4856 = vsub.f32 %v276, %v4855
    %4857 = vmatpush1.msra.mxu0 %v4856
    %v4858 = vand.u32 %v281, 4294901760
    %v4859 = vsub.f32 %v281, %v4858
    %4860 = vmatprep.subr.mxu0 %v4859
    %v4861 = vand.u32 %v280, 4294901760
    %v4862 = vsub.f32 %v280, %v4861
    %4863 = vmatpush1.msra.mxu0 %v4862
    %v4864 = vand.u32 %v285, 4294901760
    %v4865 = vsub.f32 %v285, %v4864
    %4866 = vmatprep.subr.mxu0 %v4865
    %v4867 = vand.u32 %v284, 4294901760
    %v4868 = vsub.f32 %v284, %v4867
    %4869 = vmatpush1.msra.mxu0 %v4868
    %v4870 = vand.u32 %v289, 4294901760
    %v4871 = vsub.f32 %v289, %v4870
    %4872 = vmatprep.subr.mxu0 %v4871
    %v4873 = vand.u32 %v288, 4294901760
    %v4874 = vsub.f32 %v288, %v4873
    %4875 = vmatpush1.msra.mxu0 %v4874
    %v4876 = vand.u32 %v293, 4294901760
    %v4877 = vsub.f32 %v293, %v4876
    %4878 = vmatprep.subr.mxu0 %v4877
    %v4879 = vand.u32 %v292, 4294901760
    %v4880 = vsub.f32 %v292, %v4879
    %4881 = vmatpush1.msra.mxu0 %v4880
    %v4882 = vand.u32 %v297, 4294901760
    %v4883 = vsub.f32 %v297, %v4882
    %4884 = vmatprep.subr.mxu0 %v4883
    %v4885 = vand.u32 %v296, 4294901760
    %v4886 = vsub.f32 %v296, %v4885
    %4887 = vmatpush1.msra.mxu0 %v4886
    %v4888 = vand.u32 %v301, 4294901760
    %v4889 = vsub.f32 %v301, %v4888
    %4890 = vmatprep.subr.mxu0 %v4889
    %v4891 = vand.u32 %v300, 4294901760
    %v4892 = vsub.f32 %v300, %v4891
    %4893 = vmatpush1.msra.mxu0 %v4892
    %v4894 = vand.u32 %v305, 4294901760
    %v4895 = vsub.f32 %v305, %v4894
    %4896 = vmatprep.subr.mxu0 %v4895
    %v4897 = vand.u32 %v304, 4294901760
    %v4898 = vsub.f32 %v304, %v4897
    %4899 = vmatpush1.msra.mxu0 %v4898
    %v4900 = vand.u32 %v309, 4294901760
    %v4901 = vsub.f32 %v309, %v4900
    %4902 = vmatprep.subr.mxu0 %v4901
    %v4903 = vand.u32 %v308, 4294901760
    %v4904 = vsub.f32 %v308, %v4903
    %4905 = vmatpush1.msra.mxu0 %v4904
    %v4906 = vand.u32 %v313, 4294901760
    %v4907 = vsub.f32 %v313, %v4906
    %4908 = vmatprep.subr.mxu0 %v4907
    %v4909 = vand.u32 %v312, 4294901760
    %v4910 = vsub.f32 %v312, %v4909
    %4911 = vmatpush1.msra.mxu0 %v4910
    %v4912 = vand.u32 %v317, 4294901760
    %v4913 = vsub.f32 %v317, %v4912
    %4914 = vmatprep.subr.mxu0 %v4913
    %v4915 = vand.u32 %v316, 4294901760
    %v4916 = vsub.f32 %v316, %v4915
    %4917 = vmatpush1.msra.mxu0 %v4916
    %v4918 = vand.u32 %v321, 4294901760
    %v4919 = vsub.f32 %v321, %v4918
    %4920 = vmatprep.subr.mxu0 %v4919
    %v4921 = vand.u32 %v320, 4294901760
    %v4922 = vsub.f32 %v320, %v4921
    %4923 = vmatpush1.msra.mxu0 %v4922
    %v4924 = vand.u32 %v325, 4294901760
    %v4925 = vsub.f32 %v325, %v4924
    %4926 = vmatprep.subr.mxu0 %v4925
    %v4927 = vand.u32 %v324, 4294901760
    %v4928 = vsub.f32 %v324, %v4927
    %4929 = vmatpush1.msra.mxu0 %v4928
    %v4930 = vand.u32 %v343, 4294901760
    %v4931 = vsub.f32 %v343, %v4930
    %4932 = vmatprep.mubr.f32.mxu0 %v4931
    %v4933 = vand.u32 %v341, 4294901760
    %v4934 = vsub.f32 %v341, %v4933
    %4935 = vmatmul.mubr.f32.gmra.mrb[0].mxu0 %v4934
    %v4936 = vpop.f32.mrb[0].mxu0
    %v4937 = vadd.f32 %v4734, %v4936
    %v4938 = vpop.f32.mrb[0].mxu0
    %v4939 = vadd.f32 %v4736, %v4938
    %4940 = vdwg.mxu0
    %v4941 = vand.u32 %v201, 4294901760
    %4942 = vmatprep.subr.mxu0 %v4941
    %v4943 = vand.u32 %v200, 4294901760
    %4944 = vmatpush1.msra.mxu0 %v4943
    %v4945 = vand.u32 %v205, 4294901760
    %4946 = vmatprep.subr.mxu0 %v4945
    %v4947 = vand.u32 %v204, 4294901760
    %4948 = vmatpush1.msra.mxu0 %v4947
    %v4949 = vand.u32 %v209, 4294901760
    %4950 = vmatprep.subr.mxu0 %v4949
    %v4951 = vand.u32 %v208, 4294901760
    %4952 = vmatpush1.msra.mxu0 %v4951
    %v4953 = vand.u32 %v213, 4294901760
    %4954 = vmatprep.subr.mxu0 %v4953
    %v4955 = vand.u32 %v212, 4294901760
    %4956 = vmatpush1.msra.mxu0 %v4955
    %v4957 = vand.u32 %v217, 4294901760
    %4958 = vmatprep.subr.mxu0 %v4957
    %v4959 = vand.u32 %v216, 4294901760
    %4960 = vmatpush1.msra.mxu0 %v4959
    %v4961 = vand.u32 %v221, 4294901760
    %4962 = vmatprep.subr.mxu0 %v4961
    %v4963 = vand.u32 %v220, 4294901760
    %4964 = vmatpush1.msra.mxu0 %v4963
    %v4965 = vand.u32 %v225, 4294901760
    %4966 = vmatprep.subr.mxu0 %v4965
    %v4967 = vand.u32 %v224, 4294901760
    %4968 = vmatpush1.msra.mxu0 %v4967
    %v4969 = vand.u32 %v229, 4294901760
    %4970 = vmatprep.subr.mxu0 %v4969
    %v4971 = vand.u32 %v228, 4294901760
    %4972 = vmatpush1.msra.mxu0 %v4971
    %v4973 = vand.u32 %v233, 4294901760
    %4974 = vmatprep.subr.mxu0 %v4973
    %v4975 = vand.u32 %v232, 4294901760
    %4976 = vmatpush1.msra.mxu0 %v4975
    %v4977 = vand.u32 %v237, 4294901760
    %4978 = vmatprep.subr.mxu0 %v4977
    %v4979 = vand.u32 %v236, 4294901760
    %4980 = vmatpush1.msra.mxu0 %v4979
    %v4981 = vand.u32 %v241, 4294901760
    %4982 = vmatprep.subr.mxu0 %v4981
    %v4983 = vand.u32 %v240, 4294901760
    %4984 = vmatpush1.msra.mxu0 %v4983
    %v4985 = vand.u32 %v245, 4294901760
    %4986 = vmatprep.subr.mxu0 %v4985
    %v4987 = vand.u32 %v244, 4294901760
    %4988 = vmatpush1.msra.mxu0 %v4987
    %v4989 = vand.u32 %v249, 4294901760
    %4990 = vmatprep.subr.mxu0 %v4989
    %v4991 = vand.u32 %v248, 4294901760
    %4992 = vmatpush1.msra.mxu0 %v4991
    %v4993 = vand.u32 %v253, 4294901760
    %4994 = vmatprep.subr.mxu0 %v4993
    %v4995 = vand.u32 %v252, 4294901760
    %4996 = vmatpush1.msra.mxu0 %v4995
    %v4997 = vand.u32 %v257, 4294901760
    %4998 = vmatprep.subr.mxu0 %v4997
    %v4999 = vand.u32 %v256, 4294901760
    %5000 = vmatpush1.msra.mxu0 %v4999
    %v5001 = vand.u32 %v261, 4294901760
    %5002 = vmatprep.subr.mxu0 %v5001
    %v5003 = vand.u32 %v260, 4294901760
    %5004 = vmatpush1.msra.mxu0 %v5003
    %v5005 = vand.u32 %v265, 4294901760
    %5006 = vmatprep.subr.mxu0 %v5005
    %v5007 = vand.u32 %v264, 4294901760
    %5008 = vmatpush1.msra.mxu0 %v5007
    %v5009 = vand.u32 %v269, 4294901760
    %5010 = vmatprep.subr.mxu0 %v5009
    %v5011 = vand.u32 %v268, 4294901760
    %5012 = vmatpush1.msra.mxu0 %v5011
    %v5013 = vand.u32 %v273, 4294901760
    %5014 = vmatprep.subr.mxu0 %v5013
    %v5015 = vand.u32 %v272, 4294901760
    %5016 = vmatpush1.msra.mxu0 %v5015
    %v5017 = vand.u32 %v277, 4294901760
    %5018 = vmatprep.subr.mxu0 %v5017
    %v5019 = vand.u32 %v276, 4294901760
    %5020 = vmatpush1.msra.mxu0 %v5019
    %v5021 = vand.u32 %v281, 4294901760
    %5022 = vmatprep.subr.mxu0 %v5021
    %v5023 = vand.u32 %v280, 4294901760
    %5024 = vmatpush1.msra.mxu0 %v5023
    %v5025 = vand.u32 %v285, 4294901760
    %5026 = vmatprep.subr.mxu0 %v5025
    %v5027 = vand.u32 %v284, 4294901760
    %5028 = vmatpush1.msra.mxu0 %v5027
    %v5029 = vand.u32 %v289, 4294901760
    %5030 = vmatprep.subr.mxu0 %v5029
    %v5031 = vand.u32 %v288, 4294901760
    %5032 = vmatpush1.msra.mxu0 %v5031
    %v5033 = vand.u32 %v293, 4294901760
    %5034 = vmatprep.subr.mxu0 %v5033
    %v5035 = vand.u32 %v292, 4294901760
    %5036 = vmatpush1.msra.mxu0 %v5035
    %v5037 = vand.u32 %v297, 4294901760
    %5038 = vmatprep.subr.mxu0 %v5037
    %v5039 = vand.u32 %v296, 4294901760
    %5040 = vmatpush1.msra.mxu0 %v5039
    %v5041 = vand.u32 %v301, 4294901760
    %5042 = vmatprep.subr.mxu0 %v5041
    %v5043 = vand.u32 %v300, 4294901760
    %5044 = vmatpush1.msra.mxu0 %v5043
    %v5045 = vand.u32 %v305, 4294901760
    %5046 = vmatprep.subr.mxu0 %v5045
    %v5047 = vand.u32 %v304, 4294901760
    %5048 = vmatpush1.msra.mxu0 %v5047
    %v5049 = vand.u32 %v309, 4294901760
    %5050 = vmatprep.subr.mxu0 %v5049
    %v5051 = vand.u32 %v308, 4294901760
    %5052 = vmatpush1.msra.mxu0 %v5051
    %v5053 = vand.u32 %v313, 4294901760
    %5054 = vmatprep.subr.mxu0 %v5053
    %v5055 = vand.u32 %v312, 4294901760
    %5056 = vmatpush1.msra.mxu0 %v5055
    %v5057 = vand.u32 %v317, 4294901760
    %5058 = vmatprep.subr.mxu0 %v5057
    %v5059 = vand.u32 %v316, 4294901760
    %5060 = vmatpush1.msra.mxu0 %v5059
    %v5061 = vand.u32 %v321, 4294901760
    %5062 = vmatprep.subr.mxu0 %v5061
    %v5063 = vand.u32 %v320, 4294901760
    %5064 = vmatpush1.msra.mxu0 %v5063
    %v5065 = vand.u32 %v325, 4294901760
    %5066 = vmatprep.subr.mxu0 %v5065
    %v5067 = vand.u32 %v324, 4294901760
    %5068 = vmatpush1.msra.mxu0 %v5067
    %v5069 = vand.u32 %v343, 4294901760
    %v5070 = vsub.f32 %v343, %v5069
    %v5071 = vand.u32 %v5070, 4294901760
    %5072 = vmatprep.mubr.f32.mxu0 %v5071
    %v5073 = vand.u32 %v341, 4294901760
    %v5074 = vsub.f32 %v341, %v5073
    %v5075 = vand.u32 %v5074, 4294901760
    %5076 = vmatmul.mubr.f32.gmra.mrb[0].mxu0 %v5075
    %v5077 = vpop.f32.mrb[0].mxu0
    %v5078 = vadd.f32 %v4937, %v5077
    %v5079 = vpop.f32.mrb[0].mxu0
    %v5080 = vadd.f32 %v4939, %v5079
    %5081 = vdwg.mxu0
    %v5082 = vand.u32 %v201, 4294901760
    %v5083 = vsub.f32 %v201, %v5082
    %v5084 = vand.u32 %v5083, 4294901760
    %5085 = vmatprep.subr.mxu0 %v5084
    %v5086 = vand.u32 %v200, 4294901760
    %v5087 = vsub.f32 %v200, %v5086
    %v5088 = vand.u32 %v5087, 4294901760
    %5089 = vmatpush1.msra.mxu0 %v5088
    %v5090 = vand.u32 %v205, 4294901760
    %v5091 = vsub.f32 %v205, %v5090
    %v5092 = vand.u32 %v5091, 4294901760
    %5093 = vmatprep.subr.mxu0 %v5092
    %v5094 = vand.u32 %v204, 4294901760
    %v5095 = vsub.f32 %v204, %v5094
    %v5096 = vand.u32 %v5095, 4294901760
    %5097 = vmatpush1.msra.mxu0 %v5096
    %v5098 = vand.u32 %v209, 4294901760
    %v5099 = vsub.f32 %v209, %v5098
    %v5100 = vand.u32 %v5099, 4294901760
    %5101 = vmatprep.subr.mxu0 %v5100
    %v5102 = vand.u32 %v208, 4294901760
    %v5103 = vsub.f32 %v208, %v5102
    %v5104 = vand.u32 %v5103, 4294901760
    %5105 = vmatpush1.msra.mxu0 %v5104
    %v5106 = vand.u32 %v213, 4294901760
    %v5107 = vsub.f32 %v213, %v5106
    %v5108 = vand.u32 %v5107, 4294901760
    %5109 = vmatprep.subr.mxu0 %v5108
    %v5110 = vand.u32 %v212, 4294901760
    %v5111 = vsub.f32 %v212, %v5110
    %v5112 = vand.u32 %v5111, 4294901760
    %5113 = vmatpush1.msra.mxu0 %v5112
    %v5114 = vand.u32 %v217, 4294901760
    %v5115 = vsub.f32 %v217, %v5114
    %v5116 = vand.u32 %v5115, 4294901760
    %5117 = vmatprep.subr.mxu0 %v5116
    %v5118 = vand.u32 %v216, 4294901760
    %v5119 = vsub.f32 %v216, %v5118
    %v5120 = vand.u32 %v5119, 4294901760
    %5121 = vmatpush1.msra.mxu0 %v5120
    %v5122 = vand.u32 %v221, 4294901760
    %v5123 = vsub.f32 %v221, %v5122
    %v5124 = vand.u32 %v5123, 4294901760
    %5125 = vmatprep.subr.mxu0 %v5124
    %v5126 = vand.u32 %v220, 4294901760
    %v5127 = vsub.f32 %v220, %v5126
    %v5128 = vand.u32 %v5127, 4294901760
    %5129 = vmatpush1.msra.mxu0 %v5128
    %v5130 = vand.u32 %v225, 4294901760
    %v5131 = vsub.f32 %v225, %v5130
    %v5132 = vand.u32 %v5131, 4294901760
    %5133 = vmatprep.subr.mxu0 %v5132
    %v5134 = vand.u32 %v224, 4294901760
    %v5135 = vsub.f32 %v224, %v5134
    %v5136 = vand.u32 %v5135, 4294901760
    %5137 = vmatpush1.msra.mxu0 %v5136
    %v5138 = vand.u32 %v229, 4294901760
    %v5139 = vsub.f32 %v229, %v5138
    %v5140 = vand.u32 %v5139, 4294901760
    %5141 = vmatprep.subr.mxu0 %v5140
    %v5142 = vand.u32 %v228, 4294901760
    %v5143 = vsub.f32 %v228, %v5142
    %v5144 = vand.u32 %v5143, 4294901760
    %5145 = vmatpush1.msra.mxu0 %v5144
    %v5146 = vand.u32 %v233, 4294901760
    %v5147 = vsub.f32 %v233, %v5146
    %v5148 = vand.u32 %v5147, 4294901760
    %5149 = vmatprep.subr.mxu0 %v5148
    %v5150 = vand.u32 %v232, 4294901760
    %v5151 = vsub.f32 %v232, %v5150
    %v5152 = vand.u32 %v5151, 4294901760
    %5153 = vmatpush1.msra.mxu0 %v5152
    %v5154 = vand.u32 %v237, 4294901760
    %v5155 = vsub.f32 %v237, %v5154
    %v5156 = vand.u32 %v5155, 4294901760
    %5157 = vmatprep.subr.mxu0 %v5156
    %v5158 = vand.u32 %v236, 4294901760
    %v5159 = vsub.f32 %v236, %v5158
    %v5160 = vand.u32 %v5159, 4294901760
    %5161 = vmatpush1.msra.mxu0 %v5160
    %v5162 = vand.u32 %v241, 4294901760
    %v5163 = vsub.f32 %v241, %v5162
    %v5164 = vand.u32 %v5163, 4294901760
    %5165 = vmatprep.subr.mxu0 %v5164
    %v5166 = vand.u32 %v240, 4294901760
    %v5167 = vsub.f32 %v240, %v5166
    %v5168 = vand.u32 %v5167, 4294901760
    %5169 = vmatpush1.msra.mxu0 %v5168
    %v5170 = vand.u32 %v245, 4294901760
    %v5171 = vsub.f32 %v245, %v5170
    %v5172 = vand.u32 %v5171, 4294901760
    %5173 = vmatprep.subr.mxu0 %v5172
    %v5174 = vand.u32 %v244, 4294901760
    %v5175 = vsub.f32 %v244, %v5174
    %v5176 = vand.u32 %v5175, 4294901760
    %5177 = vmatpush1.msra.mxu0 %v5176
    %v5178 = vand.u32 %v249, 4294901760
    %v5179 = vsub.f32 %v249, %v5178
    %v5180 = vand.u32 %v5179, 4294901760
    %5181 = vmatprep.subr.mxu0 %v5180
    %v5182 = vand.u32 %v248, 4294901760
    %v5183 = vsub.f32 %v248, %v5182
    %v5184 = vand.u32 %v5183, 4294901760
    %5185 = vmatpush1.msra.mxu0 %v5184
    %v5186 = vand.u32 %v253, 4294901760
    %v5187 = vsub.f32 %v253, %v5186
    %v5188 = vand.u32 %v5187, 4294901760
    %5189 = vmatprep.subr.mxu0 %v5188
    %v5190 = vand.u32 %v252, 4294901760
    %v5191 = vsub.f32 %v252, %v5190
    %v5192 = vand.u32 %v5191, 4294901760
    %5193 = vmatpush1.msra.mxu0 %v5192
    %v5194 = vand.u32 %v257, 4294901760
    %v5195 = vsub.f32 %v257, %v5194
    %v5196 = vand.u32 %v5195, 4294901760
    %5197 = vmatprep.subr.mxu0 %v5196
    %v5198 = vand.u32 %v256, 4294901760
    %v5199 = vsub.f32 %v256, %v5198
    %v5200 = vand.u32 %v5199, 4294901760
    %5201 = vmatpush1.msra.mxu0 %v5200
    %v5202 = vand.u32 %v261, 4294901760
    %v5203 = vsub.f32 %v261, %v5202
    %v5204 = vand.u32 %v5203, 4294901760
    %5205 = vmatprep.subr.mxu0 %v5204
    %v5206 = vand.u32 %v260, 4294901760
    %v5207 = vsub.f32 %v260, %v5206
    %v5208 = vand.u32 %v5207, 4294901760
    %5209 = vmatpush1.msra.mxu0 %v5208
    %v5210 = vand.u32 %v265, 4294901760
    %v5211 = vsub.f32 %v265, %v5210
    %v5212 = vand.u32 %v5211, 4294901760
    %5213 = vmatprep.subr.mxu0 %v5212
    %v5214 = vand.u32 %v264, 4294901760
    %v5215 = vsub.f32 %v264, %v5214
    %v5216 = vand.u32 %v5215, 4294901760
    %5217 = vmatpush1.msra.mxu0 %v5216
    %v5218 = vand.u32 %v269, 4294901760
    %v5219 = vsub.f32 %v269, %v5218
    %v5220 = vand.u32 %v5219, 4294901760
    %5221 = vmatprep.subr.mxu0 %v5220
    %v5222 = vand.u32 %v268, 4294901760
    %v5223 = vsub.f32 %v268, %v5222
    %v5224 = vand.u32 %v5223, 4294901760
    %5225 = vmatpush1.msra.mxu0 %v5224
    %v5226 = vand.u32 %v273, 4294901760
    %v5227 = vsub.f32 %v273, %v5226
    %v5228 = vand.u32 %v5227, 4294901760
    %5229 = vmatprep.subr.mxu0 %v5228
    %v5230 = vand.u32 %v272, 4294901760
    %v5231 = vsub.f32 %v272, %v5230
    %v5232 = vand.u32 %v5231, 4294901760
    %5233 = vmatpush1.msra.mxu0 %v5232
    %v5234 = vand.u32 %v277, 4294901760
    %v5235 = vsub.f32 %v277, %v5234
    %v5236 = vand.u32 %v5235, 4294901760
    %5237 = vmatprep.subr.mxu0 %v5236
    %v5238 = vand.u32 %v276, 4294901760
    %v5239 = vsub.f32 %v276, %v5238
    %v5240 = vand.u32 %v5239, 4294901760
    %5241 = vmatpush1.msra.mxu0 %v5240
    %v5242 = vand.u32 %v281, 4294901760
    %v5243 = vsub.f32 %v281, %v5242
    %v5244 = vand.u32 %v5243, 4294901760
    %5245 = vmatprep.subr.mxu0 %v5244
    %v5246 = vand.u32 %v280, 4294901760
    %v5247 = vsub.f32 %v280, %v5246
    %v5248 = vand.u32 %v5247, 4294901760
    %5249 = vmatpush1.msra.mxu0 %v5248
    %v5250 = vand.u32 %v285, 4294901760
    %v5251 = vsub.f32 %v285, %v5250
    %v5252 = vand.u32 %v5251, 4294901760
    %5253 = vmatprep.subr.mxu0 %v5252
    %v5254 = vand.u32 %v284, 4294901760
    %v5255 = vsub.f32 %v284, %v5254
    %v5256 = vand.u32 %v5255, 4294901760
    %5257 = vmatpush1.msra.mxu0 %v5256
    %v5258 = vand.u32 %v289, 4294901760
    %v5259 = vsub.f32 %v289, %v5258
    %v5260 = vand.u32 %v5259, 4294901760
    %5261 = vmatprep.subr.mxu0 %v5260
    %v5262 = vand.u32 %v288, 4294901760
    %v5263 = vsub.f32 %v288, %v5262
    %v5264 = vand.u32 %v5263, 4294901760
    %5265 = vmatpush1.msra.mxu0 %v5264
    %v5266 = vand.u32 %v293, 4294901760
    %v5267 = vsub.f32 %v293, %v5266
    %v5268 = vand.u32 %v5267, 4294901760
    %5269 = vmatprep.subr.mxu0 %v5268
    %v5270 = vand.u32 %v292, 4294901760
    %v5271 = vsub.f32 %v292, %v5270
    %v5272 = vand.u32 %v5271, 4294901760
    %5273 = vmatpush1.msra.mxu0 %v5272
    %v5274 = vand.u32 %v297, 4294901760
    %v5275 = vsub.f32 %v297, %v5274
    %v5276 = vand.u32 %v5275, 4294901760
    %5277 = vmatprep.subr.mxu0 %v5276
    %v5278 = vand.u32 %v296, 4294901760
    %v5279 = vsub.f32 %v296, %v5278
    %v5280 = vand.u32 %v5279, 4294901760
    %5281 = vmatpush1.msra.mxu0 %v5280
    %v5282 = vand.u32 %v301, 4294901760
    %v5283 = vsub.f32 %v301, %v5282
    %v5284 = vand.u32 %v5283, 4294901760
    %5285 = vmatprep.subr.mxu0 %v5284
    %v5286 = vand.u32 %v300, 4294901760
    %v5287 = vsub.f32 %v300, %v5286
    %v5288 = vand.u32 %v5287, 4294901760
    %5289 = vmatpush1.msra.mxu0 %v5288
    %v5290 = vand.u32 %v305, 4294901760
    %v5291 = vsub.f32 %v305, %v5290
    %v5292 = vand.u32 %v5291, 4294901760
    %5293 = vmatprep.subr.mxu0 %v5292
    %v5294 = vand.u32 %v304, 4294901760
    %v5295 = vsub.f32 %v304, %v5294
    %v5296 = vand.u32 %v5295, 4294901760
    %5297 = vmatpush1.msra.mxu0 %v5296
    %v5298 = vand.u32 %v309, 4294901760
    %v5299 = vsub.f32 %v309, %v5298
    %v5300 = vand.u32 %v5299, 4294901760
    %5301 = vmatprep.subr.mxu0 %v5300
    %v5302 = vand.u32 %v308, 4294901760
    %v5303 = vsub.f32 %v308, %v5302
    %v5304 = vand.u32 %v5303, 4294901760
    %5305 = vmatpush1.msra.mxu0 %v5304
    %v5306 = vand.u32 %v313, 4294901760
    %v5307 = vsub.f32 %v313, %v5306
    %v5308 = vand.u32 %v5307, 4294901760
    %5309 = vmatprep.subr.mxu0 %v5308
    %v5310 = vand.u32 %v312, 4294901760
    %v5311 = vsub.f32 %v312, %v5310
    %v5312 = vand.u32 %v5311, 4294901760
    %5313 = vmatpush1.msra.mxu0 %v5312
    %v5314 = vand.u32 %v317, 4294901760
    %v5315 = vsub.f32 %v317, %v5314
    %v5316 = vand.u32 %v5315, 4294901760
    %5317 = vmatprep.subr.mxu0 %v5316
    %v5318 = vand.u32 %v316, 4294901760
    %v5319 = vsub.f32 %v316, %v5318
    %v5320 = vand.u32 %v5319, 4294901760
    %5321 = vmatpush1.msra.mxu0 %v5320
    %v5322 = vand.u32 %v321, 4294901760
    %v5323 = vsub.f32 %v321, %v5322
    %v5324 = vand.u32 %v5323, 4294901760
    %5325 = vmatprep.subr.mxu0 %v5324
    %v5326 = vand.u32 %v320, 4294901760
    %v5327 = vsub.f32 %v320, %v5326
    %v5328 = vand.u32 %v5327, 4294901760
    %5329 = vmatpush1.msra.mxu0 %v5328
    %v5330 = vand.u32 %v325, 4294901760
    %v5331 = vsub.f32 %v325, %v5330
    %v5332 = vand.u32 %v5331, 4294901760
    %5333 = vmatprep.subr.mxu0 %v5332
    %v5334 = vand.u32 %v324, 4294901760
    %v5335 = vsub.f32 %v324, %v5334
    %v5336 = vand.u32 %v5335, 4294901760
    %5337 = vmatpush1.msra.mxu0 %v5336
    %v5338 = vand.u32 %v343, 4294901760
    %5339 = vmatprep.mubr.f32.mxu0 %v5338
    %v5340 = vand.u32 %v341, 4294901760
    %5341 = vmatmul.mubr.f32.gmra.mrb[0].mxu0 %v5340
    %v5342 = vpop.f32.mrb[0].mxu0
    %v5343 = vadd.f32 %v5078, %v5342
    %v5344 = vpop.f32.mrb[0].mxu0
    %v5345 = vadd.f32 %v5080, %v5344
    %5346 = vdwg.mxu0
    %v5347 = vand.u32 %v201, 4294901760
    %5348 = vmatprep.subr.mxu0 %v5347
    %v5349 = vand.u32 %v200, 4294901760
    %5350 = vmatpush1.msra.mxu0 %v5349
    %v5351 = vand.u32 %v205, 4294901760
    %5352 = vmatprep.subr.mxu0 %v5351
    %v5353 = vand.u32 %v204, 4294901760
    %5354 = vmatpush1.msra.mxu0 %v5353
    %v5355 = vand.u32 %v209, 4294901760
    %5356 = vmatprep.subr.mxu0 %v5355
    %v5357 = vand.u32 %v208, 4294901760
    %5358 = vmatpush1.msra.mxu0 %v5357
    %v5359 = vand.u32 %v213, 4294901760
    %5360 = vmatprep.subr.mxu0 %v5359
    %v5361 = vand.u32 %v212, 4294901760
    %5362 = vmatpush1.msra.mxu0 %v5361
    %v5363 = vand.u32 %v217, 4294901760
    %5364 = vmatprep.subr.mxu0 %v5363
    %v5365 = vand.u32 %v216, 4294901760
    %5366 = vmatpush1.msra.mxu0 %v5365
    %v5367 = vand.u32 %v221, 4294901760
    %5368 = vmatprep.subr.mxu0 %v5367
    %v5369 = vand.u32 %v220, 4294901760
    %5370 = vmatpush1.msra.mxu0 %v5369
    %v5371 = vand.u32 %v225, 4294901760
    %5372 = vmatprep.subr.mxu0 %v5371
    %v5373 = vand.u32 %v224, 4294901760
    %5374 = vmatpush1.msra.mxu0 %v5373
    %v5375 = vand.u32 %v229, 4294901760
    %5376 = vmatprep.subr.mxu0 %v5375
    %v5377 = vand.u32 %v228, 4294901760
    %5378 = vmatpush1.msra.mxu0 %v5377
    %v5379 = vand.u32 %v233, 4294901760
    %5380 = vmatprep.subr.mxu0 %v5379
    %v5381 = vand.u32 %v232, 4294901760
    %5382 = vmatpush1.msra.mxu0 %v5381
    %v5383 = vand.u32 %v237, 4294901760
    %5384 = vmatprep.subr.mxu0 %v5383
    %v5385 = vand.u32 %v236, 4294901760
    %5386 = vmatpush1.msra.mxu0 %v5385
    %v5387 = vand.u32 %v241, 4294901760
    %5388 = vmatprep.subr.mxu0 %v5387
    %v5389 = vand.u32 %v240, 4294901760
    %5390 = vmatpush1.msra.mxu0 %v5389
    %v5391 = vand.u32 %v245, 4294901760
    %5392 = vmatprep.subr.mxu0 %v5391
    %v5393 = vand.u32 %v244, 4294901760
    %5394 = vmatpush1.msra.mxu0 %v5393
    %v5395 = vand.u32 %v249, 4294901760
    %5396 = vmatprep.subr.mxu0 %v5395
    %v5397 = vand.u32 %v248, 4294901760
    %5398 = vmatpush1.msra.mxu0 %v5397
    %v5399 = vand.u32 %v253, 4294901760
    %5400 = vmatprep.subr.mxu0 %v5399
    %v5401 = vand.u32 %v252, 4294901760
    %5402 = vmatpush1.msra.mxu0 %v5401
    %v5403 = vand.u32 %v257, 4294901760
    %5404 = vmatprep.subr.mxu0 %v5403
    %v5405 = vand.u32 %v256, 4294901760
    %5406 = vmatpush1.msra.mxu0 %v5405
    %v5407 = vand.u32 %v261, 4294901760
    %5408 = vmatprep.subr.mxu0 %v5407
    %v5409 = vand.u32 %v260, 4294901760
    %5410 = vmatpush1.msra.mxu0 %v5409
    %v5411 = vand.u32 %v265, 4294901760
    %5412 = vmatprep.subr.mxu0 %v5411
    %v5413 = vand.u32 %v264, 4294901760
    %5414 = vmatpush1.msra.mxu0 %v5413
    %v5415 = vand.u32 %v269, 4294901760
    %5416 = vmatprep.subr.mxu0 %v5415
    %v5417 = vand.u32 %v268, 4294901760
    %5418 = vmatpush1.msra.mxu0 %v5417
    %v5419 = vand.u32 %v273, 4294901760
    %5420 = vmatprep.subr.mxu0 %v5419
    %v5421 = vand.u32 %v272, 4294901760
    %5422 = vmatpush1.msra.mxu0 %v5421
    %v5423 = vand.u32 %v277, 4294901760
    %5424 = vmatprep.subr.mxu0 %v5423
    %v5425 = vand.u32 %v276, 4294901760
    %5426 = vmatpush1.msra.mxu0 %v5425
    %v5427 = vand.u32 %v281, 4294901760
    %5428 = vmatprep.subr.mxu0 %v5427
    %v5429 = vand.u32 %v280, 4294901760
    %5430 = vmatpush1.msra.mxu0 %v5429
    %v5431 = vand.u32 %v285, 4294901760
    %5432 = vmatprep.subr.mxu0 %v5431
    %v5433 = vand.u32 %v284, 4294901760
    %5434 = vmatpush1.msra.mxu0 %v5433
    %v5435 = vand.u32 %v289, 4294901760
    %5436 = vmatprep.subr.mxu0 %v5435
    %v5437 = vand.u32 %v288, 4294901760
    %5438 = vmatpush1.msra.mxu0 %v5437
    %v5439 = vand.u32 %v293, 4294901760
    %5440 = vmatprep.subr.mxu0 %v5439
    %v5441 = vand.u32 %v292, 4294901760
    %5442 = vmatpush1.msra.mxu0 %v5441
    %v5443 = vand.u32 %v297, 4294901760
    %5444 = vmatprep.subr.mxu0 %v5443
    %v5445 = vand.u32 %v296, 4294901760
    %5446 = vmatpush1.msra.mxu0 %v5445
    %v5447 = vand.u32 %v301, 4294901760
    %5448 = vmatprep.subr.mxu0 %v5447
    %v5449 = vand.u32 %v300, 4294901760
    %5450 = vmatpush1.msra.mxu0 %v5449
    %v5451 = vand.u32 %v305, 4294901760
    %5452 = vmatprep.subr.mxu0 %v5451
    %v5453 = vand.u32 %v304, 4294901760
    %5454 = vmatpush1.msra.mxu0 %v5453
    %v5455 = vand.u32 %v309, 4294901760
    %5456 = vmatprep.subr.mxu0 %v5455
    %v5457 = vand.u32 %v308, 4294901760
    %5458 = vmatpush1.msra.mxu0 %v5457
    %v5459 = vand.u32 %v313, 4294901760
    %5460 = vmatprep.subr.mxu0 %v5459
    %v5461 = vand.u32 %v312, 4294901760
    %5462 = vmatpush1.msra.mxu0 %v5461
    %v5463 = vand.u32 %v317, 4294901760
    %5464 = vmatprep.subr.mxu0 %v5463
    %v5465 = vand.u32 %v316, 4294901760
    %5466 = vmatpush1.msra.mxu0 %v5465
    %v5467 = vand.u32 %v321, 4294901760
    %5468 = vmatprep.subr.mxu0 %v5467
    %v5469 = vand.u32 %v320, 4294901760
    %5470 = vmatpush1.msra.mxu0 %v5469
    %v5471 = vand.u32 %v325, 4294901760
    %5472 = vmatprep.subr.mxu0 %v5471
    %v5473 = vand.u32 %v324, 4294901760
    %5474 = vmatpush1.msra.mxu0 %v5473
    %v5475 = vand.u32 %v343, 4294901760
    %5476 = vmatprep.mubr.f32.mxu0 %v5475
    %v5477 = vand.u32 %v341, 4294901760
    %5478 = vmatmul.mubr.f32.gmra.mrb[0].mxu0 %v5477
    %v5479 = vpop.f32.mrb[0].mxu0
    %v5480 = vadd.f32 %v5343, %v5479
    %v5481 = vpop.f32.mrb[0].mxu0
    %v5482 = vadd.f32 %v5345, %v5481
    %5483 = vdwg.mxu0
    %v5484 = vld [vmem:[%s5] sm:$0xf]
    %v5485 = vadd.f32 %v5484, 1e-05
    %v5486 = vrsqrt.pop %v5485
    %v5487 = vld [vmem:[%s4] sm:$0xf]
    %v5489 = vlaneseq
    %v5490 = vshrl.u32 %v5489, 7
    %v5491 = vsub.s32 0, %v5490
    %v5492 = vrot.slane %v5487, %v5491
    %v5493 = vlaneseq
    %v5494 = vshrl.u32 %v5493, 7
    %v5495 = vsub.s32 1, %v5494
    %v5496 = vrot.slane %v5487, %v5495
    %v5497 = vlaneseq
    %v5498 = vshrl.u32 %v5497, 7
    %v5499 = vsub.s32 2, %v5498
    %v5500 = vrot.slane %v5487, %v5499
    %v5501 = vlaneseq
    %v5502 = vshrl.u32 %v5501, 7
    %v5503 = vsub.s32 3, %v5502
    %v5504 = vrot.slane %v5487, %v5503
    %v5509 = vsub.f32 %v2912, %v5492
    %v5510 = vsub.f32 %v2914, %v5496
    %v5511 = vsub.f32 %v5480, %v5500
    %v5512 = vsub.f32 %v5482, %v5504
    %v5513 = vld [vmem:[%s2] sm:$0xf]
    %v5514 = vmul.f32 %v5486, %v5513
    %v5516 = vlaneseq
    %v5517 = vshrl.u32 %v5516, 7
    %v5518 = vsub.s32 0, %v5517
    %v5519 = vrot.slane %v5514, %v5518
    %v5520 = vlaneseq
    %v5521 = vshrl.u32 %v5520, 7
    %v5522 = vsub.s32 1, %v5521
    %v5523 = vrot.slane %v5514, %v5522
    %v5524 = vlaneseq
    %v5525 = vshrl.u32 %v5524, 7
    %v5526 = vsub.s32 2, %v5525
    %v5527 = vrot.slane %v5514, %v5526
    %v5528 = vlaneseq
    %v5529 = vshrl.u32 %v5528, 7
    %v5530 = vsub.s32 3, %v5529
    %v5531 = vrot.slane %v5514, %v5530
    %v5536 = vmul.f32 %v5509, %v5519
    %v5537 = vmul.f32 %v5510, %v5523
    %v5538 = vmul.f32 %v5511, %v5527
    %v5539 = vmul.f32 %v5512, %v5531
    %v5540 = vld [vmem:[%s3] sm:$0xf]
    %v5542 = vlaneseq
    %v5543 = vshrl.u32 %v5542, 7
    %v5544 = vsub.s32 0, %v5543
    %v5545 = vrot.slane %v5540, %v5544
    %v5546 = vlaneseq
    %v5547 = vshrl.u32 %v5546, 7
    %v5548 = vsub.s32 1, %v5547
    %v5549 = vrot.slane %v5540, %v5548
    %v5550 = vlaneseq
    %v5551 = vshrl.u32 %v5550, 7
    %v5552 = vsub.s32 2, %v5551
    %v5553 = vrot.slane %v5540, %v5552
    %v5554 = vlaneseq
    %v5555 = vshrl.u32 %v5554, 7
    %v5556 = vsub.s32 3, %v5555
    %v5557 = vrot.slane %v5540, %v5556
    %v5562 = vadd.f32 %v5536, %v5545
    %v5563 = vadd.f32 %v5537, %v5549
    %v5564 = vadd.f32 %v5538, %v5553
    %v5565 = vadd.f32 %v5539, %v5557
    %v5566 = vmax.f32 %v5562, 0.0
    %v5567 = vmax.f32 %v5563, 0.0
    %v5568 = vmax.f32 %v5564, 0.0
    %v5569 = vmax.f32 %v5565, 0.0
    %v5570 = vld [vmem:[#allocation7] sm:$0xff]
    %v5571 = vld [vmem:[#allocation7 + $0x8] sm:$0xff]
    %v5572 = vld [vmem:[#allocation7 + $0x10] sm:$0xff]
    %v5573 = vld [vmem:[#allocation7 + $0x18] sm:$0xff]
    %v5574 = vld [vmem:[#allocation7 + $0x20] sm:$0xff]
    %v5575 = vld [vmem:[#allocation7 + $0x28] sm:$0xff]
    %v5576 = vld [vmem:[#allocation7 + $0x30] sm:$0xff]
    %v5577 = vld [vmem:[#allocation7 + $0x38] sm:$0xff]
    %v5578 = vld [vmem:[#allocation7 + $0x40] sm:$0xff]
    %v5579 = vld [vmem:[#allocation7 + $0x48] sm:$0xff]
    %v5580 = vld [vmem:[#allocation7 + $0x50] sm:$0xff]
    %v5581 = vld [vmem:[#allocation7 + $0x58] sm:$0xff]
    %v5582 = vld [vmem:[#allocation7 + $0x60] sm:$0xff]
    %v5583 = vld [vmem:[#allocation7 + $0x68] sm:$0xff]
    %v5584 = vld [vmem:[#allocation7 + $0x70] sm:$0xff]
    %v5585 = vld [vmem:[#allocation7 + $0x78] sm:$0xff]
    %v5586 = vld [vmem:[#allocation7 + $0x80] sm:$0xff]
    %v5587 = vld [vmem:[#allocation7 + $0x88] sm:$0xff]
    %v5588 = vld [vmem:[#allocation7 + $0x90] sm:$0xff]
    %v5589 = vld [vmem:[#allocation7 + $0x98] sm:$0xff]
    %v5590 = vld [vmem:[#allocation7 + $0xa0] sm:$0xff]
    %v5591 = vld [vmem:[#allocation7 + $0xa8] sm:$0xff]
    %v5592 = vld [vmem:[#allocation7 + $0xb0] sm:$0xff]
    %v5593 = vld [vmem:[#allocation7 + $0xb8] sm:$0xff]
    %v5594 = vld [vmem:[#allocation7 + $0xc0] sm:$0xff]
    %v5595 = vld [vmem:[#allocation7 + $0xc8] sm:$0xff]
    %v5596 = vld [vmem:[#allocation7 + $0xd0] sm:$0xff]
    %v5597 = vld [vmem:[#allocation7 + $0xd8] sm:$0xff]
    %v5598 = vld [vmem:[#allocation7 + $0xe0] sm:$0xff]
    %v5599 = vld [vmem:[#allocation7 + $0xe8] sm:$0xff]
    %v5600 = vld [vmem:[#allocation7 + $0xf0] sm:$0xff]
    %v5601 = vld [vmem:[#allocation7 + $0xf8] sm:$0xff]
    %v5602 = vld [vmem:[#allocation7 + $0x100] sm:$0xff]
    %v5603 = vld [vmem:[#allocation7 + $0x108] sm:$0xff]
    %v5604 = vld [vmem:[#allocation7 + $0x110] sm:$0xff]
    %v5605 = vld [vmem:[#allocation7 + $0x118] sm:$0xff]
    %v5606 = vld [vmem:[#allocation7 + $0x120] sm:$0xff]
    %v5607 = vld [vmem:[#allocation7 + $0x128] sm:$0xff]
    %v5608 = vld [vmem:[#allocation7 + $0x130] sm:$0xff]
    %v5609 = vld [vmem:[#allocation7 + $0x138] sm:$0xff]
    %v5610 = vld [vmem:[#allocation7 + $0x140] sm:$0xff]
    %v5611 = vld [vmem:[#allocation7 + $0x148] sm:$0xff]
    %v5612 = vld [vmem:[#allocation7 + $0x150] sm:$0xff]
    %v5613 = vld [vmem:[#allocation7 + $0x158] sm:$0xff]
    %v5614 = vld [vmem:[#allocation7 + $0x160] sm:$0xff]
    %v5615 = vld [vmem:[#allocation7 + $0x168] sm:$0xff]
    %v5616 = vld [vmem:[#allocation7 + $0x170] sm:$0xff]
    %v5617 = vld [vmem:[#allocation7 + $0x178] sm:$0xff]
    %v5618 = vld [vmem:[#allocation7 + $0x180] sm:$0xff]
    %v5619 = vld [vmem:[#allocation7 + $0x188] sm:$0xff]
    %v5620 = vld [vmem:[#allocation7 + $0x190] sm:$0xff]
    %v5621 = vld [vmem:[#allocation7 + $0x198] sm:$0xff]
    %v5622 = vld [vmem:[#allocation7 + $0x1a0] sm:$0xff]
    %v5623 = vld [vmem:[#allocation7 + $0x1a8] sm:$0xff]
    %v5624 = vld [vmem:[#allocation7 + $0x1b0] sm:$0xff]
    %v5625 = vld [vmem:[#allocation7 + $0x1b8] sm:$0xff]
    %v5626 = vld [vmem:[#allocation7 + $0x1c0] sm:$0xff]
    %v5627 = vld [vmem:[#allocation7 + $0x1c8] sm:$0xff]
    %v5628 = vld [vmem:[#allocation7 + $0x1d0] sm:$0xff]
    %v5629 = vld [vmem:[#allocation7 + $0x1d8] sm:$0xff]
    %v5630 = vld [vmem:[#allocation7 + $0x1e0] sm:$0xff]
    %v5631 = vld [vmem:[#allocation7 + $0x1e8] sm:$0xff]
    %v5632 = vld [vmem:[#allocation7 + $0x1f0] sm:$0xff]
    %v5633 = vld [vmem:[#allocation7 + $0x1f8] sm:$0xff]
    %v5634 = vld [vmem:[#allocation7 + $0x200] sm:$0xff]
    %v5635 = vld [vmem:[#allocation7 + $0x208] sm:$0xff]
    %v5636 = vld [vmem:[#allocation7 + $0x210] sm:$0xff]
    %v5637 = vld [vmem:[#allocation7 + $0x218] sm:$0xff]
    %v5638 = vld [vmem:[#allocation7 + $0x220] sm:$0xff]
    %v5639 = vld [vmem:[#allocation7 + $0x228] sm:$0xff]
    %v5640 = vld [vmem:[#allocation7 + $0x230] sm:$0xff]
    %v5641 = vld [vmem:[#allocation7 + $0x238] sm:$0xff]
    %v5642 = vld [vmem:[#allocation7 + $0x240] sm:$0xff]
    %v5643 = vld [vmem:[#allocation7 + $0x248] sm:$0xff]
    %v5644 = vld [vmem:[#allocation7 + $0x250] sm:$0xff]
    %v5645 = vld [vmem:[#allocation7 + $0x258] sm:$0xff]
    %v5646 = vld [vmem:[#allocation7 + $0x260] sm:$0xff]
    %v5647 = vld [vmem:[#allocation7 + $0x268] sm:$0xff]
    %v5648 = vld [vmem:[#allocation7 + $0x270] sm:$0xff]
    %v5649 = vld [vmem:[#allocation7 + $0x278] sm:$0xff]
    %v5650 = vld [vmem:[#allocation7 + $0x280] sm:$0xff]
    %v5651 = vld [vmem:[#allocation7 + $0x288] sm:$0xff]
    %v5652 = vld [vmem:[#allocation7 + $0x290] sm:$0xff]
    %v5653 = vld [vmem:[#allocation7 + $0x298] sm:$0xff]
    %v5654 = vld [vmem:[#allocation7 + $0x2a0] sm:$0xff]
    %v5655 = vld [vmem:[#allocation7 + $0x2a8] sm:$0xff]
    %v5656 = vld [vmem:[#allocation7 + $0x2b0] sm:$0xff]
    %v5657 = vld [vmem:[#allocation7 + $0x2b8] sm:$0xff]
    %v5658 = vld [vmem:[#allocation7 + $0x2c0] sm:$0xff]
    %v5659 = vld [vmem:[#allocation7 + $0x2c8] sm:$0xff]
    %v5660 = vld [vmem:[#allocation7 + $0x2d0] sm:$0xff]
    %v5661 = vld [vmem:[#allocation7 + $0x2d8] sm:$0xff]
    %v5662 = vld [vmem:[#allocation7 + $0x2e0] sm:$0xff]
    %v5663 = vld [vmem:[#allocation7 + $0x2e8] sm:$0xff]
    %v5664 = vld [vmem:[#allocation7 + $0x2f0] sm:$0xff]
    %v5665 = vld [vmem:[#allocation7 + $0x2f8] sm:$0xff]
    %v5666 = vld [vmem:[#allocation7 + $0x300] sm:$0xff]
    %v5667 = vld [vmem:[#allocation7 + $0x308] sm:$0xff]
    %v5668 = vld [vmem:[#allocation7 + $0x310] sm:$0xff]
    %v5669 = vld [vmem:[#allocation7 + $0x318] sm:$0xff]
    %v5670 = vld [vmem:[#allocation7 + $0x320] sm:$0xff]
    %v5671 = vld [vmem:[#allocation7 + $0x328] sm:$0xff]
    %v5672 = vld [vmem:[#allocation7 + $0x330] sm:$0xff]
    %v5673 = vld [vmem:[#allocation7 + $0x338] sm:$0xff]
    %v5674 = vld [vmem:[#allocation7 + $0x340] sm:$0xff]
    %v5675 = vld [vmem:[#allocation7 + $0x348] sm:$0xff]
    %v5676 = vld [vmem:[#allocation7 + $0x350] sm:$0xff]
    %v5677 = vld [vmem:[#allocation7 + $0x358] sm:$0xff]
    %v5678 = vld [vmem:[#allocation7 + $0x360] sm:$0xff]
    %v5679 = vld [vmem:[#allocation7 + $0x368] sm:$0xff]
    %v5680 = vld [vmem:[#allocation7 + $0x370] sm:$0xff]
    %v5681 = vld [vmem:[#allocation7 + $0x378] sm:$0xff]
    %v5682 = vld [vmem:[#allocation7 + $0x380] sm:$0xff]
    %v5683 = vld [vmem:[#allocation7 + $0x388] sm:$0xff]
    %v5684 = vld [vmem:[#allocation7 + $0x390] sm:$0xff]
    %v5685 = vld [vmem:[#allocation7 + $0x398] sm:$0xff]
    %v5686 = vld [vmem:[#allocation7 + $0x3a0] sm:$0xff]
    %v5687 = vld [vmem:[#allocation7 + $0x3a8] sm:$0xff]
    %v5688 = vld [vmem:[#allocation7 + $0x3b0] sm:$0xff]
    %v5689 = vld [vmem:[#allocation7 + $0x3b8] sm:$0xff]
    %v5690 = vld [vmem:[#allocation7 + $0x3c0] sm:$0xff]
    %v5691 = vld [vmem:[#allocation7 + $0x3c8] sm:$0xff]
    %v5692 = vld [vmem:[#allocation7 + $0x3d0] sm:$0xff]
    %v5693 = vld [vmem:[#allocation7 + $0x3d8] sm:$0xff]
    %v5694 = vld [vmem:[#allocation7 + $0x3e0] sm:$0xff]
    %v5695 = vld [vmem:[#allocation7 + $0x3e8] sm:$0xff]
    %v5696 = vld [vmem:[#allocation7 + $0x3f0] sm:$0xff]
    %v5697 = vld [vmem:[#allocation7 + $0x3f8] sm:$0xff]
    %v5698 = vld [vmem:[%s7] sm:$0x3]
    %v5700 = vlaneseq
    %v5701 = vshrl.u32 %v5700, 7
    %v5702 = vsub.s32 0, %v5701
    %v5703 = vrot.slane %v5698, %v5702
    %v5704 = vlaneseq
    %v5705 = vshrl.u32 %v5704, 7
    %v5706 = vsub.s32 1, %v5705
    %v5707 = vrot.slane %v5698, %v5706
    %v5710 = vand.u32 %v5571, 4294901760
    %5711 = vmatprep.subr.mxu0 %v5710
    %v5712 = vand.u32 %v5570, 4294901760
    %5713 = vmatpush1.msra.mxu0 %v5712
    %v5714 = vand.u32 %v5573, 4294901760
    %5715 = vmatprep.subr.mxu0 %v5714
    %v5716 = vand.u32 %v5572, 4294901760
    %5717 = vmatpush1.msra.mxu0 %v5716
    %v5718 = vand.u32 %v5575, 4294901760
    %5719 = vmatprep.subr.mxu0 %v5718
    %v5720 = vand.u32 %v5574, 4294901760
    %5721 = vmatpush1.msra.mxu0 %v5720
    %v5722 = vand.u32 %v5577, 4294901760
    %5723 = vmatprep.subr.mxu0 %v5722
    %v5724 = vand.u32 %v5576, 4294901760
    %5725 = vmatpush1.msra.mxu0 %v5724
    %v5726 = vand.u32 %v5579, 4294901760
    %5727 = vmatprep.subr.mxu0 %v5726
    %v5728 = vand.u32 %v5578, 4294901760
    %5729 = vmatpush1.msra.mxu0 %v5728
    %v5730 = vand.u32 %v5581, 4294901760
    %5731 = vmatprep.subr.mxu0 %v5730
    %v5732 = vand.u32 %v5580, 4294901760
    %5733 = vmatpush1.msra.mxu0 %v5732
    %v5734 = vand.u32 %v5583, 4294901760
    %5735 = vmatprep.subr.mxu0 %v5734
    %v5736 = vand.u32 %v5582, 4294901760
    %5737 = vmatpush1.msra.mxu0 %v5736
    %v5738 = vand.u32 %v5585, 4294901760
    %5739 = vmatprep.subr.mxu0 %v5738
    %v5740 = vand.u32 %v5584, 4294901760
    %5741 = vmatpush1.msra.mxu0 %v5740
    %v5742 = vand.u32 %v5587, 4294901760
    %5743 = vmatprep.subr.mxu0 %v5742
    %v5744 = vand.u32 %v5586, 4294901760
    %5745 = vmatpush1.msra.mxu0 %v5744
    %v5746 = vand.u32 %v5589, 4294901760
    %5747 = vmatprep.subr.mxu0 %v5746
    %v5748 = vand.u32 %v5588, 4294901760
    %5749 = vmatpush1.msra.mxu0 %v5748
    %v5750 = vand.u32 %v5591, 4294901760
    %5751 = vmatprep.subr.mxu0 %v5750
    %v5752 = vand.u32 %v5590, 4294901760
    %5753 = vmatpush1.msra.mxu0 %v5752
    %v5754 = vand.u32 %v5593, 4294901760
    %5755 = vmatprep.subr.mxu0 %v5754
    %v5756 = vand.u32 %v5592, 4294901760
    %5757 = vmatpush1.msra.mxu0 %v5756
    %v5758 = vand.u32 %v5595, 4294901760
    %5759 = vmatprep.subr.mxu0 %v5758
    %v5760 = vand.u32 %v5594, 4294901760
    %5761 = vmatpush1.msra.mxu0 %v5760
    %v5762 = vand.u32 %v5597, 4294901760
    %5763 = vmatprep.subr.mxu0 %v5762
    %v5764 = vand.u32 %v5596, 4294901760
    %5765 = vmatpush1.msra.mxu0 %v5764
    %v5766 = vand.u32 %v5599, 4294901760
    %5767 = vmatprep.subr.mxu0 %v5766
    %v5768 = vand.u32 %v5598, 4294901760
    %5769 = vmatpush1.msra.mxu0 %v5768
    %v5770 = vand.u32 %v5601, 4294901760
    %5771 = vmatprep.subr.mxu0 %v5770
    %v5772 = vand.u32 %v5600, 4294901760
    %5773 = vmatpush1.msra.mxu0 %v5772
    %v5774 = vand.u32 %v5603, 4294901760
    %5775 = vmatprep.subr.mxu0 %v5774
    %v5776 = vand.u32 %v5602, 4294901760
    %5777 = vmatpush1.msra.mxu0 %v5776
    %v5778 = vand.u32 %v5605, 4294901760
    %5779 = vmatprep.subr.mxu0 %v5778
    %v5780 = vand.u32 %v5604, 4294901760
    %5781 = vmatpush1.msra.mxu0 %v5780
    %v5782 = vand.u32 %v5607, 4294901760
    %5783 = vmatprep.subr.mxu0 %v5782
    %v5784 = vand.u32 %v5606, 4294901760
    %5785 = vmatpush1.msra.mxu0 %v5784
    %v5786 = vand.u32 %v5609, 4294901760
    %5787 = vmatprep.subr.mxu0 %v5786
    %v5788 = vand.u32 %v5608, 4294901760
    %5789 = vmatpush1.msra.mxu0 %v5788
    %v5790 = vand.u32 %v5611, 4294901760
    %5791 = vmatprep.subr.mxu0 %v5790
    %v5792 = vand.u32 %v5610, 4294901760
    %5793 = vmatpush1.msra.mxu0 %v5792
    %v5794 = vand.u32 %v5613, 4294901760
    %5795 = vmatprep.subr.mxu0 %v5794
    %v5796 = vand.u32 %v5612, 4294901760
    %5797 = vmatpush1.msra.mxu0 %v5796
    %v5798 = vand.u32 %v5615, 4294901760
    %5799 = vmatprep.subr.mxu0 %v5798
    %v5800 = vand.u32 %v5614, 4294901760
    %5801 = vmatpush1.msra.mxu0 %v5800
    %v5802 = vand.u32 %v5617, 4294901760
    %5803 = vmatprep.subr.mxu0 %v5802
    %v5804 = vand.u32 %v5616, 4294901760
    %5805 = vmatpush1.msra.mxu0 %v5804
    %v5806 = vand.u32 %v5619, 4294901760
    %5807 = vmatprep.subr.mxu0 %v5806
    %v5808 = vand.u32 %v5618, 4294901760
    %5809 = vmatpush1.msra.mxu0 %v5808
    %v5810 = vand.u32 %v5621, 4294901760
    %5811 = vmatprep.subr.mxu0 %v5810
    %v5812 = vand.u32 %v5620, 4294901760
    %5813 = vmatpush1.msra.mxu0 %v5812
    %v5814 = vand.u32 %v5623, 4294901760
    %5815 = vmatprep.subr.mxu0 %v5814
    %v5816 = vand.u32 %v5622, 4294901760
    %5817 = vmatpush1.msra.mxu0 %v5816
    %v5818 = vand.u32 %v5625, 4294901760
    %5819 = vmatprep.subr.mxu0 %v5818
    %v5820 = vand.u32 %v5624, 4294901760
    %5821 = vmatpush1.msra.mxu0 %v5820
    %v5822 = vand.u32 %v5627, 4294901760
    %5823 = vmatprep.subr.mxu0 %v5822
    %v5824 = vand.u32 %v5626, 4294901760
    %5825 = vmatpush1.msra.mxu0 %v5824
    %v5826 = vand.u32 %v5629, 4294901760
    %5827 = vmatprep.subr.mxu0 %v5826
    %v5828 = vand.u32 %v5628, 4294901760
    %5829 = vmatpush1.msra.mxu0 %v5828
    %v5830 = vand.u32 %v5631, 4294901760
    %5831 = vmatprep.subr.mxu0 %v5830
    %v5832 = vand.u32 %v5630, 4294901760
    %5833 = vmatpush1.msra.mxu0 %v5832
    %v5834 = vand.u32 %v5633, 4294901760
    %5835 = vmatprep.subr.mxu0 %v5834
    %v5836 = vand.u32 %v5632, 4294901760
    %5837 = vmatpush1.msra.mxu0 %v5836
    %v5838 = vand.u32 %v5567, 4294901760
    %v5839 = vsub.f32 %v5567, %v5838
    %v5840 = vand.u32 %v5839, 4294901760
    %v5841 = vsub.f32 %v5839, %v5840
    %v5842 = vand.u32 %v5841, 4294901760
    %5843 = vmatprep.mubr.f32.mxu0 %v5842
    %v5844 = vand.u32 %v5566, 4294901760
    %v5845 = vsub.f32 %v5566, %v5844
    %v5846 = vand.u32 %v5845, 4294901760
    %v5847 = vsub.f32 %v5845, %v5846
    %v5848 = vand.u32 %v5847, 4294901760
    %5849 = vmatmul.mubr.f32.gmra.mrb[0].mxu0 %v5848
    %v5850 = vpop.f32.mrb[0].mxu0
    %v5851 = vadd.f32 %v5703, %v5850
    %v5852 = vpop.f32.mrb[0].mxu0
    %v5853 = vadd.f32 %v5707, %v5852
    %5854 = vdwg.mxu0
    %v5855 = vand.u32 %v5571, 4294901760
    %v5856 = vsub.f32 %v5571, %v5855
    %v5857 = vand.u32 %v5856, 4294901760
    %v5858 = vsub.f32 %v5856, %v5857
    %v5859 = vand.u32 %v5858, 4294901760
    %5860 = vmatprep.subr.mxu0 %v5859
    %v5861 = vand.u32 %v5570, 4294901760
    %v5862 = vsub.f32 %v5570, %v5861
    %v5863 = vand.u32 %v5862, 4294901760
    %v5864 = vsub.f32 %v5862, %v5863
    %v5865 = vand.u32 %v5864, 4294901760
    %5866 = vmatpush1.msra.mxu0 %v5865
    %v5867 = vand.u32 %v5573, 4294901760
    %v5868 = vsub.f32 %v5573, %v5867
    %v5869 = vand.u32 %v5868, 4294901760
    %v5870 = vsub.f32 %v5868, %v5869
    %v5871 = vand.u32 %v5870, 4294901760
    %5872 = vmatprep.subr.mxu0 %v5871
    %v5873 = vand.u32 %v5572, 4294901760
    %v5874 = vsub.f32 %v5572, %v5873
    %v5875 = vand.u32 %v5874, 4294901760
    %v5876 = vsub.f32 %v5874, %v5875
    %v5877 = vand.u32 %v5876, 4294901760
    %5878 = vmatpush1.msra.mxu0 %v5877
    %v5879 = vand.u32 %v5575, 4294901760
    %v5880 = vsub.f32 %v5575, %v5879
    %v5881 = vand.u32 %v5880, 4294901760
    %v5882 = vsub.f32 %v5880, %v5881
    %v5883 = vand.u32 %v5882, 4294901760
    %5884 = vmatprep.subr.mxu0 %v5883
    %v5885 = vand.u32 %v5574, 4294901760
    %v5886 = vsub.f32 %v5574, %v5885
    %v5887 = vand.u32 %v5886, 4294901760
    %v5888 = vsub.f32 %v5886, %v5887
    %v5889 = vand.u32 %v5888, 4294901760
    %5890 = vmatpush1.msra.mxu0 %v5889
    %v5891 = vand.u32 %v5577, 4294901760
    %v5892 = vsub.f32 %v5577, %v5891
    %v5893 = vand.u32 %v5892, 4294901760
    %v5894 = vsub.f32 %v5892, %v5893
    %v5895 = vand.u32 %v5894, 4294901760
    %5896 = vmatprep.subr.mxu0 %v5895
    %v5897 = vand.u32 %v5576, 4294901760
    %v5898 = vsub.f32 %v5576, %v5897
    %v5899 = vand.u32 %v5898, 4294901760
    %v5900 = vsub.f32 %v5898, %v5899
    %v5901 = vand.u32 %v5900, 4294901760
    %5902 = vmatpush1.msra.mxu0 %v5901
    %v5903 = vand.u32 %v5579, 4294901760
    %v5904 = vsub.f32 %v5579, %v5903
    %v5905 = vand.u32 %v5904, 4294901760
    %v5906 = vsub.f32 %v5904, %v5905
    %v5907 = vand.u32 %v5906, 4294901760
    %5908 = vmatprep.subr.mxu0 %v5907
    %v5909 = vand.u32 %v5578, 4294901760
    %v5910 = vsub.f32 %v5578, %v5909
    %v5911 = vand.u32 %v5910, 4294901760
    %v5912 = vsub.f32 %v5910, %v5911
    %v5913 = vand.u32 %v5912, 4294901760
    %5914 = vmatpush1.msra.mxu0 %v5913
    %v5915 = vand.u32 %v5581, 4294901760
    %v5916 = vsub.f32 %v5581, %v5915
    %v5917 = vand.u32 %v5916, 4294901760
    %v5918 = vsub.f32 %v5916, %v5917
    %v5919 = vand.u32 %v5918, 4294901760
    %5920 = vmatprep.subr.mxu0 %v5919
    %v5921 = vand.u32 %v5580, 4294901760
    %v5922 = vsub.f32 %v5580, %v5921
    %v5923 = vand.u32 %v5922, 4294901760
    %v5924 = vsub.f32 %v5922, %v5923
    %v5925 = vand.u32 %v5924, 4294901760
    %5926 = vmatpush1.msra.mxu0 %v5925
    %v5927 = vand.u32 %v5583, 4294901760
    %v5928 = vsub.f32 %v5583, %v5927
    %v5929 = vand.u32 %v5928, 4294901760
    %v5930 = vsub.f32 %v5928, %v5929
    %v5931 = vand.u32 %v5930, 4294901760
    %5932 = vmatprep.subr.mxu0 %v5931
    %v5933 = vand.u32 %v5582, 4294901760
    %v5934 = vsub.f32 %v5582, %v5933
    %v5935 = vand.u32 %v5934, 4294901760
    %v5936 = vsub.f32 %v5934, %v5935
    %v5937 = vand.u32 %v5936, 4294901760
    %5938 = vmatpush1.msra.mxu0 %v5937
    %v5939 = vand.u32 %v5585, 4294901760
    %v5940 = vsub.f32 %v5585, %v5939
    %v5941 = vand.u32 %v5940, 4294901760
    %v5942 = vsub.f32 %v5940, %v5941
    %v5943 = vand.u32 %v5942, 4294901760
    %5944 = vmatprep.subr.mxu0 %v5943
    %v5945 = vand.u32 %v5584, 4294901760
    %v5946 = vsub.f32 %v5584, %v5945
    %v5947 = vand.u32 %v5946, 4294901760
    %v5948 = vsub.f32 %v5946, %v5947
    %v5949 = vand.u32 %v5948, 4294901760
    %5950 = vmatpush1.msra.mxu0 %v5949
    %v5951 = vand.u32 %v5587, 4294901760
    %v5952 = vsub.f32 %v5587, %v5951
    %v5953 = vand.u32 %v5952, 4294901760
    %v5954 = vsub.f32 %v5952, %v5953
    %v5955 = vand.u32 %v5954, 4294901760
    %5956 = vmatprep.subr.mxu0 %v5955
    %v5957 = vand.u32 %v5586, 4294901760
    %v5958 = vsub.f32 %v5586, %v5957
    %v5959 = vand.u32 %v5958, 4294901760
    %v5960 = vsub.f32 %v5958, %v5959
    %v5961 = vand.u32 %v5960, 4294901760
    %5962 = vmatpush1.msra.mxu0 %v5961
    %v5963 = vand.u32 %v5589, 4294901760
    %v5964 = vsub.f32 %v5589, %v5963
    %v5965 = vand.u32 %v5964, 4294901760
    %v5966 = vsub.f32 %v5964, %v5965
    %v5967 = vand.u32 %v5966, 4294901760
    %5968 = vmatprep.subr.mxu0 %v5967
    %v5969 = vand.u32 %v5588, 4294901760
    %v5970 = vsub.f32 %v5588, %v5969
    %v5971 = vand.u32 %v5970, 4294901760
    %v5972 = vsub.f32 %v5970, %v5971
    %v5973 = vand.u32 %v5972, 4294901760
    %5974 = vmatpush1.msra.mxu0 %v5973
    %v5975 = vand.u32 %v5591, 4294901760
    %v5976 = vsub.f32 %v5591, %v5975
    %v5977 = vand.u32 %v5976, 4294901760
    %v5978 = vsub.f32 %v5976, %v5977
    %v5979 = vand.u32 %v5978, 4294901760
    %5980 = vmatprep.subr.mxu0 %v5979
    %v5981 = vand.u32 %v5590, 4294901760
    %v5982 = vsub.f32 %v5590, %v5981
    %v5983 = vand.u32 %v5982, 4294901760
    %v5984 = vsub.f32 %v5982, %v5983
    %v5985 = vand.u32 %v5984, 4294901760
    %5986 = vmatpush1.msra.mxu0 %v5985
    %v5987 = vand.u32 %v5593, 4294901760
    %v5988 = vsub.f32 %v5593, %v5987
    %v5989 = vand.u32 %v5988, 4294901760
    %v5990 = vsub.f32 %v5988, %v5989
    %v5991 = vand.u32 %v5990, 4294901760
    %5992 = vmatprep.subr.mxu0 %v5991
    %v5993 = vand.u32 %v5592, 4294901760
    %v5994 = vsub.f32 %v5592, %v5993
    %v5995 = vand.u32 %v5994, 4294901760
    %v5996 = vsub.f32 %v5994, %v5995
    %v5997 = vand.u32 %v5996, 4294901760
    %5998 = vmatpush1.msra.mxu0 %v5997
    %v5999 = vand.u32 %v5595, 4294901760
    %v6000 = vsub.f32 %v5595, %v5999
    %v6001 = vand.u32 %v6000, 4294901760
    %v6002 = vsub.f32 %v6000, %v6001
    %v6003 = vand.u32 %v6002, 4294901760
    %6004 = vmatprep.subr.mxu0 %v6003
    %v6005 = vand.u32 %v5594, 4294901760
    %v6006 = vsub.f32 %v5594, %v6005
    %v6007 = vand.u32 %v6006, 4294901760
    %v6008 = vsub.f32 %v6006, %v6007
    %v6009 = vand.u32 %v6008, 4294901760
    %6010 = vmatpush1.msra.mxu0 %v6009
    %v6011 = vand.u32 %v5597, 4294901760
    %v6012 = vsub.f32 %v5597, %v6011
    %v6013 = vand.u32 %v6012, 4294901760
    %v6014 = vsub.f32 %v6012, %v6013
    %v6015 = vand.u32 %v6014, 4294901760
    %6016 = vmatprep.subr.mxu0 %v6015
    %v6017 = vand.u32 %v5596, 4294901760
    %v6018 = vsub.f32 %v5596, %v6017
    %v6019 = vand.u32 %v6018, 4294901760
    %v6020 = vsub.f32 %v6018, %v6019
    %v6021 = vand.u32 %v6020, 4294901760
    %6022 = vmatpush1.msra.mxu0 %v6021
    %v6023 = vand.u32 %v5599, 4294901760
    %v6024 = vsub.f32 %v5599, %v6023
    %v6025 = vand.u32 %v6024, 4294901760
    %v6026 = vsub.f32 %v6024, %v6025
    %v6027 = vand.u32 %v6026, 4294901760
    %6028 = vmatprep.subr.mxu0 %v6027
    %v6029 = vand.u32 %v5598, 4294901760
    %v6030 = vsub.f32 %v5598, %v6029
    %v6031 = vand.u32 %v6030, 4294901760
    %v6032 = vsub.f32 %v6030, %v6031
    %v6033 = vand.u32 %v6032, 4294901760
    %6034 = vmatpush1.msra.mxu0 %v6033
    %v6035 = vand.u32 %v5601, 4294901760
    %v6036 = vsub.f32 %v5601, %v6035
    %v6037 = vand.u32 %v6036, 4294901760
    %v6038 = vsub.f32 %v6036, %v6037
    %v6039 = vand.u32 %v6038, 4294901760
    %6040 = vmatprep.subr.mxu0 %v6039
    %v6041 = vand.u32 %v5600, 4294901760
    %v6042 = vsub.f32 %v5600, %v6041
    %v6043 = vand.u32 %v6042, 4294901760
    %v6044 = vsub.f32 %v6042, %v6043
    %v6045 = vand.u32 %v6044, 4294901760
    %6046 = vmatpush1.msra.mxu0 %v6045
    %v6047 = vand.u32 %v5603, 4294901760
    %v6048 = vsub.f32 %v5603, %v6047
    %v6049 = vand.u32 %v6048, 4294901760
    %v6050 = vsub.f32 %v6048, %v6049
    %v6051 = vand.u32 %v6050, 4294901760
    %6052 = vmatprep.subr.mxu0 %v6051
    %v6053 = vand.u32 %v5602, 4294901760
    %v6054 = vsub.f32 %v5602, %v6053
    %v6055 = vand.u32 %v6054, 4294901760
    %v6056 = vsub.f32 %v6054, %v6055
    %v6057 = vand.u32 %v6056, 4294901760
    %6058 = vmatpush1.msra.mxu0 %v6057
    %v6059 = vand.u32 %v5605, 4294901760
    %v6060 = vsub.f32 %v5605, %v6059
    %v6061 = vand.u32 %v6060, 4294901760
    %v6062 = vsub.f32 %v6060, %v6061
    %v6063 = vand.u32 %v6062, 4294901760
    %6064 = vmatprep.subr.mxu0 %v6063
    %v6065 = vand.u32 %v5604, 4294901760
    %v6066 = vsub.f32 %v5604, %v6065
    %v6067 = vand.u32 %v6066, 4294901760
    %v6068 = vsub.f32 %v6066, %v6067
    %v6069 = vand.u32 %v6068, 4294901760
    %6070 = vmatpush1.msra.mxu0 %v6069
    %v6071 = vand.u32 %v5607, 4294901760
    %v6072 = vsub.f32 %v5607, %v6071
    %v6073 = vand.u32 %v6072, 4294901760
    %v6074 = vsub.f32 %v6072, %v6073
    %v6075 = vand.u32 %v6074, 4294901760
    %6076 = vmatprep.subr.mxu0 %v6075
    %v6077 = vand.u32 %v5606, 4294901760
    %v6078 = vsub.f32 %v5606, %v6077
    %v6079 = vand.u32 %v6078, 4294901760
    %v6080 = vsub.f32 %v6078, %v6079
    %v6081 = vand.u32 %v6080, 4294901760
    %6082 = vmatpush1.msra.mxu0 %v6081
    %v6083 = vand.u32 %v5609, 4294901760
    %v6084 = vsub.f32 %v5609, %v6083
    %v6085 = vand.u32 %v6084, 4294901760
    %v6086 = vsub.f32 %v6084, %v6085
    %v6087 = vand.u32 %v6086, 4294901760
    %6088 = vmatprep.subr.mxu0 %v6087
    %v6089 = vand.u32 %v5608, 4294901760
    %v6090 = vsub.f32 %v5608, %v6089
    %v6091 = vand.u32 %v6090, 4294901760
    %v6092 = vsub.f32 %v6090, %v6091
    %v6093 = vand.u32 %v6092, 4294901760
    %6094 = vmatpush1.msra.mxu0 %v6093
    %v6095 = vand.u32 %v5611, 4294901760
    %v6096 = vsub.f32 %v5611, %v6095
    %v6097 = vand.u32 %v6096, 4294901760
    %v6098 = vsub.f32 %v6096, %v6097
    %v6099 = vand.u32 %v6098, 4294901760
    %6100 = vmatprep.subr.mxu0 %v6099
    %v6101 = vand.u32 %v5610, 4294901760
    %v6102 = vsub.f32 %v5610, %v6101
    %v6103 = vand.u32 %v6102, 4294901760
    %v6104 = vsub.f32 %v6102, %v6103
    %v6105 = vand.u32 %v6104, 4294901760
    %6106 = vmatpush1.msra.mxu0 %v6105
    %v6107 = vand.u32 %v5613, 4294901760
    %v6108 = vsub.f32 %v5613, %v6107
    %v6109 = vand.u32 %v6108, 4294901760
    %v6110 = vsub.f32 %v6108, %v6109
    %v6111 = vand.u32 %v6110, 4294901760
    %6112 = vmatprep.subr.mxu0 %v6111
    %v6113 = vand.u32 %v5612, 4294901760
    %v6114 = vsub.f32 %v5612, %v6113
    %v6115 = vand.u32 %v6114, 4294901760
    %v6116 = vsub.f32 %v6114, %v6115
    %v6117 = vand.u32 %v6116, 4294901760
    %6118 = vmatpush1.msra.mxu0 %v6117
    %v6119 = vand.u32 %v5615, 4294901760
    %v6120 = vsub.f32 %v5615, %v6119
    %v6121 = vand.u32 %v6120, 4294901760
    %v6122 = vsub.f32 %v6120, %v6121
    %v6123 = vand.u32 %v6122, 4294901760
    %6124 = vmatprep.subr.mxu0 %v6123
    %v6125 = vand.u32 %v5614, 4294901760
    %v6126 = vsub.f32 %v5614, %v6125
    %v6127 = vand.u32 %v6126, 4294901760
    %v6128 = vsub.f32 %v6126, %v6127
    %v6129 = vand.u32 %v6128, 4294901760
    %6130 = vmatpush1.msra.mxu0 %v6129
    %v6131 = vand.u32 %v5617, 4294901760
    %v6132 = vsub.f32 %v5617, %v6131
    %v6133 = vand.u32 %v6132, 4294901760
    %v6134 = vsub.f32 %v6132, %v6133
    %v6135 = vand.u32 %v6134, 4294901760
    %6136 = vmatprep.subr.mxu0 %v6135
    %v6137 = vand.u32 %v5616, 4294901760
    %v6138 = vsub.f32 %v5616, %v6137
    %v6139 = vand.u32 %v6138, 4294901760
    %v6140 = vsub.f32 %v6138, %v6139
    %v6141 = vand.u32 %v6140, 4294901760
    %6142 = vmatpush1.msra.mxu0 %v6141
    %v6143 = vand.u32 %v5619, 4294901760
    %v6144 = vsub.f32 %v5619, %v6143
    %v6145 = vand.u32 %v6144, 4294901760
    %v6146 = vsub.f32 %v6144, %v6145
    %v6147 = vand.u32 %v6146, 4294901760
    %6148 = vmatprep.subr.mxu0 %v6147
    %v6149 = vand.u32 %v5618, 4294901760
    %v6150 = vsub.f32 %v5618, %v6149
    %v6151 = vand.u32 %v6150, 4294901760
    %v6152 = vsub.f32 %v6150, %v6151
    %v6153 = vand.u32 %v6152, 4294901760
    %6154 = vmatpush1.msra.mxu0 %v6153
    %v6155 = vand.u32 %v5621, 4294901760
    %v6156 = vsub.f32 %v5621, %v6155
    %v6157 = vand.u32 %v6156, 4294901760
    %v6158 = vsub.f32 %v6156, %v6157
    %v6159 = vand.u32 %v6158, 4294901760
    %6160 = vmatprep.subr.mxu0 %v6159
    %v6161 = vand.u32 %v5620, 4294901760
    %v6162 = vsub.f32 %v5620, %v6161
    %v6163 = vand.u32 %v6162, 4294901760
    %v6164 = vsub.f32 %v6162, %v6163
    %v6165 = vand.u32 %v6164, 4294901760
    %6166 = vmatpush1.msra.mxu0 %v6165
    %v6167 = vand.u32 %v5623, 4294901760
    %v6168 = vsub.f32 %v5623, %v6167
    %v6169 = vand.u32 %v6168, 4294901760
    %v6170 = vsub.f32 %v6168, %v6169
    %v6171 = vand.u32 %v6170, 4294901760
    %6172 = vmatprep.subr.mxu0 %v6171
    %v6173 = vand.u32 %v5622, 4294901760
    %v6174 = vsub.f32 %v5622, %v6173
    %v6175 = vand.u32 %v6174, 4294901760
    %v6176 = vsub.f32 %v6174, %v6175
    %v6177 = vand.u32 %v6176, 4294901760
    %6178 = vmatpush1.msra.mxu0 %v6177
    %v6179 = vand.u32 %v5625, 4294901760
    %v6180 = vsub.f32 %v5625, %v6179
    %v6181 = vand.u32 %v6180, 4294901760
    %v6182 = vsub.f32 %v6180, %v6181
    %v6183 = vand.u32 %v6182, 4294901760
    %6184 = vmatprep.subr.mxu0 %v6183
    %v6185 = vand.u32 %v5624, 4294901760
    %v6186 = vsub.f32 %v5624, %v6185
    %v6187 = vand.u32 %v6186, 4294901760
    %v6188 = vsub.f32 %v6186, %v6187
    %v6189 = vand.u32 %v6188, 4294901760
    %6190 = vmatpush1.msra.mxu0 %v6189
    %v6191 = vand.u32 %v5627, 4294901760
    %v6192 = vsub.f32 %v5627, %v6191
    %v6193 = vand.u32 %v6192, 4294901760
    %v6194 = vsub.f32 %v6192, %v6193
    %v6195 = vand.u32 %v6194, 4294901760
    %6196 = vmatprep.subr.mxu0 %v6195
    %v6197 = vand.u32 %v5626, 4294901760
    %v6198 = vsub.f32 %v5626, %v6197
    %v6199 = vand.u32 %v6198, 4294901760
    %v6200 = vsub.f32 %v6198, %v6199
    %v6201 = vand.u32 %v6200, 4294901760
    %6202 = vmatpush1.msra.mxu0 %v6201
    %v6203 = vand.u32 %v5629, 4294901760
    %v6204 = vsub.f32 %v5629, %v6203
    %v6205 = vand.u32 %v6204, 4294901760
    %v6206 = vsub.f32 %v6204, %v6205
    %v6207 = vand.u32 %v6206, 4294901760
    %6208 = vmatprep.subr.mxu0 %v6207
    %v6209 = vand.u32 %v5628, 4294901760
    %v6210 = vsub.f32 %v5628, %v6209
    %v6211 = vand.u32 %v6210, 4294901760
    %v6212 = vsub.f32 %v6210, %v6211
    %v6213 = vand.u32 %v6212, 4294901760
    %6214 = vmatpush1.msra.mxu0 %v6213
    %v6215 = vand.u32 %v5631, 4294901760
    %v6216 = vsub.f32 %v5631, %v6215
    %v6217 = vand.u32 %v6216, 4294901760
    %v6218 = vsub.f32 %v6216, %v6217
    %v6219 = vand.u32 %v6218, 4294901760
    %6220 = vmatprep.subr.mxu0 %v6219
    %v6221 = vand.u32 %v5630, 4294901760
    %v6222 = vsub.f32 %v5630, %v6221
    %v6223 = vand.u32 %v6222, 4294901760
    %v6224 = vsub.f32 %v6222, %v6223
    %v6225 = vand.u32 %v6224, 4294901760
    %6226 = vmatpush1.msra.mxu0 %v6225
    %v6227 = vand.u32 %v5633, 4294901760
    %v6228 = vsub.f32 %v5633, %v6227
    %v6229 = vand.u32 %v6228, 4294901760
    %v6230 = vsub.f32 %v6228, %v6229
    %v6231 = vand.u32 %v6230, 4294901760
    %6232 = vmatprep.subr.mxu0 %v6231
    %v6233 = vand.u32 %v5632, 4294901760
    %v6234 = vsub.f32 %v5632, %v6233
    %v6235 = vand.u32 %v6234, 4294901760
    %v6236 = vsub.f32 %v6234, %v6235
    %v6237 = vand.u32 %v6236, 4294901760
    %6238 = vmatpush1.msra.mxu0 %v6237
    %v6239 = vand.u32 %v5567, 4294901760
    %6240 = vmatprep.mubr.f32.mxu0 %v6239
    %v6241 = vand.u32 %v5566, 4294901760
    %6242 = vmatmul.mubr.f32.gmra.mrb[0].mxu0 %v6241
    %v6243 = vpop.f32.mrb[0].mxu0
    %v6244 = vadd.f32 %v5851, %v6243
    %v6245 = vpop.f32.mrb[0].mxu0
    %v6246 = vadd.f32 %v5853, %v6245
    %6247 = vdwg.mxu0
    %v6248 = vand.u32 %v5571, 4294901760
    %v6249 = vsub.f32 %v5571, %v6248
    %6250 = vmatprep.subr.mxu0 %v6249
    %v6251 = vand.u32 %v5570, 4294901760
    %v6252 = vsub.f32 %v5570, %v6251
    %6253 = vmatpush1.msra.mxu0 %v6252
    %v6254 = vand.u32 %v5573, 4294901760
    %v6255 = vsub.f32 %v5573, %v6254
    %6256 = vmatprep.subr.mxu0 %v6255
    %v6257 = vand.u32 %v5572, 4294901760
    %v6258 = vsub.f32 %v5572, %v6257
    %6259 = vmatpush1.msra.mxu0 %v6258
    %v6260 = vand.u32 %v5575, 4294901760
    %v6261 = vsub.f32 %v5575, %v6260
    %6262 = vmatprep.subr.mxu0 %v6261
    %v6263 = vand.u32 %v5574, 4294901760
    %v6264 = vsub.f32 %v5574, %v6263
    %6265 = vmatpush1.msra.mxu0 %v6264
    %v6266 = vand.u32 %v5577, 4294901760
    %v6267 = vsub.f32 %v5577, %v6266
    %6268 = vmatprep.subr.mxu0 %v6267
    %v6269 = vand.u32 %v5576, 4294901760
    %v6270 = vsub.f32 %v5576, %v6269
    %6271 = vmatpush1.msra.mxu0 %v6270
    %v6272 = vand.u32 %v5579, 4294901760
    %v6273 = vsub.f32 %v5579, %v6272
    %6274 = vmatprep.subr.mxu0 %v6273
    %v6275 = vand.u32 %v5578, 4294901760
    %v6276 = vsub.f32 %v5578, %v6275
    %6277 = vmatpush1.msra.mxu0 %v6276
    %v6278 = vand.u32 %v5581, 4294901760
    %v6279 = vsub.f32 %v5581, %v6278
    %6280 = vmatprep.subr.mxu0 %v6279
    %v6281 = vand.u32 %v5580, 4294901760
    %v6282 = vsub.f32 %v5580, %v6281
    %6283 = vmatpush1.msra.mxu0 %v6282
    %v6284 = vand.u32 %v5583, 4294901760
    %v6285 = vsub.f32 %v5583, %v6284
    %6286 = vmatprep.subr.mxu0 %v6285
    %v6287 = vand.u32 %v5582, 4294901760
    %v6288 = vsub.f32 %v5582, %v6287
    %6289 = vmatpush1.msra.mxu0 %v6288
    %v6290 = vand.u32 %v5585, 4294901760
    %v6291 = vsub.f32 %v5585, %v6290
    %6292 = vmatprep.subr.mxu0 %v6291
    %v6293 = vand.u32 %v5584, 4294901760
    %v6294 = vsub.f32 %v5584, %v6293
    %6295 = vmatpush1.msra.mxu0 %v6294
    %v6296 = vand.u32 %v5587, 4294901760
    %v6297 = vsub.f32 %v5587, %v6296
    %6298 = vmatprep.subr.mxu0 %v6297
    %v6299 = vand.u32 %v5586, 4294901760
    %v6300 = vsub.f32 %v5586, %v6299
    %6301 = vmatpush1.msra.mxu0 %v6300
    %v6302 = vand.u32 %v5589, 4294901760
    %v6303 = vsub.f32 %v5589, %v6302
    %6304 = vmatprep.subr.mxu0 %v6303
    %v6305 = vand.u32 %v5588, 4294901760
    %v6306 = vsub.f32 %v5588, %v6305
    %6307 = vmatpush1.msra.mxu0 %v6306
    %v6308 = vand.u32 %v5591, 4294901760
    %v6309 = vsub.f32 %v5591, %v6308
    %6310 = vmatprep.subr.mxu0 %v6309
    %v6311 = vand.u32 %v5590, 4294901760
    %v6312 = vsub.f32 %v5590, %v6311
    %6313 = vmatpush1.msra.mxu0 %v6312
    %v6314 = vand.u32 %v5593, 4294901760
    %v6315 = vsub.f32 %v5593, %v6314
    %6316 = vmatprep.subr.mxu0 %v6315
    %v6317 = vand.u32 %v5592, 4294901760
    %v6318 = vsub.f32 %v5592, %v6317
    %6319 = vmatpush1.msra.mxu0 %v6318
    %v6320 = vand.u32 %v5595, 4294901760
    %v6321 = vsub.f32 %v5595, %v6320
    %6322 = vmatprep.subr.mxu0 %v6321
    %v6323 = vand.u32 %v5594, 4294901760
    %v6324 = vsub.f32 %v5594, %v6323
    %6325 = vmatpush1.msra.mxu0 %v6324
    %v6326 = vand.u32 %v5597, 4294901760
    %v6327 = vsub.f32 %v5597, %v6326
    %6328 = vmatprep.subr.mxu0 %v6327
    %v6329 = vand.u32 %v5596, 4294901760
    %v6330 = vsub.f32 %v5596, %v6329
    %6331 = vmatpush1.msra.mxu0 %v6330
    %v6332 = vand.u32 %v5599, 4294901760
    %v6333 = vsub.f32 %v5599, %v6332
    %6334 = vmatprep.subr.mxu0 %v6333
    %v6335 = vand.u32 %v5598, 4294901760
    %v6336 = vsub.f32 %v5598, %v6335
    %6337 = vmatpush1.msra.mxu0 %v6336
    %v6338 = vand.u32 %v5601, 4294901760
    %v6339 = vsub.f32 %v5601, %v6338
    %6340 = vmatprep.subr.mxu0 %v6339
    %v6341 = vand.u32 %v5600, 4294901760
    %v6342 = vsub.f32 %v5600, %v6341
    %6343 = vmatpush1.msra.mxu0 %v6342
    %v6344 = vand.u32 %v5603, 4294901760
    %v6345 = vsub.f32 %v5603, %v6344
    %6346 = vmatprep.subr.mxu0 %v6345
    %v6347 = vand.u32 %v5602, 4294901760
    %v6348 = vsub.f32 %v5602, %v6347
    %6349 = vmatpush1.msra.mxu0 %v6348
    %v6350 = vand.u32 %v5605, 4294901760
    %v6351 = vsub.f32 %v5605, %v6350
    %6352 = vmatprep.subr.mxu0 %v6351
    %v6353 = vand.u32 %v5604, 4294901760
    %v6354 = vsub.f32 %v5604, %v6353
    %6355 = vmatpush1.msra.mxu0 %v6354
    %v6356 = vand.u32 %v5607, 4294901760
    %v6357 = vsub.f32 %v5607, %v6356
    %6358 = vmatprep.subr.mxu0 %v6357
    %v6359 = vand.u32 %v5606, 4294901760
    %v6360 = vsub.f32 %v5606, %v6359
    %6361 = vmatpush1.msra.mxu0 %v6360
    %v6362 = vand.u32 %v5609, 4294901760
    %v6363 = vsub.f32 %v5609, %v6362
    %6364 = vmatprep.subr.mxu0 %v6363
    %v6365 = vand.u32 %v5608, 4294901760
    %v6366 = vsub.f32 %v5608, %v6365
    %6367 = vmatpush1.msra.mxu0 %v6366
    %v6368 = vand.u32 %v5611, 4294901760
    %v6369 = vsub.f32 %v5611, %v6368
    %6370 = vmatprep.subr.mxu0 %v6369
    %v6371 = vand.u32 %v5610, 4294901760
    %v6372 = vsub.f32 %v5610, %v6371
    %6373 = vmatpush1.msra.mxu0 %v6372
    %v6374 = vand.u32 %v5613, 4294901760
    %v6375 = vsub.f32 %v5613, %v6374
    %6376 = vmatprep.subr.mxu0 %v6375
    %v6377 = vand.u32 %v5612, 4294901760
    %v6378 = vsub.f32 %v5612, %v6377
    %6379 = vmatpush1.msra.mxu0 %v6378
    %v6380 = vand.u32 %v5615, 4294901760
    %v6381 = vsub.f32 %v5615, %v6380
    %6382 = vmatprep.subr.mxu0 %v6381
    %v6383 = vand.u32 %v5614, 4294901760
    %v6384 = vsub.f32 %v5614, %v6383
    %6385 = vmatpush1.msra.mxu0 %v6384
    %v6386 = vand.u32 %v5617, 4294901760
    %v6387 = vsub.f32 %v5617, %v6386
    %6388 = vmatprep.subr.mxu0 %v6387
    %v6389 = vand.u32 %v5616, 4294901760
    %v6390 = vsub.f32 %v5616, %v6389
    %6391 = vmatpush1.msra.mxu0 %v6390
    %v6392 = vand.u32 %v5619, 4294901760
    %v6393 = vsub.f32 %v5619, %v6392
    %6394 = vmatprep.subr.mxu0 %v6393
    %v6395 = vand.u32 %v5618, 4294901760
    %v6396 = vsub.f32 %v5618, %v6395
    %6397 = vmatpush1.msra.mxu0 %v6396
    %v6398 = vand.u32 %v5621, 4294901760
    %v6399 = vsub.f32 %v5621, %v6398
    %6400 = vmatprep.subr.mxu0 %v6399
    %v6401 = vand.u32 %v5620, 4294901760
    %v6402 = vsub.f32 %v5620, %v6401
    %6403 = vmatpush1.msra.mxu0 %v6402
    %v6404 = vand.u32 %v5623, 4294901760
    %v6405 = vsub.f32 %v5623, %v6404
    %6406 = vmatprep.subr.mxu0 %v6405
    %v6407 = vand.u32 %v5622, 4294901760
    %v6408 = vsub.f32 %v5622, %v6407
    %6409 = vmatpush1.msra.mxu0 %v6408
    %v6410 = vand.u32 %v5625, 4294901760
    %v6411 = vsub.f32 %v5625, %v6410
    %6412 = vmatprep.subr.mxu0 %v6411
    %v6413 = vand.u32 %v5624, 4294901760
    %v6414 = vsub.f32 %v5624, %v6413
    %6415 = vmatpush1.msra.mxu0 %v6414
    %v6416 = vand.u32 %v5627, 4294901760
    %v6417 = vsub.f32 %v5627, %v6416
    %6418 = vmatprep.subr.mxu0 %v6417
    %v6419 = vand.u32 %v5626, 4294901760
    %v6420 = vsub.f32 %v5626, %v6419
    %6421 = vmatpush1.msra.mxu0 %v6420
    %v6422 = vand.u32 %v5629, 4294901760
    %v6423 = vsub.f32 %v5629, %v6422
    %6424 = vmatprep.subr.mxu0 %v6423
    %v6425 = vand.u32 %v5628, 4294901760
    %v6426 = vsub.f32 %v5628, %v6425
    %6427 = vmatpush1.msra.mxu0 %v6426
    %v6428 = vand.u32 %v5631, 4294901760
    %v6429 = vsub.f32 %v5631, %v6428
    %6430 = vmatprep.subr.mxu0 %v6429
    %v6431 = vand.u32 %v5630, 4294901760
    %v6432 = vsub.f32 %v5630, %v6431
    %6433 = vmatpush1.msra.mxu0 %v6432
    %v6434 = vand.u32 %v5633, 4294901760
    %v6435 = vsub.f32 %v5633, %v6434
    %6436 = vmatprep.subr.mxu0 %v6435
    %v6437 = vand.u32 %v5632, 4294901760
    %v6438 = vsub.f32 %v5632, %v6437
    %6439 = vmatpush1.msra.mxu0 %v6438
    %v6440 = vand.u32 %v5567, 4294901760
    %v6441 = vsub.f32 %v5567, %v6440
    %6442 = vmatprep.mubr.f32.mxu0 %v6441
    %v6443 = vand.u32 %v5566, 4294901760
    %v6444 = vsub.f32 %v5566, %v6443
    %6445 = vmatmul.mubr.f32.gmra.mrb[0].mxu0 %v6444
    %v6446 = vpop.f32.mrb[0].mxu0
    %v6447 = vadd.f32 %v6244, %v6446
    %v6448 = vpop.f32.mrb[0].mxu0
    %v6449 = vadd.f32 %v6246, %v6448
    %6450 = vdwg.mxu0
    %v6451 = vand.u32 %v5571, 4294901760
    %6452 = vmatprep.subr.mxu0 %v6451
    %v6453 = vand.u32 %v5570, 4294901760
    %6454 = vmatpush1.msra.mxu0 %v6453
    %v6455 = vand.u32 %v5573, 4294901760
    %6456 = vmatprep.subr.mxu0 %v6455
    %v6457 = vand.u32 %v5572, 4294901760
    %6458 = vmatpush1.msra.mxu0 %v6457
    %v6459 = vand.u32 %v5575, 4294901760
    %6460 = vmatprep.subr.mxu0 %v6459
    %v6461 = vand.u32 %v5574, 4294901760
    %6462 = vmatpush1.msra.mxu0 %v6461
    %v6463 = vand.u32 %v5577, 4294901760
    %6464 = vmatprep.subr.mxu0 %v6463
    %v6465 = vand.u32 %v5576, 4294901760
    %6466 = vmatpush1.msra.mxu0 %v6465
    %v6467 = vand.u32 %v5579, 4294901760
    %6468 = vmatprep.subr.mxu0 %v6467
    %v6469 = vand.u32 %v5578, 4294901760
    %6470 = vmatpush1.msra.mxu0 %v6469
    %v6471 = vand.u32 %v5581, 4294901760
    %6472 = vmatprep.subr.mxu0 %v6471
    %v6473 = vand.u32 %v5580, 4294901760
    %6474 = vmatpush1.msra.mxu0 %v6473
    %v6475 = vand.u32 %v5583, 4294901760
    %6476 = vmatprep.subr.mxu0 %v6475
    %v6477 = vand.u32 %v5582, 4294901760
    %6478 = vmatpush1.msra.mxu0 %v6477
    %v6479 = vand.u32 %v5585, 4294901760
    %6480 = vmatprep.subr.mxu0 %v6479
    %v6481 = vand.u32 %v5584, 4294901760
    %6482 = vmatpush1.msra.mxu0 %v6481
    %v6483 = vand.u32 %v5587, 4294901760
    %6484 = vmatprep.subr.mxu0 %v6483
    %v6485 = vand.u32 %v5586, 4294901760
    %6486 = vmatpush1.msra.mxu0 %v6485
    %v6487 = vand.u32 %v5589, 4294901760
    %6488 = vmatprep.subr.mxu0 %v6487
    %v6489 = vand.u32 %v5588, 4294901760
    %6490 = vmatpush1.msra.mxu0 %v6489
    %v6491 = vand.u32 %v5591, 4294901760
    %6492 = vmatprep.subr.mxu0 %v6491
    %v6493 = vand.u32 %v5590, 4294901760
    %6494 = vmatpush1.msra.mxu0 %v6493
    %v6495 = vand.u32 %v5593, 4294901760
    %6496 = vmatprep.subr.mxu0 %v6495
    %v6497 = vand.u32 %v5592, 4294901760
    %6498 = vmatpush1.msra.mxu0 %v6497
    %v6499 = vand.u32 %v5595, 4294901760
    %6500 = vmatprep.subr.mxu0 %v6499
    %v6501 = vand.u32 %v5594, 4294901760
    %6502 = vmatpush1.msra.mxu0 %v6501
    %v6503 = vand.u32 %v5597, 4294901760
    %6504 = vmatprep.subr.mxu0 %v6503
    %v6505 = vand.u32 %v5596, 4294901760
    %6506 = vmatpush1.msra.mxu0 %v6505
    %v6507 = vand.u32 %v5599, 4294901760
    %6508 = vmatprep.subr.mxu0 %v6507
    %v6509 = vand.u32 %v5598, 4294901760
    %6510 = vmatpush1.msra.mxu0 %v6509
    %v6511 = vand.u32 %v5601, 4294901760
    %6512 = vmatprep.subr.mxu0 %v6511
    %v6513 = vand.u32 %v5600, 4294901760
    %6514 = vmatpush1.msra.mxu0 %v6513
    %v6515 = vand.u32 %v5603, 4294901760
    %6516 = vmatprep.subr.mxu0 %v6515
    %v6517 = vand.u32 %v5602, 4294901760
    %6518 = vmatpush1.msra.mxu0 %v6517
    %v6519 = vand.u32 %v5605, 4294901760
    %6520 = vmatprep.subr.mxu0 %v6519
    %v6521 = vand.u32 %v5604, 4294901760
    %6522 = vmatpush1.msra.mxu0 %v6521
    %v6523 = vand.u32 %v5607, 4294901760
    %6524 = vmatprep.subr.mxu0 %v6523
    %v6525 = vand.u32 %v5606, 4294901760
    %6526 = vmatpush1.msra.mxu0 %v6525
    %v6527 = vand.u32 %v5609, 4294901760
    %6528 = vmatprep.subr.mxu0 %v6527
    %v6529 = vand.u32 %v5608, 4294901760
    %6530 = vmatpush1.msra.mxu0 %v6529
    %v6531 = vand.u32 %v5611, 4294901760
    %6532 = vmatprep.subr.mxu0 %v6531
    %v6533 = vand.u32 %v5610, 4294901760
    %6534 = vmatpush1.msra.mxu0 %v6533
    %v6535 = vand.u32 %v5613, 4294901760
    %6536 = vmatprep.subr.mxu0 %v6535
    %v6537 = vand.u32 %v5612, 4294901760
    %6538 = vmatpush1.msra.mxu0 %v6537
    %v6539 = vand.u32 %v5615, 4294901760
    %6540 = vmatprep.subr.mxu0 %v6539
    %v6541 = vand.u32 %v5614, 4294901760
    %6542 = vmatpush1.msra.mxu0 %v6541
    %v6543 = vand.u32 %v5617, 4294901760
    %6544 = vmatprep.subr.mxu0 %v6543
    %v6545 = vand.u32 %v5616, 4294901760
    %6546 = vmatpush1.msra.mxu0 %v6545
    %v6547 = vand.u32 %v5619, 4294901760
    %6548 = vmatprep.subr.mxu0 %v6547
    %v6549 = vand.u32 %v5618, 4294901760
    %6550 = vmatpush1.msra.mxu0 %v6549
    %v6551 = vand.u32 %v5621, 4294901760
    %6552 = vmatprep.subr.mxu0 %v6551
    %v6553 = vand.u32 %v5620, 4294901760
    %6554 = vmatpush1.msra.mxu0 %v6553
    %v6555 = vand.u32 %v5623, 4294901760
    %6556 = vmatprep.subr.mxu0 %v6555
    %v6557 = vand.u32 %v5622, 4294901760
    %6558 = vmatpush1.msra.mxu0 %v6557
    %v6559 = vand.u32 %v5625, 4294901760
    %6560 = vmatprep.subr.mxu0 %v6559
    %v6561 = vand.u32 %v5624, 4294901760
    %6562 = vmatpush1.msra.mxu0 %v6561
    %v6563 = vand.u32 %v5627, 4294901760
    %6564 = vmatprep.subr.mxu0 %v6563
    %v6565 = vand.u32 %v5626, 4294901760
    %6566 = vmatpush1.msra.mxu0 %v6565
    %v6567 = vand.u32 %v5629, 4294901760
    %6568 = vmatprep.subr.mxu0 %v6567
    %v6569 = vand.u32 %v5628, 4294901760
    %6570 = vmatpush1.msra.mxu0 %v6569
    %v6571 = vand.u32 %v5631, 4294901760
    %6572 = vmatprep.subr.mxu0 %v6571
    %v6573 = vand.u32 %v5630, 4294901760
    %6574 = vmatpush1.msra.mxu0 %v6573
    %v6575 = vand.u32 %v5633, 4294901760
    %6576 = vmatprep.subr.mxu0 %v6575
    %v6577 = vand.u32 %v5632, 4294901760
    %6578 = vmatpush1.msra.mxu0 %v6577
    %v6579 = vand.u32 %v5567, 4294901760
    %v6580 = vsub.f32 %v5567, %v6579
    %v6581 = vand.u32 %v6580, 4294901760
    %6582 = vmatprep.mubr.f32.mxu0 %v6581
    %v6583 = vand.u32 %v5566, 4294901760
    %v6584 = vsub.f32 %v5566, %v6583
    %v6585 = vand.u32 %v6584, 4294901760
    %6586 = vmatmul.mubr.f32.gmra.mrb[0].mxu0 %v6585
    %v6587 = vpop.f32.mrb[0].mxu0
    %v6588 = vadd.f32 %v6447, %v6587
    %v6589 = vpop.f32.mrb[0].mxu0
    %v6590 = vadd.f32 %v6449, %v6589
    %6591 = vdwg.mxu0
    %v6592 = vand.u32 %v5571, 4294901760
    %v6593 = vsub.f32 %v5571, %v6592
    %v6594 = vand.u32 %v6593, 4294901760
    %6595 = vmatprep.subr.mxu0 %v6594
    %v6596 = vand.u32 %v5570, 4294901760
    %v6597 = vsub.f32 %v5570, %v6596
    %v6598 = vand.u32 %v6597, 4294901760
    %6599 = vmatpush1.msra.mxu0 %v6598
    %v6600 = vand.u32 %v5573, 4294901760
    %v6601 = vsub.f32 %v5573, %v6600
    %v6602 = vand.u32 %v6601, 4294901760
    %6603 = vmatprep.subr.mxu0 %v6602
    %v6604 = vand.u32 %v5572, 4294901760
    %v6605 = vsub.f32 %v5572, %v6604
    %v6606 = vand.u32 %v6605, 4294901760
    %6607 = vmatpush1.msra.mxu0 %v6606
    %v6608 = vand.u32 %v5575, 4294901760
    %v6609 = vsub.f32 %v5575, %v6608
    %v6610 = vand.u32 %v6609, 4294901760
    %6611 = vmatprep.subr.mxu0 %v6610
    %v6612 = vand.u32 %v5574, 4294901760
    %v6613 = vsub.f32 %v5574, %v6612
    %v6614 = vand.u32 %v6613, 4294901760
    %6615 = vmatpush1.msra.mxu0 %v6614
    %v6616 = vand.u32 %v5577, 4294901760
    %v6617 = vsub.f32 %v5577, %v6616
    %v6618 = vand.u32 %v6617, 4294901760
    %6619 = vmatprep.subr.mxu0 %v6618
    %v6620 = vand.u32 %v5576, 4294901760
    %v6621 = vsub.f32 %v5576, %v6620
    %v6622 = vand.u32 %v6621, 4294901760
    %6623 = vmatpush1.msra.mxu0 %v6622
    %v6624 = vand.u32 %v5579, 4294901760
    %v6625 = vsub.f32 %v5579, %v6624
    %v6626 = vand.u32 %v6625, 4294901760
    %6627 = vmatprep.subr.mxu0 %v6626
    %v6628 = vand.u32 %v5578, 4294901760
    %v6629 = vsub.f32 %v5578, %v6628
    %v6630 = vand.u32 %v6629, 4294901760
    %6631 = vmatpush1.msra.mxu0 %v6630
    %v6632 = vand.u32 %v5581, 4294901760
    %v6633 = vsub.f32 %v5581, %v6632
    %v6634 = vand.u32 %v6633, 4294901760
    %6635 = vmatprep.subr.mxu0 %v6634
    %v6636 = vand.u32 %v5580, 4294901760
    %v6637 = vsub.f32 %v5580, %v6636
    %v6638 = vand.u32 %v6637, 4294901760
    %6639 = vmatpush1.msra.mxu0 %v6638
    %v6640 = vand.u32 %v5583, 4294901760
    %v6641 = vsub.f32 %v5583, %v6640
    %v6642 = vand.u32 %v6641, 4294901760
    %6643 = vmatprep.subr.mxu0 %v6642
    %v6644 = vand.u32 %v5582, 4294901760
    %v6645 = vsub.f32 %v5582, %v6644
    %v6646 = vand.u32 %v6645, 4294901760
    %6647 = vmatpush1.msra.mxu0 %v6646
    %v6648 = vand.u32 %v5585, 4294901760
    %v6649 = vsub.f32 %v5585, %v6648
    %v6650 = vand.u32 %v6649, 4294901760
    %6651 = vmatprep.subr.mxu0 %v6650
    %v6652 = vand.u32 %v5584, 4294901760
    %v6653 = vsub.f32 %v5584, %v6652
    %v6654 = vand.u32 %v6653, 4294901760
    %6655 = vmatpush1.msra.mxu0 %v6654
    %v6656 = vand.u32 %v5587, 4294901760
    %v6657 = vsub.f32 %v5587, %v6656
    %v6658 = vand.u32 %v6657, 4294901760
    %6659 = vmatprep.subr.mxu0 %v6658
    %v6660 = vand.u32 %v5586, 4294901760
    %v6661 = vsub.f32 %v5586, %v6660
    %v6662 = vand.u32 %v6661, 4294901760
    %6663 = vmatpush1.msra.mxu0 %v6662
    %v6664 = vand.u32 %v5589, 4294901760
    %v6665 = vsub.f32 %v5589, %v6664
    %v6666 = vand.u32 %v6665, 4294901760
    %6667 = vmatprep.subr.mxu0 %v6666
    %v6668 = vand.u32 %v5588, 4294901760
    %v6669 = vsub.f32 %v5588, %v6668
    %v6670 = vand.u32 %v6669, 4294901760
    %6671 = vmatpush1.msra.mxu0 %v6670
    %v6672 = vand.u32 %v5591, 4294901760
    %v6673 = vsub.f32 %v5591, %v6672
    %v6674 = vand.u32 %v6673, 4294901760
    %6675 = vmatprep.subr.mxu0 %v6674
    %v6676 = vand.u32 %v5590, 4294901760
    %v6677 = vsub.f32 %v5590, %v6676
    %v6678 = vand.u32 %v6677, 4294901760
    %6679 = vmatpush1.msra.mxu0 %v6678
    %v6680 = vand.u32 %v5593, 4294901760
    %v6681 = vsub.f32 %v5593, %v6680
    %v6682 = vand.u32 %v6681, 4294901760
    %6683 = vmatprep.subr.mxu0 %v6682
    %v6684 = vand.u32 %v5592, 4294901760
    %v6685 = vsub.f32 %v5592, %v6684
    %v6686 = vand.u32 %v6685, 4294901760
    %6687 = vmatpush1.msra.mxu0 %v6686
    %v6688 = vand.u32 %v5595, 4294901760
    %v6689 = vsub.f32 %v5595, %v6688
    %v6690 = vand.u32 %v6689, 4294901760
    %6691 = vmatprep.subr.mxu0 %v6690
    %v6692 = vand.u32 %v5594, 4294901760
    %v6693 = vsub.f32 %v5594, %v6692
    %v6694 = vand.u32 %v6693, 4294901760
    %6695 = vmatpush1.msra.mxu0 %v6694
    %v6696 = vand.u32 %v5597, 4294901760
    %v6697 = vsub.f32 %v5597, %v6696
    %v6698 = vand.u32 %v6697, 4294901760
    %6699 = vmatprep.subr.mxu0 %v6698
    %v6700 = vand.u32 %v5596, 4294901760
    %v6701 = vsub.f32 %v5596, %v6700
    %v6702 = vand.u32 %v6701, 4294901760
    %6703 = vmatpush1.msra.mxu0 %v6702
    %v6704 = vand.u32 %v5599, 4294901760
    %v6705 = vsub.f32 %v5599, %v6704
    %v6706 = vand.u32 %v6705, 4294901760
    %6707 = vmatprep.subr.mxu0 %v6706
    %v6708 = vand.u32 %v5598, 4294901760
    %v6709 = vsub.f32 %v5598, %v6708
    %v6710 = vand.u32 %v6709, 4294901760
    %6711 = vmatpush1.msra.mxu0 %v6710
    %v6712 = vand.u32 %v5601, 4294901760
    %v6713 = vsub.f32 %v5601, %v6712
    %v6714 = vand.u32 %v6713, 4294901760
    %6715 = vmatprep.subr.mxu0 %v6714
    %v6716 = vand.u32 %v5600, 4294901760
    %v6717 = vsub.f32 %v5600, %v6716
    %v6718 = vand.u32 %v6717, 4294901760
    %6719 = vmatpush1.msra.mxu0 %v6718
    %v6720 = vand.u32 %v5603, 4294901760
    %v6721 = vsub.f32 %v5603, %v6720
    %v6722 = vand.u32 %v6721, 4294901760
    %6723 = vmatprep.subr.mxu0 %v6722
    %v6724 = vand.u32 %v5602, 4294901760
    %v6725 = vsub.f32 %v5602, %v6724
    %v6726 = vand.u32 %v6725, 4294901760
    %6727 = vmatpush1.msra.mxu0 %v6726
    %v6728 = vand.u32 %v5605, 4294901760
    %v6729 = vsub.f32 %v5605, %v6728
    %v6730 = vand.u32 %v6729, 4294901760
    %6731 = vmatprep.subr.mxu0 %v6730
    %v6732 = vand.u32 %v5604, 4294901760
    %v6733 = vsub.f32 %v5604, %v6732
    %v6734 = vand.u32 %v6733, 4294901760
    %6735 = vmatpush1.msra.mxu0 %v6734
    %v6736 = vand.u32 %v5607, 4294901760
    %v6737 = vsub.f32 %v5607, %v6736
    %v6738 = vand.u32 %v6737, 4294901760
    %6739 = vmatprep.subr.mxu0 %v6738
    %v6740 = vand.u32 %v5606, 4294901760
    %v6741 = vsub.f32 %v5606, %v6740
    %v6742 = vand.u32 %v6741, 4294901760
    %6743 = vmatpush1.msra.mxu0 %v6742
    %v6744 = vand.u32 %v5609, 4294901760
    %v6745 = vsub.f32 %v5609, %v6744
    %v6746 = vand.u32 %v6745, 4294901760
    %6747 = vmatprep.subr.mxu0 %v6746
    %v6748 = vand.u32 %v5608, 4294901760
    %v6749 = vsub.f32 %v5608, %v6748
    %v6750 = vand.u32 %v6749, 4294901760
    %6751 = vmatpush1.msra.mxu0 %v6750
    %v6752 = vand.u32 %v5611, 4294901760
    %v6753 = vsub.f32 %v5611, %v6752
    %v6754 = vand.u32 %v6753, 4294901760
    %6755 = vmatprep.subr.mxu0 %v6754
    %v6756 = vand.u32 %v5610, 4294901760
    %v6757 = vsub.f32 %v5610, %v6756
    %v6758 = vand.u32 %v6757, 4294901760
    %6759 = vmatpush1.msra.mxu0 %v6758
    %v6760 = vand.u32 %v5613, 4294901760
    %v6761 = vsub.f32 %v5613, %v6760
    %v6762 = vand.u32 %v6761, 4294901760
    %6763 = vmatprep.subr.mxu0 %v6762
    %v6764 = vand.u32 %v5612, 4294901760
    %v6765 = vsub.f32 %v5612, %v6764
    %v6766 = vand.u32 %v6765, 4294901760
    %6767 = vmatpush1.msra.mxu0 %v6766
    %v6768 = vand.u32 %v5615, 4294901760
    %v6769 = vsub.f32 %v5615, %v6768
    %v6770 = vand.u32 %v6769, 4294901760
    %6771 = vmatprep.subr.mxu0 %v6770
    %v6772 = vand.u32 %v5614, 4294901760
    %v6773 = vsub.f32 %v5614, %v6772
    %v6774 = vand.u32 %v6773, 4294901760
    %6775 = vmatpush1.msra.mxu0 %v6774
    %v6776 = vand.u32 %v5617, 4294901760
    %v6777 = vsub.f32 %v5617, %v6776
    %v6778 = vand.u32 %v6777, 4294901760
    %6779 = vmatprep.subr.mxu0 %v6778
    %v6780 = vand.u32 %v5616, 4294901760
    %v6781 = vsub.f32 %v5616, %v6780
    %v6782 = vand.u32 %v6781, 4294901760
    %6783 = vmatpush1.msra.mxu0 %v6782
    %v6784 = vand.u32 %v5619, 4294901760
    %v6785 = vsub.f32 %v5619, %v6784
    %v6786 = vand.u32 %v6785, 4294901760
    %6787 = vmatprep.subr.mxu0 %v6786
    %v6788 = vand.u32 %v5618, 4294901760
    %v6789 = vsub.f32 %v5618, %v6788
    %v6790 = vand.u32 %v6789, 4294901760
    %6791 = vmatpush1.msra.mxu0 %v6790
    %v6792 = vand.u32 %v5621, 4294901760
    %v6793 = vsub.f32 %v5621, %v6792
    %v6794 = vand.u32 %v6793, 4294901760
    %6795 = vmatprep.subr.mxu0 %v6794
    %v6796 = vand.u32 %v5620, 4294901760
    %v6797 = vsub.f32 %v5620, %v6796
    %v6798 = vand.u32 %v6797, 4294901760
    %6799 = vmatpush1.msra.mxu0 %v6798
    %v6800 = vand.u32 %v5623, 4294901760
    %v6801 = vsub.f32 %v5623, %v6800
    %v6802 = vand.u32 %v6801, 4294901760
    %6803 = vmatprep.subr.mxu0 %v6802
    %v6804 = vand.u32 %v5622, 4294901760
    %v6805 = vsub.f32 %v5622, %v6804
    %v6806 = vand.u32 %v6805, 4294901760
    %6807 = vmatpush1.msra.mxu0 %v6806
    %v6808 = vand.u32 %v5625, 4294901760
    %v6809 = vsub.f32 %v5625, %v6808
    %v6810 = vand.u32 %v6809, 4294901760
    %6811 = vmatprep.subr.mxu0 %v6810
    %v6812 = vand.u32 %v5624, 4294901760
    %v6813 = vsub.f32 %v5624, %v6812
    %v6814 = vand.u32 %v6813, 4294901760
    %6815 = vmatpush1.msra.mxu0 %v6814
    %v6816 = vand.u32 %v5627, 4294901760
    %v6817 = vsub.f32 %v5627, %v6816
    %v6818 = vand.u32 %v6817, 4294901760
    %6819 = vmatprep.subr.mxu0 %v6818
    %v6820 = vand.u32 %v5626, 4294901760
    %v6821 = vsub.f32 %v5626, %v6820
    %v6822 = vand.u32 %v6821, 4294901760
    %6823 = vmatpush1.msra.mxu0 %v6822
    %v6824 = vand.u32 %v5629, 4294901760
    %v6825 = vsub.f32 %v5629, %v6824
    %v6826 = vand.u32 %v6825, 4294901760
    %6827 = vmatprep.subr.mxu0 %v6826
    %v6828 = vand.u32 %v5628, 4294901760
    %v6829 = vsub.f32 %v5628, %v6828
    %v6830 = vand.u32 %v6829, 4294901760
    %6831 = vmatpush1.msra.mxu0 %v6830
    %v6832 = vand.u32 %v5631, 4294901760
    %v6833 = vsub.f32 %v5631, %v6832
    %v6834 = vand.u32 %v6833, 4294901760
    %6835 = vmatprep.subr.mxu0 %v6834
    %v6836 = vand.u32 %v5630, 4294901760
    %v6837 = vsub.f32 %v5630, %v6836
    %v6838 = vand.u32 %v6837, 4294901760
    %6839 = vmatpush1.msra.mxu0 %v6838
    %v6840 = vand.u32 %v5633, 4294901760
    %v6841 = vsub.f32 %v5633, %v6840
    %v6842 = vand.u32 %v6841, 4294901760
    %6843 = vmatprep.subr.mxu0 %v6842
    %v6844 = vand.u32 %v5632, 4294901760
    %v6845 = vsub.f32 %v5632, %v6844
    %v6846 = vand.u32 %v6845, 4294901760
    %6847 = vmatpush1.msra.mxu0 %v6846
    %v6848 = vand.u32 %v5567, 4294901760
    %6849 = vmatprep.mubr.f32.mxu0 %v6848
    %v6850 = vand.u32 %v5566, 4294901760
    %6851 = vmatmul.mubr.f32.gmra.mrb[0].mxu0 %v6850
    %v6852 = vpop.f32.mrb[0].mxu0
    %v6853 = vadd.f32 %v6588, %v6852
    %v6854 = vpop.f32.mrb[0].mxu0
    %v6855 = vadd.f32 %v6590, %v6854
    %6856 = vdwg.mxu0
    %v6857 = vand.u32 %v5571, 4294901760
    %6858 = vmatprep.subr.mxu0 %v6857
    %v6859 = vand.u32 %v5570, 4294901760
    %6860 = vmatpush1.msra.mxu0 %v6859
    %v6861 = vand.u32 %v5573, 4294901760
    %6862 = vmatprep.subr.mxu0 %v6861
    %v6863 = vand.u32 %v5572, 4294901760
    %6864 = vmatpush1.msra.mxu0 %v6863
    %v6865 = vand.u32 %v5575, 4294901760
    %6866 = vmatprep.subr.mxu0 %v6865
    %v6867 = vand.u32 %v5574, 4294901760
    %6868 = vmatpush1.msra.mxu0 %v6867
    %v6869 = vand.u32 %v5577, 4294901760
    %6870 = vmatprep.subr.mxu0 %v6869
    %v6871 = vand.u32 %v5576, 4294901760
    %6872 = vmatpush1.msra.mxu0 %v6871
    %v6873 = vand.u32 %v5579, 4294901760
    %6874 = vmatprep.subr.mxu0 %v6873
    %v6875 = vand.u32 %v5578, 4294901760
    %6876 = vmatpush1.msra.mxu0 %v6875
    %v6877 = vand.u32 %v5581, 4294901760
    %6878 = vmatprep.subr.mxu0 %v6877
    %v6879 = vand.u32 %v5580, 4294901760
    %6880 = vmatpush1.msra.mxu0 %v6879
    %v6881 = vand.u32 %v5583, 4294901760
    %6882 = vmatprep.subr.mxu0 %v6881
    %v6883 = vand.u32 %v5582, 4294901760
    %6884 = vmatpush1.msra.mxu0 %v6883
    %v6885 = vand.u32 %v5585, 4294901760
    %6886 = vmatprep.subr.mxu0 %v6885
    %v6887 = vand.u32 %v5584, 4294901760
    %6888 = vmatpush1.msra.mxu0 %v6887
    %v6889 = vand.u32 %v5587, 4294901760
    %6890 = vmatprep.subr.mxu0 %v6889
    %v6891 = vand.u32 %v5586, 4294901760
    %6892 = vmatpush1.msra.mxu0 %v6891
    %v6893 = vand.u32 %v5589, 4294901760
    %6894 = vmatprep.subr.mxu0 %v6893
    %v6895 = vand.u32 %v5588, 4294901760
    %6896 = vmatpush1.msra.mxu0 %v6895
    %v6897 = vand.u32 %v5591, 4294901760
    %6898 = vmatprep.subr.mxu0 %v6897
    %v6899 = vand.u32 %v5590, 4294901760
    %6900 = vmatpush1.msra.mxu0 %v6899
    %v6901 = vand.u32 %v5593, 4294901760
    %6902 = vmatprep.subr.mxu0 %v6901
    %v6903 = vand.u32 %v5592, 4294901760
    %6904 = vmatpush1.msra.mxu0 %v6903
    %v6905 = vand.u32 %v5595, 4294901760
    %6906 = vmatprep.subr.mxu0 %v6905
    %v6907 = vand.u32 %v5594, 4294901760
    %6908 = vmatpush1.msra.mxu0 %v6907
    %v6909 = vand.u32 %v5597, 4294901760
    %6910 = vmatprep.subr.mxu0 %v6909
    %v6911 = vand.u32 %v5596, 4294901760
    %6912 = vmatpush1.msra.mxu0 %v6911
    %v6913 = vand.u32 %v5599, 4294901760
    %6914 = vmatprep.subr.mxu0 %v6913
    %v6915 = vand.u32 %v5598, 4294901760
    %6916 = vmatpush1.msra.mxu0 %v6915
    %v6917 = vand.u32 %v5601, 4294901760
    %6918 = vmatprep.subr.mxu0 %v6917
    %v6919 = vand.u32 %v5600, 4294901760
    %6920 = vmatpush1.msra.mxu0 %v6919
    %v6921 = vand.u32 %v5603, 4294901760
    %6922 = vmatprep.subr.mxu0 %v6921
    %v6923 = vand.u32 %v5602, 4294901760
    %6924 = vmatpush1.msra.mxu0 %v6923
    %v6925 = vand.u32 %v5605, 4294901760
    %6926 = vmatprep.subr.mxu0 %v6925
    %v6927 = vand.u32 %v5604, 4294901760
    %6928 = vmatpush1.msra.mxu0 %v6927
    %v6929 = vand.u32 %v5607, 4294901760
    %6930 = vmatprep.subr.mxu0 %v6929
    %v6931 = vand.u32 %v5606, 4294901760
    %6932 = vmatpush1.msra.mxu0 %v6931
    %v6933 = vand.u32 %v5609, 4294901760
    %6934 = vmatprep.subr.mxu0 %v6933
    %v6935 = vand.u32 %v5608, 4294901760
    %6936 = vmatpush1.msra.mxu0 %v6935
    %v6937 = vand.u32 %v5611, 4294901760
    %6938 = vmatprep.subr.mxu0 %v6937
    %v6939 = vand.u32 %v5610, 4294901760
    %6940 = vmatpush1.msra.mxu0 %v6939
    %v6941 = vand.u32 %v5613, 4294901760
    %6942 = vmatprep.subr.mxu0 %v6941
    %v6943 = vand.u32 %v5612, 4294901760
    %6944 = vmatpush1.msra.mxu0 %v6943
    %v6945 = vand.u32 %v5615, 4294901760
    %6946 = vmatprep.subr.mxu0 %v6945
    %v6947 = vand.u32 %v5614, 4294901760
    %6948 = vmatpush1.msra.mxu0 %v6947
    %v6949 = vand.u32 %v5617, 4294901760
    %6950 = vmatprep.subr.mxu0 %v6949
    %v6951 = vand.u32 %v5616, 4294901760
    %6952 = vmatpush1.msra.mxu0 %v6951
    %v6953 = vand.u32 %v5619, 4294901760
    %6954 = vmatprep.subr.mxu0 %v6953
    %v6955 = vand.u32 %v5618, 4294901760
    %6956 = vmatpush1.msra.mxu0 %v6955
    %v6957 = vand.u32 %v5621, 4294901760
    %6958 = vmatprep.subr.mxu0 %v6957
    %v6959 = vand.u32 %v5620, 4294901760
    %6960 = vmatpush1.msra.mxu0 %v6959
    %v6961 = vand.u32 %v5623, 4294901760
    %6962 = vmatprep.subr.mxu0 %v6961
    %v6963 = vand.u32 %v5622, 4294901760
    %6964 = vmatpush1.msra.mxu0 %v6963
    %v6965 = vand.u32 %v5625, 4294901760
    %6966 = vmatprep.subr.mxu0 %v6965
    %v6967 = vand.u32 %v5624, 4294901760
    %6968 = vmatpush1.msra.mxu0 %v6967
    %v6969 = vand.u32 %v5627, 4294901760
    %6970 = vmatprep.subr.mxu0 %v6969
    %v6971 = vand.u32 %v5626, 4294901760
    %6972 = vmatpush1.msra.mxu0 %v6971
    %v6973 = vand.u32 %v5629, 4294901760
    %6974 = vmatprep.subr.mxu0 %v6973
    %v6975 = vand.u32 %v5628, 4294901760
    %6976 = vmatpush1.msra.mxu0 %v6975
    %v6977 = vand.u32 %v5631, 4294901760
    %6978 = vmatprep.subr.mxu0 %v6977
    %v6979 = vand.u32 %v5630, 4294901760
    %6980 = vmatpush1.msra.mxu0 %v6979
    %v6981 = vand.u32 %v5633, 4294901760
    %6982 = vmatprep.subr.mxu0 %v6981
    %v6983 = vand.u32 %v5632, 4294901760
    %6984 = vmatpush1.msra.mxu0 %v6983
    %v6985 = vand.u32 %v5567, 4294901760
    %6986 = vmatprep.mubr.f32.mxu0 %v6985
    %v6987 = vand.u32 %v5566, 4294901760
    %6988 = vmatmul.mubr.f32.gmra.mrb[0].mxu0 %v6987
    %v6989 = vpop.f32.mrb[0].mxu0
    %v6990 = vadd.f32 %v6853, %v6989
    %v6991 = vpop.f32.mrb[0].mxu0
    %v6992 = vadd.f32 %v6855, %v6991
    %6993 = vdwg.mxu0
    %v6994 = vand.u32 %v5635, 4294901760
    %6995 = vmatprep.subr.mxu0 %v6994
    %v6996 = vand.u32 %v5634, 4294901760
    %6997 = vmatpush1.msra.mxu0 %v6996
    %v6998 = vand.u32 %v5637, 4294901760
    %6999 = vmatprep.subr.mxu0 %v6998
    %v7000 = vand.u32 %v5636, 4294901760
    %7001 = vmatpush1.msra.mxu0 %v7000
    %v7002 = vand.u32 %v5639, 4294901760
    %7003 = vmatprep.subr.mxu0 %v7002
    %v7004 = vand.u32 %v5638, 4294901760
    %7005 = vmatpush1.msra.mxu0 %v7004
    %v7006 = vand.u32 %v5641, 4294901760
    %7007 = vmatprep.subr.mxu0 %v7006
    %v7008 = vand.u32 %v5640, 4294901760
    %7009 = vmatpush1.msra.mxu0 %v7008
    %v7010 = vand.u32 %v5643, 4294901760
    %7011 = vmatprep.subr.mxu0 %v7010
    %v7012 = vand.u32 %v5642, 4294901760
    %7013 = vmatpush1.msra.mxu0 %v7012
    %v7014 = vand.u32 %v5645, 4294901760
    %7015 = vmatprep.subr.mxu0 %v7014
    %v7016 = vand.u32 %v5644, 4294901760
    %7017 = vmatpush1.msra.mxu0 %v7016
    %v7018 = vand.u32 %v5647, 4294901760
    %7019 = vmatprep.subr.mxu0 %v7018
    %v7020 = vand.u32 %v5646, 4294901760
    %7021 = vmatpush1.msra.mxu0 %v7020
    %v7022 = vand.u32 %v5649, 4294901760
    %7023 = vmatprep.subr.mxu0 %v7022
    %v7024 = vand.u32 %v5648, 4294901760
    %7025 = vmatpush1.msra.mxu0 %v7024
    %v7026 = vand.u32 %v5651, 4294901760
    %7027 = vmatprep.subr.mxu0 %v7026
    %v7028 = vand.u32 %v5650, 4294901760
    %7029 = vmatpush1.msra.mxu0 %v7028
    %v7030 = vand.u32 %v5653, 4294901760
    %7031 = vmatprep.subr.mxu0 %v7030
    %v7032 = vand.u32 %v5652, 4294901760
    %7033 = vmatpush1.msra.mxu0 %v7032
    %v7034 = vand.u32 %v5655, 4294901760
    %7035 = vmatprep.subr.mxu0 %v7034
    %v7036 = vand.u32 %v5654, 4294901760
    %7037 = vmatpush1.msra.mxu0 %v7036
    %v7038 = vand.u32 %v5657, 4294901760
    %7039 = vmatprep.subr.mxu0 %v7038
    %v7040 = vand.u32 %v5656, 4294901760
    %7041 = vmatpush1.msra.mxu0 %v7040
    %v7042 = vand.u32 %v5659, 4294901760
    %7043 = vmatprep.subr.mxu0 %v7042
    %v7044 = vand.u32 %v5658, 4294901760
    %7045 = vmatpush1.msra.mxu0 %v7044
    %v7046 = vand.u32 %v5661, 4294901760
    %7047 = vmatprep.subr.mxu0 %v7046
    %v7048 = vand.u32 %v5660, 4294901760
    %7049 = vmatpush1.msra.mxu0 %v7048
    %v7050 = vand.u32 %v5663, 4294901760
    %7051 = vmatprep.subr.mxu0 %v7050
    %v7052 = vand.u32 %v5662, 4294901760
    %7053 = vmatpush1.msra.mxu0 %v7052
    %v7054 = vand.u32 %v5665, 4294901760
    %7055 = vmatprep.subr.mxu0 %v7054
    %v7056 = vand.u32 %v5664, 4294901760
    %7057 = vmatpush1.msra.mxu0 %v7056
    %v7058 = vand.u32 %v5667, 4294901760
    %7059 = vmatprep.subr.mxu0 %v7058
    %v7060 = vand.u32 %v5666, 4294901760
    %7061 = vmatpush1.msra.mxu0 %v7060
    %v7062 = vand.u32 %v5669, 4294901760
    %7063 = vmatprep.subr.mxu0 %v7062
    %v7064 = vand.u32 %v5668, 4294901760
    %7065 = vmatpush1.msra.mxu0 %v7064
    %v7066 = vand.u32 %v5671, 4294901760
    %7067 = vmatprep.subr.mxu0 %v7066
    %v7068 = vand.u32 %v5670, 4294901760
    %7069 = vmatpush1.msra.mxu0 %v7068
    %v7070 = vand.u32 %v5673, 4294901760
    %7071 = vmatprep.subr.mxu0 %v7070
    %v7072 = vand.u32 %v5672, 4294901760
    %7073 = vmatpush1.msra.mxu0 %v7072
    %v7074 = vand.u32 %v5675, 4294901760
    %7075 = vmatprep.subr.mxu0 %v7074
    %v7076 = vand.u32 %v5674, 4294901760
    %7077 = vmatpush1.msra.mxu0 %v7076
    %v7078 = vand.u32 %v5677, 4294901760
    %7079 = vmatprep.subr.mxu0 %v7078
    %v7080 = vand.u32 %v5676, 4294901760
    %7081 = vmatpush1.msra.mxu0 %v7080
    %v7082 = vand.u32 %v5679, 4294901760
    %7083 = vmatprep.subr.mxu0 %v7082
    %v7084 = vand.u32 %v5678, 4294901760
    %7085 = vmatpush1.msra.mxu0 %v7084
    %v7086 = vand.u32 %v5681, 4294901760
    %7087 = vmatprep.subr.mxu0 %v7086
    %v7088 = vand.u32 %v5680, 4294901760
    %7089 = vmatpush1.msra.mxu0 %v7088
    %v7090 = vand.u32 %v5683, 4294901760
    %7091 = vmatprep.subr.mxu0 %v7090
    %v7092 = vand.u32 %v5682, 4294901760
    %7093 = vmatpush1.msra.mxu0 %v7092
    %v7094 = vand.u32 %v5685, 4294901760
    %7095 = vmatprep.subr.mxu0 %v7094
    %v7096 = vand.u32 %v5684, 4294901760
    %7097 = vmatpush1.msra.mxu0 %v7096
    %v7098 = vand.u32 %v5687, 4294901760
    %7099 = vmatprep.subr.mxu0 %v7098
    %v7100 = vand.u32 %v5686, 4294901760
    %7101 = vmatpush1.msra.mxu0 %v7100
    %v7102 = vand.u32 %v5689, 4294901760
    %7103 = vmatprep.subr.mxu0 %v7102
    %v7104 = vand.u32 %v5688, 4294901760
    %7105 = vmatpush1.msra.mxu0 %v7104
    %v7106 = vand.u32 %v5691, 4294901760
    %7107 = vmatprep.subr.mxu0 %v7106
    %v7108 = vand.u32 %v5690, 4294901760
    %7109 = vmatpush1.msra.mxu0 %v7108
    %v7110 = vand.u32 %v5693, 4294901760
    %7111 = vmatprep.subr.mxu0 %v7110
    %v7112 = vand.u32 %v5692, 4294901760
    %7113 = vmatpush1.msra.mxu0 %v7112
    %v7114 = vand.u32 %v5695, 4294901760
    %7115 = vmatprep.subr.mxu0 %v7114
    %v7116 = vand.u32 %v5694, 4294901760
    %7117 = vmatpush1.msra.mxu0 %v7116
    %v7118 = vand.u32 %v5697, 4294901760
    %7119 = vmatprep.subr.mxu0 %v7118
    %v7120 = vand.u32 %v5696, 4294901760
    %7121 = vmatpush1.msra.mxu0 %v7120
    %v7122 = vand.u32 %v5569, 4294901760
    %v7123 = vsub.f32 %v5569, %v7122
    %v7124 = vand.u32 %v7123, 4294901760
    %v7125 = vsub.f32 %v7123, %v7124
    %v7126 = vand.u32 %v7125, 4294901760
    %7127 = vmatprep.mubr.f32.mxu0 %v7126
    %v7128 = vand.u32 %v5568, 4294901760
    %v7129 = vsub.f32 %v5568, %v7128
    %v7130 = vand.u32 %v7129, 4294901760
    %v7131 = vsub.f32 %v7129, %v7130
    %v7132 = vand.u32 %v7131, 4294901760
    %7133 = vmatmul.mubr.f32.gmra.mrb[0].mxu0 %v7132
    %v7134 = vpop.f32.mrb[0].mxu0
    %v7135 = vadd.f32 %v6990, %v7134
    %v7136 = vpop.f32.mrb[0].mxu0
    %v7137 = vadd.f32 %v6992, %v7136
    %7138 = vdwg.mxu0
    %v7139 = vand.u32 %v5635, 4294901760
    %v7140 = vsub.f32 %v5635, %v7139
    %v7141 = vand.u32 %v7140, 4294901760
    %v7142 = vsub.f32 %v7140, %v7141
    %v7143 = vand.u32 %v7142, 4294901760
    %7144 = vmatprep.subr.mxu0 %v7143
    %v7145 = vand.u32 %v5634, 4294901760
    %v7146 = vsub.f32 %v5634, %v7145
    %v7147 = vand.u32 %v7146, 4294901760
    %v7148 = vsub.f32 %v7146, %v7147
    %v7149 = vand.u32 %v7148, 4294901760
    %7150 = vmatpush1.msra.mxu0 %v7149
    %v7151 = vand.u32 %v5637, 4294901760
    %v7152 = vsub.f32 %v5637, %v7151
    %v7153 = vand.u32 %v7152, 4294901760
    %v7154 = vsub.f32 %v7152, %v7153
    %v7155 = vand.u32 %v7154, 4294901760
    %7156 = vmatprep.subr.mxu0 %v7155
    %v7157 = vand.u32 %v5636, 4294901760
    %v7158 = vsub.f32 %v5636, %v7157
    %v7159 = vand.u32 %v7158, 4294901760
    %v7160 = vsub.f32 %v7158, %v7159
    %v7161 = vand.u32 %v7160, 4294901760
    %7162 = vmatpush1.msra.mxu0 %v7161
    %v7163 = vand.u32 %v5639, 4294901760
    %v7164 = vsub.f32 %v5639, %v7163
    %v7165 = vand.u32 %v7164, 4294901760
    %v7166 = vsub.f32 %v7164, %v7165
    %v7167 = vand.u32 %v7166, 4294901760
    %7168 = vmatprep.subr.mxu0 %v7167
    %v7169 = vand.u32 %v5638, 4294901760
    %v7170 = vsub.f32 %v5638, %v7169
    %v7171 = vand.u32 %v7170, 4294901760
    %v7172 = vsub.f32 %v7170, %v7171
    %v7173 = vand.u32 %v7172, 4294901760
    %7174 = vmatpush1.msra.mxu0 %v7173
    %v7175 = vand.u32 %v5641, 4294901760
    %v7176 = vsub.f32 %v5641, %v7175
    %v7177 = vand.u32 %v7176, 4294901760
    %v7178 = vsub.f32 %v7176, %v7177
    %v7179 = vand.u32 %v7178, 4294901760
    %7180 = vmatprep.subr.mxu0 %v7179
    %v7181 = vand.u32 %v5640, 4294901760
    %v7182 = vsub.f32 %v5640, %v7181
    %v7183 = vand.u32 %v7182, 4294901760
    %v7184 = vsub.f32 %v7182, %v7183
    %v7185 = vand.u32 %v7184, 4294901760
    %7186 = vmatpush1.msra.mxu0 %v7185
    %v7187 = vand.u32 %v5643, 4294901760
    %v7188 = vsub.f32 %v5643, %v7187
    %v7189 = vand.u32 %v7188, 4294901760
    %v7190 = vsub.f32 %v7188, %v7189
    %v7191 = vand.u32 %v7190, 4294901760
    %7192 = vmatprep.subr.mxu0 %v7191
    %v7193 = vand.u32 %v5642, 4294901760
    %v7194 = vsub.f32 %v5642, %v7193
    %v7195 = vand.u32 %v7194, 4294901760
    %v7196 = vsub.f32 %v7194, %v7195
    %v7197 = vand.u32 %v7196, 4294901760
    %7198 = vmatpush1.msra.mxu0 %v7197
    %v7199 = vand.u32 %v5645, 4294901760
    %v7200 = vsub.f32 %v5645, %v7199
    %v7201 = vand.u32 %v7200, 4294901760
    %v7202 = vsub.f32 %v7200, %v7201
    %v7203 = vand.u32 %v7202, 4294901760
    %7204 = vmatprep.subr.mxu0 %v7203
    %v7205 = vand.u32 %v5644, 4294901760
    %v7206 = vsub.f32 %v5644, %v7205
    %v7207 = vand.u32 %v7206, 4294901760
    %v7208 = vsub.f32 %v7206, %v7207
    %v7209 = vand.u32 %v7208, 4294901760
    %7210 = vmatpush1.msra.mxu0 %v7209
    %v7211 = vand.u32 %v5647, 4294901760
    %v7212 = vsub.f32 %v5647, %v7211
    %v7213 = vand.u32 %v7212, 4294901760
    %v7214 = vsub.f32 %v7212, %v7213
    %v7215 = vand.u32 %v7214, 4294901760
    %7216 = vmatprep.subr.mxu0 %v7215
    %v7217 = vand.u32 %v5646, 4294901760
    %v7218 = vsub.f32 %v5646, %v7217
    %v7219 = vand.u32 %v7218, 4294901760
    %v7220 = vsub.f32 %v7218, %v7219
    %v7221 = vand.u32 %v7220, 4294901760
    %7222 = vmatpush1.msra.mxu0 %v7221
    %v7223 = vand.u32 %v5649, 4294901760
    %v7224 = vsub.f32 %v5649, %v7223
    %v7225 = vand.u32 %v7224, 4294901760
    %v7226 = vsub.f32 %v7224, %v7225
    %v7227 = vand.u32 %v7226, 4294901760
    %7228 = vmatprep.subr.mxu0 %v7227
    %v7229 = vand.u32 %v5648, 4294901760
    %v7230 = vsub.f32 %v5648, %v7229
    %v7231 = vand.u32 %v7230, 4294901760
    %v7232 = vsub.f32 %v7230, %v7231
    %v7233 = vand.u32 %v7232, 4294901760
    %7234 = vmatpush1.msra.mxu0 %v7233
    %v7235 = vand.u32 %v5651, 4294901760
    %v7236 = vsub.f32 %v5651, %v7235
    %v7237 = vand.u32 %v7236, 4294901760
    %v7238 = vsub.f32 %v7236, %v7237
    %v7239 = vand.u32 %v7238, 4294901760
    %7240 = vmatprep.subr.mxu0 %v7239
    %v7241 = vand.u32 %v5650, 4294901760
    %v7242 = vsub.f32 %v5650, %v7241
    %v7243 = vand.u32 %v7242, 4294901760
    %v7244 = vsub.f32 %v7242, %v7243
    %v7245 = vand.u32 %v7244, 4294901760
    %7246 = vmatpush1.msra.mxu0 %v7245
    %v7247 = vand.u32 %v5653, 4294901760
    %v7248 = vsub.f32 %v5653, %v7247
    %v7249 = vand.u32 %v7248, 4294901760
    %v7250 = vsub.f32 %v7248, %v7249
    %v7251 = vand.u32 %v7250, 4294901760
    %7252 = vmatprep.subr.mxu0 %v7251
    %v7253 = vand.u32 %v5652, 4294901760
    %v7254 = vsub.f32 %v5652, %v7253
    %v7255 = vand.u32 %v7254, 4294901760
    %v7256 = vsub.f32 %v7254, %v7255
    %v7257 = vand.u32 %v7256, 4294901760
    %7258 = vmatpush1.msra.mxu0 %v7257
    %v7259 = vand.u32 %v5655, 4294901760
    %v7260 = vsub.f32 %v5655, %v7259
    %v7261 = vand.u32 %v7260, 4294901760
    %v7262 = vsub.f32 %v7260, %v7261
    %v7263 = vand.u32 %v7262, 4294901760
    %7264 = vmatprep.subr.mxu0 %v7263
    %v7265 = vand.u32 %v5654, 4294901760
    %v7266 = vsub.f32 %v5654, %v7265
    %v7267 = vand.u32 %v7266, 4294901760
    %v7268 = vsub.f32 %v7266, %v7267
    %v7269 = vand.u32 %v7268, 4294901760
    %7270 = vmatpush1.msra.mxu0 %v7269
    %v7271 = vand.u32 %v5657, 4294901760
    %v7272 = vsub.f32 %v5657, %v7271
    %v7273 = vand.u32 %v7272, 4294901760
    %v7274 = vsub.f32 %v7272, %v7273
    %v7275 = vand.u32 %v7274, 4294901760
    %7276 = vmatprep.subr.mxu0 %v7275
    %v7277 = vand.u32 %v5656, 4294901760
    %v7278 = vsub.f32 %v5656, %v7277
    %v7279 = vand.u32 %v7278, 4294901760
    %v7280 = vsub.f32 %v7278, %v7279
    %v7281 = vand.u32 %v7280, 4294901760
    %7282 = vmatpush1.msra.mxu0 %v7281
    %v7283 = vand.u32 %v5659, 4294901760
    %v7284 = vsub.f32 %v5659, %v7283
    %v7285 = vand.u32 %v7284, 4294901760
    %v7286 = vsub.f32 %v7284, %v7285
    %v7287 = vand.u32 %v7286, 4294901760
    %7288 = vmatprep.subr.mxu0 %v7287
    %v7289 = vand.u32 %v5658, 4294901760
    %v7290 = vsub.f32 %v5658, %v7289
    %v7291 = vand.u32 %v7290, 4294901760
    %v7292 = vsub.f32 %v7290, %v7291
    %v7293 = vand.u32 %v7292, 4294901760
    %7294 = vmatpush1.msra.mxu0 %v7293
    %v7295 = vand.u32 %v5661, 4294901760
    %v7296 = vsub.f32 %v5661, %v7295
    %v7297 = vand.u32 %v7296, 4294901760
    %v7298 = vsub.f32 %v7296, %v7297
    %v7299 = vand.u32 %v7298, 4294901760
    %7300 = vmatprep.subr.mxu0 %v7299
    %v7301 = vand.u32 %v5660, 4294901760
    %v7302 = vsub.f32 %v5660, %v7301
    %v7303 = vand.u32 %v7302, 4294901760
    %v7304 = vsub.f32 %v7302, %v7303
    %v7305 = vand.u32 %v7304, 4294901760
    %7306 = vmatpush1.msra.mxu0 %v7305
    %v7307 = vand.u32 %v5663, 4294901760
    %v7308 = vsub.f32 %v5663, %v7307
    %v7309 = vand.u32 %v7308, 4294901760
    %v7310 = vsub.f32 %v7308, %v7309
    %v7311 = vand.u32 %v7310, 4294901760
    %7312 = vmatprep.subr.mxu0 %v7311
    %v7313 = vand.u32 %v5662, 4294901760
    %v7314 = vsub.f32 %v5662, %v7313
    %v7315 = vand.u32 %v7314, 4294901760
    %v7316 = vsub.f32 %v7314, %v7315
    %v7317 = vand.u32 %v7316, 4294901760
    %7318 = vmatpush1.msra.mxu0 %v7317
    %v7319 = vand.u32 %v5665, 4294901760
    %v7320 = vsub.f32 %v5665, %v7319
    %v7321 = vand.u32 %v7320, 4294901760
    %v7322 = vsub.f32 %v7320, %v7321
    %v7323 = vand.u32 %v7322, 4294901760
    %7324 = vmatprep.subr.mxu0 %v7323
    %v7325 = vand.u32 %v5664, 4294901760
    %v7326 = vsub.f32 %v5664, %v7325
    %v7327 = vand.u32 %v7326, 4294901760
    %v7328 = vsub.f32 %v7326, %v7327
    %v7329 = vand.u32 %v7328, 4294901760
    %7330 = vmatpush1.msra.mxu0 %v7329
    %v7331 = vand.u32 %v5667, 4294901760
    %v7332 = vsub.f32 %v5667, %v7331
    %v7333 = vand.u32 %v7332, 4294901760
    %v7334 = vsub.f32 %v7332, %v7333
    %v7335 = vand.u32 %v7334, 4294901760
    %7336 = vmatprep.subr.mxu0 %v7335
    %v7337 = vand.u32 %v5666, 4294901760
    %v7338 = vsub.f32 %v5666, %v7337
    %v7339 = vand.u32 %v7338, 4294901760
    %v7340 = vsub.f32 %v7338, %v7339
    %v7341 = vand.u32 %v7340, 4294901760
    %7342 = vmatpush1.msra.mxu0 %v7341
    %v7343 = vand.u32 %v5669, 4294901760
    %v7344 = vsub.f32 %v5669, %v7343
    %v7345 = vand.u32 %v7344, 4294901760
    %v7346 = vsub.f32 %v7344, %v7345
    %v7347 = vand.u32 %v7346, 4294901760
    %7348 = vmatprep.subr.mxu0 %v7347
    %v7349 = vand.u32 %v5668, 4294901760
    %v7350 = vsub.f32 %v5668, %v7349
    %v7351 = vand.u32 %v7350, 4294901760
    %v7352 = vsub.f32 %v7350, %v7351
    %v7353 = vand.u32 %v7352, 4294901760
    %7354 = vmatpush1.msra.mxu0 %v7353
    %v7355 = vand.u32 %v5671, 4294901760
    %v7356 = vsub.f32 %v5671, %v7355
    %v7357 = vand.u32 %v7356, 4294901760
    %v7358 = vsub.f32 %v7356, %v7357
    %v7359 = vand.u32 %v7358, 4294901760
    %7360 = vmatprep.subr.mxu0 %v7359
    %v7361 = vand.u32 %v5670, 4294901760
    %v7362 = vsub.f32 %v5670, %v7361
    %v7363 = vand.u32 %v7362, 4294901760
    %v7364 = vsub.f32 %v7362, %v7363
    %v7365 = vand.u32 %v7364, 4294901760
    %7366 = vmatpush1.msra.mxu0 %v7365
    %v7367 = vand.u32 %v5673, 4294901760
    %v7368 = vsub.f32 %v5673, %v7367
    %v7369 = vand.u32 %v7368, 4294901760
    %v7370 = vsub.f32 %v7368, %v7369
    %v7371 = vand.u32 %v7370, 4294901760
    %7372 = vmatprep.subr.mxu0 %v7371
    %v7373 = vand.u32 %v5672, 4294901760
    %v7374 = vsub.f32 %v5672, %v7373
    %v7375 = vand.u32 %v7374, 4294901760
    %v7376 = vsub.f32 %v7374, %v7375
    %v7377 = vand.u32 %v7376, 4294901760
    %7378 = vmatpush1.msra.mxu0 %v7377
    %v7379 = vand.u32 %v5675, 4294901760
    %v7380 = vsub.f32 %v5675, %v7379
    %v7381 = vand.u32 %v7380, 4294901760
    %v7382 = vsub.f32 %v7380, %v7381
    %v7383 = vand.u32 %v7382, 4294901760
    %7384 = vmatprep.subr.mxu0 %v7383
    %v7385 = vand.u32 %v5674, 4294901760
    %v7386 = vsub.f32 %v5674, %v7385
    %v7387 = vand.u32 %v7386, 4294901760
    %v7388 = vsub.f32 %v7386, %v7387
    %v7389 = vand.u32 %v7388, 4294901760
    %7390 = vmatpush1.msra.mxu0 %v7389
    %v7391 = vand.u32 %v5677, 4294901760
    %v7392 = vsub.f32 %v5677, %v7391
    %v7393 = vand.u32 %v7392, 4294901760
    %v7394 = vsub.f32 %v7392, %v7393
    %v7395 = vand.u32 %v7394, 4294901760
    %7396 = vmatprep.subr.mxu0 %v7395
    %v7397 = vand.u32 %v5676, 4294901760
    %v7398 = vsub.f32 %v5676, %v7397
    %v7399 = vand.u32 %v7398, 4294901760
    %v7400 = vsub.f32 %v7398, %v7399
    %v7401 = vand.u32 %v7400, 4294901760
    %7402 = vmatpush1.msra.mxu0 %v7401
    %v7403 = vand.u32 %v5679, 4294901760
    %v7404 = vsub.f32 %v5679, %v7403
    %v7405 = vand.u32 %v7404, 4294901760
    %v7406 = vsub.f32 %v7404, %v7405
    %v7407 = vand.u32 %v7406, 4294901760
    %7408 = vmatprep.subr.mxu0 %v7407
    %v7409 = vand.u32 %v5678, 4294901760
    %v7410 = vsub.f32 %v5678, %v7409
    %v7411 = vand.u32 %v7410, 4294901760
    %v7412 = vsub.f32 %v7410, %v7411
    %v7413 = vand.u32 %v7412, 4294901760
    %7414 = vmatpush1.msra.mxu0 %v7413
    %v7415 = vand.u32 %v5681, 4294901760
    %v7416 = vsub.f32 %v5681, %v7415
    %v7417 = vand.u32 %v7416, 4294901760
    %v7418 = vsub.f32 %v7416, %v7417
    %v7419 = vand.u32 %v7418, 4294901760
    %7420 = vmatprep.subr.mxu0 %v7419
    %v7421 = vand.u32 %v5680, 4294901760
    %v7422 = vsub.f32 %v5680, %v7421
    %v7423 = vand.u32 %v7422, 4294901760
    %v7424 = vsub.f32 %v7422, %v7423
    %v7425 = vand.u32 %v7424, 4294901760
    %7426 = vmatpush1.msra.mxu0 %v7425
    %v7427 = vand.u32 %v5683, 4294901760
    %v7428 = vsub.f32 %v5683, %v7427
    %v7429 = vand.u32 %v7428, 4294901760
    %v7430 = vsub.f32 %v7428, %v7429
    %v7431 = vand.u32 %v7430, 4294901760
    %7432 = vmatprep.subr.mxu0 %v7431
    %v7433 = vand.u32 %v5682, 4294901760
    %v7434 = vsub.f32 %v5682, %v7433
    %v7435 = vand.u32 %v7434, 4294901760
    %v7436 = vsub.f32 %v7434, %v7435
    %v7437 = vand.u32 %v7436, 4294901760
    %7438 = vmatpush1.msra.mxu0 %v7437
    %v7439 = vand.u32 %v5685, 4294901760
    %v7440 = vsub.f32 %v5685, %v7439
    %v7441 = vand.u32 %v7440, 4294901760
    %v7442 = vsub.f32 %v7440, %v7441
    %v7443 = vand.u32 %v7442, 4294901760
    %7444 = vmatprep.subr.mxu0 %v7443
    %v7445 = vand.u32 %v5684, 4294901760
    %v7446 = vsub.f32 %v5684, %v7445
    %v7447 = vand.u32 %v7446, 4294901760
    %v7448 = vsub.f32 %v7446, %v7447
    %v7449 = vand.u32 %v7448, 4294901760
    %7450 = vmatpush1.msra.mxu0 %v7449
    %v7451 = vand.u32 %v5687, 4294901760
    %v7452 = vsub.f32 %v5687, %v7451
    %v7453 = vand.u32 %v7452, 4294901760
    %v7454 = vsub.f32 %v7452, %v7453
    %v7455 = vand.u32 %v7454, 4294901760
    %7456 = vmatprep.subr.mxu0 %v7455
    %v7457 = vand.u32 %v5686, 4294901760
    %v7458 = vsub.f32 %v5686, %v7457
    %v7459 = vand.u32 %v7458, 4294901760
    %v7460 = vsub.f32 %v7458, %v7459
    %v7461 = vand.u32 %v7460, 4294901760
    %7462 = vmatpush1.msra.mxu0 %v7461
    %v7463 = vand.u32 %v5689, 4294901760
    %v7464 = vsub.f32 %v5689, %v7463
    %v7465 = vand.u32 %v7464, 4294901760
    %v7466 = vsub.f32 %v7464, %v7465
    %v7467 = vand.u32 %v7466, 4294901760
    %7468 = vmatprep.subr.mxu0 %v7467
    %v7469 = vand.u32 %v5688, 4294901760
    %v7470 = vsub.f32 %v5688, %v7469
    %v7471 = vand.u32 %v7470, 4294901760
    %v7472 = vsub.f32 %v7470, %v7471
    %v7473 = vand.u32 %v7472, 4294901760
    %7474 = vmatpush1.msra.mxu0 %v7473
    %v7475 = vand.u32 %v5691, 4294901760
    %v7476 = vsub.f32 %v5691, %v7475
    %v7477 = vand.u32 %v7476, 4294901760
    %v7478 = vsub.f32 %v7476, %v7477
    %v7479 = vand.u32 %v7478, 4294901760
    %7480 = vmatprep.subr.mxu0 %v7479
    %v7481 = vand.u32 %v5690, 4294901760
    %v7482 = vsub.f32 %v5690, %v7481
    %v7483 = vand.u32 %v7482, 4294901760
    %v7484 = vsub.f32 %v7482, %v7483
    %v7485 = vand.u32 %v7484, 4294901760
    %7486 = vmatpush1.msra.mxu0 %v7485
    %v7487 = vand.u32 %v5693, 4294901760
    %v7488 = vsub.f32 %v5693, %v7487
    %v7489 = vand.u32 %v7488, 4294901760
    %v7490 = vsub.f32 %v7488, %v7489
    %v7491 = vand.u32 %v7490, 4294901760
    %7492 = vmatprep.subr.mxu0 %v7491
    %v7493 = vand.u32 %v5692, 4294901760
    %v7494 = vsub.f32 %v5692, %v7493
    %v7495 = vand.u32 %v7494, 4294901760
    %v7496 = vsub.f32 %v7494, %v7495
    %v7497 = vand.u32 %v7496, 4294901760
    %7498 = vmatpush1.msra.mxu0 %v7497
    %v7499 = vand.u32 %v5695, 4294901760
    %v7500 = vsub.f32 %v5695, %v7499
    %v7501 = vand.u32 %v7500, 4294901760
    %v7502 = vsub.f32 %v7500, %v7501
    %v7503 = vand.u32 %v7502, 4294901760
    %7504 = vmatprep.subr.mxu0 %v7503
    %v7505 = vand.u32 %v5694, 4294901760
    %v7506 = vsub.f32 %v5694, %v7505
    %v7507 = vand.u32 %v7506, 4294901760
    %v7508 = vsub.f32 %v7506, %v7507
    %v7509 = vand.u32 %v7508, 4294901760
    %7510 = vmatpush1.msra.mxu0 %v7509
    %v7511 = vand.u32 %v5697, 4294901760
    %v7512 = vsub.f32 %v5697, %v7511
    %v7513 = vand.u32 %v7512, 4294901760
    %v7514 = vsub.f32 %v7512, %v7513
    %v7515 = vand.u32 %v7514, 4294901760
    %7516 = vmatprep.subr.mxu0 %v7515
    %v7517 = vand.u32 %v5696, 4294901760
    %v7518 = vsub.f32 %v5696, %v7517
    %v7519 = vand.u32 %v7518, 4294901760
    %v7520 = vsub.f32 %v7518, %v7519
    %v7521 = vand.u32 %v7520, 4294901760
    %7522 = vmatpush1.msra.mxu0 %v7521
    %v7523 = vand.u32 %v5569, 4294901760
    %7524 = vmatprep.mubr.f32.mxu0 %v7523
    %v7525 = vand.u32 %v5568, 4294901760
    %7526 = vmatmul.mubr.f32.gmra.mrb[0].mxu0 %v7525
    %v7527 = vpop.f32.mrb[0].mxu0
    %v7528 = vadd.f32 %v7135, %v7527
    %v7529 = vpop.f32.mrb[0].mxu0
    %v7530 = vadd.f32 %v7137, %v7529
    %7531 = vdwg.mxu0
    %v7532 = vand.u32 %v5635, 4294901760
    %v7533 = vsub.f32 %v5635, %v7532
    %7534 = vmatprep.subr.mxu0 %v7533
    %v7535 = vand.u32 %v5634, 4294901760
    %v7536 = vsub.f32 %v5634, %v7535
    %7537 = vmatpush1.msra.mxu0 %v7536
    %v7538 = vand.u32 %v5637, 4294901760
    %v7539 = vsub.f32 %v5637, %v7538
    %7540 = vmatprep.subr.mxu0 %v7539
    %v7541 = vand.u32 %v5636, 4294901760
    %v7542 = vsub.f32 %v5636, %v7541
    %7543 = vmatpush1.msra.mxu0 %v7542
    %v7544 = vand.u32 %v5639, 4294901760
    %v7545 = vsub.f32 %v5639, %v7544
    %7546 = vmatprep.subr.mxu0 %v7545
    %v7547 = vand.u32 %v5638, 4294901760
    %v7548 = vsub.f32 %v5638, %v7547
    %7549 = vmatpush1.msra.mxu0 %v7548
    %v7550 = vand.u32 %v5641, 4294901760
    %v7551 = vsub.f32 %v5641, %v7550
    %7552 = vmatprep.subr.mxu0 %v7551
    %v7553 = vand.u32 %v5640, 4294901760
    %v7554 = vsub.f32 %v5640, %v7553
    %7555 = vmatpush1.msra.mxu0 %v7554
    %v7556 = vand.u32 %v5643, 4294901760
    %v7557 = vsub.f32 %v5643, %v7556
    %7558 = vmatprep.subr.mxu0 %v7557
    %v7559 = vand.u32 %v5642, 4294901760
    %v7560 = vsub.f32 %v5642, %v7559
    %7561 = vmatpush1.msra.mxu0 %v7560
    %v7562 = vand.u32 %v5645, 4294901760
    %v7563 = vsub.f32 %v5645, %v7562
    %7564 = vmatprep.subr.mxu0 %v7563
    %v7565 = vand.u32 %v5644, 4294901760
    %v7566 = vsub.f32 %v5644, %v7565
    %7567 = vmatpush1.msra.mxu0 %v7566
    %v7568 = vand.u32 %v5647, 4294901760
    %v7569 = vsub.f32 %v5647, %v7568
    %7570 = vmatprep.subr.mxu0 %v7569
    %v7571 = vand.u32 %v5646, 4294901760
    %v7572 = vsub.f32 %v5646, %v7571
    %7573 = vmatpush1.msra.mxu0 %v7572
    %v7574 = vand.u32 %v5649, 4294901760
    %v7575 = vsub.f32 %v5649, %v7574
    %7576 = vmatprep.subr.mxu0 %v7575
    %v7577 = vand.u32 %v5648, 4294901760
    %v7578 = vsub.f32 %v5648, %v7577
    %7579 = vmatpush1.msra.mxu0 %v7578
    %v7580 = vand.u32 %v5651, 4294901760
    %v7581 = vsub.f32 %v5651, %v7580
    %7582 = vmatprep.subr.mxu0 %v7581
    %v7583 = vand.u32 %v5650, 4294901760
    %v7584 = vsub.f32 %v5650, %v7583
    %7585 = vmatpush1.msra.mxu0 %v7584
    %v7586 = vand.u32 %v5653, 4294901760
    %v7587 = vsub.f32 %v5653, %v7586
    %7588 = vmatprep.subr.mxu0 %v7587
    %v7589 = vand.u32 %v5652, 4294901760
    %v7590 = vsub.f32 %v5652, %v7589
    %7591 = vmatpush1.msra.mxu0 %v7590
    %v7592 = vand.u32 %v5655, 4294901760
    %v7593 = vsub.f32 %v5655, %v7592
    %7594 = vmatprep.subr.mxu0 %v7593
    %v7595 = vand.u32 %v5654, 4294901760
    %v7596 = vsub.f32 %v5654, %v7595
    %7597 = vmatpush1.msra.mxu0 %v7596
    %v7598 = vand.u32 %v5657, 4294901760
    %v7599 = vsub.f32 %v5657, %v7598
    %7600 = vmatprep.subr.mxu0 %v7599
    %v7601 = vand.u32 %v5656, 4294901760
    %v7602 = vsub.f32 %v5656, %v7601
    %7603 = vmatpush1.msra.mxu0 %v7602
    %v7604 = vand.u32 %v5659, 4294901760
    %v7605 = vsub.f32 %v5659, %v7604
    %7606 = vmatprep.subr.mxu0 %v7605
    %v7607 = vand.u32 %v5658, 4294901760
    %v7608 = vsub.f32 %v5658, %v7607
    %7609 = vmatpush1.msra.mxu0 %v7608
    %v7610 = vand.u32 %v5661, 4294901760
    %v7611 = vsub.f32 %v5661, %v7610
    %7612 = vmatprep.subr.mxu0 %v7611
    %v7613 = vand.u32 %v5660, 4294901760
    %v7614 = vsub.f32 %v5660, %v7613
    %7615 = vmatpush1.msra.mxu0 %v7614
    %v7616 = vand.u32 %v5663, 4294901760
    %v7617 = vsub.f32 %v5663, %v7616
    %7618 = vmatprep.subr.mxu0 %v7617
    %v7619 = vand.u32 %v5662, 4294901760
    %v7620 = vsub.f32 %v5662, %v7619
    %7621 = vmatpush1.msra.mxu0 %v7620
    %v7622 = vand.u32 %v5665, 4294901760
    %v7623 = vsub.f32 %v5665, %v7622
    %7624 = vmatprep.subr.mxu0 %v7623
    %v7625 = vand.u32 %v5664, 4294901760
    %v7626 = vsub.f32 %v5664, %v7625
    %7627 = vmatpush1.msra.mxu0 %v7626
    %v7628 = vand.u32 %v5667, 4294901760
    %v7629 = vsub.f32 %v5667, %v7628
    %7630 = vmatprep.subr.mxu0 %v7629
    %v7631 = vand.u32 %v5666, 4294901760
    %v7632 = vsub.f32 %v5666, %v7631
    %7633 = vmatpush1.msra.mxu0 %v7632
    %v7634 = vand.u32 %v5669, 4294901760
    %v7635 = vsub.f32 %v5669, %v7634
    %7636 = vmatprep.subr.mxu0 %v7635
    %v7637 = vand.u32 %v5668, 4294901760
    %v7638 = vsub.f32 %v5668, %v7637
    %7639 = vmatpush1.msra.mxu0 %v7638
    %v7640 = vand.u32 %v5671, 4294901760
    %v7641 = vsub.f32 %v5671, %v7640
    %7642 = vmatprep.subr.mxu0 %v7641
    %v7643 = vand.u32 %v5670, 4294901760
    %v7644 = vsub.f32 %v5670, %v7643
    %7645 = vmatpush1.msra.mxu0 %v7644
    %v7646 = vand.u32 %v5673, 4294901760
    %v7647 = vsub.f32 %v5673, %v7646
    %7648 = vmatprep.subr.mxu0 %v7647
    %v7649 = vand.u32 %v5672, 4294901760
    %v7650 = vsub.f32 %v5672, %v7649
    %7651 = vmatpush1.msra.mxu0 %v7650
    %v7652 = vand.u32 %v5675, 4294901760
    %v7653 = vsub.f32 %v5675, %v7652
    %7654 = vmatprep.subr.mxu0 %v7653
    %v7655 = vand.u32 %v5674, 4294901760
    %v7656 = vsub.f32 %v5674, %v7655
    %7657 = vmatpush1.msra.mxu0 %v7656
    %v7658 = vand.u32 %v5677, 4294901760
    %v7659 = vsub.f32 %v5677, %v7658
    %7660 = vmatprep.subr.mxu0 %v7659
    %v7661 = vand.u32 %v5676, 4294901760
    %v7662 = vsub.f32 %v5676, %v7661
    %7663 = vmatpush1.msra.mxu0 %v7662
    %v7664 = vand.u32 %v5679, 4294901760
    %v7665 = vsub.f32 %v5679, %v7664
    %7666 = vmatprep.subr.mxu0 %v7665
    %v7667 = vand.u32 %v5678, 4294901760
    %v7668 = vsub.f32 %v5678, %v7667
    %7669 = vmatpush1.msra.mxu0 %v7668
    %v7670 = vand.u32 %v5681, 4294901760
    %v7671 = vsub.f32 %v5681, %v7670
    %7672 = vmatprep.subr.mxu0 %v7671
    %v7673 = vand.u32 %v5680, 4294901760
    %v7674 = vsub.f32 %v5680, %v7673
    %7675 = vmatpush1.msra.mxu0 %v7674
    %v7676 = vand.u32 %v5683, 4294901760
    %v7677 = vsub.f32 %v5683, %v7676
    %7678 = vmatprep.subr.mxu0 %v7677
    %v7679 = vand.u32 %v5682, 4294901760
    %v7680 = vsub.f32 %v5682, %v7679
    %7681 = vmatpush1.msra.mxu0 %v7680
    %v7682 = vand.u32 %v5685, 4294901760
    %v7683 = vsub.f32 %v5685, %v7682
    %7684 = vmatprep.subr.mxu0 %v7683
    %v7685 = vand.u32 %v5684, 4294901760
    %v7686 = vsub.f32 %v5684, %v7685
    %7687 = vmatpush1.msra.mxu0 %v7686
    %v7688 = vand.u32 %v5687, 4294901760
    %v7689 = vsub.f32 %v5687, %v7688
    %7690 = vmatprep.subr.mxu0 %v7689
    %v7691 = vand.u32 %v5686, 4294901760
    %v7692 = vsub.f32 %v5686, %v7691
    %7693 = vmatpush1.msra.mxu0 %v7692
    %v7694 = vand.u32 %v5689, 4294901760
    %v7695 = vsub.f32 %v5689, %v7694
    %7696 = vmatprep.subr.mxu0 %v7695
    %v7697 = vand.u32 %v5688, 4294901760
    %v7698 = vsub.f32 %v5688, %v7697
    %7699 = vmatpush1.msra.mxu0 %v7698
    %v7700 = vand.u32 %v5691, 4294901760
    %v7701 = vsub.f32 %v5691, %v7700
    %7702 = vmatprep.subr.mxu0 %v7701
    %v7703 = vand.u32 %v5690, 4294901760
    %v7704 = vsub.f32 %v5690, %v7703
    %7705 = vmatpush1.msra.mxu0 %v7704
    %v7706 = vand.u32 %v5693, 4294901760
    %v7707 = vsub.f32 %v5693, %v7706
    %7708 = vmatprep.subr.mxu0 %v7707
    %v7709 = vand.u32 %v5692, 4294901760
    %v7710 = vsub.f32 %v5692, %v7709
    %7711 = vmatpush1.msra.mxu0 %v7710
    %v7712 = vand.u32 %v5695, 4294901760
    %v7713 = vsub.f32 %v5695, %v7712
    %7714 = vmatprep.subr.mxu0 %v7713
    %v7715 = vand.u32 %v5694, 4294901760
    %v7716 = vsub.f32 %v5694, %v7715
    %7717 = vmatpush1.msra.mxu0 %v7716
    %v7718 = vand.u32 %v5697, 4294901760
    %v7719 = vsub.f32 %v5697, %v7718
    %7720 = vmatprep.subr.mxu0 %v7719
    %v7721 = vand.u32 %v5696, 4294901760
    %v7722 = vsub.f32 %v5696, %v7721
    %7723 = vmatpush1.msra.mxu0 %v7722
    %v7724 = vand.u32 %v5569, 4294901760
    %v7725 = vsub.f32 %v5569, %v7724
    %7726 = vmatprep.mubr.f32.mxu0 %v7725
    %v7727 = vand.u32 %v5568, 4294901760
    %v7728 = vsub.f32 %v5568, %v7727
    %7729 = vmatmul.mubr.f32.gmra.mrb[0].mxu0 %v7728
    %v7730 = vpop.f32.mrb[0].mxu0
    %v7731 = vadd.f32 %v7528, %v7730
    %v7732 = vpop.f32.mrb[0].mxu0
    %v7733 = vadd.f32 %v7530, %v7732
    %7734 = vdwg.mxu0
    %v7735 = vand.u32 %v5635, 4294901760
    %7736 = vmatprep.subr.mxu0 %v7735
    %v7737 = vand.u32 %v5634, 4294901760
    %7738 = vmatpush1.msra.mxu0 %v7737
    %v7739 = vand.u32 %v5637, 4294901760
    %7740 = vmatprep.subr.mxu0 %v7739
    %v7741 = vand.u32 %v5636, 4294901760
    %7742 = vmatpush1.msra.mxu0 %v7741
    %v7743 = vand.u32 %v5639, 4294901760
    %7744 = vmatprep.subr.mxu0 %v7743
    %v7745 = vand.u32 %v5638, 4294901760
    %7746 = vmatpush1.msra.mxu0 %v7745
    %v7747 = vand.u32 %v5641, 4294901760
    %7748 = vmatprep.subr.mxu0 %v7747
    %v7749 = vand.u32 %v5640, 4294901760
    %7750 = vmatpush1.msra.mxu0 %v7749
    %v7751 = vand.u32 %v5643, 4294901760
    %7752 = vmatprep.subr.mxu0 %v7751
    %v7753 = vand.u32 %v5642, 4294901760
    %7754 = vmatpush1.msra.mxu0 %v7753
    %v7755 = vand.u32 %v5645, 4294901760
    %7756 = vmatprep.subr.mxu0 %v7755
    %v7757 = vand.u32 %v5644, 4294901760
    %7758 = vmatpush1.msra.mxu0 %v7757
    %v7759 = vand.u32 %v5647, 4294901760
    %7760 = vmatprep.subr.mxu0 %v7759
    %v7761 = vand.u32 %v5646, 4294901760
    %7762 = vmatpush1.msra.mxu0 %v7761
    %v7763 = vand.u32 %v5649, 4294901760
    %7764 = vmatprep.subr.mxu0 %v7763
    %v7765 = vand.u32 %v5648, 4294901760
    %7766 = vmatpush1.msra.mxu0 %v7765
    %v7767 = vand.u32 %v5651, 4294901760
    %7768 = vmatprep.subr.mxu0 %v7767
    %v7769 = vand.u32 %v5650, 4294901760
    %7770 = vmatpush1.msra.mxu0 %v7769
    %v7771 = vand.u32 %v5653, 4294901760
    %7772 = vmatprep.subr.mxu0 %v7771
    %v7773 = vand.u32 %v5652, 4294901760
    %7774 = vmatpush1.msra.mxu0 %v7773
    %v7775 = vand.u32 %v5655, 4294901760
    %7776 = vmatprep.subr.mxu0 %v7775
    %v7777 = vand.u32 %v5654, 4294901760
    %7778 = vmatpush1.msra.mxu0 %v7777
    %v7779 = vand.u32 %v5657, 4294901760
    %7780 = vmatprep.subr.mxu0 %v7779
    %v7781 = vand.u32 %v5656, 4294901760
    %7782 = vmatpush1.msra.mxu0 %v7781
    %v7783 = vand.u32 %v5659, 4294901760
    %7784 = vmatprep.subr.mxu0 %v7783
    %v7785 = vand.u32 %v5658, 4294901760
    %7786 = vmatpush1.msra.mxu0 %v7785
    %v7787 = vand.u32 %v5661, 4294901760
    %7788 = vmatprep.subr.mxu0 %v7787
    %v7789 = vand.u32 %v5660, 4294901760
    %7790 = vmatpush1.msra.mxu0 %v7789
    %v7791 = vand.u32 %v5663, 4294901760
    %7792 = vmatprep.subr.mxu0 %v7791
    %v7793 = vand.u32 %v5662, 4294901760
    %7794 = vmatpush1.msra.mxu0 %v7793
    %v7795 = vand.u32 %v5665, 4294901760
    %7796 = vmatprep.subr.mxu0 %v7795
    %v7797 = vand.u32 %v5664, 4294901760
    %7798 = vmatpush1.msra.mxu0 %v7797
    %v7799 = vand.u32 %v5667, 4294901760
    %7800 = vmatprep.subr.mxu0 %v7799
    %v7801 = vand.u32 %v5666, 4294901760
    %7802 = vmatpush1.msra.mxu0 %v7801
    %v7803 = vand.u32 %v5669, 4294901760
    %7804 = vmatprep.subr.mxu0 %v7803
    %v7805 = vand.u32 %v5668, 4294901760
    %7806 = vmatpush1.msra.mxu0 %v7805
    %v7807 = vand.u32 %v5671, 4294901760
    %7808 = vmatprep.subr.mxu0 %v7807
    %v7809 = vand.u32 %v5670, 4294901760
    %7810 = vmatpush1.msra.mxu0 %v7809
    %v7811 = vand.u32 %v5673, 4294901760
    %7812 = vmatprep.subr.mxu0 %v7811
    %v7813 = vand.u32 %v5672, 4294901760
    %7814 = vmatpush1.msra.mxu0 %v7813
    %v7815 = vand.u32 %v5675, 4294901760
    %7816 = vmatprep.subr.mxu0 %v7815
    %v7817 = vand.u32 %v5674, 4294901760
    %7818 = vmatpush1.msra.mxu0 %v7817
    %v7819 = vand.u32 %v5677, 4294901760
    %7820 = vmatprep.subr.mxu0 %v7819
    %v7821 = vand.u32 %v5676, 4294901760
    %7822 = vmatpush1.msra.mxu0 %v7821
    %v7823 = vand.u32 %v5679, 4294901760
    %7824 = vmatprep.subr.mxu0 %v7823
    %v7825 = vand.u32 %v5678, 4294901760
    %7826 = vmatpush1.msra.mxu0 %v7825
    %v7827 = vand.u32 %v5681, 4294901760
    %7828 = vmatprep.subr.mxu0 %v7827
    %v7829 = vand.u32 %v5680, 4294901760
    %7830 = vmatpush1.msra.mxu0 %v7829
    %v7831 = vand.u32 %v5683, 4294901760
    %7832 = vmatprep.subr.mxu0 %v7831
    %v7833 = vand.u32 %v5682, 4294901760
    %7834 = vmatpush1.msra.mxu0 %v7833
    %v7835 = vand.u32 %v5685, 4294901760
    %7836 = vmatprep.subr.mxu0 %v7835
    %v7837 = vand.u32 %v5684, 4294901760
    %7838 = vmatpush1.msra.mxu0 %v7837
    %v7839 = vand.u32 %v5687, 4294901760
    %7840 = vmatprep.subr.mxu0 %v7839
    %v7841 = vand.u32 %v5686, 4294901760
    %7842 = vmatpush1.msra.mxu0 %v7841
    %v7843 = vand.u32 %v5689, 4294901760
    %7844 = vmatprep.subr.mxu0 %v7843
    %v7845 = vand.u32 %v5688, 4294901760
    %7846 = vmatpush1.msra.mxu0 %v7845
    %v7847 = vand.u32 %v5691, 4294901760
    %7848 = vmatprep.subr.mxu0 %v7847
    %v7849 = vand.u32 %v5690, 4294901760
    %7850 = vmatpush1.msra.mxu0 %v7849
    %v7851 = vand.u32 %v5693, 4294901760
    %7852 = vmatprep.subr.mxu0 %v7851
    %v7853 = vand.u32 %v5692, 4294901760
    %7854 = vmatpush1.msra.mxu0 %v7853
    %v7855 = vand.u32 %v5695, 4294901760
    %7856 = vmatprep.subr.mxu0 %v7855
    %v7857 = vand.u32 %v5694, 4294901760
    %7858 = vmatpush1.msra.mxu0 %v7857
    %v7859 = vand.u32 %v5697, 4294901760
    %7860 = vmatprep.subr.mxu0 %v7859
    %v7861 = vand.u32 %v5696, 4294901760
    %7862 = vmatpush1.msra.mxu0 %v7861
    %v7863 = vand.u32 %v5569, 4294901760
    %v7864 = vsub.f32 %v5569, %v7863
    %v7865 = vand.u32 %v7864, 4294901760
    %7866 = vmatprep.mubr.f32.mxu0 %v7865
    %v7867 = vand.u32 %v5568, 4294901760
    %v7868 = vsub.f32 %v5568, %v7867
    %v7869 = vand.u32 %v7868, 4294901760
    %7870 = vmatmul.mubr.f32.gmra.mrb[0].mxu0 %v7869
    %v7871 = vpop.f32.mrb[0].mxu0
    %v7872 = vadd.f32 %v7731, %v7871
    %v7873 = vpop.f32.mrb[0].mxu0
    %v7874 = vadd.f32 %v7733, %v7873
    %7875 = vdwg.mxu0
    %v7876 = vand.u32 %v5635, 4294901760
    %v7877 = vsub.f32 %v5635, %v7876
    %v7878 = vand.u32 %v7877, 4294901760
    %7879 = vmatprep.subr.mxu0 %v7878
    %v7880 = vand.u32 %v5634, 4294901760
    %v7881 = vsub.f32 %v5634, %v7880
    %v7882 = vand.u32 %v7881, 4294901760
    %7883 = vmatpush1.msra.mxu0 %v7882
    %v7884 = vand.u32 %v5637, 4294901760
    %v7885 = vsub.f32 %v5637, %v7884
    %v7886 = vand.u32 %v7885, 4294901760
    %7887 = vmatprep.subr.mxu0 %v7886
    %v7888 = vand.u32 %v5636, 4294901760
    %v7889 = vsub.f32 %v5636, %v7888
    %v7890 = vand.u32 %v7889, 4294901760
    %7891 = vmatpush1.msra.mxu0 %v7890
    %v7892 = vand.u32 %v5639, 4294901760
    %v7893 = vsub.f32 %v5639, %v7892
    %v7894 = vand.u32 %v7893, 4294901760
    %7895 = vmatprep.subr.mxu0 %v7894
    %v7896 = vand.u32 %v5638, 4294901760
    %v7897 = vsub.f32 %v5638, %v7896
    %v7898 = vand.u32 %v7897, 4294901760
    %7899 = vmatpush1.msra.mxu0 %v7898
    %v7900 = vand.u32 %v5641, 4294901760
    %v7901 = vsub.f32 %v5641, %v7900
    %v7902 = vand.u32 %v7901, 4294901760
    %7903 = vmatprep.subr.mxu0 %v7902
    %v7904 = vand.u32 %v5640, 4294901760
    %v7905 = vsub.f32 %v5640, %v7904
    %v7906 = vand.u32 %v7905, 4294901760
    %7907 = vmatpush1.msra.mxu0 %v7906
    %v7908 = vand.u32 %v5643, 4294901760
    %v7909 = vsub.f32 %v5643, %v7908
    %v7910 = vand.u32 %v7909, 4294901760
    %7911 = vmatprep.subr.mxu0 %v7910
    %v7912 = vand.u32 %v5642, 4294901760
    %v7913 = vsub.f32 %v5642, %v7912
    %v7914 = vand.u32 %v7913, 4294901760
    %7915 = vmatpush1.msra.mxu0 %v7914
    %v7916 = vand.u32 %v5645, 4294901760
    %v7917 = vsub.f32 %v5645, %v7916
    %v7918 = vand.u32 %v7917, 4294901760
    %7919 = vmatprep.subr.mxu0 %v7918
    %v7920 = vand.u32 %v5644, 4294901760
    %v7921 = vsub.f32 %v5644, %v7920
    %v7922 = vand.u32 %v7921, 4294901760
    %7923 = vmatpush1.msra.mxu0 %v7922
    %v7924 = vand.u32 %v5647, 4294901760
    %v7925 = vsub.f32 %v5647, %v7924
    %v7926 = vand.u32 %v7925, 4294901760
    %7927 = vmatprep.subr.mxu0 %v7926
    %v7928 = vand.u32 %v5646, 4294901760
    %v7929 = vsub.f32 %v5646, %v7928
    %v7930 = vand.u32 %v7929, 4294901760
    %7931 = vmatpush1.msra.mxu0 %v7930
    %v7932 = vand.u32 %v5649, 4294901760
    %v7933 = vsub.f32 %v5649, %v7932
    %v7934 = vand.u32 %v7933, 4294901760
    %7935 = vmatprep.subr.mxu0 %v7934
    %v7936 = vand.u32 %v5648, 4294901760
    %v7937 = vsub.f32 %v5648, %v7936
    %v7938 = vand.u32 %v7937, 4294901760
    %7939 = vmatpush1.msra.mxu0 %v7938
    %v7940 = vand.u32 %v5651, 4294901760
    %v7941 = vsub.f32 %v5651, %v7940
    %v7942 = vand.u32 %v7941, 4294901760
    %7943 = vmatprep.subr.mxu0 %v7942
    %v7944 = vand.u32 %v5650, 4294901760
    %v7945 = vsub.f32 %v5650, %v7944
    %v7946 = vand.u32 %v7945, 4294901760
    %7947 = vmatpush1.msra.mxu0 %v7946
    %v7948 = vand.u32 %v5653, 4294901760
    %v7949 = vsub.f32 %v5653, %v7948
    %v7950 = vand.u32 %v7949, 4294901760
    %7951 = vmatprep.subr.mxu0 %v7950
    %v7952 = vand.u32 %v5652, 4294901760
    %v7953 = vsub.f32 %v5652, %v7952
    %v7954 = vand.u32 %v7953, 4294901760
    %7955 = vmatpush1.msra.mxu0 %v7954
    %v7956 = vand.u32 %v5655, 4294901760
    %v7957 = vsub.f32 %v5655, %v7956
    %v7958 = vand.u32 %v7957, 4294901760
    %7959 = vmatprep.subr.mxu0 %v7958
    %v7960 = vand.u32 %v5654, 4294901760
    %v7961 = vsub.f32 %v5654, %v7960
    %v7962 = vand.u32 %v7961, 4294901760
    %7963 = vmatpush1.msra.mxu0 %v7962
    %v7964 = vand.u32 %v5657, 4294901760
    %v7965 = vsub.f32 %v5657, %v7964
    %v7966 = vand.u32 %v7965, 4294901760
    %7967 = vmatprep.subr.mxu0 %v7966
    %v7968 = vand.u32 %v5656, 4294901760
    %v7969 = vsub.f32 %v5656, %v7968
    %v7970 = vand.u32 %v7969, 4294901760
    %7971 = vmatpush1.msra.mxu0 %v7970
    %v7972 = vand.u32 %v5659, 4294901760
    %v7973 = vsub.f32 %v5659, %v7972
    %v7974 = vand.u32 %v7973, 4294901760
    %7975 = vmatprep.subr.mxu0 %v7974
    %v7976 = vand.u32 %v5658, 4294901760
    %v7977 = vsub.f32 %v5658, %v7976
    %v7978 = vand.u32 %v7977, 4294901760
    %7979 = vmatpush1.msra.mxu0 %v7978
    %v7980 = vand.u32 %v5661, 4294901760
    %v7981 = vsub.f32 %v5661, %v7980
    %v7982 = vand.u32 %v7981, 4294901760
    %7983 = vmatprep.subr.mxu0 %v7982
    %v7984 = vand.u32 %v5660, 4294901760
    %v7985 = vsub.f32 %v5660, %v7984
    %v7986 = vand.u32 %v7985, 4294901760
    %7987 = vmatpush1.msra.mxu0 %v7986
    %v7988 = vand.u32 %v5663, 4294901760
    %v7989 = vsub.f32 %v5663, %v7988
    %v7990 = vand.u32 %v7989, 4294901760
    %7991 = vmatprep.subr.mxu0 %v7990
    %v7992 = vand.u32 %v5662, 4294901760
    %v7993 = vsub.f32 %v5662, %v7992
    %v7994 = vand.u32 %v7993, 4294901760
    %7995 = vmatpush1.msra.mxu0 %v7994
    %v7996 = vand.u32 %v5665, 4294901760
    %v7997 = vsub.f32 %v5665, %v7996
    %v7998 = vand.u32 %v7997, 4294901760
    %7999 = vmatprep.subr.mxu0 %v7998
    %v8000 = vand.u32 %v5664, 4294901760
    %v8001 = vsub.f32 %v5664, %v8000
    %v8002 = vand.u32 %v8001, 4294901760
    %8003 = vmatpush1.msra.mxu0 %v8002
    %v8004 = vand.u32 %v5667, 4294901760
    %v8005 = vsub.f32 %v5667, %v8004
    %v8006 = vand.u32 %v8005, 4294901760
    %8007 = vmatprep.subr.mxu0 %v8006
    %v8008 = vand.u32 %v5666, 4294901760
    %v8009 = vsub.f32 %v5666, %v8008
    %v8010 = vand.u32 %v8009, 4294901760
    %8011 = vmatpush1.msra.mxu0 %v8010
    %v8012 = vand.u32 %v5669, 4294901760
    %v8013 = vsub.f32 %v5669, %v8012
    %v8014 = vand.u32 %v8013, 4294901760
    %8015 = vmatprep.subr.mxu0 %v8014
    %v8016 = vand.u32 %v5668, 4294901760
    %v8017 = vsub.f32 %v5668, %v8016
    %v8018 = vand.u32 %v8017, 4294901760
    %8019 = vmatpush1.msra.mxu0 %v8018
    %v8020 = vand.u32 %v5671, 4294901760
    %v8021 = vsub.f32 %v5671, %v8020
    %v8022 = vand.u32 %v8021, 4294901760
    %8023 = vmatprep.subr.mxu0 %v8022
    %v8024 = vand.u32 %v5670, 4294901760
    %v8025 = vsub.f32 %v5670, %v8024
    %v8026 = vand.u32 %v8025, 4294901760
    %8027 = vmatpush1.msra.mxu0 %v8026
    %v8028 = vand.u32 %v5673, 4294901760
    %v8029 = vsub.f32 %v5673, %v8028
    %v8030 = vand.u32 %v8029, 4294901760
    %8031 = vmatprep.subr.mxu0 %v8030
    %v8032 = vand.u32 %v5672, 4294901760
    %v8033 = vsub.f32 %v5672, %v8032
    %v8034 = vand.u32 %v8033, 4294901760
    %8035 = vmatpush1.msra.mxu0 %v8034
    %v8036 = vand.u32 %v5675, 4294901760
    %v8037 = vsub.f32 %v5675, %v8036
    %v8038 = vand.u32 %v8037, 4294901760
    %8039 = vmatprep.subr.mxu0 %v8038
    %v8040 = vand.u32 %v5674, 4294901760
    %v8041 = vsub.f32 %v5674, %v8040
    %v8042 = vand.u32 %v8041, 4294901760
    %8043 = vmatpush1.msra.mxu0 %v8042
    %v8044 = vand.u32 %v5677, 4294901760
    %v8045 = vsub.f32 %v5677, %v8044
    %v8046 = vand.u32 %v8045, 4294901760
    %8047 = vmatprep.subr.mxu0 %v8046
    %v8048 = vand.u32 %v5676, 4294901760
    %v8049 = vsub.f32 %v5676, %v8048
    %v8050 = vand.u32 %v8049, 4294901760
    %8051 = vmatpush1.msra.mxu0 %v8050
    %v8052 = vand.u32 %v5679, 4294901760
    %v8053 = vsub.f32 %v5679, %v8052
    %v8054 = vand.u32 %v8053, 4294901760
    %8055 = vmatprep.subr.mxu0 %v8054
    %v8056 = vand.u32 %v5678, 4294901760
    %v8057 = vsub.f32 %v5678, %v8056
    %v8058 = vand.u32 %v8057, 4294901760
    %8059 = vmatpush1.msra.mxu0 %v8058
    %v8060 = vand.u32 %v5681, 4294901760
    %v8061 = vsub.f32 %v5681, %v8060
    %v8062 = vand.u32 %v8061, 4294901760
    %8063 = vmatprep.subr.mxu0 %v8062
    %v8064 = vand.u32 %v5680, 4294901760
    %v8065 = vsub.f32 %v5680, %v8064
    %v8066 = vand.u32 %v8065, 4294901760
    %8067 = vmatpush1.msra.mxu0 %v8066
    %v8068 = vand.u32 %v5683, 4294901760
    %v8069 = vsub.f32 %v5683, %v8068
    %v8070 = vand.u32 %v8069, 4294901760
    %8071 = vmatprep.subr.mxu0 %v8070
    %v8072 = vand.u32 %v5682, 4294901760
    %v8073 = vsub.f32 %v5682, %v8072
    %v8074 = vand.u32 %v8073, 4294901760
    %8075 = vmatpush1.msra.mxu0 %v8074
    %v8076 = vand.u32 %v5685, 4294901760
    %v8077 = vsub.f32 %v5685, %v8076
    %v8078 = vand.u32 %v8077, 4294901760
    %8079 = vmatprep.subr.mxu0 %v8078
    %v8080 = vand.u32 %v5684, 4294901760
    %v8081 = vsub.f32 %v5684, %v8080
    %v8082 = vand.u32 %v8081, 4294901760
    %8083 = vmatpush1.msra.mxu0 %v8082
    %v8084 = vand.u32 %v5687, 4294901760
    %v8085 = vsub.f32 %v5687, %v8084
    %v8086 = vand.u32 %v8085, 4294901760
    %8087 = vmatprep.subr.mxu0 %v8086
    %v8088 = vand.u32 %v5686, 4294901760
    %v8089 = vsub.f32 %v5686, %v8088
    %v8090 = vand.u32 %v8089, 4294901760
    %8091 = vmatpush1.msra.mxu0 %v8090
    %v8092 = vand.u32 %v5689, 4294901760
    %v8093 = vsub.f32 %v5689, %v8092
    %v8094 = vand.u32 %v8093, 4294901760
    %8095 = vmatprep.subr.mxu0 %v8094
    %v8096 = vand.u32 %v5688, 4294901760
    %v8097 = vsub.f32 %v5688, %v8096
    %v8098 = vand.u32 %v8097, 4294901760
    %8099 = vmatpush1.msra.mxu0 %v8098
    %v8100 = vand.u32 %v5691, 4294901760
    %v8101 = vsub.f32 %v5691, %v8100
    %v8102 = vand.u32 %v8101, 4294901760
    %8103 = vmatprep.subr.mxu0 %v8102
    %v8104 = vand.u32 %v5690, 4294901760
    %v8105 = vsub.f32 %v5690, %v8104
    %v8106 = vand.u32 %v8105, 4294901760
    %8107 = vmatpush1.msra.mxu0 %v8106
    %v8108 = vand.u32 %v5693, 4294901760
    %v8109 = vsub.f32 %v5693, %v8108
    %v8110 = vand.u32 %v8109, 4294901760
    %8111 = vmatprep.subr.mxu0 %v8110
    %v8112 = vand.u32 %v5692, 4294901760
    %v8113 = vsub.f32 %v5692, %v8112
    %v8114 = vand.u32 %v8113, 4294901760
    %8115 = vmatpush1.msra.mxu0 %v8114
    %v8116 = vand.u32 %v5695, 4294901760
    %v8117 = vsub.f32 %v5695, %v8116
    %v8118 = vand.u32 %v8117, 4294901760
    %8119 = vmatprep.subr.mxu0 %v8118
    %v8120 = vand.u32 %v5694, 4294901760
    %v8121 = vsub.f32 %v5694, %v8120
    %v8122 = vand.u32 %v8121, 4294901760
    %8123 = vmatpush1.msra.mxu0 %v8122
    %v8124 = vand.u32 %v5697, 4294901760
    %v8125 = vsub.f32 %v5697, %v8124
    %v8126 = vand.u32 %v8125, 4294901760
    %8127 = vmatprep.subr.mxu0 %v8126
    %v8128 = vand.u32 %v5696, 4294901760
    %v8129 = vsub.f32 %v5696, %v8128
    %v8130 = vand.u32 %v8129, 4294901760
    %8131 = vmatpush1.msra.mxu0 %v8130
    %v8132 = vand.u32 %v5569, 4294901760
    %8133 = vmatprep.mubr.f32.mxu0 %v8132
    %v8134 = vand.u32 %v5568, 4294901760
    %8135 = vmatmul.mubr.f32.gmra.mrb[0].mxu0 %v8134
    %v8136 = vpop.f32.mrb[0].mxu0
    %v8137 = vadd.f32 %v7872, %v8136
    %v8138 = vpop.f32.mrb[0].mxu0
    %v8139 = vadd.f32 %v7874, %v8138
    %8140 = vdwg.mxu0
    %v8141 = vand.u32 %v5635, 4294901760
    %8142 = vmatprep.subr.mxu0 %v8141
    %v8143 = vand.u32 %v5634, 4294901760
    %8144 = vmatpush1.msra.mxu0 %v8143
    %v8145 = vand.u32 %v5637, 4294901760
    %8146 = vmatprep.subr.mxu0 %v8145
    %v8147 = vand.u32 %v5636, 4294901760
    %8148 = vmatpush1.msra.mxu0 %v8147
    %v8149 = vand.u32 %v5639, 4294901760
    %8150 = vmatprep.subr.mxu0 %v8149
    %v8151 = vand.u32 %v5638, 4294901760
    %8152 = vmatpush1.msra.mxu0 %v8151
    %v8153 = vand.u32 %v5641, 4294901760
    %8154 = vmatprep.subr.mxu0 %v8153
    %v8155 = vand.u32 %v5640, 4294901760
    %8156 = vmatpush1.msra.mxu0 %v8155
    %v8157 = vand.u32 %v5643, 4294901760
    %8158 = vmatprep.subr.mxu0 %v8157
    %v8159 = vand.u32 %v5642, 4294901760
    %8160 = vmatpush1.msra.mxu0 %v8159
    %v8161 = vand.u32 %v5645, 4294901760
    %8162 = vmatprep.subr.mxu0 %v8161
    %v8163 = vand.u32 %v5644, 4294901760
    %8164 = vmatpush1.msra.mxu0 %v8163
    %v8165 = vand.u32 %v5647, 4294901760
    %8166 = vmatprep.subr.mxu0 %v8165
    %v8167 = vand.u32 %v5646, 4294901760
    %8168 = vmatpush1.msra.mxu0 %v8167
    %v8169 = vand.u32 %v5649, 4294901760
    %8170 = vmatprep.subr.mxu0 %v8169
    %v8171 = vand.u32 %v5648, 4294901760
    %8172 = vmatpush1.msra.mxu0 %v8171
    %v8173 = vand.u32 %v5651, 4294901760
    %8174 = vmatprep.subr.mxu0 %v8173
    %v8175 = vand.u32 %v5650, 4294901760
    %8176 = vmatpush1.msra.mxu0 %v8175
    %v8177 = vand.u32 %v5653, 4294901760
    %8178 = vmatprep.subr.mxu0 %v8177
    %v8179 = vand.u32 %v5652, 4294901760
    %8180 = vmatpush1.msra.mxu0 %v8179
    %v8181 = vand.u32 %v5655, 4294901760
    %8182 = vmatprep.subr.mxu0 %v8181
    %v8183 = vand.u32 %v5654, 4294901760
    %8184 = vmatpush1.msra.mxu0 %v8183
    %v8185 = vand.u32 %v5657, 4294901760
    %8186 = vmatprep.subr.mxu0 %v8185
    %v8187 = vand.u32 %v5656, 4294901760
    %8188 = vmatpush1.msra.mxu0 %v8187
    %v8189 = vand.u32 %v5659, 4294901760
    %8190 = vmatprep.subr.mxu0 %v8189
    %v8191 = vand.u32 %v5658, 4294901760
    %8192 = vmatpush1.msra.mxu0 %v8191
    %v8193 = vand.u32 %v5661, 4294901760
    %8194 = vmatprep.subr.mxu0 %v8193
    %v8195 = vand.u32 %v5660, 4294901760
    %8196 = vmatpush1.msra.mxu0 %v8195
    %v8197 = vand.u32 %v5663, 4294901760
    %8198 = vmatprep.subr.mxu0 %v8197
    %v8199 = vand.u32 %v5662, 4294901760
    %8200 = vmatpush1.msra.mxu0 %v8199
    %v8201 = vand.u32 %v5665, 4294901760
    %8202 = vmatprep.subr.mxu0 %v8201
    %v8203 = vand.u32 %v5664, 4294901760
    %8204 = vmatpush1.msra.mxu0 %v8203
    %v8205 = vand.u32 %v5667, 4294901760
    %8206 = vmatprep.subr.mxu0 %v8205
    %v8207 = vand.u32 %v5666, 4294901760
    %8208 = vmatpush1.msra.mxu0 %v8207
    %v8209 = vand.u32 %v5669, 4294901760
    %8210 = vmatprep.subr.mxu0 %v8209
    %v8211 = vand.u32 %v5668, 4294901760
    %8212 = vmatpush1.msra.mxu0 %v8211
    %v8213 = vand.u32 %v5671, 4294901760
    %8214 = vmatprep.subr.mxu0 %v8213
    %v8215 = vand.u32 %v5670, 4294901760
    %8216 = vmatpush1.msra.mxu0 %v8215
    %v8217 = vand.u32 %v5673, 4294901760
    %8218 = vmatprep.subr.mxu0 %v8217
    %v8219 = vand.u32 %v5672, 4294901760
    %8220 = vmatpush1.msra.mxu0 %v8219
    %v8221 = vand.u32 %v5675, 4294901760
    %8222 = vmatprep.subr.mxu0 %v8221
    %v8223 = vand.u32 %v5674, 4294901760
    %8224 = vmatpush1.msra.mxu0 %v8223
    %v8225 = vand.u32 %v5677, 4294901760
    %8226 = vmatprep.subr.mxu0 %v8225
    %v8227 = vand.u32 %v5676, 4294901760
    %8228 = vmatpush1.msra.mxu0 %v8227
    %v8229 = vand.u32 %v5679, 4294901760
    %8230 = vmatprep.subr.mxu0 %v8229
    %v8231 = vand.u32 %v5678, 4294901760
    %8232 = vmatpush1.msra.mxu0 %v8231
    %v8233 = vand.u32 %v5681, 4294901760
    %8234 = vmatprep.subr.mxu0 %v8233
    %v8235 = vand.u32 %v5680, 4294901760
    %8236 = vmatpush1.msra.mxu0 %v8235
    %v8237 = vand.u32 %v5683, 4294901760
    %8238 = vmatprep.subr.mxu0 %v8237
    %v8239 = vand.u32 %v5682, 4294901760
    %8240 = vmatpush1.msra.mxu0 %v8239
    %v8241 = vand.u32 %v5685, 4294901760
    %8242 = vmatprep.subr.mxu0 %v8241
    %v8243 = vand.u32 %v5684, 4294901760
    %8244 = vmatpush1.msra.mxu0 %v8243
    %v8245 = vand.u32 %v5687, 4294901760
    %8246 = vmatprep.subr.mxu0 %v8245
    %v8247 = vand.u32 %v5686, 4294901760
    %8248 = vmatpush1.msra.mxu0 %v8247
    %v8249 = vand.u32 %v5689, 4294901760
    %8250 = vmatprep.subr.mxu0 %v8249
    %v8251 = vand.u32 %v5688, 4294901760
    %8252 = vmatpush1.msra.mxu0 %v8251
    %v8253 = vand.u32 %v5691, 4294901760
    %8254 = vmatprep.subr.mxu0 %v8253
    %v8255 = vand.u32 %v5690, 4294901760
    %8256 = vmatpush1.msra.mxu0 %v8255
    %v8257 = vand.u32 %v5693, 4294901760
    %8258 = vmatprep.subr.mxu0 %v8257
    %v8259 = vand.u32 %v5692, 4294901760
    %8260 = vmatpush1.msra.mxu0 %v8259
    %v8261 = vand.u32 %v5695, 4294901760
    %8262 = vmatprep.subr.mxu0 %v8261
    %v8263 = vand.u32 %v5694, 4294901760
    %8264 = vmatpush1.msra.mxu0 %v8263
    %v8265 = vand.u32 %v5697, 4294901760
    %8266 = vmatprep.subr.mxu0 %v8265
    %v8267 = vand.u32 %v5696, 4294901760
    %8268 = vmatpush1.msra.mxu0 %v8267
    %v8269 = vand.u32 %v5569, 4294901760
    %8270 = vmatprep.mubr.f32.mxu0 %v8269
    %v8271 = vand.u32 %v5568, 4294901760
    %8272 = vmatmul.mubr.f32.gmra.mrb[0].mxu0 %v8271
    %v8273 = vpop.f32.mrb[0].mxu0
    %v8274 = vadd.f32 %v8137, %v8273
    %v8275 = vpop.f32.mrb[0].mxu0
    %v8276 = vadd.f32 %v8139, %v8275
    %8277 = vdwg.mxu0
    %v8278 = vmul.f32 %v8274, %v8274
    %v8279 = vmul.f32 %v8276, %v8276
    %vm8280 = vcmask 1041408
    %v8281 = vsel %vm8280, %v8278, 0.0
    %v8282 = vsel %vm8280, %v8279, 0.0
    %v8283 = vadd.f32 %v8281, %v8282
    %8284 = vadd.xlane.f32.xlu0 %v8283
    %v8285 = vpop.xlane.xlu0 %8284
    %v8286 = vrsqrt.pop %v8285
    %v8287 = vmul.f32 %v8285, %v8286
    %vm8288 = vcmp.eq.f32.partialorder %v8285, inf
    %v8289 = vsel %vm8288, %v8285, %v8287
    %vm8290 = vcmp.eq.f32.partialorder %v8285, 0.0
    %v8291 = vand.u32 %v8285, 2147483648
    %v8292 = vsel %vm8290, %v8291, %v8289
    %v8293 = vmax.f32 %v8292, 1e-12
    %v8294 = vrcp.pop %v8293
    %v8295 = vmul.f32 %v8274, %v8294
    %v8296 = vmul.f32 %v8276, %v8294
    %v8299 = vcombine.low %v8295, %v8296
    %v8301 = vunpack.c.l.s4 1983009808
    %v8302 = vunpack.c.0.s8 %v8301
    %v8303 = vlaneseq
    %v8304 = vshrl.u32 %v8303, 7
    %v8305 = vsub.s32 %v8302, %v8304
    %v8306 = vrot.slane %v8299, %v8305
    %8308 = vst [vmem:[#allocation8] sm:$0xf] %v8306
    // Predicated region
    $region46: #{tpu_custom_call.1} parent=1 // pred_check
      _
    $region47: #{tpu_custom_call.1} parent=1 // pred_check_branch
      %8310 = sbr.rel (0) target = $region49
    $region48: #{tpu_custom_call.1} parent=1 // pred_region
      %s8312 = ssub.s32 64, 64
      %8313 = vsyncadd [#allocation4], %s8312
      %s8315 = sshll.u32 [#allocation8], 4
      %s8316 = int_to_ptr.vmem [resolvable:$true] %s8315
      %8318 = dma.vmem_to_hbm [thread:$0]  %s8316, 64, %s8, [#allocation4]
    $region49: #{tpu_custom_call.1} parent=1 // pred_fallthru
      _
    // Predicated region
    $region50: #{tpu_custom_call.1} parent=1 // pred_check
      _
    $region51: #{tpu_custom_call.1} parent=1 // pred_check_branch
      %8320 = sbr.rel (0) target = $region53
    $region52: #{tpu_custom_call.1} parent=1 // pred_region
      %8321 = dma.done [#allocation4], 64
    $region53: #{tpu_custom_call.1} parent=1 // pred_fallthru
      _
    %8322 = vsyncpa [#allocation3], 1
    %8323 = vsyncpa [#allocation6], 1
    %8324 = vsyncpa [#allocation4], 1

</llo_original>
